<compile_context>
chip_gen: v5e
topology: v5e:2x2
jax: 0.10.0
libtpu: 0.0.40
codegen_flags: <defaults>
</compile_context>

<pallas_src>
import functools

import jax
import jax.numpy as jnp
from jax import lax
from jax.experimental import pallas as pl
from jax.experimental.pallas import tpu as pltpu

_EPS = 1e-5


# ----------------------------------------------------------------------------
# tiling helpers
# ----------------------------------------------------------------------------

def _row_tile(R):
    """Largest row tile dividing R that still leaves >= 2 tiles (v7x: 2 TCs)."""
    for cand in (1024, 512, 256, 128, 64, 32, 16, 8):
        if R % cand == 0 and R // cand >= 2:
            return cand
    return R


def _point_tile(N):
    """Largest point tile dividing N (the point axis is a tiled reduction)."""
    for cand in (1024, 512, 256, 128, 64, 32, 16):
        if N % cand == 0:
            return cand
    return N


# ----------------------------------------------------------------------------
# Pallas kernels
# ----------------------------------------------------------------------------

def _pw_conv_kernel(x_ref, w_ref, e_ref, o_ref, *, act):
    """Row-collapsed 1x1 conv: y = post_affine(act(x @ w + b)).
    e_ref packs [bias; post_scale; post_shift] as one (3, Cout) block."""
    x = x_ref[...]                                                 # (tr, Cin)
    y = jnp.dot(x, w_ref[...], preferred_element_type=jnp.float32)
    e = e_ref[...]
    y = y + e[0:1]
    if act == "relu":
        y = jnp.maximum(y, 0.0)
    elif act == "tanh":
        y = jnp.tanh(y)
    y = y * e[1:2] + e[2:3]
    o_ref[...] = y


def pw_conv_rows(x2d, w, b, *, act="relu", post_scale=None, post_shift=None):
    """y[r, :] = post_scale * act(x2d[r, :] @ w + b) + post_shift, rows tiled."""
    R, Cin = x2d.shape
    Cout = w.shape[1]
    if post_scale is None:
        post_scale = jnp.ones((Cout,), jnp.float32)
    if post_shift is None:
        post_shift = jnp.zeros((Cout,), jnp.float32)
    eps = jnp.stack([b.astype(jnp.float32),
                     post_scale.astype(jnp.float32),
                     post_shift.astype(jnp.float32)], axis=0)      # (3, Cout)
    tr = _row_tile(R)
    return pl.pallas_call(
        functools.partial(_pw_conv_kernel, act=act),
        out_shape=jax.ShapeDtypeStruct((R, Cout), jnp.float32),
        grid_spec=pltpu.PrefetchScalarGridSpec(
            num_scalar_prefetch=0,
            grid=(R // tr,),
            in_specs=[
                pl.BlockSpec((tr, Cin), lambda i: (i, 0)),
                pl.BlockSpec((Cin, Cout), lambda i: (0, 0)),
                pl.BlockSpec((3, Cout), lambda i: (0, 0)),
            ],
            out_specs=pl.BlockSpec((tr, Cout), lambda i: (i, 0)),
        ),
        compiler_params=pltpu.CompilerParams(
            dimension_semantics=("parallel",)),
    )(x2d.astype(jnp.float32), w.astype(jnp.float32), eps)


def _tnet_body_kernel(x_ref, w1_ref, b1_ref, w2_ref, b2_ref, w3_ref, b3_ref,
                      o_ref, acc_ref):
    """Fused T-Net body: conv1 -> conv2 -> conv3 (bf16 wide matmul) -> running
    max over point tiles.  Output written once on the last point tile."""
    j = pl.program_id(1)

    @pl.when(j == 0)
    def _():
        acc_ref[...] = jnp.full(acc_ref.shape, -jnp.inf, acc_ref.dtype)

    h = x_ref[0]                                                   # (tn, Cin)
    h = jnp.maximum(jnp.dot(h, w1_ref[...],
                            preferred_element_type=jnp.float32) + b1_ref[...], 0.0)
    h = jnp.maximum(jnp.dot(h, w2_ref[...],
                            preferred_element_type=jnp.float32) + b2_ref[...], 0.0)
    h = jnp.maximum(jnp.dot(h.astype(jnp.bfloat16), w3_ref[...],
                            preferred_element_type=jnp.float32) + b3_ref[...], 0.0)
    acc_ref[...] = jnp.maximum(acc_ref[...], jnp.max(h, axis=0, keepdims=True))

    @pl.when(j == pl.num_programs(1) - 1)
    def _():
        o_ref[0] = acc_ref[...]


def tnet_body(x, w1, b1, w2, b2, w3, b3):
    """x: (B, N, Cin) -> (B, 1024): max over points of the 3-layer conv stack."""
    B, N, Cin = x.shape
    C1, C2, C3 = w1.shape[1], w2.shape[1], w3.shape[1]
    tn = _point_tile(N)
    out = pl.pallas_call(
        _tnet_body_kernel,
        out_shape=jax.ShapeDtypeStruct((B, 1, C3), jnp.float32),
        grid_spec=pltpu.PrefetchScalarGridSpec(
            num_scalar_prefetch=0,
            grid=(B, N // tn),
            in_specs=[
                pl.BlockSpec((1, tn, Cin), lambda i, j: (i, j, 0)),
                pl.BlockSpec((Cin, C1), lambda i, j: (0, 0)),
                pl.BlockSpec((1, C1), lambda i, j: (0, 0)),
                pl.BlockSpec((C1, C2), lambda i, j: (0, 0)),
                pl.BlockSpec((1, C2), lambda i, j: (0, 0)),
                pl.BlockSpec((C2, C3), lambda i, j: (0, 0)),
                pl.BlockSpec((1, C3), lambda i, j: (0, 0)),
            ],
            out_specs=pl.BlockSpec((1, 1, C3), lambda i, j: (i, 0, 0)),
            scratch_shapes=[pltpu.VMEM((1, C3), jnp.float32)],
        ),
        compiler_params=pltpu.CompilerParams(
            dimension_semantics=("parallel", "arbitrary")),
    )(x.astype(jnp.float32),
      w1.astype(jnp.float32), b1.reshape(1, -1).astype(jnp.float32),
      w2.astype(jnp.float32), b2.reshape(1, -1).astype(jnp.float32),
      w3.astype(jnp.bfloat16), b3.reshape(1, -1).astype(jnp.float32))
    return out[:, 0, :]


def _fe_tail_kernel(x_ref, w4_ref, b4_ref, w5_ref, e5_ref, bn_ref,
                    o_ref, acc_ref):
    """Fused FE tail: conv4 -> conv5 (bf16) -> per-point conv5_bn affine ->
    running max over point tiles -> bn1 affine at finalize."""
    j = pl.program_id(1)

    @pl.when(j == 0)
    def _():
        acc_ref[...] = jnp.full(acc_ref.shape, -jnp.inf, acc_ref.dtype)

    x = x_ref[0]                                                   # (tn, 128) bf16
    y = jnp.dot(x, w4_ref[...], preferred_element_type=jnp.float32)
    y = jnp.maximum(y + b4_ref[...], 0.0)                          # conv4 + BN + relu
    e5 = e5_ref[...]
    z = jnp.dot(y.astype(jnp.bfloat16), w5_ref[...],
                preferred_element_type=jnp.float32)
    z = jnp.maximum(z + e5[0:1], 0.0)                              # conv5 + BN + relu
    z = z * e5[1:2] + e5[2:3]                                      # conv5_bn per point
    acc_ref[...] = jnp.maximum(acc_ref[...], jnp.max(z, axis=0, keepdims=True))

    @pl.when(j == pl.num_programs(1) - 1)
    def _():
        bn = bn_ref[...]
        o_ref[0] = acc_ref[...] * bn[0:1] + bn[1:2]                # bn1 after max


def fe_tail(h, w4, b4, w5, b5, post5_scale, post5_shift, bn1_scale, bn1_shift):
    """h: (B, N, 128) -> (B, 1024)."""
    B, N, Cin = h.shape
    C4, C5 = w4.shape[1], w5.shape[1]
    tn = _point_tile(N)
    e5 = jnp.stack([b5, post5_scale, post5_shift], axis=0).astype(jnp.float32)
    bn = jnp.stack([bn1_scale, bn1_shift], axis=0).astype(jnp.float32)
    out = pl.pallas_call(
        _fe_tail_kernel,
        out_shape=jax.ShapeDtypeStruct((B, 1, C5), jnp.float32),
        grid_spec=pltpu.PrefetchScalarGridSpec(
            num_scalar_prefetch=0,
            grid=(B, N // tn),
            in_specs=[
                pl.BlockSpec((1, tn, Cin), lambda i, j: (i, j, 0)),
                pl.BlockSpec((Cin, C4), lambda i, j: (0, 0)),
                pl.BlockSpec((1, C4), lambda i, j: (0, 0)),
                pl.BlockSpec((C4, C5), lambda i, j: (0, 0)),
                pl.BlockSpec((3, C5), lambda i, j: (0, 0)),
                pl.BlockSpec((2, C5), lambda i, j: (0, 0)),
            ],
            out_specs=pl.BlockSpec((1, 1, C5), lambda i, j: (i, 0, 0)),
            scratch_shapes=[pltpu.VMEM((1, C5), jnp.float32)],
        ),
        compiler_params=pltpu.CompilerParams(
            dimension_semantics=("parallel", "arbitrary")),
    )(h.astype(jnp.bfloat16), w4.astype(jnp.bfloat16),
      b4.reshape(1, -1).astype(jnp.float32),
      w5.astype(jnp.bfloat16), e5, bn)
    return out[:, 0, :]


def _bmm_kernel(x_ref, t_ref, o_ref):
    o_ref[0] = jnp.dot(x_ref[0], t_ref[0], preferred_element_type=jnp.float32)


def bmm(x, t):
    """Batched (N, K) @ (K, K) — used only for the K=64 transform."""
    B, N, K = x.shape
    return pl.pallas_call(
        _bmm_kernel,
        out_shape=jax.ShapeDtypeStruct((B, N, K), jnp.float32),
        grid_spec=pltpu.PrefetchScalarGridSpec(
            num_scalar_prefetch=0,
            grid=(B,),
            in_specs=[pl.BlockSpec((1, N, K), lambda i: (i, 0, 0)),
                      pl.BlockSpec((1, K, K), lambda i: (i, 0, 0))],
            out_specs=pl.BlockSpec((1, N, K), lambda i: (i, 0, 0)),
        ),
        compiler_params=pltpu.CompilerParams(dimension_semantics=("parallel",)),
    )(x.astype(jnp.float32), t.astype(jnp.float32))


# ----------------------------------------------------------------------------
# Parameter initialization (deterministic, synthetic) + BN folding
# ----------------------------------------------------------------------------

def _conv_bn_params(key, cin, cout):
    ks = jax.random.split(key, 6)
    return dict(
        w=0.1 * jax.random.normal(ks[0], (cin, cout), jnp.float32),
        b=0.1 * jax.random.normal(ks[1], (cout,), jnp.float32),
        gamma=1.0 + 0.1 * jax.random.normal(ks[2], (cout,), jnp.float32),
        beta=0.1 * jax.random.normal(ks[3], (cout,), jnp.float32),
        mean=0.1 * jax.random.normal(ks[4], (cout,), jnp.float32),
        var=0.9 + 0.2 * jax.random.uniform(ks[5], (cout,), jnp.float32),
    )


def _bn_params(key, c):
    ks = jax.random.split(key, 4)
    return dict(
        gamma=1.0 + 0.1 * jax.random.normal(ks[0], (c,), jnp.float32),
        beta=0.1 * jax.random.normal(ks[1], (c,), jnp.float32),
        mean=0.1 * jax.random.normal(ks[2], (c,), jnp.float32),
        var=0.9 + 0.2 * jax.random.uniform(ks[3], (c,), jnp.float32),
    )


def _bn_affine(p):
    scale = p["gamma"] / jnp.sqrt(p["var"] + _EPS)
    shift = p["beta"] - p["mean"] * scale
    return scale, shift


def _fold_conv_bn(p):
    # conv -> BN (pre-activation) folded into one matmul + bias
    scale, shift = _bn_affine(p)
    return p["w"] * scale[None, :], p["b"] * scale + shift


# ----------------------------------------------------------------------------
# transform_net (T-Net)
# ----------------------------------------------------------------------------

def _transform_net_params(key, cin, K):
    ks = jax.random.split(key, 7)
    return dict(
        c1=_conv_bn_params(ks[0], cin, 64),
        c2=_conv_bn_params(ks[1], 64, 128),
        c3=_conv_bn_params(ks[2], 128, 1024),
        fc1=_conv_bn_params(ks[3], 1024, 512),   # fc_layer = Linear + BN1d + ReLU
        fc2=_conv_bn_params(ks[4], 512, 256),
        fc3_w=0.1 * jax.random.normal(ks[5], (256, K * K), jnp.float32),
        fc3_b=0.1 * jax.random.normal(ks[6], (K * K,), jnp.float32),
    )


def transform_net_forward(p, x, K):
    # x: (B, N, Cin) channels-last
    B = x.shape[0]
    w1, b1 = _fold_conv_bn(p["c1"])
    w2, b2 = _fold_conv_bn(p["c2"])
    w3, b3 = _fold_conv_bn(p["c3"])
    g = tnet_body(x, w1, b1, w2, b2, w3, b3)                     # (B, 1024) fused
    # fc head operates on (B, C) only -> plain JAX (no kernel launch worth it)
    fw1, fb1 = _fold_conv_bn(p["fc1"])
    fw2, fb2 = _fold_conv_bn(p["fc2"])
    g = jnp.maximum(g @ fw1 + fb1, 0.0)                          # (B, 512)
    g = jnp.maximum(g @ fw2 + fb2, 0.0)                          # (B, 256)
    # fc3 + identity: +eye(K) folded exactly into the linear bias
    b3f = p["fc3_b"] + jnp.eye(K, dtype=jnp.float32).reshape(-1)
    g = g @ p["fc3_w"] + b3f                                     # (B, K*K)
    return g.reshape(B, K, K)


# ----------------------------------------------------------------------------
# adapt_layer_off helpers (index construction is data-dependent -> plain JAX)
# ----------------------------------------------------------------------------

NUM_NODE = 64
NSAMPLE = 64
RADIUS = 0.3


def farthest_point_sample(pts, num_node):
    # pts: (B, N, 3) -> (B, num_node) int32
    # TODO(synk): PyTorch FPS starts from a random point; start from index 0 here.
    B, N, _ = pts.shape
    barange = jnp.arange(B)

    def body(i, state):
        idxs, dists, far = state
        idxs = idxs.at[:, i].set(far)
        centroid = pts[barange, far][:, None, :]          # (B, 1, 3)
        d = jnp.sum((pts - centroid) ** 2, axis=-1)       # (B, N)
        dists = jnp.minimum(dists, d)
        far = jnp.argmax(dists, axis=-1).astype(jnp.int32)
        return idxs, dists, far

    idxs0 = jnp.zeros((B, num_node), jnp.int32)
    dists0 = jnp.full((B, N), 1e10, jnp.float32)
    far0 = jnp.zeros((B,), jnp.int32)
    idxs, _, _ = lax.fori_loop(0, num_node, body, (idxs0, dists0, far0))
    return idxs


def index_points(points, idx):
    # points: (B, N, C); idx: (B, ...) -> (B, ..., C)
    B = points.shape[0]
    bidx = jnp.arange(B).reshape((B,) + (1,) * (idx.ndim - 1))
    return points[bidx, idx]


def query_ball_point(radius, nsample, xyz, new_xyz):
    # xyz: (B, N, 3), new_xyz: (B, S, 3) -> (B, S, nsample) int32
    B, N, _ = xyz.shape
    S = new_xyz.shape[1]
    sqrdists = jnp.sum((new_xyz[:, :, None, :] - xyz[:, None, :, :]) ** 2, -1)
    gidx = jnp.broadcast_to(jnp.arange(N, dtype=jnp.int32), (B, S, N))
    gidx = jnp.where(sqrdists > radius ** 2, jnp.int32(N), gidx)
    gidx = jnp.sort(gidx, axis=-1)[:, :, :nsample]
    first = gidx[:, :, :1]
    return jnp.where(gidx == N, first, gidx)


def _adapt_params(key):
    ks = jax.random.split(key, 3)
    return dict(
        trans=_conv_bn_params(ks[0], 64, 64),      # conv_2d(64, 64, 1)
        residual=_conv_bn_params(ks[1], 64, 64),   # conv_2d(64, 64, 1)
        off_w=0.1 * jax.random.normal(ks[2], (64, 3), jnp.float32),  # Conv2d(64,3,1,bias=False)
    )


def adapt_layer_off_forward(p, fea, loc):
    # fea: (B, N, 64) channels-last, loc: (B, 3, N) (the PyTorch x_loc)
    # TODO(synk): adapt_layer_off internals (model_utils.py) were not provided;
    # this is a reconstruction of PointDAN's SA-node module: FPS -> ball-query
    # grouping -> tanh offset prediction -> node-feature max-pool -> nearest-node
    # upsample, concatenated with a residual 1x1-conv branch (64 + 64 = 128 ch).
    B, N, C = fea.shape
    pts = jnp.transpose(loc, (0, 2, 1))                          # (B, N, 3)

    fidx = farthest_point_sample(pts, NUM_NODE)                  # (B, S)
    floc = index_points(pts, fidx)                               # (B, S, 3)
    ffea = index_points(fea, fidx)                               # (B, S, 64)
    gidx = query_ball_point(RADIUS, NSAMPLE, pts, floc)          # (B, S, K)
    gfea = index_points(fea, gidx) - ffea[:, :, None, :]         # (B, S, K, 64)
    flat = gfea.reshape(B * NUM_NODE * NSAMPLE, C)

    # offset branch: Cout=3 conv + tanh -> plain JAX (a kernel would force
    # masked sub-128-lane stores and a nearly empty MXU pass)
    sem = jnp.tanh(flat @ p["off_w"]).reshape(B, NUM_NODE, NSAMPLE, 3)
    gloc = index_points(pts, gidx) - floc[:, :, None, :]         # (B, S, K, 3)
    node_off = sem + gloc

    # node features: conv_2d(64,64) on grouped features as ONE row-collapsed
    # Pallas matmul; the max over the group is a single fused XLA reduce
    # (replaces the previous 128-step max_over_points kernel launch storm).
    wt, bt = _fold_conv_bn(p["trans"])
    nfea = pw_conv_rows(flat, wt, bt, act="relu")                # (B*S*K, 64)
    nfea = jnp.max(nfea.reshape(B, NUM_NODE, NSAMPLE, C), axis=2)  # (B, S, 64)

    # nearest-node interpolation back to all N points
    d = jnp.sum((pts[:, :, None, :] - floc[:, None, :, :]) ** 2, axis=-1)
    nn = jnp.argmin(d, axis=-1)                                  # (B, N)
    interp = index_points(nfea, nn)                              # (B, N, 64)

    wr, br = _fold_conv_bn(p["residual"])
    res = pw_conv_rows(fea.reshape(B * N, C), wr, br, act="relu").reshape(B, N, C)
    out = jnp.concatenate([interp, res], axis=-1)                # (B, N, 128)
    return out, nfea, node_off


# ----------------------------------------------------------------------------
# FE module
# ----------------------------------------------------------------------------

def init_fe_params(key):
    ks = jax.random.split(key, 12)
    return dict(
        tnet1=_transform_net_params(ks[0], 3, 3),
        tnet2=_transform_net_params(ks[1], 64, 64),
        conv1=_conv_bn_params(ks[2], 3, 64),
        conv1_bn=_bn_params(ks[3], 64),
        conv2=_conv_bn_params(ks[4], 64, 64),
        conv2_bn=_bn_params(ks[5], 64),
        adapt=_adapt_params(ks[6]),
        conv4=_conv_bn_params(ks[7], 128, 128),
        conv4_bn=_bn_params(ks[8], 128),
        conv5=_conv_bn_params(ks[9], 128, 1024),
        conv5_bn=_bn_params(ks[10], 1024),
        bn1=_bn_params(ks[11], 1024),
    )


def fe_forward(params, x):
    # x: (B, 3, N, 1) — PyTorch NCHW point-cloud input
    B = x.shape[0]
    x_loc = x[..., 0]                                            # (B, 3, N)
    pts = jnp.transpose(x_loc, (0, 2, 1))                        # (B, N, 3)
    N = pts.shape[1]

    # T-Net 1; the (N,3)@(3,3) bmm is pure launch overhead as a kernel -> JAX
    t1 = transform_net_forward(params["tnet1"], pts, 3)          # (B, 3, 3)
    h = jnp.einsum("bnc,bck->bnk", pts, t1)                      # (B, N, 3)

    # conv1 (+pre-BN+relu); conv1_bn is folded into conv2's matmul (exact)
    w1, b1 = _fold_conv_bn(params["conv1"])
    s1, t1a = _bn_affine(params["conv1_bn"])
    h = pw_conv_rows(h.reshape(B * N, 3), w1, b1, act="relu")    # (B*N, 64)

    w2f, b2f = _fold_conv_bn(params["conv2"])
    b2f = b2f + t1a @ w2f
    w2f = s1[:, None] * w2f
    s2, t2a = _bn_affine(params["conv2_bn"])
    h = pw_conv_rows(h, w2f, b2f, act="relu",
                     post_scale=s2, post_shift=t2a)              # (B*N, 64)
    h = h.reshape(B, N, 64)

    # T-Net 2 + K=64 feature transform (Pallas bmm)
    t2 = transform_net_forward(params["tnet2"], h, 64)           # (B, 64, 64)
    h = bmm(h, t2)                                               # (B, N, 64)

    # adapt_layer_off
    h, _node_fea, _node_off = adapt_layer_off_forward(params["adapt"], h, x_loc)

    # fused tail: conv4 -> conv5 -> max over points -> bn1 (one kernel)
    w4f, b4f = _fold_conv_bn(params["conv4"])
    s4, t4a = _bn_affine(params["conv4_bn"])
    w5f, b5f = _fold_conv_bn(params["conv5"])
    b5f = b5f + t4a @ w5f                 # fold conv4_bn into conv5 (exact)
    w5f = s4[:, None] * w5f
    s5, t5a = _bn_affine(params["conv5_bn"])
    sb, tb = _bn_affine(params["bn1"])
    return fe_tail(h, w4f, b4f, w5f, b5f, s5, t5a, sb, tb)       # (B, 1024)


if __name__ == "__main__":
    key = jax.random.PRNGKey(0)
    kx, kp = jax.random.split(key)
    B, N = 2, 128
    x = jax.random.normal(kx, (B, 3, N, 1), jnp.float32)
    params = init_fe_params(kp)

    out = jax.jit(fe_forward)(params, x)
    out = jax.block_until_ready(out)
    assert out.shape == (B, 1024) and out.dtype == jnp.float32
    assert bool(jnp.all(jnp.isfinite(out)))
    print("KERNEL_OK")
</pallas_src>

<mosaic_0001>
module attributes {stable_mosaic.version = 11 : i64} {
  func.func @_tnet_body_kernel(%arg0: i32, %arg1: i32, %arg2: memref<1x128x3xf32, #tpu.memory_space<vmem>>, %arg3: memref<3x64xf32, #tpu.memory_space<vmem>>, %arg4: memref<1x64xf32, #tpu.memory_space<vmem>>, %arg5: memref<64x128xf32, #tpu.memory_space<vmem>>, %arg6: memref<1x128xf32, #tpu.memory_space<vmem>>, %arg7: memref<128x1024xbf16, #tpu.memory_space<vmem>>, %arg8: memref<1x1024xf32, #tpu.memory_space<vmem>>, %arg9: memref<1x1x1024xf32, #tpu.memory_space<vmem>>, %arg10: memref<1x1024xf32, #tpu.memory_space<vmem>>) attributes {dimension_semantics = [#tpu.dimension_semantics<parallel>, #tpu.dimension_semantics<arbitrary>], iteration_bounds = array<i64: 2, 1>, scalar_prefetch = 0 : i64, scratch_operands = 1 : i64, tpu.core_type = #tpu.core_type<tc>, window_params = [{transform_indices = @transform_0, window_bounds = array<i64: 1, 128, 3>}, {pipeline_mode = #tpu.pipeline_mode<synchronous>, transform_indices = @transform_1, window_bounds = array<i64: 3, 64>}, {pipeline_mode = #tpu.pipeline_mode<synchronous>, transform_indices = @transform_2, window_bounds = array<i64: 1, 64>}, {pipeline_mode = #tpu.pipeline_mode<synchronous>, transform_indices = @transform_3, window_bounds = array<i64: 64, 128>}, {pipeline_mode = #tpu.pipeline_mode<synchronous>, transform_indices = @transform_4, window_bounds = array<i64: 1, 128>}, {pipeline_mode = #tpu.pipeline_mode<synchronous>, transform_indices = @transform_5, window_bounds = array<i64: 128, 1024>}, {pipeline_mode = #tpu.pipeline_mode<synchronous>, transform_indices = @transform_6, window_bounds = array<i64: 1, 1024>}, {transform_indices = @transform_7, window_bounds = array<i64: 1, 1, 1024>}]} {
    %c0_i32 = arith.constant 0 : i32
    %0 = arith.cmpi eq, %arg1, %c0_i32 : i32
    %1 = arith.extui %0 : i1 to i32
    %c0_i32_0 = arith.constant 0 : i32
    %2 = arith.cmpi ne, %1, %c0_i32_0 : i32
    scf.if %2 {
      %cst_27 = arith.constant 0xFF800000 : f32
      %35 = vector.broadcast %cst_27 : f32 to vector<1x1024xf32>
      %c0_28 = arith.constant 0 : index
      %c0_29 = arith.constant 0 : index
      %36 = vector.load %arg10[%c0_28, %c0_29] : memref<1x1024xf32, #tpu.memory_space<vmem>>, vector<1x1024xf32>
      tpu.vector_store %arg10[%c0_28, %c0_29], %35 {strides = array<i32>} : memref<1x1024xf32, #tpu.memory_space<vmem>>, vector<1x1024xf32>,
    } else {
    }
    %c0 = arith.constant 0 : index
    %c0_1 = arith.constant 0 : index
    %c0_2 = arith.constant 0 : index
    %3 = vector.load %arg2[%c0, %c0_1, %c0_2] : memref<1x128x3xf32, #tpu.memory_space<vmem>>, vector<1x128x3xf32>
    %4 = vector.shape_cast %3 : vector<1x128x3xf32> to vector<128x3xf32>
    %c0_3 = arith.constant 0 : index
    %c0_4 = arith.constant 0 : index
    %5 = vector.load %arg3[%c0_3, %c0_4] : memref<3x64xf32, #tpu.memory_space<vmem>>, vector<3x64xf32>
    %cst = arith.constant dense<0.000000e+00> : vector<128x64xf32>
    %6 = tpu.matmul %4, %5, %cst {dimension_numbers = #tpu.dot_dimension_numbers<[1], [0], [0], [1], [0, 0, 1, 1], [], []>} : vector<128x3xf32>, vector<3x64xf32>, vector<128x64xf32> -> vector<128x64xf32>
    %c0_5 = arith.constant 0 : index
    %c0_6 = arith.constant 0 : index
    %7 = vector.load %arg4[%c0_5, %c0_6] : memref<1x64xf32, #tpu.memory_space<vmem>>, vector<1x64xf32>
    %8 = vector.broadcast %7 : vector<1x64xf32> to vector<128x64xf32>
    %9 = arith.addf %6, %8 : vector<128x64xf32>
    %cst_7 = arith.constant 0.000000e+00 : f32
    %10 = vector.broadcast %cst_7 : f32 to vector<128x64xf32>
    %11 = arith.maximumf %9, %10 : vector<128x64xf32>
    %c0_8 = arith.constant 0 : index
    %c0_9 = arith.constant 0 : index
    %12 = vector.load %arg5[%c0_8, %c0_9] : memref<64x128xf32, #tpu.memory_space<vmem>>, vector<64x128xf32>
    %cst_10 = arith.constant dense<0.000000e+00> : vector<128x128xf32>
    %13 = tpu.matmul %11, %12, %cst_10 {dimension_numbers = #tpu.dot_dimension_numbers<[1], [0], [0], [1], [0, 0, 1, 1], [], []>} : vector<128x64xf32>, vector<64x128xf32>, vector<128x128xf32> -> vector<128x128xf32>
    %c0_11 = arith.constant 0 : index
    %c0_12 = arith.constant 0 : index
    %14 = vector.load %arg6[%c0_11, %c0_12] : memref<1x128xf32, #tpu.memory_space<vmem>>, vector<1x128xf32>
    %15 = vector.broadcast %14 : vector<1x128xf32> to vector<128x128xf32>
    %16 = arith.addf %13, %15 : vector<128x128xf32>
    %cst_13 = arith.constant 0.000000e+00 : f32
    %17 = vector.broadcast %cst_13 : f32 to vector<128x128xf32>
    %18 = arith.maximumf %16, %17 : vector<128x128xf32>
    %19 = arith.truncf %18 : vector<128x128xf32> to vector<128x128xbf16>
    %c0_14 = arith.constant 0 : index
    %c0_15 = arith.constant 0 : index
    %20 = vector.load %arg7[%c0_14, %c0_15] : memref<128x1024xbf16, #tpu.memory_space<vmem>>, vector<128x1024xbf16>
    %cst_16 = arith.constant dense<0.000000e+00> : vector<128x1024xf32>
    %21 = tpu.matmul %19, %20, %cst_16 {dimension_numbers = #tpu.dot_dimension_numbers<[1], [0], [0], [1], [0, 0, 1, 1], [], []>} : vector<128x128xbf16>, vector<128x1024xbf16>, vector<128x1024xf32> -> vector<128x1024xf32>
    %c0_17 = arith.constant 0 : index
    %c0_18 = arith.constant 0 : index
    %22 = vector.load %arg8[%c0_17, %c0_18] : memref<1x1024xf32, #tpu.memory_space<vmem>>, vector<1x1024xf32>
    %23 = vector.broadcast %22 : vector<1x1024xf32> to vector<128x1024xf32>
    %24 = arith.addf %21, %23 : vector<128x1024xf32>
    %cst_19 = arith.constant 0.000000e+00 : f32
    %25 = vector.broadcast %cst_19 : f32 to vector<128x1024xf32>
    %26 = arith.maximumf %24, %25 : vector<128x1024xf32>
    %c0_20 = arith.constant 0 : index
    %c0_21 = arith.constant 0 : index
    %27 = vector.load %arg10[%c0_20, %c0_21] : memref<1x1024xf32, #tpu.memory_space<vmem>>, vector<1x1024xf32>
    %cst_22 = arith.constant dense<0xFF800000> : vector<1024xf32>
    %28 = vector.multi_reduction <maximumf>, %26, %cst_22 [0] : vector<128x1024xf32> to vector<1024xf32>
    %29 = vector.shape_cast %28 : vector<1024xf32> to vector<1x1024xf32>
    %30 = arith.maximumf %27, %29 : vector<1x1024xf32>
    %c0_23 = arith.constant 0 : index
    %c0_24 = arith.constant 0 : index
    %31 = vector.load %arg10[%c0_23, %c0_24] : memref<1x1024xf32, #tpu.memory_space<vmem>>, vector<1x1024xf32>
    tpu.vector_store %arg10[%c0_23, %c0_24], %30 {strides = array<i32>} : memref<1x1024xf32, #tpu.memory_space<vmem>>, vector<1x1024xf32>,
    %c0_i32_25 = arith.constant 0 : i32
    %32 = arith.cmpi eq, %arg1, %c0_i32_25 : i32
    %33 = arith.extui %32 : i1 to i32
    %c0_i32_26 = arith.constant 0 : i32
    %34 = arith.cmpi ne, %33, %c0_i32_26 : i32
    scf.if %34 {
      %c0_27 = arith.constant 0 : index
      %c0_28 = arith.constant 0 : index
      %35 = vector.load %arg10[%c0_27, %c0_28] : memref<1x1024xf32, #tpu.memory_space<vmem>>, vector<1x1024xf32>
      %c0_29 = arith.constant 0 : index
      %c0_30 = arith.constant 0 : index
      %c0_31 = arith.constant 0 : index
      %36 = vector.load %arg9[%c0_29, %c0_30, %c0_31] : memref<1x1x1024xf32, #tpu.memory_space<vmem>>, vector<1x1x1024xf32>
      %37 = vector.shape_cast %36 : vector<1x1x1024xf32> to vector<1x1024xf32>
      %38 = vector.shape_cast %35 : vector<1x1024xf32> to vector<1x1x1024xf32>
      tpu.vector_store %arg9[%c0_29, %c0_30, %c0_31], %38 {strides = array<i32>} : memref<1x1x1024xf32, #tpu.memory_space<vmem>>, vector<1x1x1024xf32>,
    } else {
    }
    return
  }
  func.func @transform_0(%arg0: i32, %arg1: i32) -> (i32, i32, i32) {
    %c0_i32 = arith.constant 0 : i32
    %c0_i32_0 = arith.constant 0 : i32
    return %arg0, %arg1, %c0_i32 : i32, i32, i32
  }
  func.func @transform_1(%arg0: i32, %arg1: i32) -> (i32, i32) {
    %c0_i32 = arith.constant 0 : i32
    %c0_i32_0 = arith.constant 0 : i32
    %c0_i32_1 = arith.constant 0 : i32
    return %c0_i32, %c0_i32_0 : i32, i32
  }
  func.func @transform_2(%arg0: i32, %arg1: i32) -> (i32, i32) {
    %c0_i32 = arith.constant 0 : i32
    %c0_i32_0 = arith.constant 0 : i32
    %c0_i32_1 = arith.constant 0 : i32
    return %c0_i32, %c0_i32_0 : i32, i32
  }
  func.func @transform_3(%arg0: i32, %arg1: i32) -> (i32, i32) {
    %c0_i32 = arith.constant 0 : i32
    %c0_i32_0 = arith.constant 0 : i32
    %c0_i32_1 = arith.constant 0 : i32
    return %c0_i32, %c0_i32_0 : i32, i32
  }
  func.func @transform_4(%arg0: i32, %arg1: i32) -> (i32, i32) {
    %c0_i32 = arith.constant 0 : i32
    %c0_i32_0 = arith.constant 0 : i32
    %c0_i32_1 = arith.constant 0 : i32
    return %c0_i32, %c0_i32_0 : i32, i32
  }
  func.func @transform_5(%arg0: i32, %arg1: i32) -> (i32, i32) {
    %c0_i32 = arith.constant 0 : i32
    %c0_i32_0 = arith.constant 0 : i32
    %c0_i32_1 = arith.constant 0 : i32
    return %c0_i32, %c0_i32_0 : i32, i32
  }
  func.func @transform_6(%arg0: i32, %arg1: i32) -> (i32, i32) {
    %c0_i32 = arith.constant 0 : i32
    %c0_i32_0 = arith.constant 0 : i32
    %c0_i32_1 = arith.constant 0 : i32
    return %c0_i32, %c0_i32_0 : i32, i32
  }
  func.func @transform_7(%arg0: i32, %arg1: i32) -> (i32, i32, i32) {
    %c0_i32 = arith.constant 0 : i32
    %c0_i32_0 = arith.constant 0 : i32
    %c0_i32_1 = arith.constant 0 : i32
    return %arg0, %c0_i32, %c0_i32_0 : i32, i32, i32
  }
}

module attributes {stable_mosaic.version = 11 : i64} {
  func.func @_pw_conv_kernel(%arg0: i32, %arg1: memref<128x3xf32, #tpu.memory_space<vmem>>, %arg2: memref<3x64xf32, #tpu.memory_space<vmem>>, %arg3: memref<3x64xf32, #tpu.memory_space<vmem>>, %arg4: memref<128x64xf32, #tpu.memory_space<vmem>>) attributes {dimension_semantics = [#tpu.dimension_semantics<parallel>], iteration_bounds = array<i64: 2>, scalar_prefetch = 0 : i64, scratch_operands = 0 : i64, tpu.core_type = #tpu.core_type<tc>, window_params = [{transform_indices = @transform_0, window_bounds = array<i64: 128, 3>}, {pipeline_mode = #tpu.pipeline_mode<synchronous>, transform_indices = @transform_1, window_bounds = array<i64: 3, 64>}, {pipeline_mode = #tpu.pipeline_mode<synchronous>, transform_indices = @transform_2, window_bounds = array<i64: 3, 64>}, {transform_indices = @transform_3, window_bounds = array<i64: 128, 64>}]} {
    %c0 = arith.constant 0 : index
    %c0_0 = arith.constant 0 : index
    %0 = vector.load %arg1[%c0, %c0_0] : memref<128x3xf32, #tpu.memory_space<vmem>>, vector<128x3xf32>
    %c0_1 = arith.constant 0 : index
    %c0_2 = arith.constant 0 : index
    %1 = vector.load %arg2[%c0_1, %c0_2] : memref<3x64xf32, #tpu.memory_space<vmem>>, vector<3x64xf32>
    %cst = arith.constant dense<0.000000e+00> : vector<128x64xf32>
    %2 = tpu.matmul %0, %1, %cst {dimension_numbers = #tpu.dot_dimension_numbers<[1], [0], [0], [1], [0, 0, 1, 1], [], []>} : vector<128x3xf32>, vector<3x64xf32>, vector<128x64xf32> -> vector<128x64xf32>
    %c0_3 = arith.constant 0 : index
    %c0_4 = arith.constant 0 : index
    %3 = vector.load %arg3[%c0_3, %c0_4] : memref<3x64xf32, #tpu.memory_space<vmem>>, vector<3x64xf32>
    %4 = vector.extract_strided_slice %3 {offsets = [0, 0], sizes = [1, 64], strides = [1, 1]} : vector<3x64xf32> to vector<1x64xf32>
    %5 = vector.broadcast %4 : vector<1x64xf32> to vector<128x64xf32>
    %6 = arith.addf %2, %5 : vector<128x64xf32>
    %cst_5 = arith.constant 0.000000e+00 : f32
    %7 = vector.broadcast %cst_5 : f32 to vector<128x64xf32>
    %8 = arith.maximumf %6, %7 : vector<128x64xf32>
    %9 = vector.extract_strided_slice %3 {offsets = [1, 0], sizes = [1, 64], strides = [1, 1]} : vector<3x64xf32> to vector<1x64xf32>
    %10 = vector.broadcast %9 : vector<1x64xf32> to vector<128x64xf32>
    %11 = arith.mulf %8, %10 : vector<128x64xf32>
    %12 = vector.extract_strided_slice %3 {offsets = [2, 0], sizes = [1, 64], strides = [1, 1]} : vector<3x64xf32> to vector<1x64xf32>
    %13 = vector.broadcast %12 : vector<1x64xf32> to vector<128x64xf32>
    %14 = arith.addf %11, %13 : vector<128x64xf32>
    %c0_6 = arith.constant 0 : index
    %c0_7 = arith.constant 0 : index
    %15 = vector.load %arg4[%c0_6, %c0_7] : memref<128x64xf32, #tpu.memory_space<vmem>>, vector<128x64xf32>
    tpu.vector_store %arg4[%c0_6, %c0_7], %14 {strides = array<i32>} : memref<128x64xf32, #tpu.memory_space<vmem>>, vector<128x64xf32>,
    return
  }
  func.func @transform_0(%arg0: i32) -> (i32, i32) {
    %c0_i32 = arith.constant 0 : i32
    %c0_i32_0 = arith.constant 0 : i32
    return %arg0, %c0_i32 : i32, i32
  }
  func.func @transform_1(%arg0: i32) -> (i32, i32) {
    %c0_i32 = arith.constant 0 : i32
    %c0_i32_0 = arith.constant 0 : i32
    %c0_i32_1 = arith.constant 0 : i32
    return %c0_i32, %c0_i32_0 : i32, i32
  }
  func.func @transform_2(%arg0: i32) -> (i32, i32) {
    %c0_i32 = arith.constant 0 : i32
    %c0_i32_0 = arith.constant 0 : i32
    %c0_i32_1 = arith.constant 0 : i32
    return %c0_i32, %c0_i32_0 : i32, i32
  }
  func.func @transform_3(%arg0: i32) -> (i32, i32) {
    %c0_i32 = arith.constant 0 : i32
    %c0_i32_0 = arith.constant 0 : i32
    return %arg0, %c0_i32 : i32, i32
  }
}

module attributes {stable_mosaic.version = 11 : i64} {
  func.func @_pw_conv_kernel(%arg0: i32, %arg1: memref<128x64xf32, #tpu.memory_space<vmem>>, %arg2: memref<64x64xf32, #tpu.memory_space<vmem>>, %arg3: memref<3x64xf32, #tpu.memory_space<vmem>>, %arg4: memref<128x64xf32, #tpu.memory_space<vmem>>) attributes {dimension_semantics = [#tpu.dimension_semantics<parallel>], iteration_bounds = array<i64: 2>, scalar_prefetch = 0 : i64, scratch_operands = 0 : i64, tpu.core_type = #tpu.core_type<tc>, window_params = [{transform_indices = @transform_0, window_bounds = array<i64: 128, 64>}, {pipeline_mode = #tpu.pipeline_mode<synchronous>, transform_indices = @transform_1, window_bounds = array<i64: 64, 64>}, {pipeline_mode = #tpu.pipeline_mode<synchronous>, transform_indices = @transform_2, window_bounds = array<i64: 3, 64>}, {transform_indices = @transform_3, window_bounds = array<i64: 128, 64>}]} {
    %c0 = arith.constant 0 : index
    %c0_0 = arith.constant 0 : index
    %0 = vector.load %arg1[%c0, %c0_0] : memref<128x64xf32, #tpu.memory_space<vmem>>, vector<128x64xf32>
    %c0_1 = arith.constant 0 : index
    %c0_2 = arith.constant 0 : index
    %1 = vector.load %arg2[%c0_1, %c0_2] : memref<64x64xf32, #tpu.memory_space<vmem>>, vector<64x64xf32>
    %cst = arith.constant dense<0.000000e+00> : vector<128x64xf32>
    %2 = tpu.matmul %0, %1, %cst {dimension_numbers = #tpu.dot_dimension_numbers<[1], [0], [0], [1], [0, 0, 1, 1], [], []>} : vector<128x64xf32>, vector<64x64xf32>, vector<128x64xf32> -> vector<128x64xf32>
    %c0_3 = arith.constant 0 : index
    %c0_4 = arith.constant 0 : index
    %3 = vector.load %arg3[%c0_3, %c0_4] : memref<3x64xf32, #tpu.memory_space<vmem>>, vector<3x64xf32>
    %4 = vector.extract_strided_slice %3 {offsets = [0, 0], sizes = [1, 64], strides = [1, 1]} : vector<3x64xf32> to vector<1x64xf32>
    %5 = vector.broadcast %4 : vector<1x64xf32> to vector<128x64xf32>
    %6 = arith.addf %2, %5 : vector<128x64xf32>
    %cst_5 = arith.constant 0.000000e+00 : f32
    %7 = vector.broadcast %cst_5 : f32 to vector<128x64xf32>
    %8 = arith.maximumf %6, %7 : vector<128x64xf32>
    %9 = vector.extract_strided_slice %3 {offsets = [1, 0], sizes = [1, 64], strides = [1, 1]} : vector<3x64xf32> to vector<1x64xf32>
    %10 = vector.broadcast %9 : vector<1x64xf32> to vector<128x64xf32>
    %11 = arith.mulf %8, %10 : vector<128x64xf32>
    %12 = vector.extract_strided_slice %3 {offsets = [2, 0], sizes = [1, 64], strides = [1, 1]} : vector<3x64xf32> to vector<1x64xf32>
    %13 = vector.broadcast %12 : vector<1x64xf32> to vector<128x64xf32>
    %14 = arith.addf %11, %13 : vector<128x64xf32>
    %c0_6 = arith.constant 0 : index
    %c0_7 = arith.constant 0 : index
    %15 = vector.load %arg4[%c0_6, %c0_7] : memref<128x64xf32, #tpu.memory_space<vmem>>, vector<128x64xf32>
    tpu.vector_store %arg4[%c0_6, %c0_7], %14 {strides = array<i32>} : memref<128x64xf32, #tpu.memory_space<vmem>>, vector<128x64xf32>,
    return
  }
  func.func @transform_0(%arg0: i32) -> (i32, i32) {
    %c0_i32 = arith.constant 0 : i32
    %c0_i32_0 = arith.constant 0 : i32
    return %arg0, %c0_i32 : i32, i32
  }
  func.func @transform_1(%arg0: i32) -> (i32, i32) {
    %c0_i32 = arith.constant 0 : i32
    %c0_i32_0 = arith.constant 0 : i32
    %c0_i32_1 = arith.constant 0 : i32
    return %c0_i32, %c0_i32_0 : i32, i32
  }
  func.func @transform_2(%arg0: i32) -> (i32, i32) {
    %c0_i32 = arith.constant 0 : i32
    %c0_i32_0 = arith.constant 0 : i32
    %c0_i32_1 = arith.constant 0 : i32
    return %c0_i32, %c0_i32_0 : i32, i32
  }
  func.func @transform_3(%arg0: i32) -> (i32, i32) {
    %c0_i32 = arith.constant 0 : i32
    %c0_i32_0 = arith.constant 0 : i32
    return %arg0, %c0_i32 : i32, i32
  }
}

module attributes {stable_mosaic.version = 11 : i64} {
  func.func @_tnet_body_kernel(%arg0: i32, %arg1: i32, %arg2: memref<1x128x64xf32, #tpu.memory_space<vmem>>, %arg3: memref<64x64xf32, #tpu.memory_space<vmem>>, %arg4: memref<1x64xf32, #tpu.memory_space<vmem>>, %arg5: memref<64x128xf32, #tpu.memory_space<vmem>>, %arg6: memref<1x128xf32, #tpu.memory_space<vmem>>, %arg7: memref<128x1024xbf16, #tpu.memory_space<vmem>>, %arg8: memref<1x1024xf32, #tpu.memory_space<vmem>>, %arg9: memref<1x1x1024xf32, #tpu.memory_space<vmem>>, %arg10: memref<1x1024xf32, #tpu.memory_space<vmem>>) attributes {dimension_semantics = [#tpu.dimension_semantics<parallel>, #tpu.dimension_semantics<arbitrary>], iteration_bounds = array<i64: 2, 1>, scalar_prefetch = 0 : i64, scratch_operands = 1 : i64, tpu.core_type = #tpu.core_type<tc>, window_params = [{transform_indices = @transform_0, window_bounds = array<i64: 1, 128, 64>}, {pipeline_mode = #tpu.pipeline_mode<synchronous>, transform_indices = @transform_1, window_bounds = array<i64: 64, 64>}, {pipeline_mode = #tpu.pipeline_mode<synchronous>, transform_indices = @transform_2, window_bounds = array<i64: 1, 64>}, {pipeline_mode = #tpu.pipeline_mode<synchronous>, transform_indices = @transform_3, window_bounds = array<i64: 64, 128>}, {pipeline_mode = #tpu.pipeline_mode<synchronous>, transform_indices = @transform_4, window_bounds = array<i64: 1, 128>}, {pipeline_mode = #tpu.pipeline_mode<synchronous>, transform_indices = @transform_5, window_bounds = array<i64: 128, 1024>}, {pipeline_mode = #tpu.pipeline_mode<synchronous>, transform_indices = @transform_6, window_bounds = array<i64: 1, 1024>}, {transform_indices = @transform_7, window_bounds = array<i64: 1, 1, 1024>}]} {
    %c0_i32 = arith.constant 0 : i32
    %0 = arith.cmpi eq, %arg1, %c0_i32 : i32
    %1 = arith.extui %0 : i1 to i32
    %c0_i32_0 = arith.constant 0 : i32
    %2 = arith.cmpi ne, %1, %c0_i32_0 : i32
    scf.if %2 {
      %cst_27 = arith.constant 0xFF800000 : f32
      %35 = vector.broadcast %cst_27 : f32 to vector<1x1024xf32>
      %c0_28 = arith.constant 0 : index
      %c0_29 = arith.constant 0 : index
      %36 = vector.load %arg10[%c0_28, %c0_29] : memref<1x1024xf32, #tpu.memory_space<vmem>>, vector<1x1024xf32>
      tpu.vector_store %arg10[%c0_28, %c0_29], %35 {strides = array<i32>} : memref<1x1024xf32, #tpu.memory_space<vmem>>, vector<1x1024xf32>,
    } else {
    }
    %c0 = arith.constant 0 : index
    %c0_1 = arith.constant 0 : index
    %c0_2 = arith.constant 0 : index
    %3 = vector.load %arg2[%c0, %c0_1, %c0_2] : memref<1x128x64xf32, #tpu.memory_space<vmem>>, vector<1x128x64xf32>
    %4 = vector.shape_cast %3 : vector<1x128x64xf32> to vector<128x64xf32>
    %c0_3 = arith.constant 0 : index
    %c0_4 = arith.constant 0 : index
    %5 = vector.load %arg3[%c0_3, %c0_4] : memref<64x64xf32, #tpu.memory_space<vmem>>, vector<64x64xf32>
    %cst = arith.constant dense<0.000000e+00> : vector<128x64xf32>
    %6 = tpu.matmul %4, %5, %cst {dimension_numbers = #tpu.dot_dimension_numbers<[1], [0], [0], [1], [0, 0, 1, 1], [], []>} : vector<128x64xf32>, vector<64x64xf32>, vector<128x64xf32> -> vector<128x64xf32>
    %c0_5 = arith.constant 0 : index
    %c0_6 = arith.constant 0 : index
    %7 = vector.load %arg4[%c0_5, %c0_6] : memref<1x64xf32, #tpu.memory_space<vmem>>, vector<1x64xf32>
    %8 = vector.broadcast %7 : vector<1x64xf32> to vector<128x64xf32>
    %9 = arith.addf %6, %8 : vector<128x64xf32>
    %cst_7 = arith.constant 0.000000e+00 : f32
    %10 = vector.broadcast %cst_7 : f32 to vector<128x64xf32>
    %11 = arith.maximumf %9, %10 : vector<128x64xf32>
    %c0_8 = arith.constant 0 : index
    %c0_9 = arith.constant 0 : index
    %12 = vector.load %arg5[%c0_8, %c0_9] : memref<64x128xf32, #tpu.memory_space<vmem>>, vector<64x128xf32>
    %cst_10 = arith.constant dense<0.000000e+00> : vector<128x128xf32>
    %13 = tpu.matmul %11, %12, %cst_10 {dimension_numbers = #tpu.dot_dimension_numbers<[1], [0], [0], [1], [0, 0, 1, 1], [], []>} : vector<128x64xf32>, vector<64x128xf32>, vector<128x128xf32> -> vector<128x128xf32>
    %c0_11 = arith.constant 0 : index
    %c0_12 = arith.constant 0 : index
    %14 = vector.load %arg6[%c0_11, %c0_12] : memref<1x128xf32, #tpu.memory_space<vmem>>, vector<1x128xf32>
    %15 = vector.broadcast %14 : vector<1x128xf32> to vector<128x128xf32>
    %16 = arith.addf %13, %15 : vector<128x128xf32>
    %cst_13 = arith.constant 0.000000e+00 : f32
    %17 = vector.broadcast %cst_13 : f32 to vector<128x128xf32>
    %18 = arith.maximumf %16, %17 : vector<128x128xf32>
    %19 = arith.truncf %18 : vector<128x128xf32> to vector<128x128xbf16>
    %c0_14 = arith.constant 0 : index
    %c0_15 = arith.constant 0 : index
    %20 = vector.load %arg7[%c0_14, %c0_15] : memref<128x1024xbf16, #tpu.memory_space<vmem>>, vector<128x1024xbf16>
    %cst_16 = arith.constant dense<0.000000e+00> : vector<128x1024xf32>
    %21 = tpu.matmul %19, %20, %cst_16 {dimension_numbers = #tpu.dot_dimension_numbers<[1], [0], [0], [1], [0, 0, 1, 1], [], []>} : vector<128x128xbf16>, vector<128x1024xbf16>, vector<128x1024xf32> -> vector<128x1024xf32>
    %c0_17 = arith.constant 0 : index
    %c0_18 = arith.constant 0 : index
    %22 = vector.load %arg8[%c0_17, %c0_18] : memref<1x1024xf32, #tpu.memory_space<vmem>>, vector<1x1024xf32>
    %23 = vector.broadcast %22 : vector<1x1024xf32> to vector<128x1024xf32>
    %24 = arith.addf %21, %23 : vector<128x1024xf32>
    %cst_19 = arith.constant 0.000000e+00 : f32
    %25 = vector.broadcast %cst_19 : f32 to vector<128x1024xf32>
    %26 = arith.maximumf %24, %25 : vector<128x1024xf32>
    %c0_20 = arith.constant 0 : index
    %c0_21 = arith.constant 0 : index
    %27 = vector.load %arg10[%c0_20, %c0_21] : memref<1x1024xf32, #tpu.memory_space<vmem>>, vector<1x1024xf32>
    %cst_22 = arith.constant dense<0xFF800000> : vector<1024xf32>
    %28 = vector.multi_reduction <maximumf>, %26, %cst_22 [0] : vector<128x1024xf32> to vector<1024xf32>
    %29 = vector.shape_cast %28 : vector<1024xf32> to vector<1x1024xf32>
    %30 = arith.maximumf %27, %29 : vector<1x1024xf32>
    %c0_23 = arith.constant 0 : index
    %c0_24 = arith.constant 0 : index
    %31 = vector.load %arg10[%c0_23, %c0_24] : memref<1x1024xf32, #tpu.memory_space<vmem>>, vector<1x1024xf32>
    tpu.vector_store %arg10[%c0_23, %c0_24], %30 {strides = array<i32>} : memref<1x1024xf32, #tpu.memory_space<vmem>>, vector<1x1024xf32>,
    %c0_i32_25 = arith.constant 0 : i32
    %32 = arith.cmpi eq, %arg1, %c0_i32_25 : i32
    %33 = arith.extui %32 : i1 to i32
    %c0_i32_26 = arith.constant 0 : i32
    %34 = arith.cmpi ne, %33, %c0_i32_26 : i32
    scf.if %34 {
      %c0_27 = arith.constant 0 : index
      %c0_28 = arith.constant 0 : index
      %35 = vector.load %arg10[%c0_27, %c0_28] : memref<1x1024xf32, #tpu.memory_space<vmem>>, vector<1x1024xf32>
      %c0_29 = arith.constant 0 : index
      %c0_30 = arith.constant 0 : index
      %c0_31 = arith.constant 0 : index
      %36 = vector.load %arg9[%c0_29, %c0_30, %c0_31] : memref<1x1x1024xf32, #tpu.memory_space<vmem>>, vector<1x1x1024xf32>
      %37 = vector.shape_cast %36 : vector<1x1x1024xf32> to vector<1x1024xf32>
      %38 = vector.shape_cast %35 : vector<1x1024xf32> to vector<1x1x1024xf32>
      tpu.vector_store %arg9[%c0_29, %c0_30, %c0_31], %38 {strides = array<i32>} : memref<1x1x1024xf32, #tpu.memory_space<vmem>>, vector<1x1x1024xf32>,
    } else {
    }
    return
  }
  func.func @transform_0(%arg0: i32, %arg1: i32) -> (i32, i32, i32) {
    %c0_i32 = arith.constant 0 : i32
    %c0_i32_0 = arith.constant 0 : i32
    return %arg0, %arg1, %c0_i32 : i32, i32, i32
  }
  func.func @transform_1(%arg0: i32, %arg1: i32) -> (i32, i32) {
    %c0_i32 = arith.constant 0 : i32
    %c0_i32_0 = arith.constant 0 : i32
    %c0_i32_1 = arith.constant 0 : i32
    return %c0_i32, %c0_i32_0 : i32, i32
  }
  func.func @transform_2(%arg0: i32, %arg1: i32) -> (i32, i32) {
    %c0_i32 = arith.constant 0 : i32
    %c0_i32_0 = arith.constant 0 : i32
    %c0_i32_1 = arith.constant 0 : i32
    return %c0_i32, %c0_i32_0 : i32, i32
  }
  func.func @transform_3(%arg0: i32, %arg1: i32) -> (i32, i32) {
    %c0_i32 = arith.constant 0 : i32
    %c0_i32_0 = arith.constant 0 : i32
    %c0_i32_1 = arith.constant 0 : i32
    return %c0_i32, %c0_i32_0 : i32, i32
  }
  func.func @transform_4(%arg0: i32, %arg1: i32) -> (i32, i32) {
    %c0_i32 = arith.constant 0 : i32
    %c0_i32_0 = arith.constant 0 : i32
    %c0_i32_1 = arith.constant 0 : i32
    return %c0_i32, %c0_i32_0 : i32, i32
  }
  func.func @transform_5(%arg0: i32, %arg1: i32) -> (i32, i32) {
    %c0_i32 = arith.constant 0 : i32
    %c0_i32_0 = arith.constant 0 : i32
    %c0_i32_1 = arith.constant 0 : i32
    return %c0_i32, %c0_i32_0 : i32, i32
  }
  func.func @transform_6(%arg0: i32, %arg1: i32) -> (i32, i32) {
    %c0_i32 = arith.constant 0 : i32
    %c0_i32_0 = arith.constant 0 : i32
    %c0_i32_1 = arith.constant 0 : i32
    return %c0_i32, %c0_i32_0 : i32, i32
  }
  func.func @transform_7(%arg0: i32, %arg1: i32) -> (i32, i32, i32) {
    %c0_i32 = arith.constant 0 : i32
    %c0_i32_0 = arith.constant 0 : i32
    %c0_i32_1 = arith.constant 0 : i32
    return %arg0, %c0_i32, %c0_i32_0 : i32, i32, i32
  }
}

module attributes {stable_mosaic.version = 11 : i64} {
  func.func @_bmm_kernel(%arg0: i32, %arg1: memref<1x128x64xf32, #tpu.memory_space<vmem>>, %arg2: memref<1x64x64xf32, #tpu.memory_space<vmem>>, %arg3: memref<1x128x64xf32, #tpu.memory_space<vmem>>) attributes {dimension_semantics = [#tpu.dimension_semantics<parallel>], iteration_bounds = array<i64: 2>, scalar_prefetch = 0 : i64, scratch_operands = 0 : i64, tpu.core_type = #tpu.core_type<tc>, window_params = [{transform_indices = @transform_0, window_bounds = array<i64: 1, 128, 64>}, {transform_indices = @transform_1, window_bounds = array<i64: 1, 64, 64>}, {transform_indices = @transform_2, window_bounds = array<i64: 1, 128, 64>}]} {
    %c0 = arith.constant 0 : index
    %c0_0 = arith.constant 0 : index
    %c0_1 = arith.constant 0 : index
    %0 = vector.load %arg1[%c0, %c0_0, %c0_1] : memref<1x128x64xf32, #tpu.memory_space<vmem>>, vector<1x128x64xf32>
    %1 = vector.shape_cast %0 : vector<1x128x64xf32> to vector<128x64xf32>
    %c0_2 = arith.constant 0 : index
    %c0_3 = arith.constant 0 : index
    %c0_4 = arith.constant 0 : index
    %2 = vector.load %arg2[%c0_2, %c0_3, %c0_4] : memref<1x64x64xf32, #tpu.memory_space<vmem>>, vector<1x64x64xf32>
    %3 = vector.shape_cast %2 : vector<1x64x64xf32> to vector<64x64xf32>
    %cst = arith.constant dense<0.000000e+00> : vector<128x64xf32>
    %4 = tpu.matmul %1, %3, %cst {dimension_numbers = #tpu.dot_dimension_numbers<[1], [0], [0], [1], [0, 0, 1, 1], [], []>} : vector<128x64xf32>, vector<64x64xf32>, vector<128x64xf32> -> vector<128x64xf32>
    %c0_5 = arith.constant 0 : index
    %c0_6 = arith.constant 0 : index
    %c0_7 = arith.constant 0 : index
    %5 = vector.load %arg3[%c0_5, %c0_6, %c0_7] : memref<1x128x64xf32, #tpu.memory_space<vmem>>, vector<1x128x64xf32>
    %6 = vector.shape_cast %5 : vector<1x128x64xf32> to vector<128x64xf32>
    %7 = vector.shape_cast %4 : vector<128x64xf32> to vector<1x128x64xf32>
    tpu.vector_store %arg3[%c0_5, %c0_6, %c0_7], %7 {strides = array<i32>} : memref<1x128x64xf32, #tpu.memory_space<vmem>>, vector<1x128x64xf32>,
    return
  }
  func.func @transform_0(%arg0: i32) -> (i32, i32, i32) {
    %c0_i32 = arith.constant 0 : i32
    %c0_i32_0 = arith.constant 0 : i32
    %c0_i32_1 = arith.constant 0 : i32
    return %arg0, %c0_i32, %c0_i32_0 : i32, i32, i32
  }
  func.func @transform_1(%arg0: i32) -> (i32, i32, i32) {
    %c0_i32 = arith.constant 0 : i32
    %c0_i32_0 = arith.constant 0 : i32
    %c0_i32_1 = arith.constant 0 : i32
    return %arg0, %c0_i32, %c0_i32_0 : i32, i32, i32
  }
  func.func @transform_2(%arg0: i32) -> (i32, i32, i32) {
    %c0_i32 = arith.constant 0 : i32
    %c0_i32_0 = arith.constant 0 : i32
    %c0_i32_1 = arith.constant 0 : i32
    return %arg0, %c0_i32, %c0_i32_0 : i32, i32, i32
  }
}

module attributes {stable_mosaic.version = 11 : i64} {
  func.func @_pw_conv_kernel(%arg0: i32, %arg1: memref<1024x64xf32, #tpu.memory_space<vmem>>, %arg2: memref<64x64xf32, #tpu.memory_space<vmem>>, %arg3: memref<3x64xf32, #tpu.memory_space<vmem>>, %arg4: memref<1024x64xf32, #tpu.memory_space<vmem>>) attributes {dimension_semantics = [#tpu.dimension_semantics<parallel>], iteration_bounds = array<i64: 8>, scalar_prefetch = 0 : i64, scratch_operands = 0 : i64, tpu.core_type = #tpu.core_type<tc>, window_params = [{transform_indices = @transform_0, window_bounds = array<i64: 1024, 64>}, {pipeline_mode = #tpu.pipeline_mode<synchronous>, transform_indices = @transform_1, window_bounds = array<i64: 64, 64>}, {pipeline_mode = #tpu.pipeline_mode<synchronous>, transform_indices = @transform_2, window_bounds = array<i64: 3, 64>}, {transform_indices = @transform_3, window_bounds = array<i64: 1024, 64>}]} {
    %c0 = arith.constant 0 : index
    %c0_0 = arith.constant 0 : index
    %0 = vector.load %arg1[%c0, %c0_0] : memref<1024x64xf32, #tpu.memory_space<vmem>>, vector<1024x64xf32>
    %c0_1 = arith.constant 0 : index
    %c0_2 = arith.constant 0 : index
    %1 = vector.load %arg2[%c0_1, %c0_2] : memref<64x64xf32, #tpu.memory_space<vmem>>, vector<64x64xf32>
    %cst = arith.constant dense<0.000000e+00> : vector<1024x64xf32>
    %2 = tpu.matmul %0, %1, %cst {dimension_numbers = #tpu.dot_dimension_numbers<[1], [0], [0], [1], [0, 0, 1, 1], [], []>} : vector<1024x64xf32>, vector<64x64xf32>, vector<1024x64xf32> -> vector<1024x64xf32>
    %c0_3 = arith.constant 0 : index
    %c0_4 = arith.constant 0 : index
    %3 = vector.load %arg3[%c0_3, %c0_4] : memref<3x64xf32, #tpu.memory_space<vmem>>, vector<3x64xf32>
    %4 = vector.extract_strided_slice %3 {offsets = [0, 0], sizes = [1, 64], strides = [1, 1]} : vector<3x64xf32> to vector<1x64xf32>
    %5 = vector.broadcast %4 : vector<1x64xf32> to vector<1024x64xf32>
    %6 = arith.addf %2, %5 : vector<1024x64xf32>
    %cst_5 = arith.constant 0.000000e+00 : f32
    %7 = vector.broadcast %cst_5 : f32 to vector<1024x64xf32>
    %8 = arith.maximumf %6, %7 : vector<1024x64xf32>
    %9 = vector.extract_strided_slice %3 {offsets = [1, 0], sizes = [1, 64], strides = [1, 1]} : vector<3x64xf32> to vector<1x64xf32>
    %10 = vector.broadcast %9 : vector<1x64xf32> to vector<1024x64xf32>
    %11 = arith.mulf %8, %10 : vector<1024x64xf32>
    %12 = vector.extract_strided_slice %3 {offsets = [2, 0], sizes = [1, 64], strides = [1, 1]} : vector<3x64xf32> to vector<1x64xf32>
    %13 = vector.broadcast %12 : vector<1x64xf32> to vector<1024x64xf32>
    %14 = arith.addf %11, %13 : vector<1024x64xf32>
    %c0_6 = arith.constant 0 : index
    %c0_7 = arith.constant 0 : index
    %15 = vector.load %arg4[%c0_6, %c0_7] : memref<1024x64xf32, #tpu.memory_space<vmem>>, vector<1024x64xf32>
    tpu.vector_store %arg4[%c0_6, %c0_7], %14 {strides = array<i32>} : memref<1024x64xf32, #tpu.memory_space<vmem>>, vector<1024x64xf32>,
    return
  }
  func.func @transform_0(%arg0: i32) -> (i32, i32) {
    %c0_i32 = arith.constant 0 : i32
    %c0_i32_0 = arith.constant 0 : i32
    return %arg0, %c0_i32 : i32, i32
  }
  func.func @transform_1(%arg0: i32) -> (i32, i32) {
    %c0_i32 = arith.constant 0 : i32
    %c0_i32_0 = arith.constant 0 : i32
    %c0_i32_1 = arith.constant 0 : i32
    return %c0_i32, %c0_i32_0 : i32, i32
  }
  func.func @transform_2(%arg0: i32) -> (i32, i32) {
    %c0_i32 = arith.constant 0 : i32
    %c0_i32_0 = arith.constant 0 : i32
    %c0_i32_1 = arith.constant 0 : i32
    return %c0_i32, %c0_i32_0 : i32, i32
  }
  func.func @transform_3(%arg0: i32) -> (i32, i32) {
    %c0_i32 = arith.constant 0 : i32
    %c0_i32_0 = arith.constant 0 : i32
    return %arg0, %c0_i32 : i32, i32
  }
}

module attributes {stable_mosaic.version = 11 : i64} {
  func.func @_fe_tail_kernel(%arg0: i32, %arg1: i32, %arg2: memref<1x128x128xbf16, #tpu.memory_space<vmem>>, %arg3: memref<128x128xbf16, #tpu.memory_space<vmem>>, %arg4: memref<1x128xf32, #tpu.memory_space<vmem>>, %arg5: memref<128x1024xbf16, #tpu.memory_space<vmem>>, %arg6: memref<3x1024xf32, #tpu.memory_space<vmem>>, %arg7: memref<2x1024xf32, #tpu.memory_space<vmem>>, %arg8: memref<1x1x1024xf32, #tpu.memory_space<vmem>>, %arg9: memref<1x1024xf32, #tpu.memory_space<vmem>>) attributes {dimension_semantics = [#tpu.dimension_semantics<parallel>, #tpu.dimension_semantics<arbitrary>], iteration_bounds = array<i64: 2, 1>, scalar_prefetch = 0 : i64, scratch_operands = 1 : i64, tpu.core_type = #tpu.core_type<tc>, window_params = [{transform_indices = @transform_0, window_bounds = array<i64: 1, 128, 128>}, {pipeline_mode = #tpu.pipeline_mode<synchronous>, transform_indices = @transform_1, window_bounds = array<i64: 128, 128>}, {pipeline_mode = #tpu.pipeline_mode<synchronous>, transform_indices = @transform_2, window_bounds = array<i64: 1, 128>}, {pipeline_mode = #tpu.pipeline_mode<synchronous>, transform_indices = @transform_3, window_bounds = array<i64: 128, 1024>}, {pipeline_mode = #tpu.pipeline_mode<synchronous>, transform_indices = @transform_4, window_bounds = array<i64: 3, 1024>}, {pipeline_mode = #tpu.pipeline_mode<synchronous>, transform_indices = @transform_5, window_bounds = array<i64: 2, 1024>}, {transform_indices = @transform_6, window_bounds = array<i64: 1, 1, 1024>}]} {
    %c0_i32 = arith.constant 0 : i32
    %0 = arith.cmpi eq, %arg1, %c0_i32 : i32
    %1 = arith.extui %0 : i1 to i32
    %c0_i32_0 = arith.constant 0 : i32
    %2 = arith.cmpi ne, %1, %c0_i32_0 : i32
    scf.if %2 {
      %cst_21 = arith.constant 0xFF800000 : f32
      %35 = vector.broadcast %cst_21 : f32 to vector<1x1024xf32>
      %c0_22 = arith.constant 0 : index
      %c0_23 = arith.constant 0 : index
      %36 = vector.load %arg9[%c0_22, %c0_23] : memref<1x1024xf32, #tpu.memory_space<vmem>>, vector<1x1024xf32>
      tpu.vector_store %arg9[%c0_22, %c0_23], %35 {strides = array<i32>} : memref<1x1024xf32, #tpu.memory_space<vmem>>, vector<1x1024xf32>,
    } else {
    }
    %c0 = arith.constant 0 : index
    %c0_1 = arith.constant 0 : index
    %c0_2 = arith.constant 0 : index
    %3 = vector.load %arg2[%c0, %c0_1, %c0_2] : memref<1x128x128xbf16, #tpu.memory_space<vmem>>, vector<1x128x128xbf16>
    %4 = vector.shape_cast %3 : vector<1x128x128xbf16> to vector<128x128xbf16>
    %c0_3 = arith.constant 0 : index
    %c0_4 = arith.constant 0 : index
    %5 = vector.load %arg3[%c0_3, %c0_4] : memref<128x128xbf16, #tpu.memory_space<vmem>>, vector<128x128xbf16>
    %cst = arith.constant dense<0.000000e+00> : vector<128x128xf32>
    %6 = tpu.matmul %4, %5, %cst {dimension_numbers = #tpu.dot_dimension_numbers<[1], [0], [0], [1], [0, 0, 1, 1], [], []>} : vector<128x128xbf16>, vector<128x128xbf16>, vector<128x128xf32> -> vector<128x128xf32>
    %c0_5 = arith.constant 0 : index
    %c0_6 = arith.constant 0 : index
    %7 = vector.load %arg4[%c0_5, %c0_6] : memref<1x128xf32, #tpu.memory_space<vmem>>, vector<1x128xf32>
    %8 = vector.broadcast %7 : vector<1x128xf32> to vector<128x128xf32>
    %9 = arith.addf %6, %8 : vector<128x128xf32>
    %cst_7 = arith.constant 0.000000e+00 : f32
    %10 = vector.broadcast %cst_7 : f32 to vector<128x128xf32>
    %11 = arith.maximumf %9, %10 : vector<128x128xf32>
    %c0_8 = arith.constant 0 : index
    %c0_9 = arith.constant 0 : index
    %12 = vector.load %arg6[%c0_8, %c0_9] : memref<3x1024xf32, #tpu.memory_space<vmem>>, vector<3x1024xf32>
    %13 = arith.truncf %11 : vector<128x128xf32> to vector<128x128xbf16>
    %c0_10 = arith.constant 0 : index
    %c0_11 = arith.constant 0 : index
    %14 = vector.load %arg5[%c0_10, %c0_11] : memref<128x1024xbf16, #tpu.memory_space<vmem>>, vector<128x1024xbf16>
    %cst_12 = arith.constant dense<0.000000e+00> : vector<128x1024xf32>
    %15 = tpu.matmul %13, %14, %cst_12 {dimension_numbers = #tpu.dot_dimension_numbers<[1], [0], [0], [1], [0, 0, 1, 1], [], []>} : vector<128x128xbf16>, vector<128x1024xbf16>, vector<128x1024xf32> -> vector<128x1024xf32>
    %16 = vector.extract_strided_slice %12 {offsets = [0, 0], sizes = [1, 1024], strides = [1, 1]} : vector<3x1024xf32> to vector<1x1024xf32>
    %17 = vector.broadcast %16 : vector<1x1024xf32> to vector<128x1024xf32>
    %18 = arith.addf %15, %17 : vector<128x1024xf32>
    %cst_13 = arith.constant 0.000000e+00 : f32
    %19 = vector.broadcast %cst_13 : f32 to vector<128x1024xf32>
    %20 = arith.maximumf %18, %19 : vector<128x1024xf32>
    %21 = vector.extract_strided_slice %12 {offsets = [1, 0], sizes = [1, 1024], strides = [1, 1]} : vector<3x1024xf32> to vector<1x1024xf32>
    %22 = vector.broadcast %21 : vector<1x1024xf32> to vector<128x1024xf32>
    %23 = arith.mulf %20, %22 : vector<128x1024xf32>
    %24 = vector.extract_strided_slice %12 {offsets = [2, 0], sizes = [1, 1024], strides = [1, 1]} : vector<3x1024xf32> to vector<1x1024xf32>
    %25 = vector.broadcast %24 : vector<1x1024xf32> to vector<128x1024xf32>
    %26 = arith.addf %23, %25 : vector<128x1024xf32>
    %c0_14 = arith.constant 0 : index
    %c0_15 = arith.constant 0 : index
    %27 = vector.load %arg9[%c0_14, %c0_15] : memref<1x1024xf32, #tpu.memory_space<vmem>>, vector<1x1024xf32>
    %cst_16 = arith.constant dense<0xFF800000> : vector<1024xf32>
    %28 = vector.multi_reduction <maximumf>, %26, %cst_16 [0] : vector<128x1024xf32> to vector<1024xf32>
    %29 = vector.shape_cast %28 : vector<1024xf32> to vector<1x1024xf32>
    %30 = arith.maximumf %27, %29 : vector<1x1024xf32>
    %c0_17 = arith.constant 0 : index
    %c0_18 = arith.constant 0 : index
    %31 = vector.load %arg9[%c0_17, %c0_18] : memref<1x1024xf32, #tpu.memory_space<vmem>>, vector<1x1024xf32>
    tpu.vector_store %arg9[%c0_17, %c0_18], %30 {strides = array<i32>} : memref<1x1024xf32, #tpu.memory_space<vmem>>, vector<1x1024xf32>,
    %c0_i32_19 = arith.constant 0 : i32
    %32 = arith.cmpi eq, %arg1, %c0_i32_19 : i32
    %33 = arith.extui %32 : i1 to i32
    %c0_i32_20 = arith.constant 0 : i32
    %34 = arith.cmpi ne, %33, %c0_i32_20 : i32
    scf.if %34 {
      %c0_21 = arith.constant 0 : index
      %c0_22 = arith.constant 0 : index
      %35 = vector.load %arg7[%c0_21, %c0_22] : memref<2x1024xf32, #tpu.memory_space<vmem>>, vector<2x1024xf32>
      %c0_23 = arith.constant 0 : index
      %c0_24 = arith.constant 0 : index
      %36 = vector.load %arg9[%c0_23, %c0_24] : memref<1x1024xf32, #tpu.memory_space<vmem>>, vector<1x1024xf32>
      %37 = vector.extract_strided_slice %35 {offsets = [0, 0], sizes = [1, 1024], strides = [1, 1]} : vector<2x1024xf32> to vector<1x1024xf32>
      %38 = arith.mulf %36, %37 : vector<1x1024xf32>
      %39 = vector.extract_strided_slice %35 {offsets = [1, 0], sizes = [1, 1024], strides = [1, 1]} : vector<2x1024xf32> to vector<1x1024xf32>
      %40 = arith.addf %38, %39 : vector<1x1024xf32>
      %c0_25 = arith.constant 0 : index
      %c0_26 = arith.constant 0 : index
      %c0_27 = arith.constant 0 : index
      %41 = vector.load %arg8[%c0_25, %c0_26, %c0_27] : memref<1x1x1024xf32, #tpu.memory_space<vmem>>, vector<1x1x1024xf32>
      %42 = vector.shape_cast %41 : vector<1x1x1024xf32> to vector<1x1024xf32>
      %43 = vector.shape_cast %40 : vector<1x1024xf32> to vector<1x1x1024xf32>
      tpu.vector_store %arg8[%c0_25, %c0_26, %c0_27], %43 {strides = array<i32>} : memref<1x1x1024xf32, #tpu.memory_space<vmem>>, vector<1x1x1024xf32>,
    } else {
    }
    return
  }
  func.func @transform_0(%arg0: i32, %arg1: i32) -> (i32, i32, i32) {
    %c0_i32 = arith.constant 0 : i32
    %c0_i32_0 = arith.constant 0 : i32
    return %arg0, %arg1, %c0_i32 : i32, i32, i32
  }
  func.func @transform_1(%arg0: i32, %arg1: i32) -> (i32, i32) {
    %c0_i32 = arith.constant 0 : i32
    %c0_i32_0 = arith.constant 0 : i32
    %c0_i32_1 = arith.constant 0 : i32
    return %c0_i32, %c0_i32_0 : i32, i32
  }
  func.func @transform_2(%arg0: i32, %arg1: i32) -> (i32, i32) {
    %c0_i32 = arith.constant 0 : i32
    %c0_i32_0 = arith.constant 0 : i32
    %c0_i32_1 = arith.constant 0 : i32
    return %c0_i32, %c0_i32_0 : i32, i32
  }
  func.func @transform_3(%arg0: i32, %arg1: i32) -> (i32, i32) {
    %c0_i32 = arith.constant 0 : i32
    %c0_i32_0 = arith.constant 0 : i32
    %c0_i32_1 = arith.constant 0 : i32
    return %c0_i32, %c0_i32_0 : i32, i32
  }
  func.func @transform_4(%arg0: i32, %arg1: i32) -> (i32, i32) {
    %c0_i32 = arith.constant 0 : i32
    %c0_i32_0 = arith.constant 0 : i32
    %c0_i32_1 = arith.constant 0 : i32
    return %c0_i32, %c0_i32_0 : i32, i32
  }
  func.func @transform_5(%arg0: i32, %arg1: i32) -> (i32, i32) {
    %c0_i32 = arith.constant 0 : i32
    %c0_i32_0 = arith.constant 0 : i32
    %c0_i32_1 = arith.constant 0 : i32
    return %c0_i32, %c0_i32_0 : i32, i32
  }
  func.func @transform_6(%arg0: i32, %arg1: i32) -> (i32, i32, i32) {
    %c0_i32 = arith.constant 0 : i32
    %c0_i32_0 = arith.constant 0 : i32
    %c0_i32_1 = arith.constant 0 : i32
    return %arg0, %c0_i32, %c0_i32_0 : i32, i32, i32
  }
}

</mosaic_0001>

<llo_original>
// kernel: fe_forward.9
$region0: #{fe_forward.9}
  #allocation0 [shape = 'u32[]', space=smem, size = 0x4, offset = 0x4, fixed_abs, tag = 'smem constant byte address 0x4 - core index']
  #allocation1 [shape = 'u32[72,128]{1,0:T(1,128)}', space=vmem, size = 0x9000, scoped, tag = 'internal scratch']
  %s0 = inlined_call_operand.vmem [shape: f32[256,3], index: 0, kind: input, shape index: {}]
  %s1 = inlined_call_operand.vmem [shape: f32[3,64], index: 1, kind: input, shape index: {}]
  %s2 = inlined_call_operand.vmem [shape: f32[3,64], index: 2, kind: input, shape index: {}]
  %s3 = inlined_call_operand.vmem [shape: f32[256,64], index: 3, kind: output, shape index: {}]
  %s4 = sld [smem:[#allocation0]]
  $region45: #{fe_forward.9} parent=0
    _
  %s6 = ssub.s32 1, %s4
  %s7 = scalar_select 0, %s6, %s4
  loop: start=0, step=1, limit=4
  $region2: #{fe_forward.9} parent=0 // loop_pre_header
    _
  $region3: #{fe_forward.9} parent=0 // loop_header
    %s9 = sphi 0, %s13
    %p10 = scmp.ge.s32.totalorder %s9, 4
    %s19 = sphi 0, %s21
    %s22 = sphi 0, %s19
    %s23 = sphi 0, %s22
    %s39 = sphi 0, %s23
    %s43 = sphi 0, %s43
    %s45 = sphi 0, %s43
    %s46 = sphi 0, %s45
    %s60 = sphi 0, %s46
    %s64 = sphi 0, %s64
    %s66 = sphi 0, %s64
    %s67 = sphi 0, %s66
    %s81 = sphi 0, %s67
    %s87 = sphi 0, %s89
    %s90 = sphi 0, %s87
    %s91 = sphi 0, %s90
    %s107 = sphi 0, %s91
  $region4: #{fe_forward.9} parent=0 // loop_header_branch
    %12 = sbr.rel (%p10) target = $region8
  $region5: #{fe_forward.9} parent=0 // loop_body
    %s14 = ssub.s32 %s9, 1
    %s15 = ssub.s32 %s9, 2
    %s16 = sadd.s32 %s9, 1
    %s17 = ssub.s32 %s9, %s16
    %p18 = scmp.eq.s32.totalorder %s17, 0
    %s20 = sadd.s32 %s19, 1
    %s21 = scalar_select %p18, %s19, %s20
    %p24 = pneg %p18
    %p25 = scmp.eq.s32.totalorder %s9, 1
    %p26 = por %p24, %p25
    %p27 = scmp.ne.s32.totalorder %s19, %s22
    %p28 = scmp.eq.s32.totalorder %s9, 0
    %p29 = por %p27, %p28
    %p30 = scmp.ne.s32.totalorder %s19, %s22
    %p31 = scmp.eq.s32.totalorder %s14, 1
    %p32 = por %p30, %p31
    %p33 = scmp.ne.s32.totalorder %s22, %s23
    %p34 = scmp.eq.s32.totalorder %s14, 0
    %p35 = por %p33, %p34
    %p36 = scmp.ne.s32.totalorder %s22, %s23
    %p37 = scmp.eq.s32.totalorder %s15, 1
    %p38 = por %p36, %p37
    %p40 = scmp.ne.s32.totalorder %s23, %s39
    %p41 = scmp.eq.s32.totalorder %s15, 0
    %p42 = por %p40, %p41
    %s44 = sadd.s32 %s43, 1
    %p47 = scmp.eq.s32.totalorder %s9, 1
    %p48 = scmp.ne.s32.totalorder %s43, %s45
    %p49 = scmp.eq.s32.totalorder %s9, 0
    %p50 = por %p48, %p49
    %p51 = scmp.ne.s32.totalorder %s43, %s45
    %p52 = scmp.eq.s32.totalorder %s14, 1
    %p53 = por %p51, %p52
    %p54 = scmp.ne.s32.totalorder %s45, %s46
    %p55 = scmp.eq.s32.totalorder %s14, 0
    %p56 = por %p54, %p55
    %p57 = scmp.ne.s32.totalorder %s45, %s46
    %p58 = scmp.eq.s32.totalorder %s15, 1
    %p59 = por %p57, %p58
    %p61 = scmp.ne.s32.totalorder %s46, %s60
    %p62 = scmp.eq.s32.totalorder %s15, 0
    %p63 = por %p61, %p62
    %s65 = sadd.s32 %s64, 1
    %p68 = scmp.eq.s32.totalorder %s9, 1
    %p69 = scmp.ne.s32.totalorder %s64, %s66
    %p70 = scmp.eq.s32.totalorder %s9, 0
    %p71 = por %p69, %p70
    %p72 = scmp.ne.s32.totalorder %s64, %s66
    %p73 = scmp.eq.s32.totalorder %s14, 1
    %p74 = por %p72, %p73
    %p75 = scmp.ne.s32.totalorder %s66, %s67
    %p76 = scmp.eq.s32.totalorder %s14, 0
    %p77 = por %p75, %p76
    %p78 = scmp.ne.s32.totalorder %s66, %s67
    %p79 = scmp.eq.s32.totalorder %s15, 1
    %p80 = por %p78, %p79
    %p82 = scmp.ne.s32.totalorder %s67, %s81
    %p83 = scmp.eq.s32.totalorder %s15, 0
    %p84 = por %p82, %p83
    %s85 = ssub.s32 %s9, %s16
    %p86 = scmp.eq.s32.totalorder %s85, 0
    %s88 = sadd.s32 %s87, 1
    %s89 = scalar_select %p86, %s87, %s88
    %p92 = pneg %p86
    %p93 = scmp.eq.s32.totalorder %s9, 1
    %p94 = por %p92, %p93
    %p95 = scmp.ne.s32.totalorder %s87, %s90
    %p96 = scmp.eq.s32.totalorder %s9, 0
    %p97 = por %p95, %p96
    %p98 = scmp.ne.s32.totalorder %s87, %s90
    %p99 = scmp.eq.s32.totalorder %s14, 1
    %p100 = por %p98, %p99
    %p101 = scmp.ne.s32.totalorder %s90, %s91
    %p102 = scmp.eq.s32.totalorder %s14, 0
    %p103 = por %p101, %p102
    %p104 = scmp.ne.s32.totalorder %s90, %s91
    %p105 = scmp.eq.s32.totalorder %s15, 1
    %p106 = por %p104, %p105
    %p108 = scmp.ne.s32.totalorder %s91, %s107
    %p109 = scmp.eq.s32.totalorder %s15, 0
    %p110 = por %p108, %p109
    %p111 = scmp.le.s32.totalorder 1, %s9
    %p112 = scmp.lt.s32.totalorder %s9, 3
    %p113 = pnand %p111, %p112
    %p114 = pneg %p113
    // Predicated region
    $region9: #{fe_forward.9} parent=5 // pred_check
      _
    $region10: #{fe_forward.9} parent=5 // pred_check_branch
      %116 = sbr.rel (%p113) target = $region12
    $region11: #{fe_forward.9} parent=5 // pred_region
      %s117 = ssub.s32 %s9, 1
      // Predicated region
      $region13: #{fe_forward.9} parent=11 // pred_check
        %p118 = pneg %p56
      $region14: #{fe_forward.9} parent=11 // pred_check_branch
        %120 = sbr.rel (%p118) target = $region16
      $region15: #{fe_forward.9} parent=11 // pred_region
        _
      $region16: #{fe_forward.9} parent=11 // pred_fallthru
        _
      // Predicated region
      $region17: #{fe_forward.9} parent=11 // pred_check
        %p121 = pneg %p77
      $region18: #{fe_forward.9} parent=11 // pred_check_branch
        %123 = sbr.rel (%p121) target = $region20
      $region19: #{fe_forward.9} parent=11 // pred_region
        _
      $region20: #{fe_forward.9} parent=11 // pred_fallthru
        _
    $region12: #{fe_forward.9} parent=5 // pred_fallthru
      _
    %p124 = scmp.lt.s32.totalorder %s9, 2
    // Predicated region
    $region21: #{fe_forward.9} parent=5 // pred_check
      %p125 = pneg %p124
    $region22: #{fe_forward.9} parent=5 // pred_check_branch
      %127 = sbr.rel (%p125) target = $region24
    $region23: #{fe_forward.9} parent=5 // pred_region
      // Predicated region
      $region25: #{fe_forward.9} parent=23 // pred_check
        %p128 = pneg %p29
      $region26: #{fe_forward.9} parent=23 // pred_check_branch
        %130 = sbr.rel (%p128) target = $region28
      $region27: #{fe_forward.9} parent=23 // pred_region
        %s131 = smul.u32 16, %s9
        %p132 = scmp.lt.s32.totalorder %s131, 31
        %s133 = scalar_select %p132, %s131, 31
        %s134 = smul.addr %s133, 8
        %s135 = scalar_lea.vmem %s0, %s134
        %s136 = smul.u32 16, %s9
      $region28: #{fe_forward.9} parent=23 // pred_fallthru
        _
    $region24: #{fe_forward.9} parent=5 // pred_fallthru
      _
    %p137 = scmp.le.s32.totalorder 1, %s9
    %p138 = scmp.lt.s32.totalorder %s9, 3
    %p139 = pnand %p137, %p138
    %p140 = pneg %p139
    // Predicated region
    $region29: #{fe_forward.9} parent=5 // pred_check
      _
    $region30: #{fe_forward.9} parent=5 // pred_check_branch
      %142 = sbr.rel (%p139) target = $region32
    $region31: #{fe_forward.9} parent=5 // pred_region
      %s143 = ssub.s32 %s9, 1
      %s144 = smul.u32 16, %s14
      %p145 = scmp.lt.s32.totalorder %s144, 31
      %s146 = scalar_select %p145, %s144, 31
      %s147 = smul.addr %s146, 8
      %s148 = scalar_lea.vmem %s0, %s147
      %p149 = pneg %p35
      %p150 = pneg %p32
      %p151 = pneg %p56
      %p152 = pneg %p53
      %p153 = pneg %p77
      %p154 = pneg %p74
      %p155 = pneg %p103
      %p156 = pneg %p100
      %s157 = smul.u32 16, %s14
      %p158 = scmp.lt.s32.totalorder %s157, 31
      %s159 = scalar_select %p158, %s157, 31
      %s160 = smul.addr %s159, 8
      %s161 = scalar_lea.vmem %s3, %s160
      %s162 = smul.u32 16, %s14
      %p163 = scmp.lt.s32.totalorder %s162, 31
      %s164 = scalar_select %p163, %s162, 31
      %s165 = smul.addr %s164, 8
      %s166 = scalar_lea.vmem %s0, %s165
      %s167 = smul.u32 16, %s14
      %s168 = smul.u32 16, %s14
      %p169 = scmp.lt.s32.totalorder %s168, 31
      %s170 = scalar_select %p169, %s168, 31
      %s171 = smul.addr %s170, 8
      %s172 = scalar_lea.vmem %s3, %s171
      %s173 = smul.u32 16, %s14
      %v174 = vld [vmem:[%s166] sm:$0xff]
      %v175 = vld [vmem:[%s166 + $0x8] sm:$0xff]
      %v176 = vld [vmem:[%s166 + $0x10] sm:$0xff]
      %v177 = vld [vmem:[%s166 + $0x18] sm:$0xff]
      %v178 = vld [vmem:[%s166 + $0x20] sm:$0xff]
      %v179 = vld [vmem:[%s166 + $0x28] sm:$0xff]
      %v180 = vld [vmem:[%s166 + $0x30] sm:$0xff]
      %v181 = vld [vmem:[%s166 + $0x38] sm:$0xff]
      %v182 = vld [vmem:[%s166 + $0x40] sm:$0xff]
      %v183 = vld [vmem:[%s166 + $0x48] sm:$0xff]
      %v184 = vld [vmem:[%s166 + $0x50] sm:$0xff]
      %v185 = vld [vmem:[%s166 + $0x58] sm:$0xff]
      %v186 = vld [vmem:[%s166 + $0x60] sm:$0xff]
      %v187 = vld [vmem:[%s166 + $0x68] sm:$0xff]
      %v188 = vld [vmem:[%s166 + $0x70] sm:$0xff]
      %v189 = vld [vmem:[%s166 + $0x78] sm:$0xff]
      %v190 = vld [vmem:[%s1] sm:$0x7]
      %v191 = vld [vmem:[%s2] sm:$0x7]
      %v192 = vperm.slane %v191, 0
      %vm193 = vcmask 23552
      %v195 = vsel %vm193, %v174, 0
      %v198 = vsel %vm193, %v175, 0
      %v201 = vsel %vm193, %v176, 0
      %v204 = vsel %vm193, %v177, 0
      %v207 = vsel %vm193, %v178, 0
      %v210 = vsel %vm193, %v179, 0
      %v213 = vsel %vm193, %v180, 0
      %v216 = vsel %vm193, %v181, 0
      %v219 = vsel %vm193, %v182, 0
      %v222 = vsel %vm193, %v183, 0
      %v225 = vsel %vm193, %v184, 0
      %v228 = vsel %vm193, %v185, 0
      %v231 = vsel %vm193, %v186, 0
      %v234 = vsel %vm193, %v187, 0
      %v237 = vsel %vm193, %v188, 0
      %v240 = vsel %vm193, %v189, 0
      %vm242 = vcmask 1042432
      %v244 = vsel %vm242, %v190, 0
      %246 = vmatpush.msra.mxu0 0.0
      %247 = vmatpush.msra.mxu0 0.0
      %248 = vmatpush.msra.mxu0 0.0
      %249 = vmatpush.msra.mxu0 0.0
      %250 = vmatpush.msra.mxu0 0.0
      %251 = vmatpush.msra.mxu0 0.0
      %252 = vmatpush.msra.mxu0 0.0
      %253 = vmatpush.msra.mxu0 0.0
      %254 = vmatpush.msra.mxu0 0.0
      %255 = vmatpush.msra.mxu0 0.0
      %256 = vmatpush.msra.mxu0 0.0
      %257 = vmatpush.msra.mxu0 0.0
      %258 = vmatpush.msra.mxu0 0.0
      %259 = vmatpush.msra.mxu0 0.0
      %260 = vmatpush.msra.mxu0 0.0
      %261 = vmatpush.msra.mxu0 %v244
      %262 = vmatmul.f32.gmra.mxu0 %v195
      %v263 = vpop.f32.mrf.mxu0
      %v264 = vadd.f32 %v192, %v263
      %265 = vmatmul.f32.gmra.mxu0 %v198
      %v266 = vpop.f32.mrf.mxu0
      %v267 = vadd.f32 %v192, %v266
      %268 = vmatmul.f32.gmra.mxu0 %v201
      %v269 = vpop.f32.mrf.mxu0
      %v270 = vadd.f32 %v192, %v269
      %271 = vmatmul.f32.gmra.mxu0 %v204
      %v272 = vpop.f32.mrf.mxu0
      %v273 = vadd.f32 %v192, %v272
      %274 = vmatmul.f32.gmra.mxu0 %v207
      %v275 = vpop.f32.mrf.mxu0
      %v276 = vadd.f32 %v192, %v275
      %277 = vmatmul.f32.gmra.mxu0 %v210
      %v278 = vpop.f32.mrf.mxu0
      %v279 = vadd.f32 %v192, %v278
      %280 = vmatmul.f32.gmra.mxu0 %v213
      %v281 = vpop.f32.mrf.mxu0
      %v282 = vadd.f32 %v192, %v281
      %283 = vmatmul.f32.gmra.mxu0 %v216
      %v284 = vpop.f32.mrf.mxu0
      %v285 = vadd.f32 %v192, %v284
      %286 = vmatmul.f32.gmra.mxu0 %v219
      %v287 = vpop.f32.mrf.mxu0
      %v288 = vadd.f32 %v192, %v287
      %289 = vmatmul.f32.gmra.mxu0 %v222
      %v290 = vpop.f32.mrf.mxu0
      %v291 = vadd.f32 %v192, %v290
      %292 = vmatmul.f32.gmra.mxu0 %v225
      %v293 = vpop.f32.mrf.mxu0
      %v294 = vadd.f32 %v192, %v293
      %295 = vmatmul.f32.gmra.mxu0 %v228
      %v296 = vpop.f32.mrf.mxu0
      %v297 = vadd.f32 %v192, %v296
      %298 = vmatmul.f32.gmra.mxu0 %v231
      %v299 = vpop.f32.mrf.mxu0
      %v300 = vadd.f32 %v192, %v299
      %301 = vmatmul.f32.gmra.mxu0 %v234
      %v302 = vpop.f32.mrf.mxu0
      %v303 = vadd.f32 %v192, %v302
      %304 = vmatmul.f32.gmra.mxu0 %v237
      %v305 = vpop.f32.mrf.mxu0
      %v306 = vadd.f32 %v192, %v305
      %307 = vmatmul.f32.gmra.mxu0 %v240
      %v308 = vpop.f32.mrf.mxu0
      %v309 = vadd.f32 %v192, %v308
      %310 = vdwg.mxu0
      %v311 = vmax.f32 %v264, 0.0
      %v312 = vmax.f32 %v267, 0.0
      %v313 = vmax.f32 %v270, 0.0
      %v314 = vmax.f32 %v273, 0.0
      %v315 = vmax.f32 %v276, 0.0
      %v316 = vmax.f32 %v279, 0.0
      %v317 = vmax.f32 %v282, 0.0
      %v318 = vmax.f32 %v285, 0.0
      %v319 = vmax.f32 %v288, 0.0
      %v320 = vmax.f32 %v291, 0.0
      %v321 = vmax.f32 %v294, 0.0
      %v322 = vmax.f32 %v297, 0.0
      %v323 = vmax.f32 %v300, 0.0
      %v324 = vmax.f32 %v303, 0.0
      %v325 = vmax.f32 %v306, 0.0
      %v326 = vmax.f32 %v309, 0.0
      %v327 = vperm.slane %v191, 1
      %v328 = vmul.f32 %v311, %v327
      %v329 = vmul.f32 %v312, %v327
      %v330 = vmul.f32 %v313, %v327
      %v331 = vmul.f32 %v314, %v327
      %v332 = vmul.f32 %v315, %v327
      %v333 = vmul.f32 %v316, %v327
      %v334 = vmul.f32 %v317, %v327
      %v335 = vmul.f32 %v318, %v327
      %v336 = vmul.f32 %v319, %v327
      %v337 = vmul.f32 %v320, %v327
      %v338 = vmul.f32 %v321, %v327
      %v339 = vmul.f32 %v322, %v327
      %v340 = vmul.f32 %v323, %v327
      %v341 = vmul.f32 %v324, %v327
      %v342 = vmul.f32 %v325, %v327
      %v343 = vmul.f32 %v326, %v327
      %v344 = vperm.slane %v191, 2
      %v345 = vadd.f32 %v328, %v344
      %v346 = vadd.f32 %v329, %v344
      %v347 = vadd.f32 %v330, %v344
      %v348 = vadd.f32 %v331, %v344
      %v349 = vadd.f32 %v332, %v344
      %v350 = vadd.f32 %v333, %v344
      %v351 = vadd.f32 %v334, %v344
      %v352 = vadd.f32 %v335, %v344
      %v353 = vadd.f32 %v336, %v344
      %v354 = vadd.f32 %v337, %v344
      %v355 = vadd.f32 %v338, %v344
      %v356 = vadd.f32 %v339, %v344
      %v357 = vadd.f32 %v340, %v344
      %v358 = vadd.f32 %v341, %v344
      %v359 = vadd.f32 %v342, %v344
      %v360 = vadd.f32 %v343, %v344
      %vm361 = vcmask 523264
      %362 = vst.msk [vmem:[%s172] sm:$0xff] %vm361, %v345
      %363 = vst.msk [vmem:[%s172 + $0x8] sm:$0xff] %vm361, %v346
      %364 = vst.msk [vmem:[%s172 + $0x10] sm:$0xff] %vm361, %v347
      %365 = vst.msk [vmem:[%s172 + $0x18] sm:$0xff] %vm361, %v348
      %366 = vst.msk [vmem:[%s172 + $0x20] sm:$0xff] %vm361, %v349
      %367 = vst.msk [vmem:[%s172 + $0x28] sm:$0xff] %vm361, %v350
      %368 = vst.msk [vmem:[%s172 + $0x30] sm:$0xff] %vm361, %v351
      %369 = vst.msk [vmem:[%s172 + $0x38] sm:$0xff] %vm361, %v352
      %370 = vst.msk [vmem:[%s172 + $0x40] sm:$0xff] %vm361, %v353
      %371 = vst.msk [vmem:[%s172 + $0x48] sm:$0xff] %vm361, %v354
      %372 = vst.msk [vmem:[%s172 + $0x50] sm:$0xff] %vm361, %v355
      %373 = vst.msk [vmem:[%s172 + $0x58] sm:$0xff] %vm361, %v356
      %374 = vst.msk [vmem:[%s172 + $0x60] sm:$0xff] %vm361, %v357
      %375 = vst.msk [vmem:[%s172 + $0x68] sm:$0xff] %vm361, %v358
      %376 = vst.msk [vmem:[%s172 + $0x70] sm:$0xff] %vm361, %v359
      %377 = vst.msk [vmem:[%s172 + $0x78] sm:$0xff] %vm361, %v360
      %s378 = smul.u32 16, %s14
      %p379 = scmp.lt.s32.totalorder %s378, 31
      %s380 = scalar_select %p379, %s378, 31
      %s381 = smul.addr %s380, 8
      %s382 = scalar_lea.vmem %s3, %s381
      // Predicated region
      $region33: #{fe_forward.9} parent=31 // pred_check
        %p383 = pneg %p100
      $region34: #{fe_forward.9} parent=31 // pred_check_branch
        %385 = sbr.rel (%p383) target = $region36
      $region35: #{fe_forward.9} parent=31 // pred_region
        %s386 = smul.u32 16, %s14
      $region36: #{fe_forward.9} parent=31 // pred_fallthru
        _
    $region32: #{fe_forward.9} parent=5 // pred_fallthru
      _
    %p387 = scmp.le.s32.totalorder 2, %s9
    // Predicated region
    $region37: #{fe_forward.9} parent=5 // pred_check
      %p388 = pneg %p387
    $region38: #{fe_forward.9} parent=5 // pred_check_branch
      %390 = sbr.rel (%p388) target = $region40
    $region39: #{fe_forward.9} parent=5 // pred_region
      %s391 = ssub.s32 %s9, 2
      // Predicated region
      $region41: #{fe_forward.9} parent=39 // pred_check
        %p392 = pneg %p106
      $region42: #{fe_forward.9} parent=39 // pred_check_branch
        %394 = sbr.rel (%p392) target = $region44
      $region43: #{fe_forward.9} parent=39 // pred_region
        %s395 = smul.u32 16, %s15
        %p396 = scmp.lt.s32.totalorder %s395, 31
        %s397 = scalar_select %p396, %s395, 31
        %s398 = smul.addr %s397, 8
        %s399 = scalar_lea.vmem %s3, %s398
      $region44: #{fe_forward.9} parent=39 // pred_fallthru
        _
    $region40: #{fe_forward.9} parent=5 // pred_fallthru
      _
  $region6: #{fe_forward.9} parent=0 // loop_footer
    %s13 = sadd.s32 1, %s9
  $region7: #{fe_forward.9} parent=0 // loop_footer_branch
    %8 = sbr.rel target = $region3
  $region8: #{fe_forward.9} parent=0 // loop_exit
    _

// kernel: fe_forward.8
$region0: #{fe_forward.8}
  #allocation0 [shape = 'u32[]', space=smem, size = 0x4, offset = 0x4, fixed_abs, tag = 'smem constant byte address 0x4 - core index']
  #allocation1 [shape = 'u32[72,128]{1,0:T(1,128)}', space=vmem, size = 0x9000, scoped, tag = 'internal scratch']
  #allocation2 [shape = 'f32[1,1024]{1,0:T(1,128)}', space=vmem, size = 0x1000, scoped, tag = 'scratch operand']
  %s0 = inlined_call_operand.vmem [shape: f32[2,128,3], index: 0, kind: input, shape index: {}]
  %s1 = inlined_call_operand.vmem [shape: f32[3,64], index: 1, kind: input, shape index: {}]
  %s2 = inlined_call_operand.vmem [shape: f32[1,64], index: 2, kind: input, shape index: {}]
  %s3 = inlined_call_operand.vmem [shape: f32[64,128], index: 3, kind: input, shape index: {}]
  %s4 = inlined_call_operand.vmem [shape: f32[1,128], index: 4, kind: input, shape index: {}]
  %s5 = inlined_call_operand.vmem [shape: bf16[128,1024], index: 5, kind: input, shape index: {}]
  %s6 = inlined_call_operand.vmem [shape: f32[1,1024], index: 6, kind: input, shape index: {}]
  %s7 = inlined_call_operand.vmem [shape: f32[2,1,1024], index: 7, kind: output, shape index: {}]
  %s8 = sld [smem:[#allocation0]]
  $region69: #{fe_forward.8} parent=0
    _
  %s10 = ssub.s32 1, %s8
  %s11 = scalar_select 0, %s10, %s8
  loop: start=0, step=1, limit=4
  $region2: #{fe_forward.8} parent=0 // loop_pre_header
    _
  $region3: #{fe_forward.8} parent=0 // loop_header
    %s13 = sphi 0, %s17
    %p14 = scmp.ge.s32.totalorder %s13, 4
    %s20 = sphi 0, %s32
    %s21 = sphi 0, %s28
    %s22 = sphi 0, %s20
    %s23 = sphi 0, %s21
    %s24 = sphi 0, %s22
    %s25 = sphi 0, %s23
    %s37 = sphi 0, %s39
    %s40 = sphi 0, %s37
    %s41 = sphi 0, %s40
    %s57 = sphi 0, %s41
    %s61 = sphi 0, %s61
    %s63 = sphi 0, %s61
    %s64 = sphi 0, %s63
    %s78 = sphi 0, %s64
    %s82 = sphi 0, %s82
    %s84 = sphi 0, %s82
    %s85 = sphi 0, %s84
    %s99 = sphi 0, %s85
    %s103 = sphi 0, %s103
    %s105 = sphi 0, %s103
    %s106 = sphi 0, %s105
    %s120 = sphi 0, %s106
    %s124 = sphi 0, %s124
    %s126 = sphi 0, %s124
    %s127 = sphi 0, %s126
    %s141 = sphi 0, %s127
    %s145 = sphi 0, %s145
    %s147 = sphi 0, %s145
    %s148 = sphi 0, %s147
    %s162 = sphi 0, %s148
    %s166 = sphi 0, %s166
    %s168 = sphi 0, %s166
    %s169 = sphi 0, %s168
    %s183 = sphi 0, %s169
    %s189 = sphi 0, %s191
    %s192 = sphi 0, %s189
    %s193 = sphi 0, %s192
    %s209 = sphi 0, %s193
  $region4: #{fe_forward.8} parent=0 // loop_header_branch
    %16 = sbr.rel (%p14) target = $region8
  $region5: #{fe_forward.8} parent=0 // loop_body
    %s18 = ssub.s32 %s13, 1
    %s19 = ssub.s32 %s13, 2
    %s26 = sadd.s32 1, %s21
    %p27 = scmp.ge.s32.totalorder %s26, 1
    %s28 = scalar_select %p27, 0, %s26
    %s29 = sadd.s32 1, %s20
    %s30 = scalar_select %p27, %s29, %s20
    %p31 = scmp.ge.s32.totalorder %s30, 2
    %s32 = scalar_select %p31, 0, %s30
    %s33 = ssub.s32 %s20, %s32
    %s34 = ssub.s32 %s21, %s28
    %s35 = sor.u32 %s33, %s34
    %p36 = scmp.eq.s32.totalorder %s35, 0
    %s38 = sadd.s32 %s37, 1
    %s39 = scalar_select %p36, %s37, %s38
    %p42 = pneg %p36
    %p43 = scmp.eq.s32.totalorder %s13, 1
    %p44 = por %p42, %p43
    %p45 = scmp.ne.s32.totalorder %s37, %s40
    %p46 = scmp.eq.s32.totalorder %s13, 0
    %p47 = por %p45, %p46
    %p48 = scmp.ne.s32.totalorder %s37, %s40
    %p49 = scmp.eq.s32.totalorder %s18, 1
    %p50 = por %p48, %p49
    %p51 = scmp.ne.s32.totalorder %s40, %s41
    %p52 = scmp.eq.s32.totalorder %s18, 0
    %p53 = por %p51, %p52
    %p54 = scmp.ne.s32.totalorder %s40, %s41
    %p55 = scmp.eq.s32.totalorder %s19, 1
    %p56 = por %p54, %p55
    %p58 = scmp.ne.s32.totalorder %s41, %s57
    %p59 = scmp.eq.s32.totalorder %s19, 0
    %p60 = por %p58, %p59
    %s62 = sadd.s32 %s61, 1
    %p65 = scmp.eq.s32.totalorder %s13, 1
    %p66 = scmp.ne.s32.totalorder %s61, %s63
    %p67 = scmp.eq.s32.totalorder %s13, 0
    %p68 = por %p66, %p67
    %p69 = scmp.ne.s32.totalorder %s61, %s63
    %p70 = scmp.eq.s32.totalorder %s18, 1
    %p71 = por %p69, %p70
    %p72 = scmp.ne.s32.totalorder %s63, %s64
    %p73 = scmp.eq.s32.totalorder %s18, 0
    %p74 = por %p72, %p73
    %p75 = scmp.ne.s32.totalorder %s63, %s64
    %p76 = scmp.eq.s32.totalorder %s19, 1
    %p77 = por %p75, %p76
    %p79 = scmp.ne.s32.totalorder %s64, %s78
    %p80 = scmp.eq.s32.totalorder %s19, 0
    %p81 = por %p79, %p80
    %s83 = sadd.s32 %s82, 1
    %p86 = scmp.eq.s32.totalorder %s13, 1
    %p87 = scmp.ne.s32.totalorder %s82, %s84
    %p88 = scmp.eq.s32.totalorder %s13, 0
    %p89 = por %p87, %p88
    %p90 = scmp.ne.s32.totalorder %s82, %s84
    %p91 = scmp.eq.s32.totalorder %s18, 1
    %p92 = por %p90, %p91
    %p93 = scmp.ne.s32.totalorder %s84, %s85
    %p94 = scmp.eq.s32.totalorder %s18, 0
    %p95 = por %p93, %p94
    %p96 = scmp.ne.s32.totalorder %s84, %s85
    %p97 = scmp.eq.s32.totalorder %s19, 1
    %p98 = por %p96, %p97
    %p100 = scmp.ne.s32.totalorder %s85, %s99
    %p101 = scmp.eq.s32.totalorder %s19, 0
    %p102 = por %p100, %p101
    %s104 = sadd.s32 %s103, 1
    %p107 = scmp.eq.s32.totalorder %s13, 1
    %p108 = scmp.ne.s32.totalorder %s103, %s105
    %p109 = scmp.eq.s32.totalorder %s13, 0
    %p110 = por %p108, %p109
    %p111 = scmp.ne.s32.totalorder %s103, %s105
    %p112 = scmp.eq.s32.totalorder %s18, 1
    %p113 = por %p111, %p112
    %p114 = scmp.ne.s32.totalorder %s105, %s106
    %p115 = scmp.eq.s32.totalorder %s18, 0
    %p116 = por %p114, %p115
    %p117 = scmp.ne.s32.totalorder %s105, %s106
    %p118 = scmp.eq.s32.totalorder %s19, 1
    %p119 = por %p117, %p118
    %p121 = scmp.ne.s32.totalorder %s106, %s120
    %p122 = scmp.eq.s32.totalorder %s19, 0
    %p123 = por %p121, %p122
    %s125 = sadd.s32 %s124, 1
    %p128 = scmp.eq.s32.totalorder %s13, 1
    %p129 = scmp.ne.s32.totalorder %s124, %s126
    %p130 = scmp.eq.s32.totalorder %s13, 0
    %p131 = por %p129, %p130
    %p132 = scmp.ne.s32.totalorder %s124, %s126
    %p133 = scmp.eq.s32.totalorder %s18, 1
    %p134 = por %p132, %p133
    %p135 = scmp.ne.s32.totalorder %s126, %s127
    %p136 = scmp.eq.s32.totalorder %s18, 0
    %p137 = por %p135, %p136
    %p138 = scmp.ne.s32.totalorder %s126, %s127
    %p139 = scmp.eq.s32.totalorder %s19, 1
    %p140 = por %p138, %p139
    %p142 = scmp.ne.s32.totalorder %s127, %s141
    %p143 = scmp.eq.s32.totalorder %s19, 0
    %p144 = por %p142, %p143
    %s146 = sadd.s32 %s145, 1
    %p149 = scmp.eq.s32.totalorder %s13, 1
    %p150 = scmp.ne.s32.totalorder %s145, %s147
    %p151 = scmp.eq.s32.totalorder %s13, 0
    %p152 = por %p150, %p151
    %p153 = scmp.ne.s32.totalorder %s145, %s147
    %p154 = scmp.eq.s32.totalorder %s18, 1
    %p155 = por %p153, %p154
    %p156 = scmp.ne.s32.totalorder %s147, %s148
    %p157 = scmp.eq.s32.totalorder %s18, 0
    %p158 = por %p156, %p157
    %p159 = scmp.ne.s32.totalorder %s147, %s148
    %p160 = scmp.eq.s32.totalorder %s19, 1
    %p161 = por %p159, %p160
    %p163 = scmp.ne.s32.totalorder %s148, %s162
    %p164 = scmp.eq.s32.totalorder %s19, 0
    %p165 = por %p163, %p164
    %s167 = sadd.s32 %s166, 1
    %p170 = scmp.eq.s32.totalorder %s13, 1
    %p171 = scmp.ne.s32.totalorder %s166, %s168
    %p172 = scmp.eq.s32.totalorder %s13, 0
    %p173 = por %p171, %p172
    %p174 = scmp.ne.s32.totalorder %s166, %s168
    %p175 = scmp.eq.s32.totalorder %s18, 1
    %p176 = por %p174, %p175
    %p177 = scmp.ne.s32.totalorder %s168, %s169
    %p178 = scmp.eq.s32.totalorder %s18, 0
    %p179 = por %p177, %p178
    %p180 = scmp.ne.s32.totalorder %s168, %s169
    %p181 = scmp.eq.s32.totalorder %s19, 1
    %p182 = por %p180, %p181
    %p184 = scmp.ne.s32.totalorder %s169, %s183
    %p185 = scmp.eq.s32.totalorder %s19, 0
    %p186 = por %p184, %p185
    %s187 = ssub.s32 %s20, %s32
    %p188 = scmp.eq.s32.totalorder %s187, 0
    %s190 = sadd.s32 %s189, 1
    %s191 = scalar_select %p188, %s189, %s190
    %p194 = pneg %p188
    %p195 = scmp.eq.s32.totalorder %s13, 1
    %p196 = por %p194, %p195
    %p197 = scmp.ne.s32.totalorder %s189, %s192
    %p198 = scmp.eq.s32.totalorder %s13, 0
    %p199 = por %p197, %p198
    %p200 = scmp.ne.s32.totalorder %s189, %s192
    %p201 = scmp.eq.s32.totalorder %s18, 1
    %p202 = por %p200, %p201
    %p203 = scmp.ne.s32.totalorder %s192, %s193
    %p204 = scmp.eq.s32.totalorder %s18, 0
    %p205 = por %p203, %p204
    %p206 = scmp.ne.s32.totalorder %s192, %s193
    %p207 = scmp.eq.s32.totalorder %s19, 1
    %p208 = por %p206, %p207
    %p210 = scmp.ne.s32.totalorder %s193, %s209
    %p211 = scmp.eq.s32.totalorder %s19, 0
    %p212 = por %p210, %p211
    %p213 = scmp.le.s32.totalorder 1, %s13
    %p214 = scmp.lt.s32.totalorder %s13, 3
    %p215 = pnand %p213, %p214
    %p216 = pneg %p215
    // Predicated region
    $region9: #{fe_forward.8} parent=5 // pred_check
      _
    $region10: #{fe_forward.8} parent=5 // pred_check_branch
      %218 = sbr.rel (%p215) target = $region12
    $region11: #{fe_forward.8} parent=5 // pred_region
      %s219 = ssub.s32 %s13, 1
      // Predicated region
      $region13: #{fe_forward.8} parent=11 // pred_check
        %p220 = pneg %p74
      $region14: #{fe_forward.8} parent=11 // pred_check_branch
        %222 = sbr.rel (%p220) target = $region16
      $region15: #{fe_forward.8} parent=11 // pred_region
        _
      $region16: #{fe_forward.8} parent=11 // pred_fallthru
        _
      // Predicated region
      $region17: #{fe_forward.8} parent=11 // pred_check
        %p223 = pneg %p95
      $region18: #{fe_forward.8} parent=11 // pred_check_branch
        %225 = sbr.rel (%p223) target = $region20
      $region19: #{fe_forward.8} parent=11 // pred_region
        _
      $region20: #{fe_forward.8} parent=11 // pred_fallthru
        _
      // Predicated region
      $region21: #{fe_forward.8} parent=11 // pred_check
        %p226 = pneg %p116
      $region22: #{fe_forward.8} parent=11 // pred_check_branch
        %228 = sbr.rel (%p226) target = $region24
      $region23: #{fe_forward.8} parent=11 // pred_region
        _
      $region24: #{fe_forward.8} parent=11 // pred_fallthru
        _
      // Predicated region
      $region25: #{fe_forward.8} parent=11 // pred_check
        %p229 = pneg %p137
      $region26: #{fe_forward.8} parent=11 // pred_check_branch
        %231 = sbr.rel (%p229) target = $region28
      $region27: #{fe_forward.8} parent=11 // pred_region
        _
      $region28: #{fe_forward.8} parent=11 // pred_fallthru
        _
      // Predicated region
      $region29: #{fe_forward.8} parent=11 // pred_check
        %p232 = pneg %p158
      $region30: #{fe_forward.8} parent=11 // pred_check_branch
        %234 = sbr.rel (%p232) target = $region32
      $region31: #{fe_forward.8} parent=11 // pred_region
        _
      $region32: #{fe_forward.8} parent=11 // pred_fallthru
        _
      // Predicated region
      $region33: #{fe_forward.8} parent=11 // pred_check
        %p235 = pneg %p179
      $region34: #{fe_forward.8} parent=11 // pred_check_branch
        %237 = sbr.rel (%p235) target = $region36
      $region35: #{fe_forward.8} parent=11 // pred_region
        _
      $region36: #{fe_forward.8} parent=11 // pred_fallthru
        _
    $region12: #{fe_forward.8} parent=5 // pred_fallthru
      _
    %p238 = scmp.lt.s32.totalorder %s13, 2
    // Predicated region
    $region37: #{fe_forward.8} parent=5 // pred_check
      %p239 = pneg %p238
    $region38: #{fe_forward.8} parent=5 // pred_check_branch
      %241 = sbr.rel (%p239) target = $region40
    $region39: #{fe_forward.8} parent=5 // pred_region
      // Predicated region
      $region41: #{fe_forward.8} parent=39 // pred_check
        %p242 = pneg %p47
      $region42: #{fe_forward.8} parent=39 // pred_check_branch
        %244 = sbr.rel (%p242) target = $region44
      $region43: #{fe_forward.8} parent=39 // pred_region
        %s245 = smul.u32 16, %s21
        %p246 = scmp.lt.s32.totalorder %s20, 1
        %s247 = scalar_select %p246, %s20, 1
        %p248 = scmp.lt.s32.totalorder %s245, 15
        %s249 = scalar_select %p248, %s245, 15
        %s250 = smul.addr %s247, 16
        %s251 = sadd.s32 %s249, %s250
        %s252 = smul.addr %s251, 8
        %s253 = scalar_lea.vmem %s0, %s252
        %s254 = smul.u32 16, %s21
      $region44: #{fe_forward.8} parent=39 // pred_fallthru
        _
    $region40: #{fe_forward.8} parent=5 // pred_fallthru
      _
    %p255 = scmp.le.s32.totalorder 1, %s13
    %p256 = scmp.lt.s32.totalorder %s13, 3
    %p257 = pnand %p255, %p256
    %p258 = pneg %p257
    // Predicated region
    $region45: #{fe_forward.8} parent=5 // pred_check
      _
    $region46: #{fe_forward.8} parent=5 // pred_check_branch
      %260 = sbr.rel (%p257) target = $region48
    $region47: #{fe_forward.8} parent=5 // pred_region
      %s261 = ssub.s32 %s13, 1
      %s262 = smul.u32 16, %s23
      %p263 = scmp.lt.s32.totalorder %s22, 1
      %s264 = scalar_select %p263, %s22, 1
      %p265 = scmp.lt.s32.totalorder %s262, 15
      %s266 = scalar_select %p265, %s262, 15
      %s267 = smul.addr %s264, 16
      %s268 = sadd.s32 %s266, %s267
      %s269 = smul.addr %s268, 8
      %s270 = scalar_lea.vmem %s0, %s269
      %p271 = pneg %p53
      %p272 = pneg %p50
      %p273 = pneg %p74
      %p274 = pneg %p71
      %p275 = pneg %p95
      %p276 = pneg %p92
      %p277 = pneg %p116
      %p278 = pneg %p113
      %p279 = pneg %p137
      %p280 = pneg %p134
      %p281 = pneg %p158
      %p282 = pneg %p155
      %p283 = pneg %p179
      %p284 = pneg %p176
      %p285 = pneg %p205
      %p286 = pneg %p202
      %p287 = scmp.lt.s32.totalorder %s22, 1
      %s288 = scalar_select %p287, %s22, 1
      %s289 = smul.addr %s288, 8
      %s290 = scalar_lea.vmem %s7, %s289
      %s291 = smul.u32 16, %s23
      %p292 = scmp.lt.s32.totalorder %s22, 1
      %s293 = scalar_select %p292, %s22, 1
      %p294 = scmp.lt.s32.totalorder %s291, 15
      %s295 = scalar_select %p294, %s291, 15
      %s296 = smul.addr %s293, 16
      %s297 = sadd.s32 %s295, %s296
      %s298 = smul.addr %s297, 8
      %s299 = scalar_lea.vmem %s0, %s298
      %s300 = smul.u32 16, %s23
      %p301 = scmp.lt.s32.totalorder %s22, 1
      %s302 = scalar_select %p301, %s22, 1
      %s303 = smul.addr %s302, 8
      %s304 = scalar_lea.vmem %s7, %s303
      %p305 = scmp.eq.s32.totalorder %s23, 0
      // Predicated region
      $region49: #{fe_forward.8} parent=47 // pred_check
        %p306 = pneg %p305
      $region50: #{fe_forward.8} parent=47 // pred_check_branch
        %308 = sbr.rel (%p306) target = $region52
      $region51: #{fe_forward.8} parent=47 // pred_region
        %309 = vst [vmem:[#allocation2] sm:$0xff] -inf
      $region52: #{fe_forward.8} parent=47 // pred_fallthru
        _
      %v310 = vld [vmem:[%s299] sm:$0xff]
      %v311 = vld [vmem:[%s299 + $0x8] sm:$0xff]
      %v312 = vld [vmem:[%s299 + $0x10] sm:$0xff]
      %v313 = vld [vmem:[%s299 + $0x18] sm:$0xff]
      %v314 = vld [vmem:[%s299 + $0x20] sm:$0xff]
      %v315 = vld [vmem:[%s299 + $0x28] sm:$0xff]
      %v316 = vld [vmem:[%s299 + $0x30] sm:$0xff]
      %v317 = vld [vmem:[%s299 + $0x38] sm:$0xff]
      %v318 = vld [vmem:[%s299 + $0x40] sm:$0xff]
      %v319 = vld [vmem:[%s299 + $0x48] sm:$0xff]
      %v320 = vld [vmem:[%s299 + $0x50] sm:$0xff]
      %v321 = vld [vmem:[%s299 + $0x58] sm:$0xff]
      %v322 = vld [vmem:[%s299 + $0x60] sm:$0xff]
      %v323 = vld [vmem:[%s299 + $0x68] sm:$0xff]
      %v324 = vld [vmem:[%s299 + $0x70] sm:$0xff]
      %v325 = vld [vmem:[%s299 + $0x78] sm:$0xff]
      %v326 = vld [vmem:[%s1] sm:$0x7]
      %v327 = vld [vmem:[%s2] sm:$0x1]
      %v329 = vperm.slane %v327, 0
      %vm331 = vcmask 23552
      %v333 = vsel %vm331, %v310, 0
      %v336 = vsel %vm331, %v311, 0
      %v339 = vsel %vm331, %v312, 0
      %v342 = vsel %vm331, %v313, 0
      %v345 = vsel %vm331, %v314, 0
      %v348 = vsel %vm331, %v315, 0
      %v351 = vsel %vm331, %v316, 0
      %v354 = vsel %vm331, %v317, 0
      %v357 = vsel %vm331, %v318, 0
      %v360 = vsel %vm331, %v319, 0
      %v363 = vsel %vm331, %v320, 0
      %v366 = vsel %vm331, %v321, 0
      %v369 = vsel %vm331, %v322, 0
      %v372 = vsel %vm331, %v323, 0
      %v375 = vsel %vm331, %v324, 0
      %v378 = vsel %vm331, %v325, 0
      %vm380 = vcmask 1042432
      %v382 = vsel %vm380, %v326, 0
      %384 = vmatpush.msra.mxu0 0.0
      %385 = vmatpush.msra.mxu0 0.0
      %386 = vmatpush.msra.mxu0 0.0
      %387 = vmatpush.msra.mxu0 0.0
      %388 = vmatpush.msra.mxu0 0.0
      %389 = vmatpush.msra.mxu0 0.0
      %390 = vmatpush.msra.mxu0 0.0
      %391 = vmatpush.msra.mxu0 0.0
      %392 = vmatpush.msra.mxu0 0.0
      %393 = vmatpush.msra.mxu0 0.0
      %394 = vmatpush.msra.mxu0 0.0
      %395 = vmatpush.msra.mxu0 0.0
      %396 = vmatpush.msra.mxu0 0.0
      %397 = vmatpush.msra.mxu0 0.0
      %398 = vmatpush.msra.mxu0 0.0
      %399 = vmatpush.msra.mxu0 %v382
      %400 = vmatmul.f32.gmra.mxu0 %v333
      %v401 = vpop.f32.mrf.mxu0
      %v402 = vadd.f32 %v329, %v401
      %403 = vmatmul.f32.gmra.mxu0 %v336
      %v404 = vpop.f32.mrf.mxu0
      %v405 = vadd.f32 %v329, %v404
      %406 = vmatmul.f32.gmra.mxu0 %v339
      %v407 = vpop.f32.mrf.mxu0
      %v408 = vadd.f32 %v329, %v407
      %409 = vmatmul.f32.gmra.mxu0 %v342
      %v410 = vpop.f32.mrf.mxu0
      %v411 = vadd.f32 %v329, %v410
      %412 = vmatmul.f32.gmra.mxu0 %v345
      %v413 = vpop.f32.mrf.mxu0
      %v414 = vadd.f32 %v329, %v413
      %415 = vmatmul.f32.gmra.mxu0 %v348
      %v416 = vpop.f32.mrf.mxu0
      %v417 = vadd.f32 %v329, %v416
      %418 = vmatmul.f32.gmra.mxu0 %v351
      %v419 = vpop.f32.mrf.mxu0
      %v420 = vadd.f32 %v329, %v419
      %421 = vmatmul.f32.gmra.mxu0 %v354
      %v422 = vpop.f32.mrf.mxu0
      %v423 = vadd.f32 %v329, %v422
      %424 = vmatmul.f32.gmra.mxu0 %v357
      %v425 = vpop.f32.mrf.mxu0
      %v426 = vadd.f32 %v329, %v425
      %427 = vmatmul.f32.gmra.mxu0 %v360
      %v428 = vpop.f32.mrf.mxu0
      %v429 = vadd.f32 %v329, %v428
      %430 = vmatmul.f32.gmra.mxu0 %v363
      %v431 = vpop.f32.mrf.mxu0
      %v432 = vadd.f32 %v329, %v431
      %433 = vmatmul.f32.gmra.mxu0 %v366
      %v434 = vpop.f32.mrf.mxu0
      %v435 = vadd.f32 %v329, %v434
      %436 = vmatmul.f32.gmra.mxu0 %v369
      %v437 = vpop.f32.mrf.mxu0
      %v438 = vadd.f32 %v329, %v437
      %439 = vmatmul.f32.gmra.mxu0 %v372
      %v440 = vpop.f32.mrf.mxu0
      %v441 = vadd.f32 %v329, %v440
      %442 = vmatmul.f32.gmra.mxu0 %v375
      %v443 = vpop.f32.mrf.mxu0
      %v444 = vadd.f32 %v329, %v443
      %445 = vmatmul.f32.gmra.mxu0 %v378
      %v446 = vpop.f32.mrf.mxu0
      %v447 = vadd.f32 %v329, %v446
      %448 = vdwg.mxu0
      %v449 = vmax.f32 %v402, 0.0
      %v450 = vmax.f32 %v405, 0.0
      %v451 = vmax.f32 %v408, 0.0
      %v452 = vmax.f32 %v411, 0.0
      %v453 = vmax.f32 %v414, 0.0
      %v454 = vmax.f32 %v417, 0.0
      %v455 = vmax.f32 %v420, 0.0
      %v456 = vmax.f32 %v423, 0.0
      %v457 = vmax.f32 %v426, 0.0
      %v458 = vmax.f32 %v429, 0.0
      %v459 = vmax.f32 %v432, 0.0
      %v460 = vmax.f32 %v435, 0.0
      %v461 = vmax.f32 %v438, 0.0
      %v462 = vmax.f32 %v441, 0.0
      %v463 = vmax.f32 %v444, 0.0
      %v464 = vmax.f32 %v447, 0.0
      %v465 = vld [vmem:[%s3] sm:$0xff]
      %v466 = vld [vmem:[%s3 + $0x8] sm:$0xff]
      %v467 = vld [vmem:[%s3 + $0x10] sm:$0xff]
      %v468 = vld [vmem:[%s3 + $0x18] sm:$0xff]
      %v469 = vld [vmem:[%s3 + $0x20] sm:$0xff]
      %v470 = vld [vmem:[%s3 + $0x28] sm:$0xff]
      %v471 = vld [vmem:[%s3 + $0x30] sm:$0xff]
      %v472 = vld [vmem:[%s3 + $0x38] sm:$0xff]
      %v473 = vld [vmem:[%s4] sm:$0x1]
      %v475 = vperm.slane %v473, 0
      %vm477 = vcmask 523264
      %v479 = vsel %vm477, %v449, 0
      %v482 = vsel %vm477, %v450, 0
      %v485 = vsel %vm477, %v451, 0
      %v488 = vsel %vm477, %v452, 0
      %v491 = vsel %vm477, %v453, 0
      %v494 = vsel %vm477, %v454, 0
      %v497 = vsel %vm477, %v455, 0
      %v500 = vsel %vm477, %v456, 0
      %v503 = vsel %vm477, %v457, 0
      %v506 = vsel %vm477, %v458, 0
      %v509 = vsel %vm477, %v459, 0
      %v512 = vsel %vm477, %v460, 0
      %v515 = vsel %vm477, %v461, 0
      %v518 = vsel %vm477, %v462, 0
      %v521 = vsel %vm477, %v463, 0
      %v524 = vsel %vm477, %v464, 0
      %526 = vmatpush.msra.mxu0 0.0
      %527 = vmatpush.msra.mxu0 0.0
      %528 = vmatpush.msra.mxu0 0.0
      %529 = vmatpush.msra.mxu0 0.0
      %530 = vmatpush.msra.mxu0 0.0
      %531 = vmatpush.msra.mxu0 0.0
      %532 = vmatpush.msra.mxu0 0.0
      %533 = vmatpush.msra.mxu0 0.0
      %534 = vmatpush.msra.mxu0 %v472
      %535 = vmatpush.msra.mxu0 %v471
      %536 = vmatpush.msra.mxu0 %v470
      %537 = vmatpush.msra.mxu0 %v469
      %538 = vmatpush.msra.mxu0 %v468
      %539 = vmatpush.msra.mxu0 %v467
      %540 = vmatpush.msra.mxu0 %v466
      %541 = vmatpush.msra.mxu0 %v465
      %542 = vmatmul.f32.gmra.mxu0 %v479
      %v543 = vpop.f32.mrf.mxu0
      %v544 = vadd.f32 %v475, %v543
      %545 = vmatmul.f32.gmra.mxu0 %v482
      %v546 = vpop.f32.mrf.mxu0
      %v547 = vadd.f32 %v475, %v546
      %548 = vmatmul.f32.gmra.mxu0 %v485
      %v549 = vpop.f32.mrf.mxu0
      %v550 = vadd.f32 %v475, %v549
      %551 = vmatmul.f32.gmra.mxu0 %v488
      %v552 = vpop.f32.mrf.mxu0
      %v553 = vadd.f32 %v475, %v552
      %554 = vmatmul.f32.gmra.mxu0 %v491
      %v555 = vpop.f32.mrf.mxu0
      %v556 = vadd.f32 %v475, %v555
      %557 = vmatmul.f32.gmra.mxu0 %v494
      %v558 = vpop.f32.mrf.mxu0
      %v559 = vadd.f32 %v475, %v558
      %560 = vmatmul.f32.gmra.mxu0 %v497
      %v561 = vpop.f32.mrf.mxu0
      %v562 = vadd.f32 %v475, %v561
      %563 = vmatmul.f32.gmra.mxu0 %v500
      %v564 = vpop.f32.mrf.mxu0
      %v565 = vadd.f32 %v475, %v564
      %566 = vmatmul.f32.gmra.mxu0 %v503
      %v567 = vpop.f32.mrf.mxu0
      %v568 = vadd.f32 %v475, %v567
      %569 = vmatmul.f32.gmra.mxu0 %v506
      %v570 = vpop.f32.mrf.mxu0
      %v571 = vadd.f32 %v475, %v570
      %572 = vmatmul.f32.gmra.mxu0 %v509
      %v573 = vpop.f32.mrf.mxu0
      %v574 = vadd.f32 %v475, %v573
      %575 = vmatmul.f32.gmra.mxu0 %v512
      %v576 = vpop.f32.mrf.mxu0
      %v577 = vadd.f32 %v475, %v576
      %578 = vmatmul.f32.gmra.mxu0 %v515
      %v579 = vpop.f32.mrf.mxu0
      %v580 = vadd.f32 %v475, %v579
      %581 = vmatmul.f32.gmra.mxu0 %v518
      %v582 = vpop.f32.mrf.mxu0
      %v583 = vadd.f32 %v475, %v582
      %584 = vmatmul.f32.gmra.mxu0 %v521
      %v585 = vpop.f32.mrf.mxu0
      %v586 = vadd.f32 %v475, %v585
      %587 = vmatmul.f32.gmra.mxu0 %v524
      %v588 = vpop.f32.mrf.mxu0
      %v589 = vadd.f32 %v475, %v588
      %590 = vdwg.mxu0
      %v591 = vmax.f32 %v544, 0.0
      %v592 = vmax.f32 %v547, 0.0
      %v593 = vmax.f32 %v550, 0.0
      %v594 = vmax.f32 %v553, 0.0
      %v595 = vmax.f32 %v556, 0.0
      %v596 = vmax.f32 %v559, 0.0
      %v597 = vmax.f32 %v562, 0.0
      %v598 = vmax.f32 %v565, 0.0
      %v599 = vmax.f32 %v568, 0.0
      %v600 = vmax.f32 %v571, 0.0
      %v601 = vmax.f32 %v574, 0.0
      %v602 = vmax.f32 %v577, 0.0
      %v603 = vmax.f32 %v580, 0.0
      %v604 = vmax.f32 %v583, 0.0
      %v605 = vmax.f32 %v586, 0.0
      %v606 = vmax.f32 %v589, 0.0
      %v607 = vpack.c.bf16 %v592, %v591
      %v608 = vpack.c.bf16 %v594, %v593
      %v609 = vpack.c.bf16 %v596, %v595
      %v610 = vpack.c.bf16 %v598, %v597
      %v611 = vpack.c.bf16 %v600, %v599
      %v612 = vpack.c.bf16 %v602, %v601
      %v613 = vpack.c.bf16 %v604, %v603
      %v614 = vpack.c.bf16 %v606, %v605
      %v615 = vld [vmem:[%s5] sm:$0xff]
      %v616 = vld [vmem:[%s5 + $0x8] sm:$0xff]
      %v617 = vld [vmem:[%s5 + $0x10] sm:$0xff]
      %v618 = vld [vmem:[%s5 + $0x18] sm:$0xff]
      %v619 = vld [vmem:[%s5 + $0x20] sm:$0xff]
      %v620 = vld [vmem:[%s5 + $0x28] sm:$0xff]
      %v621 = vld [vmem:[%s5 + $0x30] sm:$0xff]
      %v622 = vld [vmem:[%s5 + $0x38] sm:$0xff]
      %v623 = vld [vmem:[%s5 + $0x40] sm:$0xff]
      %v624 = vld [vmem:[%s5 + $0x48] sm:$0xff]
      %v625 = vld [vmem:[%s5 + $0x50] sm:$0xff]
      %v626 = vld [vmem:[%s5 + $0x58] sm:$0xff]
      %v627 = vld [vmem:[%s5 + $0x60] sm:$0xff]
      %v628 = vld [vmem:[%s5 + $0x68] sm:$0xff]
      %v629 = vld [vmem:[%s5 + $0x70] sm:$0xff]
      %v630 = vld [vmem:[%s5 + $0x78] sm:$0xff]
      %v631 = vld [vmem:[%s5 + $0x80] sm:$0xff]
      %v632 = vld [vmem:[%s5 + $0x88] sm:$0xff]
      %v633 = vld [vmem:[%s5 + $0x90] sm:$0xff]
      %v634 = vld [vmem:[%s5 + $0x98] sm:$0xff]
      %v635 = vld [vmem:[%s5 + $0xa0] sm:$0xff]
      %v636 = vld [vmem:[%s5 + $0xa8] sm:$0xff]
      %v637 = vld [vmem:[%s5 + $0xb0] sm:$0xff]
      %v638 = vld [vmem:[%s5 + $0xb8] sm:$0xff]
      %v639 = vld [vmem:[%s5 + $0xc0] sm:$0xff]
      %v640 = vld [vmem:[%s5 + $0xc8] sm:$0xff]
      %v641 = vld [vmem:[%s5 + $0xd0] sm:$0xff]
      %v642 = vld [vmem:[%s5 + $0xd8] sm:$0xff]
      %v643 = vld [vmem:[%s5 + $0xe0] sm:$0xff]
      %v644 = vld [vmem:[%s5 + $0xe8] sm:$0xff]
      %v645 = vld [vmem:[%s5 + $0xf0] sm:$0xff]
      %v646 = vld [vmem:[%s5 + $0xf8] sm:$0xff]
      %v647 = vld [vmem:[%s5 + $0x100] sm:$0xff]
      %v648 = vld [vmem:[%s5 + $0x108] sm:$0xff]
      %v649 = vld [vmem:[%s5 + $0x110] sm:$0xff]
      %v650 = vld [vmem:[%s5 + $0x118] sm:$0xff]
      %v651 = vld [vmem:[%s5 + $0x120] sm:$0xff]
      %v652 = vld [vmem:[%s5 + $0x128] sm:$0xff]
      %v653 = vld [vmem:[%s5 + $0x130] sm:$0xff]
      %v654 = vld [vmem:[%s5 + $0x138] sm:$0xff]
      %v655 = vld [vmem:[%s5 + $0x140] sm:$0xff]
      %v656 = vld [vmem:[%s5 + $0x148] sm:$0xff]
      %v657 = vld [vmem:[%s5 + $0x150] sm:$0xff]
      %v658 = vld [vmem:[%s5 + $0x158] sm:$0xff]
      %v659 = vld [vmem:[%s5 + $0x160] sm:$0xff]
      %v660 = vld [vmem:[%s5 + $0x168] sm:$0xff]
      %v661 = vld [vmem:[%s5 + $0x170] sm:$0xff]
      %v662 = vld [vmem:[%s5 + $0x178] sm:$0xff]
      %v663 = vld [vmem:[%s5 + $0x180] sm:$0xff]
      %v664 = vld [vmem:[%s5 + $0x188] sm:$0xff]
      %v665 = vld [vmem:[%s5 + $0x190] sm:$0xff]
      %v666 = vld [vmem:[%s5 + $0x198] sm:$0xff]
      %v667 = vld [vmem:[%s5 + $0x1a0] sm:$0xff]
      %v668 = vld [vmem:[%s5 + $0x1a8] sm:$0xff]
      %v669 = vld [vmem:[%s5 + $0x1b0] sm:$0xff]
      %v670 = vld [vmem:[%s5 + $0x1b8] sm:$0xff]
      %v671 = vld [vmem:[%s5 + $0x1c0] sm:$0xff]
      %v672 = vld [vmem:[%s5 + $0x1c8] sm:$0xff]
      %v673 = vld [vmem:[%s5 + $0x1d0] sm:$0xff]
      %v674 = vld [vmem:[%s5 + $0x1d8] sm:$0xff]
      %v675 = vld [vmem:[%s5 + $0x1e0] sm:$0xff]
      %v676 = vld [vmem:[%s5 + $0x1e8] sm:$0xff]
      %v677 = vld [vmem:[%s5 + $0x1f0] sm:$0xff]
      %v678 = vld [vmem:[%s5 + $0x1f8] sm:$0xff]
      %v679 = vld [vmem:[%s6] sm:$0xff]
      %v681 = vperm.slane %v679, 0
      %v682 = vperm.slane %v679, 1
      %v683 = vperm.slane %v679, 2
      %v684 = vperm.slane %v679, 3
      %v685 = vperm.slane %v679, 4
      %v686 = vperm.slane %v679, 5
      %v687 = vperm.slane %v679, 6
      %v688 = vperm.slane %v679, 7
      %v761 = vunpack.c.l.b16 %v615
      %v762 = vunpack.c.h.b16 %v615
      %v763 = vunpack.c.l.b16 %v616
      %v764 = vunpack.c.h.b16 %v616
      %v765 = vunpack.c.l.b16 %v617
      %v766 = vunpack.c.h.b16 %v617
      %v767 = vunpack.c.l.b16 %v618
      %v768 = vunpack.c.h.b16 %v618
      %v769 = vunpack.c.l.b16 %v619
      %v770 = vunpack.c.h.b16 %v619
      %v771 = vunpack.c.l.b16 %v620
      %v772 = vunpack.c.h.b16 %v620
      %v773 = vunpack.c.l.b16 %v621
      %v774 = vunpack.c.h.b16 %v621
      %v775 = vunpack.c.l.b16 %v622
      %v776 = vunpack.c.h.b16 %v622
      %v777 = vunpack.c.l.b16 %v623
      %v778 = vunpack.c.h.b16 %v623
      %v779 = vunpack.c.l.b16 %v624
      %v780 = vunpack.c.h.b16 %v624
      %v781 = vunpack.c.l.b16 %v625
      %v782 = vunpack.c.h.b16 %v625
      %v783 = vunpack.c.l.b16 %v626
      %v784 = vunpack.c.h.b16 %v626
      %v785 = vunpack.c.l.b16 %v627
      %v786 = vunpack.c.h.b16 %v627
      %v787 = vunpack.c.l.b16 %v628
      %v788 = vunpack.c.h.b16 %v628
      %v789 = vunpack.c.l.b16 %v629
      %v790 = vunpack.c.h.b16 %v629
      %v791 = vunpack.c.l.b16 %v630
      %v792 = vunpack.c.h.b16 %v630
      %v793 = vunpack.c.l.b16 %v631
      %v794 = vunpack.c.h.b16 %v631
      %v795 = vunpack.c.l.b16 %v632
      %v796 = vunpack.c.h.b16 %v632
      %v797 = vunpack.c.l.b16 %v633
      %v798 = vunpack.c.h.b16 %v633
      %v799 = vunpack.c.l.b16 %v634
      %v800 = vunpack.c.h.b16 %v634
      %v801 = vunpack.c.l.b16 %v635
      %v802 = vunpack.c.h.b16 %v635
      %v803 = vunpack.c.l.b16 %v636
      %v804 = vunpack.c.h.b16 %v636
      %v805 = vunpack.c.l.b16 %v637
      %v806 = vunpack.c.h.b16 %v637
      %v807 = vunpack.c.l.b16 %v638
      %v808 = vunpack.c.h.b16 %v638
      %v809 = vunpack.c.l.b16 %v639
      %v810 = vunpack.c.h.b16 %v639
      %v811 = vunpack.c.l.b16 %v640
      %v812 = vunpack.c.h.b16 %v640
      %v813 = vunpack.c.l.b16 %v641
      %v814 = vunpack.c.h.b16 %v641
      %v815 = vunpack.c.l.b16 %v642
      %v816 = vunpack.c.h.b16 %v642
      %v817 = vunpack.c.l.b16 %v643
      %v818 = vunpack.c.h.b16 %v643
      %v819 = vunpack.c.l.b16 %v644
      %v820 = vunpack.c.h.b16 %v644
      %v821 = vunpack.c.l.b16 %v645
      %v822 = vunpack.c.h.b16 %v645
      %v823 = vunpack.c.l.b16 %v646
      %v824 = vunpack.c.h.b16 %v646
      %v825 = vunpack.c.l.b16 %v647
      %v826 = vunpack.c.h.b16 %v647
      %v827 = vunpack.c.l.b16 %v648
      %v828 = vunpack.c.h.b16 %v648
      %v829 = vunpack.c.l.b16 %v649
      %v830 = vunpack.c.h.b16 %v649
      %v831 = vunpack.c.l.b16 %v650
      %v832 = vunpack.c.h.b16 %v650
      %v833 = vunpack.c.l.b16 %v651
      %v834 = vunpack.c.h.b16 %v651
      %v835 = vunpack.c.l.b16 %v652
      %v836 = vunpack.c.h.b16 %v652
      %v837 = vunpack.c.l.b16 %v653
      %v838 = vunpack.c.h.b16 %v653
      %v839 = vunpack.c.l.b16 %v654
      %v840 = vunpack.c.h.b16 %v654
      %v841 = vunpack.c.l.b16 %v655
      %v842 = vunpack.c.h.b16 %v655
      %v843 = vunpack.c.l.b16 %v656
      %v844 = vunpack.c.h.b16 %v656
      %v845 = vunpack.c.l.b16 %v657
      %v846 = vunpack.c.h.b16 %v657
      %v847 = vunpack.c.l.b16 %v658
      %v848 = vunpack.c.h.b16 %v658
      %v849 = vunpack.c.l.b16 %v659
      %v850 = vunpack.c.h.b16 %v659
      %v851 = vunpack.c.l.b16 %v660
      %v852 = vunpack.c.h.b16 %v660
      %v853 = vunpack.c.l.b16 %v661
      %v854 = vunpack.c.h.b16 %v661
      %v855 = vunpack.c.l.b16 %v662
      %v856 = vunpack.c.h.b16 %v662
      %v857 = vunpack.c.l.b16 %v663
      %v858 = vunpack.c.h.b16 %v663
      %v859 = vunpack.c.l.b16 %v664
      %v860 = vunpack.c.h.b16 %v664
      %v861 = vunpack.c.l.b16 %v665
      %v862 = vunpack.c.h.b16 %v665
      %v863 = vunpack.c.l.b16 %v666
      %v864 = vunpack.c.h.b16 %v666
      %v865 = vunpack.c.l.b16 %v667
      %v866 = vunpack.c.h.b16 %v667
      %v867 = vunpack.c.l.b16 %v668
      %v868 = vunpack.c.h.b16 %v668
      %v869 = vunpack.c.l.b16 %v669
      %v870 = vunpack.c.h.b16 %v669
      %v871 = vunpack.c.l.b16 %v670
      %v872 = vunpack.c.h.b16 %v670
      %v873 = vunpack.c.l.b16 %v671
      %v874 = vunpack.c.h.b16 %v671
      %v875 = vunpack.c.l.b16 %v672
      %v876 = vunpack.c.h.b16 %v672
      %v877 = vunpack.c.l.b16 %v673
      %v878 = vunpack.c.h.b16 %v673
      %v879 = vunpack.c.l.b16 %v674
      %v880 = vunpack.c.h.b16 %v674
      %v881 = vunpack.c.l.b16 %v675
      %v882 = vunpack.c.h.b16 %v675
      %v883 = vunpack.c.l.b16 %v676
      %v884 = vunpack.c.h.b16 %v676
      %v885 = vunpack.c.l.b16 %v677
      %v886 = vunpack.c.h.b16 %v677
      %v887 = vunpack.c.l.b16 %v678
      %v888 = vunpack.c.h.b16 %v678
      %v889 = vpack.c.b16 %v769, %v761
      %v890 = vpack.c.b16 %v770, %v762
      %v891 = vpack.c.b16 %v771, %v763
      %v892 = vpack.c.b16 %v772, %v764
      %v893 = vpack.c.b16 %v773, %v765
      %v894 = vpack.c.b16 %v774, %v766
      %v895 = vpack.c.b16 %v775, %v767
      %v896 = vpack.c.b16 %v776, %v768
      %v897 = vpack.c.b16 %v785, %v777
      %v898 = vpack.c.b16 %v786, %v778
      %v899 = vpack.c.b16 %v787, %v779
      %v900 = vpack.c.b16 %v788, %v780
      %v901 = vpack.c.b16 %v789, %v781
      %v902 = vpack.c.b16 %v790, %v782
      %v903 = vpack.c.b16 %v791, %v783
      %v904 = vpack.c.b16 %v792, %v784
      %v905 = vpack.c.b16 %v801, %v793
      %v906 = vpack.c.b16 %v802, %v794
      %v907 = vpack.c.b16 %v803, %v795
      %v908 = vpack.c.b16 %v804, %v796
      %v909 = vpack.c.b16 %v805, %v797
      %v910 = vpack.c.b16 %v806, %v798
      %v911 = vpack.c.b16 %v807, %v799
      %v912 = vpack.c.b16 %v808, %v800
      %v913 = vpack.c.b16 %v817, %v809
      %v914 = vpack.c.b16 %v818, %v810
      %v915 = vpack.c.b16 %v819, %v811
      %v916 = vpack.c.b16 %v820, %v812
      %v917 = vpack.c.b16 %v821, %v813
      %v918 = vpack.c.b16 %v822, %v814
      %v919 = vpack.c.b16 %v823, %v815
      %v920 = vpack.c.b16 %v824, %v816
      %v921 = vpack.c.b16 %v833, %v825
      %v922 = vpack.c.b16 %v834, %v826
      %v923 = vpack.c.b16 %v835, %v827
      %v924 = vpack.c.b16 %v836, %v828
      %v925 = vpack.c.b16 %v837, %v829
      %v926 = vpack.c.b16 %v838, %v830
      %v927 = vpack.c.b16 %v839, %v831
      %v928 = vpack.c.b16 %v840, %v832
      %v929 = vpack.c.b16 %v849, %v841
      %v930 = vpack.c.b16 %v850, %v842
      %v931 = vpack.c.b16 %v851, %v843
      %v932 = vpack.c.b16 %v852, %v844
      %v933 = vpack.c.b16 %v853, %v845
      %v934 = vpack.c.b16 %v854, %v846
      %v935 = vpack.c.b16 %v855, %v847
      %v936 = vpack.c.b16 %v856, %v848
      %v937 = vpack.c.b16 %v865, %v857
      %v938 = vpack.c.b16 %v866, %v858
      %v939 = vpack.c.b16 %v867, %v859
      %v940 = vpack.c.b16 %v868, %v860
      %v941 = vpack.c.b16 %v869, %v861
      %v942 = vpack.c.b16 %v870, %v862
      %v943 = vpack.c.b16 %v871, %v863
      %v944 = vpack.c.b16 %v872, %v864
      %v945 = vpack.c.b16 %v881, %v873
      %v946 = vpack.c.b16 %v882, %v874
      %v947 = vpack.c.b16 %v883, %v875
      %v948 = vpack.c.b16 %v884, %v876
      %v949 = vpack.c.b16 %v885, %v877
      %v950 = vpack.c.b16 %v886, %v878
      %v951 = vpack.c.b16 %v887, %v879
      %v952 = vpack.c.b16 %v888, %v880
      %1017 = vmatpush.bf16.msra.mxu0 %v945
      %1018 = vmatpush.bf16.msra.mxu0 %v937
      %1019 = vmatpush.bf16.msra.mxu0 %v929
      %1020 = vmatpush.bf16.msra.mxu0 %v921
      %1021 = vmatpush.bf16.msra.mxu0 %v913
      %1022 = vmatpush.bf16.msra.mxu0 %v905
      %1023 = vmatpush.bf16.msra.mxu0 %v897
      %1024 = vmatpush.bf16.msra.mxu0 %v889
      %1025 = vmatmul.bf16.gmra.mxu0 %v607
      %v1026 = vpop.f32.mrf.mxu0
      %v1027 = vadd.f32 %v681, %v1026
      %v1028 = vpop.f32.mrf.mxu0
      %v1029 = vadd.f32 %v681, %v1028
      %1030 = vmatmul.bf16.gmra.mxu0 %v608
      %v1031 = vpop.f32.mrf.mxu0
      %v1032 = vadd.f32 %v681, %v1031
      %v1033 = vpop.f32.mrf.mxu0
      %v1034 = vadd.f32 %v681, %v1033
      %1035 = vmatmul.bf16.gmra.mxu0 %v609
      %v1036 = vpop.f32.mrf.mxu0
      %v1037 = vadd.f32 %v681, %v1036
      %v1038 = vpop.f32.mrf.mxu0
      %v1039 = vadd.f32 %v681, %v1038
      %1040 = vmatmul.bf16.gmra.mxu0 %v610
      %v1041 = vpop.f32.mrf.mxu0
      %v1042 = vadd.f32 %v681, %v1041
      %v1043 = vpop.f32.mrf.mxu0
      %v1044 = vadd.f32 %v681, %v1043
      %1045 = vmatmul.bf16.gmra.mxu0 %v611
      %v1046 = vpop.f32.mrf.mxu0
      %v1047 = vadd.f32 %v681, %v1046
      %v1048 = vpop.f32.mrf.mxu0
      %v1049 = vadd.f32 %v681, %v1048
      %1050 = vmatmul.bf16.gmra.mxu0 %v612
      %v1051 = vpop.f32.mrf.mxu0
      %v1052 = vadd.f32 %v681, %v1051
      %v1053 = vpop.f32.mrf.mxu0
      %v1054 = vadd.f32 %v681, %v1053
      %1055 = vmatmul.bf16.gmra.mxu0 %v613
      %v1056 = vpop.f32.mrf.mxu0
      %v1057 = vadd.f32 %v681, %v1056
      %v1058 = vpop.f32.mrf.mxu0
      %v1059 = vadd.f32 %v681, %v1058
      %1060 = vmatmul.bf16.gmra.mxu0 %v614
      %v1061 = vpop.f32.mrf.mxu0
      %v1062 = vadd.f32 %v681, %v1061
      %v1063 = vpop.f32.mrf.mxu0
      %v1064 = vadd.f32 %v681, %v1063
      %1065 = vdwg.mxu0
      %1066 = vmatpush.bf16.msra.mxu0 %v946
      %1067 = vmatpush.bf16.msra.mxu0 %v938
      %1068 = vmatpush.bf16.msra.mxu0 %v930
      %1069 = vmatpush.bf16.msra.mxu0 %v922
      %1070 = vmatpush.bf16.msra.mxu0 %v914
      %1071 = vmatpush.bf16.msra.mxu0 %v906
      %1072 = vmatpush.bf16.msra.mxu0 %v898
      %1073 = vmatpush.bf16.msra.mxu0 %v890
      %1074 = vmatmul.bf16.gmra.mxu0 %v607
      %v1075 = vpop.f32.mrf.mxu0
      %v1076 = vadd.f32 %v682, %v1075
      %v1077 = vpop.f32.mrf.mxu0
      %v1078 = vadd.f32 %v682, %v1077
      %1079 = vmatmul.bf16.gmra.mxu0 %v608
      %v1080 = vpop.f32.mrf.mxu0
      %v1081 = vadd.f32 %v682, %v1080
      %v1082 = vpop.f32.mrf.mxu0
      %v1083 = vadd.f32 %v682, %v1082
      %1084 = vmatmul.bf16.gmra.mxu0 %v609
      %v1085 = vpop.f32.mrf.mxu0
      %v1086 = vadd.f32 %v682, %v1085
      %v1087 = vpop.f32.mrf.mxu0
      %v1088 = vadd.f32 %v682, %v1087
      %1089 = vmatmul.bf16.gmra.mxu0 %v610
      %v1090 = vpop.f32.mrf.mxu0
      %v1091 = vadd.f32 %v682, %v1090
      %v1092 = vpop.f32.mrf.mxu0
      %v1093 = vadd.f32 %v682, %v1092
      %1094 = vmatmul.bf16.gmra.mxu0 %v611
      %v1095 = vpop.f32.mrf.mxu0
      %v1096 = vadd.f32 %v682, %v1095
      %v1097 = vpop.f32.mrf.mxu0
      %v1098 = vadd.f32 %v682, %v1097
      %1099 = vmatmul.bf16.gmra.mxu0 %v612
      %v1100 = vpop.f32.mrf.mxu0
      %v1101 = vadd.f32 %v682, %v1100
      %v1102 = vpop.f32.mrf.mxu0
      %v1103 = vadd.f32 %v682, %v1102
      %1104 = vmatmul.bf16.gmra.mxu0 %v613
      %v1105 = vpop.f32.mrf.mxu0
      %v1106 = vadd.f32 %v682, %v1105
      %v1107 = vpop.f32.mrf.mxu0
      %v1108 = vadd.f32 %v682, %v1107
      %1109 = vmatmul.bf16.gmra.mxu0 %v614
      %v1110 = vpop.f32.mrf.mxu0
      %v1111 = vadd.f32 %v682, %v1110
      %v1112 = vpop.f32.mrf.mxu0
      %v1113 = vadd.f32 %v682, %v1112
      %1114 = vdwg.mxu0
      %1115 = vmatpush.bf16.msra.mxu0 %v947
      %1116 = vmatpush.bf16.msra.mxu0 %v939
      %1117 = vmatpush.bf16.msra.mxu0 %v931
      %1118 = vmatpush.bf16.msra.mxu0 %v923
      %1119 = vmatpush.bf16.msra.mxu0 %v915
      %1120 = vmatpush.bf16.msra.mxu0 %v907
      %1121 = vmatpush.bf16.msra.mxu0 %v899
      %1122 = vmatpush.bf16.msra.mxu0 %v891
      %1123 = vmatmul.bf16.gmra.mxu0 %v607
      %v1124 = vpop.f32.mrf.mxu0
      %v1125 = vadd.f32 %v683, %v1124
      %v1126 = vpop.f32.mrf.mxu0
      %v1127 = vadd.f32 %v683, %v1126
      %1128 = vmatmul.bf16.gmra.mxu0 %v608
      %v1129 = vpop.f32.mrf.mxu0
      %v1130 = vadd.f32 %v683, %v1129
      %v1131 = vpop.f32.mrf.mxu0
      %v1132 = vadd.f32 %v683, %v1131
      %1133 = vmatmul.bf16.gmra.mxu0 %v609
      %v1134 = vpop.f32.mrf.mxu0
      %v1135 = vadd.f32 %v683, %v1134
      %v1136 = vpop.f32.mrf.mxu0
      %v1137 = vadd.f32 %v683, %v1136
      %1138 = vmatmul.bf16.gmra.mxu0 %v610
      %v1139 = vpop.f32.mrf.mxu0
      %v1140 = vadd.f32 %v683, %v1139
      %v1141 = vpop.f32.mrf.mxu0
      %v1142 = vadd.f32 %v683, %v1141
      %1143 = vmatmul.bf16.gmra.mxu0 %v611
      %v1144 = vpop.f32.mrf.mxu0
      %v1145 = vadd.f32 %v683, %v1144
      %v1146 = vpop.f32.mrf.mxu0
      %v1147 = vadd.f32 %v683, %v1146
      %1148 = vmatmul.bf16.gmra.mxu0 %v612
      %v1149 = vpop.f32.mrf.mxu0
      %v1150 = vadd.f32 %v683, %v1149
      %v1151 = vpop.f32.mrf.mxu0
      %v1152 = vadd.f32 %v683, %v1151
      %1153 = vmatmul.bf16.gmra.mxu0 %v613
      %v1154 = vpop.f32.mrf.mxu0
      %v1155 = vadd.f32 %v683, %v1154
      %v1156 = vpop.f32.mrf.mxu0
      %v1157 = vadd.f32 %v683, %v1156
      %1158 = vmatmul.bf16.gmra.mxu0 %v614
      %v1159 = vpop.f32.mrf.mxu0
      %v1160 = vadd.f32 %v683, %v1159
      %v1161 = vpop.f32.mrf.mxu0
      %v1162 = vadd.f32 %v683, %v1161
      %1163 = vdwg.mxu0
      %1164 = vmatpush.bf16.msra.mxu0 %v948
      %1165 = vmatpush.bf16.msra.mxu0 %v940
      %1166 = vmatpush.bf16.msra.mxu0 %v932
      %1167 = vmatpush.bf16.msra.mxu0 %v924
      %1168 = vmatpush.bf16.msra.mxu0 %v916
      %1169 = vmatpush.bf16.msra.mxu0 %v908
      %1170 = vmatpush.bf16.msra.mxu0 %v900
      %1171 = vmatpush.bf16.msra.mxu0 %v892
      %1172 = vmatmul.bf16.gmra.mxu0 %v607
      %v1173 = vpop.f32.mrf.mxu0
      %v1174 = vadd.f32 %v684, %v1173
      %v1175 = vpop.f32.mrf.mxu0
      %v1176 = vadd.f32 %v684, %v1175
      %1177 = vmatmul.bf16.gmra.mxu0 %v608
      %v1178 = vpop.f32.mrf.mxu0
      %v1179 = vadd.f32 %v684, %v1178
      %v1180 = vpop.f32.mrf.mxu0
      %v1181 = vadd.f32 %v684, %v1180
      %1182 = vmatmul.bf16.gmra.mxu0 %v609
      %v1183 = vpop.f32.mrf.mxu0
      %v1184 = vadd.f32 %v684, %v1183
      %v1185 = vpop.f32.mrf.mxu0
      %v1186 = vadd.f32 %v684, %v1185
      %1187 = vmatmul.bf16.gmra.mxu0 %v610
      %v1188 = vpop.f32.mrf.mxu0
      %v1189 = vadd.f32 %v684, %v1188
      %v1190 = vpop.f32.mrf.mxu0
      %v1191 = vadd.f32 %v684, %v1190
      %1192 = vmatmul.bf16.gmra.mxu0 %v611
      %v1193 = vpop.f32.mrf.mxu0
      %v1194 = vadd.f32 %v684, %v1193
      %v1195 = vpop.f32.mrf.mxu0
      %v1196 = vadd.f32 %v684, %v1195
      %1197 = vmatmul.bf16.gmra.mxu0 %v612
      %v1198 = vpop.f32.mrf.mxu0
      %v1199 = vadd.f32 %v684, %v1198
      %v1200 = vpop.f32.mrf.mxu0
      %v1201 = vadd.f32 %v684, %v1200
      %1202 = vmatmul.bf16.gmra.mxu0 %v613
      %v1203 = vpop.f32.mrf.mxu0
      %v1204 = vadd.f32 %v684, %v1203
      %v1205 = vpop.f32.mrf.mxu0
      %v1206 = vadd.f32 %v684, %v1205
      %1207 = vmatmul.bf16.gmra.mxu0 %v614
      %v1208 = vpop.f32.mrf.mxu0
      %v1209 = vadd.f32 %v684, %v1208
      %v1210 = vpop.f32.mrf.mxu0
      %v1211 = vadd.f32 %v684, %v1210
      %1212 = vdwg.mxu0
      %1213 = vmatpush.bf16.msra.mxu0 %v949
      %1214 = vmatpush.bf16.msra.mxu0 %v941
      %1215 = vmatpush.bf16.msra.mxu0 %v933
      %1216 = vmatpush.bf16.msra.mxu0 %v925
      %1217 = vmatpush.bf16.msra.mxu0 %v917
      %1218 = vmatpush.bf16.msra.mxu0 %v909
      %1219 = vmatpush.bf16.msra.mxu0 %v901
      %1220 = vmatpush.bf16.msra.mxu0 %v893
      %1221 = vmatmul.bf16.gmra.mxu0 %v607
      %v1222 = vpop.f32.mrf.mxu0
      %v1223 = vadd.f32 %v685, %v1222
      %v1224 = vpop.f32.mrf.mxu0
      %v1225 = vadd.f32 %v685, %v1224
      %1226 = vmatmul.bf16.gmra.mxu0 %v608
      %v1227 = vpop.f32.mrf.mxu0
      %v1228 = vadd.f32 %v685, %v1227
      %v1229 = vpop.f32.mrf.mxu0
      %v1230 = vadd.f32 %v685, %v1229
      %1231 = vmatmul.bf16.gmra.mxu0 %v609
      %v1232 = vpop.f32.mrf.mxu0
      %v1233 = vadd.f32 %v685, %v1232
      %v1234 = vpop.f32.mrf.mxu0
      %v1235 = vadd.f32 %v685, %v1234
      %1236 = vmatmul.bf16.gmra.mxu0 %v610
      %v1237 = vpop.f32.mrf.mxu0
      %v1238 = vadd.f32 %v685, %v1237
      %v1239 = vpop.f32.mrf.mxu0
      %v1240 = vadd.f32 %v685, %v1239
      %1241 = vmatmul.bf16.gmra.mxu0 %v611
      %v1242 = vpop.f32.mrf.mxu0
      %v1243 = vadd.f32 %v685, %v1242
      %v1244 = vpop.f32.mrf.mxu0
      %v1245 = vadd.f32 %v685, %v1244
      %1246 = vmatmul.bf16.gmra.mxu0 %v612
      %v1247 = vpop.f32.mrf.mxu0
      %v1248 = vadd.f32 %v685, %v1247
      %v1249 = vpop.f32.mrf.mxu0
      %v1250 = vadd.f32 %v685, %v1249
      %1251 = vmatmul.bf16.gmra.mxu0 %v613
      %v1252 = vpop.f32.mrf.mxu0
      %v1253 = vadd.f32 %v685, %v1252
      %v1254 = vpop.f32.mrf.mxu0
      %v1255 = vadd.f32 %v685, %v1254
      %1256 = vmatmul.bf16.gmra.mxu0 %v614
      %v1257 = vpop.f32.mrf.mxu0
      %v1258 = vadd.f32 %v685, %v1257
      %v1259 = vpop.f32.mrf.mxu0
      %v1260 = vadd.f32 %v685, %v1259
      %1261 = vdwg.mxu0
      %1262 = vmatpush.bf16.msra.mxu0 %v950
      %1263 = vmatpush.bf16.msra.mxu0 %v942
      %1264 = vmatpush.bf16.msra.mxu0 %v934
      %1265 = vmatpush.bf16.msra.mxu0 %v926
      %1266 = vmatpush.bf16.msra.mxu0 %v918
      %1267 = vmatpush.bf16.msra.mxu0 %v910
      %1268 = vmatpush.bf16.msra.mxu0 %v902
      %1269 = vmatpush.bf16.msra.mxu0 %v894
      %1270 = vmatmul.bf16.gmra.mxu0 %v607
      %v1271 = vpop.f32.mrf.mxu0
      %v1272 = vadd.f32 %v686, %v1271
      %v1273 = vpop.f32.mrf.mxu0
      %v1274 = vadd.f32 %v686, %v1273
      %1275 = vmatmul.bf16.gmra.mxu0 %v608
      %v1276 = vpop.f32.mrf.mxu0
      %v1277 = vadd.f32 %v686, %v1276
      %v1278 = vpop.f32.mrf.mxu0
      %v1279 = vadd.f32 %v686, %v1278
      %1280 = vmatmul.bf16.gmra.mxu0 %v609
      %v1281 = vpop.f32.mrf.mxu0
      %v1282 = vadd.f32 %v686, %v1281
      %v1283 = vpop.f32.mrf.mxu0
      %v1284 = vadd.f32 %v686, %v1283
      %1285 = vmatmul.bf16.gmra.mxu0 %v610
      %v1286 = vpop.f32.mrf.mxu0
      %v1287 = vadd.f32 %v686, %v1286
      %v1288 = vpop.f32.mrf.mxu0
      %v1289 = vadd.f32 %v686, %v1288
      %1290 = vmatmul.bf16.gmra.mxu0 %v611
      %v1291 = vpop.f32.mrf.mxu0
      %v1292 = vadd.f32 %v686, %v1291
      %v1293 = vpop.f32.mrf.mxu0
      %v1294 = vadd.f32 %v686, %v1293
      %1295 = vmatmul.bf16.gmra.mxu0 %v612
      %v1296 = vpop.f32.mrf.mxu0
      %v1297 = vadd.f32 %v686, %v1296
      %v1298 = vpop.f32.mrf.mxu0
      %v1299 = vadd.f32 %v686, %v1298
      %1300 = vmatmul.bf16.gmra.mxu0 %v613
      %v1301 = vpop.f32.mrf.mxu0
      %v1302 = vadd.f32 %v686, %v1301
      %v1303 = vpop.f32.mrf.mxu0
      %v1304 = vadd.f32 %v686, %v1303
      %1305 = vmatmul.bf16.gmra.mxu0 %v614
      %v1306 = vpop.f32.mrf.mxu0
      %v1307 = vadd.f32 %v686, %v1306
      %v1308 = vpop.f32.mrf.mxu0
      %v1309 = vadd.f32 %v686, %v1308
      %1310 = vdwg.mxu0
      %1311 = vmatpush.bf16.msra.mxu0 %v951
      %1312 = vmatpush.bf16.msra.mxu0 %v943
      %1313 = vmatpush.bf16.msra.mxu0 %v935
      %1314 = vmatpush.bf16.msra.mxu0 %v927
      %1315 = vmatpush.bf16.msra.mxu0 %v919
      %1316 = vmatpush.bf16.msra.mxu0 %v911
      %1317 = vmatpush.bf16.msra.mxu0 %v903
      %1318 = vmatpush.bf16.msra.mxu0 %v895
      %1319 = vmatmul.bf16.gmra.mxu0 %v607
      %v1320 = vpop.f32.mrf.mxu0
      %v1321 = vadd.f32 %v687, %v1320
      %v1322 = vpop.f32.mrf.mxu0
      %v1323 = vadd.f32 %v687, %v1322
      %1324 = vmatmul.bf16.gmra.mxu0 %v608
      %v1325 = vpop.f32.mrf.mxu0
      %v1326 = vadd.f32 %v687, %v1325
      %v1327 = vpop.f32.mrf.mxu0
      %v1328 = vadd.f32 %v687, %v1327
      %1329 = vmatmul.bf16.gmra.mxu0 %v609
      %v1330 = vpop.f32.mrf.mxu0
      %v1331 = vadd.f32 %v687, %v1330
      %v1332 = vpop.f32.mrf.mxu0
      %v1333 = vadd.f32 %v687, %v1332
      %1334 = vmatmul.bf16.gmra.mxu0 %v610
      %v1335 = vpop.f32.mrf.mxu0
      %v1336 = vadd.f32 %v687, %v1335
      %v1337 = vpop.f32.mrf.mxu0
      %v1338 = vadd.f32 %v687, %v1337
      %1339 = vmatmul.bf16.gmra.mxu0 %v611
      %v1340 = vpop.f32.mrf.mxu0
      %v1341 = vadd.f32 %v687, %v1340
      %v1342 = vpop.f32.mrf.mxu0
      %v1343 = vadd.f32 %v687, %v1342
      %1344 = vmatmul.bf16.gmra.mxu0 %v612
      %v1345 = vpop.f32.mrf.mxu0
      %v1346 = vadd.f32 %v687, %v1345
      %v1347 = vpop.f32.mrf.mxu0
      %v1348 = vadd.f32 %v687, %v1347
      %1349 = vmatmul.bf16.gmra.mxu0 %v613
      %v1350 = vpop.f32.mrf.mxu0
      %v1351 = vadd.f32 %v687, %v1350
      %v1352 = vpop.f32.mrf.mxu0
      %v1353 = vadd.f32 %v687, %v1352
      %1354 = vmatmul.bf16.gmra.mxu0 %v614
      %v1355 = vpop.f32.mrf.mxu0
      %v1356 = vadd.f32 %v687, %v1355
      %v1357 = vpop.f32.mrf.mxu0
      %v1358 = vadd.f32 %v687, %v1357
      %1359 = vdwg.mxu0
      %1360 = vmatpush.bf16.msra.mxu0 %v952
      %1361 = vmatpush.bf16.msra.mxu0 %v944
      %1362 = vmatpush.bf16.msra.mxu0 %v936
      %1363 = vmatpush.bf16.msra.mxu0 %v928
      %1364 = vmatpush.bf16.msra.mxu0 %v920
      %1365 = vmatpush.bf16.msra.mxu0 %v912
      %1366 = vmatpush.bf16.msra.mxu0 %v904
      %1367 = vmatpush.bf16.msra.mxu0 %v896
      %1368 = vmatmul.bf16.gmra.mxu0 %v607
      %v1369 = vpop.f32.mrf.mxu0
      %v1370 = vadd.f32 %v688, %v1369
      %v1371 = vpop.f32.mrf.mxu0
      %v1372 = vadd.f32 %v688, %v1371
      %1373 = vmatmul.bf16.gmra.mxu0 %v608
      %v1374 = vpop.f32.mrf.mxu0
      %v1375 = vadd.f32 %v688, %v1374
      %v1376 = vpop.f32.mrf.mxu0
      %v1377 = vadd.f32 %v688, %v1376
      %1378 = vmatmul.bf16.gmra.mxu0 %v609
      %v1379 = vpop.f32.mrf.mxu0
      %v1380 = vadd.f32 %v688, %v1379
      %v1381 = vpop.f32.mrf.mxu0
      %v1382 = vadd.f32 %v688, %v1381
      %1383 = vmatmul.bf16.gmra.mxu0 %v610
      %v1384 = vpop.f32.mrf.mxu0
      %v1385 = vadd.f32 %v688, %v1384
      %v1386 = vpop.f32.mrf.mxu0
      %v1387 = vadd.f32 %v688, %v1386
      %1388 = vmatmul.bf16.gmra.mxu0 %v611
      %v1389 = vpop.f32.mrf.mxu0
      %v1390 = vadd.f32 %v688, %v1389
      %v1391 = vpop.f32.mrf.mxu0
      %v1392 = vadd.f32 %v688, %v1391
      %1393 = vmatmul.bf16.gmra.mxu0 %v612
      %v1394 = vpop.f32.mrf.mxu0
      %v1395 = vadd.f32 %v688, %v1394
      %v1396 = vpop.f32.mrf.mxu0
      %v1397 = vadd.f32 %v688, %v1396
      %1398 = vmatmul.bf16.gmra.mxu0 %v613
      %v1399 = vpop.f32.mrf.mxu0
      %v1400 = vadd.f32 %v688, %v1399
      %v1401 = vpop.f32.mrf.mxu0
      %v1402 = vadd.f32 %v688, %v1401
      %1403 = vmatmul.bf16.gmra.mxu0 %v614
      %v1404 = vpop.f32.mrf.mxu0
      %v1405 = vadd.f32 %v688, %v1404
      %v1406 = vpop.f32.mrf.mxu0
      %v1407 = vadd.f32 %v688, %v1406
      %1408 = vdwg.mxu0
      %v1409 = vmax.f32 %v1027, 0.0
      %v1410 = vmax.f32 %v1076, 0.0
      %v1411 = vmax.f32 %v1125, 0.0
      %v1412 = vmax.f32 %v1174, 0.0
      %v1413 = vmax.f32 %v1223, 0.0
      %v1414 = vmax.f32 %v1272, 0.0
      %v1415 = vmax.f32 %v1321, 0.0
      %v1416 = vmax.f32 %v1370, 0.0
      %v1417 = vmax.f32 %v1029, 0.0
      %v1418 = vmax.f32 %v1078, 0.0
      %v1419 = vmax.f32 %v1127, 0.0
      %v1420 = vmax.f32 %v1176, 0.0
      %v1421 = vmax.f32 %v1225, 0.0
      %v1422 = vmax.f32 %v1274, 0.0
      %v1423 = vmax.f32 %v1323, 0.0
      %v1424 = vmax.f32 %v1372, 0.0
      %v1425 = vmax.f32 %v1032, 0.0
      %v1426 = vmax.f32 %v1081, 0.0
      %v1427 = vmax.f32 %v1130, 0.0
      %v1428 = vmax.f32 %v1179, 0.0
      %v1429 = vmax.f32 %v1228, 0.0
      %v1430 = vmax.f32 %v1277, 0.0
      %v1431 = vmax.f32 %v1326, 0.0
      %v1432 = vmax.f32 %v1375, 0.0
      %v1433 = vmax.f32 %v1034, 0.0
      %v1434 = vmax.f32 %v1083, 0.0
      %v1435 = vmax.f32 %v1132, 0.0
      %v1436 = vmax.f32 %v1181, 0.0
      %v1437 = vmax.f32 %v1230, 0.0
      %v1438 = vmax.f32 %v1279, 0.0
      %v1439 = vmax.f32 %v1328, 0.0
      %v1440 = vmax.f32 %v1377, 0.0
      %v1441 = vmax.f32 %v1037, 0.0
      %v1442 = vmax.f32 %v1086, 0.0
      %v1443 = vmax.f32 %v1135, 0.0
      %v1444 = vmax.f32 %v1184, 0.0
      %v1445 = vmax.f32 %v1233, 0.0
      %v1446 = vmax.f32 %v1282, 0.0
      %v1447 = vmax.f32 %v1331, 0.0
      %v1448 = vmax.f32 %v1380, 0.0
      %v1449 = vmax.f32 %v1039, 0.0
      %v1450 = vmax.f32 %v1088, 0.0
      %v1451 = vmax.f32 %v1137, 0.0
      %v1452 = vmax.f32 %v1186, 0.0
      %v1453 = vmax.f32 %v1235, 0.0
      %v1454 = vmax.f32 %v1284, 0.0
      %v1455 = vmax.f32 %v1333, 0.0
      %v1456 = vmax.f32 %v1382, 0.0
      %v1457 = vmax.f32 %v1042, 0.0
      %v1458 = vmax.f32 %v1091, 0.0
      %v1459 = vmax.f32 %v1140, 0.0
      %v1460 = vmax.f32 %v1189, 0.0
      %v1461 = vmax.f32 %v1238, 0.0
      %v1462 = vmax.f32 %v1287, 0.0
      %v1463 = vmax.f32 %v1336, 0.0
      %v1464 = vmax.f32 %v1385, 0.0
      %v1465 = vmax.f32 %v1044, 0.0
      %v1466 = vmax.f32 %v1093, 0.0
      %v1467 = vmax.f32 %v1142, 0.0
      %v1468 = vmax.f32 %v1191, 0.0
      %v1469 = vmax.f32 %v1240, 0.0
      %v1470 = vmax.f32 %v1289, 0.0
      %v1471 = vmax.f32 %v1338, 0.0
      %v1472 = vmax.f32 %v1387, 0.0
      %v1473 = vmax.f32 %v1047, 0.0
      %v1474 = vmax.f32 %v1096, 0.0
      %v1475 = vmax.f32 %v1145, 0.0
      %v1476 = vmax.f32 %v1194, 0.0
      %v1477 = vmax.f32 %v1243, 0.0
      %v1478 = vmax.f32 %v1292, 0.0
      %v1479 = vmax.f32 %v1341, 0.0
      %v1480 = vmax.f32 %v1390, 0.0
      %v1481 = vmax.f32 %v1049, 0.0
      %v1482 = vmax.f32 %v1098, 0.0
      %v1483 = vmax.f32 %v1147, 0.0
      %v1484 = vmax.f32 %v1196, 0.0
      %v1485 = vmax.f32 %v1245, 0.0
      %v1486 = vmax.f32 %v1294, 0.0
      %v1487 = vmax.f32 %v1343, 0.0
      %v1488 = vmax.f32 %v1392, 0.0
      %v1489 = vmax.f32 %v1052, 0.0
      %v1490 = vmax.f32 %v1101, 0.0
      %v1491 = vmax.f32 %v1150, 0.0
      %v1492 = vmax.f32 %v1199, 0.0
      %v1493 = vmax.f32 %v1248, 0.0
      %v1494 = vmax.f32 %v1297, 0.0
      %v1495 = vmax.f32 %v1346, 0.0
      %v1496 = vmax.f32 %v1395, 0.0
      %v1497 = vmax.f32 %v1054, 0.0
      %v1498 = vmax.f32 %v1103, 0.0
      %v1499 = vmax.f32 %v1152, 0.0
      %v1500 = vmax.f32 %v1201, 0.0
      %v1501 = vmax.f32 %v1250, 0.0
      %v1502 = vmax.f32 %v1299, 0.0
      %v1503 = vmax.f32 %v1348, 0.0
      %v1504 = vmax.f32 %v1397, 0.0
      %v1505 = vmax.f32 %v1057, 0.0
      %v1506 = vmax.f32 %v1106, 0.0
      %v1507 = vmax.f32 %v1155, 0.0
      %v1508 = vmax.f32 %v1204, 0.0
      %v1509 = vmax.f32 %v1253, 0.0
      %v1510 = vmax.f32 %v1302, 0.0
      %v1511 = vmax.f32 %v1351, 0.0
      %v1512 = vmax.f32 %v1400, 0.0
      %v1513 = vmax.f32 %v1059, 0.0
      %v1514 = vmax.f32 %v1108, 0.0
      %v1515 = vmax.f32 %v1157, 0.0
      %v1516 = vmax.f32 %v1206, 0.0
      %v1517 = vmax.f32 %v1255, 0.0
      %v1518 = vmax.f32 %v1304, 0.0
      %v1519 = vmax.f32 %v1353, 0.0
      %v1520 = vmax.f32 %v1402, 0.0
      %v1521 = vmax.f32 %v1062, 0.0
      %v1522 = vmax.f32 %v1111, 0.0
      %v1523 = vmax.f32 %v1160, 0.0
      %v1524 = vmax.f32 %v1209, 0.0
      %v1525 = vmax.f32 %v1258, 0.0
      %v1526 = vmax.f32 %v1307, 0.0
      %v1527 = vmax.f32 %v1356, 0.0
      %v1528 = vmax.f32 %v1405, 0.0
      %v1529 = vmax.f32 %v1064, 0.0
      %v1530 = vmax.f32 %v1113, 0.0
      %v1531 = vmax.f32 %v1162, 0.0
      %v1532 = vmax.f32 %v1211, 0.0
      %v1533 = vmax.f32 %v1260, 0.0
      %v1534 = vmax.f32 %v1309, 0.0
      %v1535 = vmax.f32 %v1358, 0.0
      %v1536 = vmax.f32 %v1407, 0.0
      %v1537 = vld [vmem:[#allocation2] sm:$0xff]
      %v1538 = vmax.f32 %v1409, %v1417
      %v1539 = vmax.f32 %v1538, %v1425
      %v1540 = vmax.f32 %v1539, %v1433
      %v1541 = vmax.f32 %v1540, %v1441
      %v1542 = vmax.f32 %v1541, %v1449
      %v1543 = vmax.f32 %v1542, %v1457
      %v1544 = vmax.f32 %v1543, %v1465
      %v1545 = vmax.f32 %v1544, %v1473
      %v1546 = vmax.f32 %v1545, %v1481
      %v1547 = vmax.f32 %v1546, %v1489
      %v1548 = vmax.f32 %v1547, %v1497
      %v1549 = vmax.f32 %v1548, %v1505
      %v1550 = vmax.f32 %v1549, %v1513
      %v1551 = vmax.f32 %v1550, %v1521
      %v1552 = vmax.f32 %v1551, %v1529
      %v1553 = vrot.slane %v1552, 4
      %v1554 = vmax.f32 %v1552, %v1553
      %v1555 = vrot.slane %v1554, 2
      %v1556 = vmax.f32 %v1554, %v1555
      %v1557 = vrot.slane %v1556, 1
      %v1558 = vmax.f32 %v1556, %v1557
      %v1559 = vmax.f32 %v1410, %v1418
      %v1560 = vmax.f32 %v1559, %v1426
      %v1561 = vmax.f32 %v1560, %v1434
      %v1562 = vmax.f32 %v1561, %v1442
      %v1563 = vmax.f32 %v1562, %v1450
      %v1564 = vmax.f32 %v1563, %v1458
      %v1565 = vmax.f32 %v1564, %v1466
      %v1566 = vmax.f32 %v1565, %v1474
      %v1567 = vmax.f32 %v1566, %v1482
      %v1568 = vmax.f32 %v1567, %v1490
      %v1569 = vmax.f32 %v1568, %v1498
      %v1570 = vmax.f32 %v1569, %v1506
      %v1571 = vmax.f32 %v1570, %v1514
      %v1572 = vmax.f32 %v1571, %v1522
      %v1573 = vmax.f32 %v1572, %v1530
      %v1574 = vrot.slane %v1573, 4
      %v1575 = vmax.f32 %v1573, %v1574
      %v1576 = vrot.slane %v1575, 2
      %v1577 = vmax.f32 %v1575, %v1576
      %v1578 = vrot.slane %v1577, 1
      %v1579 = vmax.f32 %v1577, %v1578
      %v1580 = vmax.f32 %v1411, %v1419
      %v1581 = vmax.f32 %v1580, %v1427
      %v1582 = vmax.f32 %v1581, %v1435
      %v1583 = vmax.f32 %v1582, %v1443
      %v1584 = vmax.f32 %v1583, %v1451
      %v1585 = vmax.f32 %v1584, %v1459
      %v1586 = vmax.f32 %v1585, %v1467
      %v1587 = vmax.f32 %v1586, %v1475
      %v1588 = vmax.f32 %v1587, %v1483
      %v1589 = vmax.f32 %v1588, %v1491
      %v1590 = vmax.f32 %v1589, %v1499
      %v1591 = vmax.f32 %v1590, %v1507
      %v1592 = vmax.f32 %v1591, %v1515
      %v1593 = vmax.f32 %v1592, %v1523
      %v1594 = vmax.f32 %v1593, %v1531
      %v1595 = vrot.slane %v1594, 4
      %v1596 = vmax.f32 %v1594, %v1595
      %v1597 = vrot.slane %v1596, 2
      %v1598 = vmax.f32 %v1596, %v1597
      %v1599 = vrot.slane %v1598, 1
      %v1600 = vmax.f32 %v1598, %v1599
      %v1601 = vmax.f32 %v1412, %v1420
      %v1602 = vmax.f32 %v1601, %v1428
      %v1603 = vmax.f32 %v1602, %v1436
      %v1604 = vmax.f32 %v1603, %v1444
      %v1605 = vmax.f32 %v1604, %v1452
      %v1606 = vmax.f32 %v1605, %v1460
      %v1607 = vmax.f32 %v1606, %v1468
      %v1608 = vmax.f32 %v1607, %v1476
      %v1609 = vmax.f32 %v1608, %v1484
      %v1610 = vmax.f32 %v1609, %v1492
      %v1611 = vmax.f32 %v1610, %v1500
      %v1612 = vmax.f32 %v1611, %v1508
      %v1613 = vmax.f32 %v1612, %v1516
      %v1614 = vmax.f32 %v1613, %v1524
      %v1615 = vmax.f32 %v1614, %v1532
      %v1616 = vrot.slane %v1615, 4
      %v1617 = vmax.f32 %v1615, %v1616
      %v1618 = vrot.slane %v1617, 2
      %v1619 = vmax.f32 %v1617, %v1618
      %v1620 = vrot.slane %v1619, 1
      %v1621 = vmax.f32 %v1619, %v1620
      %v1622 = vmax.f32 %v1413, %v1421
      %v1623 = vmax.f32 %v1622, %v1429
      %v1624 = vmax.f32 %v1623, %v1437
      %v1625 = vmax.f32 %v1624, %v1445
      %v1626 = vmax.f32 %v1625, %v1453
      %v1627 = vmax.f32 %v1626, %v1461
      %v1628 = vmax.f32 %v1627, %v1469
      %v1629 = vmax.f32 %v1628, %v1477
      %v1630 = vmax.f32 %v1629, %v1485
      %v1631 = vmax.f32 %v1630, %v1493
      %v1632 = vmax.f32 %v1631, %v1501
      %v1633 = vmax.f32 %v1632, %v1509
      %v1634 = vmax.f32 %v1633, %v1517
      %v1635 = vmax.f32 %v1634, %v1525
      %v1636 = vmax.f32 %v1635, %v1533
      %v1637 = vrot.slane %v1636, 4
      %v1638 = vmax.f32 %v1636, %v1637
      %v1639 = vrot.slane %v1638, 2
      %v1640 = vmax.f32 %v1638, %v1639
      %v1641 = vrot.slane %v1640, 1
      %v1642 = vmax.f32 %v1640, %v1641
      %v1643 = vmax.f32 %v1414, %v1422
      %v1644 = vmax.f32 %v1643, %v1430
      %v1645 = vmax.f32 %v1644, %v1438
      %v1646 = vmax.f32 %v1645, %v1446
      %v1647 = vmax.f32 %v1646, %v1454
      %v1648 = vmax.f32 %v1647, %v1462
      %v1649 = vmax.f32 %v1648, %v1470
      %v1650 = vmax.f32 %v1649, %v1478
      %v1651 = vmax.f32 %v1650, %v1486
      %v1652 = vmax.f32 %v1651, %v1494
      %v1653 = vmax.f32 %v1652, %v1502
      %v1654 = vmax.f32 %v1653, %v1510
      %v1655 = vmax.f32 %v1654, %v1518
      %v1656 = vmax.f32 %v1655, %v1526
      %v1657 = vmax.f32 %v1656, %v1534
      %v1658 = vrot.slane %v1657, 4
      %v1659 = vmax.f32 %v1657, %v1658
      %v1660 = vrot.slane %v1659, 2
      %v1661 = vmax.f32 %v1659, %v1660
      %v1662 = vrot.slane %v1661, 1
      %v1663 = vmax.f32 %v1661, %v1662
      %v1664 = vmax.f32 %v1415, %v1423
      %v1665 = vmax.f32 %v1664, %v1431
      %v1666 = vmax.f32 %v1665, %v1439
      %v1667 = vmax.f32 %v1666, %v1447
      %v1668 = vmax.f32 %v1667, %v1455
      %v1669 = vmax.f32 %v1668, %v1463
      %v1670 = vmax.f32 %v1669, %v1471
      %v1671 = vmax.f32 %v1670, %v1479
      %v1672 = vmax.f32 %v1671, %v1487
      %v1673 = vmax.f32 %v1672, %v1495
      %v1674 = vmax.f32 %v1673, %v1503
      %v1675 = vmax.f32 %v1674, %v1511
      %v1676 = vmax.f32 %v1675, %v1519
      %v1677 = vmax.f32 %v1676, %v1527
      %v1678 = vmax.f32 %v1677, %v1535
      %v1679 = vrot.slane %v1678, 4
      %v1680 = vmax.f32 %v1678, %v1679
      %v1681 = vrot.slane %v1680, 2
      %v1682 = vmax.f32 %v1680, %v1681
      %v1683 = vrot.slane %v1682, 1
      %v1684 = vmax.f32 %v1682, %v1683
      %v1685 = vmax.f32 %v1416, %v1424
      %v1686 = vmax.f32 %v1685, %v1432
      %v1687 = vmax.f32 %v1686, %v1440
      %v1688 = vmax.f32 %v1687, %v1448
      %v1689 = vmax.f32 %v1688, %v1456
      %v1690 = vmax.f32 %v1689, %v1464
      %v1691 = vmax.f32 %v1690, %v1472
      %v1692 = vmax.f32 %v1691, %v1480
      %v1693 = vmax.f32 %v1692, %v1488
      %v1694 = vmax.f32 %v1693, %v1496
      %v1695 = vmax.f32 %v1694, %v1504
      %v1696 = vmax.f32 %v1695, %v1512
      %v1697 = vmax.f32 %v1696, %v1520
      %v1698 = vmax.f32 %v1697, %v1528
      %v1699 = vmax.f32 %v1698, %v1536
      %v1700 = vrot.slane %v1699, 4
      %v1701 = vmax.f32 %v1699, %v1700
      %v1702 = vrot.slane %v1701, 2
      %v1703 = vmax.f32 %v1701, %v1702
      %v1704 = vrot.slane %v1703, 1
      %v1705 = vmax.f32 %v1703, %v1704
      %v1714 = vrot.slane %v1579, 7
      %v1715 = vrot.slane %v1600, 6
      %v1716 = vrot.slane %v1621, 5
      %v1717 = vrot.slane %v1642, 4
      %v1718 = vrot.slane %v1663, 3
      %v1719 = vrot.slane %v1684, 2
      %v1720 = vrot.slane %v1705, 1
      %vm1721 = vcmask 1040384
      %v1722 = vsel %vm1721, %v1558, %v1714
      %vm1723 = vcmask 1042434
      %v1724 = vsel %vm1723, %v1715, %v1716
      %vm1725 = vcmask 1041408
      %v1726 = vsel %vm1725, %v1722, %v1724
      %vm1727 = vcmask 1044484
      %v1728 = vsel %vm1727, %v1717, %v1718
      %vm1729 = vcmask 1046534
      %v1730 = vsel %vm1729, %v1719, %v1720
      %vm1731 = vcmask 1045508
      %v1732 = vsel %vm1731, %v1728, %v1730
      %vm1733 = vcmask 1043456
      %v1734 = vsel %vm1733, %v1726, %v1732
      %v1736 = vmax.f32 %v1537, %v1734
      %1737 = vst [vmem:[#allocation2] sm:$0xff] %v1736
      // Predicated region
      $region53: #{fe_forward.8} parent=47 // pred_check
        %p1738 = pneg %p305
      $region54: #{fe_forward.8} parent=47 // pred_check_branch
        %1740 = sbr.rel (%p1738) target = $region56
      $region55: #{fe_forward.8} parent=47 // pred_region
        %v1741 = vld [vmem:[#allocation2] sm:$0xff]
        %1742 = vst [vmem:[%s304] sm:$0xff] %v1741
      $region56: #{fe_forward.8} parent=47 // pred_fallthru
        _
      %p1743 = scmp.lt.s32.totalorder %s22, 1
      %s1744 = scalar_select %p1743, %s22, 1
      %s1745 = smul.addr %s1744, 8
      %s1746 = scalar_lea.vmem %s7, %s1745
      // Predicated region
      $region57: #{fe_forward.8} parent=47 // pred_check
        %p1747 = pneg %p202
      $region58: #{fe_forward.8} parent=47 // pred_check_branch
        %1749 = sbr.rel (%p1747) target = $region60
      $region59: #{fe_forward.8} parent=47 // pred_region
        _
      $region60: #{fe_forward.8} parent=47 // pred_fallthru
        _
    $region48: #{fe_forward.8} parent=5 // pred_fallthru
      _
    %p1750 = scmp.le.s32.totalorder 2, %s13
    // Predicated region
    $region61: #{fe_forward.8} parent=5 // pred_check
      %p1751 = pneg %p1750
    $region62: #{fe_forward.8} parent=5 // pred_check_branch
      %1753 = sbr.rel (%p1751) target = $region64
    $region63: #{fe_forward.8} parent=5 // pred_region
      %s1754 = ssub.s32 %s13, 2
      // Predicated region
      $region65: #{fe_forward.8} parent=63 // pred_check
        %p1755 = pneg %p208
      $region66: #{fe_forward.8} parent=63 // pred_check_branch
        %1757 = sbr.rel (%p1755) target = $region68
      $region67: #{fe_forward.8} parent=63 // pred_region
        %p1758 = scmp.lt.s32.totalorder %s24, 1
        %s1759 = scalar_select %p1758, %s24, 1
        %s1760 = smul.addr %s1759, 8
        %s1761 = scalar_lea.vmem %s7, %s1760
      $region68: #{fe_forward.8} parent=63 // pred_fallthru
        _
    $region64: #{fe_forward.8} parent=5 // pred_fallthru
      _
  $region6: #{fe_forward.8} parent=0 // loop_footer
    %s17 = sadd.s32 1, %s13
  $region7: #{fe_forward.8} parent=0 // loop_footer_branch
    %12 = sbr.rel target = $region3
  $region8: #{fe_forward.8} parent=0 // loop_exit
    _

// kernel: fe_forward.10
$region0: #{fe_forward.10}
  #allocation0 [shape = 'u32[]', space=smem, size = 0x4, offset = 0x4, fixed_abs, tag = 'smem constant byte address 0x4 - core index']
  #allocation1 [shape = 'u32[72,128]{1,0:T(1,128)}', space=vmem, size = 0x9000, scoped, tag = 'internal scratch']
  %s0 = inlined_call_operand.vmem [shape: f32[256,64], index: 0, kind: input, shape index: {}]
  %s1 = inlined_call_operand.vmem [shape: f32[64,64], index: 1, kind: input, shape index: {}]
  %s2 = inlined_call_operand.vmem [shape: f32[3,64], index: 2, kind: input, shape index: {}]
  %s3 = inlined_call_operand.vmem [shape: f32[256,64], index: 3, kind: output, shape index: {}]
  %s4 = sld [smem:[#allocation0]]
  $region45: #{fe_forward.10} parent=0
    _
  %s6 = ssub.s32 1, %s4
  %s7 = scalar_select 0, %s6, %s4
  loop: start=0, step=1, limit=4
  $region2: #{fe_forward.10} parent=0 // loop_pre_header
    _
  $region3: #{fe_forward.10} parent=0 // loop_header
    %s9 = sphi 0, %s13
    %p10 = scmp.ge.s32.totalorder %s9, 4
    %s19 = sphi 0, %s21
    %s22 = sphi 0, %s19
    %s23 = sphi 0, %s22
    %s39 = sphi 0, %s23
    %s43 = sphi 0, %s43
    %s45 = sphi 0, %s43
    %s46 = sphi 0, %s45
    %s60 = sphi 0, %s46
    %s64 = sphi 0, %s64
    %s66 = sphi 0, %s64
    %s67 = sphi 0, %s66
    %s81 = sphi 0, %s67
    %s87 = sphi 0, %s89
    %s90 = sphi 0, %s87
    %s91 = sphi 0, %s90
    %s107 = sphi 0, %s91
  $region4: #{fe_forward.10} parent=0 // loop_header_branch
    %12 = sbr.rel (%p10) target = $region8
  $region5: #{fe_forward.10} parent=0 // loop_body
    %s14 = ssub.s32 %s9, 1
    %s15 = ssub.s32 %s9, 2
    %s16 = sadd.s32 %s9, 1
    %s17 = ssub.s32 %s9, %s16
    %p18 = scmp.eq.s32.totalorder %s17, 0
    %s20 = sadd.s32 %s19, 1
    %s21 = scalar_select %p18, %s19, %s20
    %p24 = pneg %p18
    %p25 = scmp.eq.s32.totalorder %s9, 1
    %p26 = por %p24, %p25
    %p27 = scmp.ne.s32.totalorder %s19, %s22
    %p28 = scmp.eq.s32.totalorder %s9, 0
    %p29 = por %p27, %p28
    %p30 = scmp.ne.s32.totalorder %s19, %s22
    %p31 = scmp.eq.s32.totalorder %s14, 1
    %p32 = por %p30, %p31
    %p33 = scmp.ne.s32.totalorder %s22, %s23
    %p34 = scmp.eq.s32.totalorder %s14, 0
    %p35 = por %p33, %p34
    %p36 = scmp.ne.s32.totalorder %s22, %s23
    %p37 = scmp.eq.s32.totalorder %s15, 1
    %p38 = por %p36, %p37
    %p40 = scmp.ne.s32.totalorder %s23, %s39
    %p41 = scmp.eq.s32.totalorder %s15, 0
    %p42 = por %p40, %p41
    %s44 = sadd.s32 %s43, 1
    %p47 = scmp.eq.s32.totalorder %s9, 1
    %p48 = scmp.ne.s32.totalorder %s43, %s45
    %p49 = scmp.eq.s32.totalorder %s9, 0
    %p50 = por %p48, %p49
    %p51 = scmp.ne.s32.totalorder %s43, %s45
    %p52 = scmp.eq.s32.totalorder %s14, 1
    %p53 = por %p51, %p52
    %p54 = scmp.ne.s32.totalorder %s45, %s46
    %p55 = scmp.eq.s32.totalorder %s14, 0
    %p56 = por %p54, %p55
    %p57 = scmp.ne.s32.totalorder %s45, %s46
    %p58 = scmp.eq.s32.totalorder %s15, 1
    %p59 = por %p57, %p58
    %p61 = scmp.ne.s32.totalorder %s46, %s60
    %p62 = scmp.eq.s32.totalorder %s15, 0
    %p63 = por %p61, %p62
    %s65 = sadd.s32 %s64, 1
    %p68 = scmp.eq.s32.totalorder %s9, 1
    %p69 = scmp.ne.s32.totalorder %s64, %s66
    %p70 = scmp.eq.s32.totalorder %s9, 0
    %p71 = por %p69, %p70
    %p72 = scmp.ne.s32.totalorder %s64, %s66
    %p73 = scmp.eq.s32.totalorder %s14, 1
    %p74 = por %p72, %p73
    %p75 = scmp.ne.s32.totalorder %s66, %s67
    %p76 = scmp.eq.s32.totalorder %s14, 0
    %p77 = por %p75, %p76
    %p78 = scmp.ne.s32.totalorder %s66, %s67
    %p79 = scmp.eq.s32.totalorder %s15, 1
    %p80 = por %p78, %p79
    %p82 = scmp.ne.s32.totalorder %s67, %s81
    %p83 = scmp.eq.s32.totalorder %s15, 0
    %p84 = por %p82, %p83
    %s85 = ssub.s32 %s9, %s16
    %p86 = scmp.eq.s32.totalorder %s85, 0
    %s88 = sadd.s32 %s87, 1
    %s89 = scalar_select %p86, %s87, %s88
    %p92 = pneg %p86
    %p93 = scmp.eq.s32.totalorder %s9, 1
    %p94 = por %p92, %p93
    %p95 = scmp.ne.s32.totalorder %s87, %s90
    %p96 = scmp.eq.s32.totalorder %s9, 0
    %p97 = por %p95, %p96
    %p98 = scmp.ne.s32.totalorder %s87, %s90
    %p99 = scmp.eq.s32.totalorder %s14, 1
    %p100 = por %p98, %p99
    %p101 = scmp.ne.s32.totalorder %s90, %s91
    %p102 = scmp.eq.s32.totalorder %s14, 0
    %p103 = por %p101, %p102
    %p104 = scmp.ne.s32.totalorder %s90, %s91
    %p105 = scmp.eq.s32.totalorder %s15, 1
    %p106 = por %p104, %p105
    %p108 = scmp.ne.s32.totalorder %s91, %s107
    %p109 = scmp.eq.s32.totalorder %s15, 0
    %p110 = por %p108, %p109
    %p111 = scmp.le.s32.totalorder 1, %s9
    %p112 = scmp.lt.s32.totalorder %s9, 3
    %p113 = pnand %p111, %p112
    %p114 = pneg %p113
    // Predicated region
    $region9: #{fe_forward.10} parent=5 // pred_check
      _
    $region10: #{fe_forward.10} parent=5 // pred_check_branch
      %116 = sbr.rel (%p113) target = $region12
    $region11: #{fe_forward.10} parent=5 // pred_region
      %s117 = ssub.s32 %s9, 1
      // Predicated region
      $region13: #{fe_forward.10} parent=11 // pred_check
        %p118 = pneg %p56
      $region14: #{fe_forward.10} parent=11 // pred_check_branch
        %120 = sbr.rel (%p118) target = $region16
      $region15: #{fe_forward.10} parent=11 // pred_region
        _
      $region16: #{fe_forward.10} parent=11 // pred_fallthru
        _
      // Predicated region
      $region17: #{fe_forward.10} parent=11 // pred_check
        %p121 = pneg %p77
      $region18: #{fe_forward.10} parent=11 // pred_check_branch
        %123 = sbr.rel (%p121) target = $region20
      $region19: #{fe_forward.10} parent=11 // pred_region
        _
      $region20: #{fe_forward.10} parent=11 // pred_fallthru
        _
    $region12: #{fe_forward.10} parent=5 // pred_fallthru
      _
    %p124 = scmp.lt.s32.totalorder %s9, 2
    // Predicated region
    $region21: #{fe_forward.10} parent=5 // pred_check
      %p125 = pneg %p124
    $region22: #{fe_forward.10} parent=5 // pred_check_branch
      %127 = sbr.rel (%p125) target = $region24
    $region23: #{fe_forward.10} parent=5 // pred_region
      // Predicated region
      $region25: #{fe_forward.10} parent=23 // pred_check
        %p128 = pneg %p29
      $region26: #{fe_forward.10} parent=23 // pred_check_branch
        %130 = sbr.rel (%p128) target = $region28
      $region27: #{fe_forward.10} parent=23 // pred_region
        %s131 = smul.u32 16, %s9
        %p132 = scmp.lt.s32.totalorder %s131, 31
        %s133 = scalar_select %p132, %s131, 31
        %s134 = smul.addr %s133, 8
        %s135 = scalar_lea.vmem %s0, %s134
        %s136 = smul.u32 16, %s9
      $region28: #{fe_forward.10} parent=23 // pred_fallthru
        _
    $region24: #{fe_forward.10} parent=5 // pred_fallthru
      _
    %p137 = scmp.le.s32.totalorder 1, %s9
    %p138 = scmp.lt.s32.totalorder %s9, 3
    %p139 = pnand %p137, %p138
    %p140 = pneg %p139
    // Predicated region
    $region29: #{fe_forward.10} parent=5 // pred_check
      _
    $region30: #{fe_forward.10} parent=5 // pred_check_branch
      %142 = sbr.rel (%p139) target = $region32
    $region31: #{fe_forward.10} parent=5 // pred_region
      %s143 = ssub.s32 %s9, 1
      %s144 = smul.u32 16, %s14
      %p145 = scmp.lt.s32.totalorder %s144, 31
      %s146 = scalar_select %p145, %s144, 31
      %s147 = smul.addr %s146, 8
      %s148 = scalar_lea.vmem %s0, %s147
      %p149 = pneg %p35
      %p150 = pneg %p32
      %p151 = pneg %p56
      %p152 = pneg %p53
      %p153 = pneg %p77
      %p154 = pneg %p74
      %p155 = pneg %p103
      %p156 = pneg %p100
      %s157 = smul.u32 16, %s14
      %p158 = scmp.lt.s32.totalorder %s157, 31
      %s159 = scalar_select %p158, %s157, 31
      %s160 = smul.addr %s159, 8
      %s161 = scalar_lea.vmem %s3, %s160
      %s162 = smul.u32 16, %s14
      %p163 = scmp.lt.s32.totalorder %s162, 31
      %s164 = scalar_select %p163, %s162, 31
      %s165 = smul.addr %s164, 8
      %s166 = scalar_lea.vmem %s0, %s165
      %s167 = smul.u32 16, %s14
      %s168 = smul.u32 16, %s14
      %p169 = scmp.lt.s32.totalorder %s168, 31
      %s170 = scalar_select %p169, %s168, 31
      %s171 = smul.addr %s170, 8
      %s172 = scalar_lea.vmem %s3, %s171
      %s173 = smul.u32 16, %s14
      %v174 = vld [vmem:[%s166] sm:$0xff]
      %v175 = vld [vmem:[%s166 + $0x8] sm:$0xff]
      %v176 = vld [vmem:[%s166 + $0x10] sm:$0xff]
      %v177 = vld [vmem:[%s166 + $0x18] sm:$0xff]
      %v178 = vld [vmem:[%s166 + $0x20] sm:$0xff]
      %v179 = vld [vmem:[%s166 + $0x28] sm:$0xff]
      %v180 = vld [vmem:[%s166 + $0x30] sm:$0xff]
      %v181 = vld [vmem:[%s166 + $0x38] sm:$0xff]
      %v182 = vld [vmem:[%s166 + $0x40] sm:$0xff]
      %v183 = vld [vmem:[%s166 + $0x48] sm:$0xff]
      %v184 = vld [vmem:[%s166 + $0x50] sm:$0xff]
      %v185 = vld [vmem:[%s166 + $0x58] sm:$0xff]
      %v186 = vld [vmem:[%s166 + $0x60] sm:$0xff]
      %v187 = vld [vmem:[%s166 + $0x68] sm:$0xff]
      %v188 = vld [vmem:[%s166 + $0x70] sm:$0xff]
      %v189 = vld [vmem:[%s166 + $0x78] sm:$0xff]
      %v190 = vld [vmem:[%s1] sm:$0xff]
      %v191 = vld [vmem:[%s1 + $0x8] sm:$0xff]
      %v192 = vld [vmem:[%s1 + $0x10] sm:$0xff]
      %v193 = vld [vmem:[%s1 + $0x18] sm:$0xff]
      %v194 = vld [vmem:[%s1 + $0x20] sm:$0xff]
      %v195 = vld [vmem:[%s1 + $0x28] sm:$0xff]
      %v196 = vld [vmem:[%s1 + $0x30] sm:$0xff]
      %v197 = vld [vmem:[%s1 + $0x38] sm:$0xff]
      %v198 = vld [vmem:[%s2] sm:$0x7]
      %v199 = vperm.slane %v198, 0
      %vm200 = vcmask 523264
      %v202 = vsel %vm200, %v174, 0
      %v205 = vsel %vm200, %v175, 0
      %v208 = vsel %vm200, %v176, 0
      %v211 = vsel %vm200, %v177, 0
      %v214 = vsel %vm200, %v178, 0
      %v217 = vsel %vm200, %v179, 0
      %v220 = vsel %vm200, %v180, 0
      %v223 = vsel %vm200, %v181, 0
      %v226 = vsel %vm200, %v182, 0
      %v229 = vsel %vm200, %v183, 0
      %v232 = vsel %vm200, %v184, 0
      %v235 = vsel %vm200, %v185, 0
      %v238 = vsel %vm200, %v186, 0
      %v241 = vsel %vm200, %v187, 0
      %v244 = vsel %vm200, %v188, 0
      %v247 = vsel %vm200, %v189, 0
      %249 = vmatpush.msra.mxu0 0.0
      %250 = vmatpush.msra.mxu0 0.0
      %251 = vmatpush.msra.mxu0 0.0
      %252 = vmatpush.msra.mxu0 0.0
      %253 = vmatpush.msra.mxu0 0.0
      %254 = vmatpush.msra.mxu0 0.0
      %255 = vmatpush.msra.mxu0 0.0
      %256 = vmatpush.msra.mxu0 0.0
      %257 = vmatpush.msra.mxu0 %v197
      %258 = vmatpush.msra.mxu0 %v196
      %259 = vmatpush.msra.mxu0 %v195
      %260 = vmatpush.msra.mxu0 %v194
      %261 = vmatpush.msra.mxu0 %v193
      %262 = vmatpush.msra.mxu0 %v192
      %263 = vmatpush.msra.mxu0 %v191
      %264 = vmatpush.msra.mxu0 %v190
      %265 = vmatmul.f32.gmra.mxu0 %v202
      %v266 = vpop.f32.mrf.mxu0
      %v267 = vadd.f32 %v199, %v266
      %268 = vmatmul.f32.gmra.mxu0 %v205
      %v269 = vpop.f32.mrf.mxu0
      %v270 = vadd.f32 %v199, %v269
      %271 = vmatmul.f32.gmra.mxu0 %v208
      %v272 = vpop.f32.mrf.mxu0
      %v273 = vadd.f32 %v199, %v272
      %274 = vmatmul.f32.gmra.mxu0 %v211
      %v275 = vpop.f32.mrf.mxu0
      %v276 = vadd.f32 %v199, %v275
      %277 = vmatmul.f32.gmra.mxu0 %v214
      %v278 = vpop.f32.mrf.mxu0
      %v279 = vadd.f32 %v199, %v278
      %280 = vmatmul.f32.gmra.mxu0 %v217
      %v281 = vpop.f32.mrf.mxu0
      %v282 = vadd.f32 %v199, %v281
      %283 = vmatmul.f32.gmra.mxu0 %v220
      %v284 = vpop.f32.mrf.mxu0
      %v285 = vadd.f32 %v199, %v284
      %286 = vmatmul.f32.gmra.mxu0 %v223
      %v287 = vpop.f32.mrf.mxu0
      %v288 = vadd.f32 %v199, %v287
      %289 = vmatmul.f32.gmra.mxu0 %v226
      %v290 = vpop.f32.mrf.mxu0
      %v291 = vadd.f32 %v199, %v290
      %292 = vmatmul.f32.gmra.mxu0 %v229
      %v293 = vpop.f32.mrf.mxu0
      %v294 = vadd.f32 %v199, %v293
      %295 = vmatmul.f32.gmra.mxu0 %v232
      %v296 = vpop.f32.mrf.mxu0
      %v297 = vadd.f32 %v199, %v296
      %298 = vmatmul.f32.gmra.mxu0 %v235
      %v299 = vpop.f32.mrf.mxu0
      %v300 = vadd.f32 %v199, %v299
      %301 = vmatmul.f32.gmra.mxu0 %v238
      %v302 = vpop.f32.mrf.mxu0
      %v303 = vadd.f32 %v199, %v302
      %304 = vmatmul.f32.gmra.mxu0 %v241
      %v305 = vpop.f32.mrf.mxu0
      %v306 = vadd.f32 %v199, %v305
      %307 = vmatmul.f32.gmra.mxu0 %v244
      %v308 = vpop.f32.mrf.mxu0
      %v309 = vadd.f32 %v199, %v308
      %310 = vmatmul.f32.gmra.mxu0 %v247
      %v311 = vpop.f32.mrf.mxu0
      %v312 = vadd.f32 %v199, %v311
      %313 = vdwg.mxu0
      %v314 = vmax.f32 %v267, 0.0
      %v315 = vmax.f32 %v270, 0.0
      %v316 = vmax.f32 %v273, 0.0
      %v317 = vmax.f32 %v276, 0.0
      %v318 = vmax.f32 %v279, 0.0
      %v319 = vmax.f32 %v282, 0.0
      %v320 = vmax.f32 %v285, 0.0
      %v321 = vmax.f32 %v288, 0.0
      %v322 = vmax.f32 %v291, 0.0
      %v323 = vmax.f32 %v294, 0.0
      %v324 = vmax.f32 %v297, 0.0
      %v325 = vmax.f32 %v300, 0.0
      %v326 = vmax.f32 %v303, 0.0
      %v327 = vmax.f32 %v306, 0.0
      %v328 = vmax.f32 %v309, 0.0
      %v329 = vmax.f32 %v312, 0.0
      %v330 = vperm.slane %v198, 1
      %v331 = vmul.f32 %v314, %v330
      %v332 = vmul.f32 %v315, %v330
      %v333 = vmul.f32 %v316, %v330
      %v334 = vmul.f32 %v317, %v330
      %v335 = vmul.f32 %v318, %v330
      %v336 = vmul.f32 %v319, %v330
      %v337 = vmul.f32 %v320, %v330
      %v338 = vmul.f32 %v321, %v330
      %v339 = vmul.f32 %v322, %v330
      %v340 = vmul.f32 %v323, %v330
      %v341 = vmul.f32 %v324, %v330
      %v342 = vmul.f32 %v325, %v330
      %v343 = vmul.f32 %v326, %v330
      %v344 = vmul.f32 %v327, %v330
      %v345 = vmul.f32 %v328, %v330
      %v346 = vmul.f32 %v329, %v330
      %v347 = vperm.slane %v198, 2
      %v348 = vadd.f32 %v331, %v347
      %v349 = vadd.f32 %v332, %v347
      %v350 = vadd.f32 %v333, %v347
      %v351 = vadd.f32 %v334, %v347
      %v352 = vadd.f32 %v335, %v347
      %v353 = vadd.f32 %v336, %v347
      %v354 = vadd.f32 %v337, %v347
      %v355 = vadd.f32 %v338, %v347
      %v356 = vadd.f32 %v339, %v347
      %v357 = vadd.f32 %v340, %v347
      %v358 = vadd.f32 %v341, %v347
      %v359 = vadd.f32 %v342, %v347
      %v360 = vadd.f32 %v343, %v347
      %v361 = vadd.f32 %v344, %v347
      %v362 = vadd.f32 %v345, %v347
      %v363 = vadd.f32 %v346, %v347
      %364 = vst.msk [vmem:[%s172] sm:$0xff] %vm200, %v348
      %365 = vst.msk [vmem:[%s172 + $0x8] sm:$0xff] %vm200, %v349
      %366 = vst.msk [vmem:[%s172 + $0x10] sm:$0xff] %vm200, %v350
      %367 = vst.msk [vmem:[%s172 + $0x18] sm:$0xff] %vm200, %v351
      %368 = vst.msk [vmem:[%s172 + $0x20] sm:$0xff] %vm200, %v352
      %369 = vst.msk [vmem:[%s172 + $0x28] sm:$0xff] %vm200, %v353
      %370 = vst.msk [vmem:[%s172 + $0x30] sm:$0xff] %vm200, %v354
      %371 = vst.msk [vmem:[%s172 + $0x38] sm:$0xff] %vm200, %v355
      %372 = vst.msk [vmem:[%s172 + $0x40] sm:$0xff] %vm200, %v356
      %373 = vst.msk [vmem:[%s172 + $0x48] sm:$0xff] %vm200, %v357
      %374 = vst.msk [vmem:[%s172 + $0x50] sm:$0xff] %vm200, %v358
      %375 = vst.msk [vmem:[%s172 + $0x58] sm:$0xff] %vm200, %v359
      %376 = vst.msk [vmem:[%s172 + $0x60] sm:$0xff] %vm200, %v360
      %377 = vst.msk [vmem:[%s172 + $0x68] sm:$0xff] %vm200, %v361
      %378 = vst.msk [vmem:[%s172 + $0x70] sm:$0xff] %vm200, %v362
      %379 = vst.msk [vmem:[%s172 + $0x78] sm:$0xff] %vm200, %v363
      %s380 = smul.u32 16, %s14
      %p381 = scmp.lt.s32.totalorder %s380, 31
      %s382 = scalar_select %p381, %s380, 31
      %s383 = smul.addr %s382, 8
      %s384 = scalar_lea.vmem %s3, %s383
      // Predicated region
      $region33: #{fe_forward.10} parent=31 // pred_check
        %p385 = pneg %p100
      $region34: #{fe_forward.10} parent=31 // pred_check_branch
        %387 = sbr.rel (%p385) target = $region36
      $region35: #{fe_forward.10} parent=31 // pred_region
        %s388 = smul.u32 16, %s14
      $region36: #{fe_forward.10} parent=31 // pred_fallthru
        _
    $region32: #{fe_forward.10} parent=5 // pred_fallthru
      _
    %p389 = scmp.le.s32.totalorder 2, %s9
    // Predicated region
    $region37: #{fe_forward.10} parent=5 // pred_check
      %p390 = pneg %p389
    $region38: #{fe_forward.10} parent=5 // pred_check_branch
      %392 = sbr.rel (%p390) target = $region40
    $region39: #{fe_forward.10} parent=5 // pred_region
      %s393 = ssub.s32 %s9, 2
      // Predicated region
      $region41: #{fe_forward.10} parent=39 // pred_check
        %p394 = pneg %p106
      $region42: #{fe_forward.10} parent=39 // pred_check_branch
        %396 = sbr.rel (%p394) target = $region44
      $region43: #{fe_forward.10} parent=39 // pred_region
        %s397 = smul.u32 16, %s15
        %p398 = scmp.lt.s32.totalorder %s397, 31
        %s399 = scalar_select %p398, %s397, 31
        %s400 = smul.addr %s399, 8
        %s401 = scalar_lea.vmem %s3, %s400
      $region44: #{fe_forward.10} parent=39 // pred_fallthru
        _
    $region40: #{fe_forward.10} parent=5 // pred_fallthru
      _
  $region6: #{fe_forward.10} parent=0 // loop_footer
    %s13 = sadd.s32 1, %s9
  $region7: #{fe_forward.10} parent=0 // loop_footer_branch
    %8 = sbr.rel target = $region3
  $region8: #{fe_forward.10} parent=0 // loop_exit
    _

// kernel: fe_forward.11
$region0: #{fe_forward.11}
  #allocation0 [shape = 'u32[]', space=smem, size = 0x4, offset = 0x4, fixed_abs, tag = 'smem constant byte address 0x4 - core index']
  #allocation1 [shape = 'u32[72,128]{1,0:T(1,128)}', space=vmem, size = 0x9000, scoped, tag = 'internal scratch']
  #allocation2 [shape = 'f32[1,1024]{1,0:T(1,128)}', space=vmem, size = 0x1000, scoped, tag = 'scratch operand']
  %s0 = inlined_call_operand.vmem [shape: f32[2,128,64], index: 0, kind: input, shape index: {}]
  %s1 = inlined_call_operand.vmem [shape: f32[64,64], index: 1, kind: input, shape index: {}]
  %s2 = inlined_call_operand.vmem [shape: f32[1,64], index: 2, kind: input, shape index: {}]
  %s3 = inlined_call_operand.vmem [shape: f32[64,128], index: 3, kind: input, shape index: {}]
  %s4 = inlined_call_operand.vmem [shape: f32[1,128], index: 4, kind: input, shape index: {}]
  %s5 = inlined_call_operand.vmem [shape: bf16[128,1024], index: 5, kind: input, shape index: {}]
  %s6 = inlined_call_operand.vmem [shape: f32[1,1024], index: 6, kind: input, shape index: {}]
  %s7 = inlined_call_operand.vmem [shape: f32[2,1,1024], index: 7, kind: output, shape index: {}]
  %s8 = sld [smem:[#allocation0]]
  $region69: #{fe_forward.11} parent=0
    _
  %s10 = ssub.s32 1, %s8
  %s11 = scalar_select 0, %s10, %s8
  loop: start=0, step=1, limit=4
  $region2: #{fe_forward.11} parent=0 // loop_pre_header
    _
  $region3: #{fe_forward.11} parent=0 // loop_header
    %s13 = sphi 0, %s17
    %p14 = scmp.ge.s32.totalorder %s13, 4
    %s20 = sphi 0, %s32
    %s21 = sphi 0, %s28
    %s22 = sphi 0, %s20
    %s23 = sphi 0, %s21
    %s24 = sphi 0, %s22
    %s25 = sphi 0, %s23
    %s37 = sphi 0, %s39
    %s40 = sphi 0, %s37
    %s41 = sphi 0, %s40
    %s57 = sphi 0, %s41
    %s61 = sphi 0, %s61
    %s63 = sphi 0, %s61
    %s64 = sphi 0, %s63
    %s78 = sphi 0, %s64
    %s82 = sphi 0, %s82
    %s84 = sphi 0, %s82
    %s85 = sphi 0, %s84
    %s99 = sphi 0, %s85
    %s103 = sphi 0, %s103
    %s105 = sphi 0, %s103
    %s106 = sphi 0, %s105
    %s120 = sphi 0, %s106
    %s124 = sphi 0, %s124
    %s126 = sphi 0, %s124
    %s127 = sphi 0, %s126
    %s141 = sphi 0, %s127
    %s145 = sphi 0, %s145
    %s147 = sphi 0, %s145
    %s148 = sphi 0, %s147
    %s162 = sphi 0, %s148
    %s166 = sphi 0, %s166
    %s168 = sphi 0, %s166
    %s169 = sphi 0, %s168
    %s183 = sphi 0, %s169
    %s189 = sphi 0, %s191
    %s192 = sphi 0, %s189
    %s193 = sphi 0, %s192
    %s209 = sphi 0, %s193
  $region4: #{fe_forward.11} parent=0 // loop_header_branch
    %16 = sbr.rel (%p14) target = $region8
  $region5: #{fe_forward.11} parent=0 // loop_body
    %s18 = ssub.s32 %s13, 1
    %s19 = ssub.s32 %s13, 2
    %s26 = sadd.s32 1, %s21
    %p27 = scmp.ge.s32.totalorder %s26, 1
    %s28 = scalar_select %p27, 0, %s26
    %s29 = sadd.s32 1, %s20
    %s30 = scalar_select %p27, %s29, %s20
    %p31 = scmp.ge.s32.totalorder %s30, 2
    %s32 = scalar_select %p31, 0, %s30
    %s33 = ssub.s32 %s20, %s32
    %s34 = ssub.s32 %s21, %s28
    %s35 = sor.u32 %s33, %s34
    %p36 = scmp.eq.s32.totalorder %s35, 0
    %s38 = sadd.s32 %s37, 1
    %s39 = scalar_select %p36, %s37, %s38
    %p42 = pneg %p36
    %p43 = scmp.eq.s32.totalorder %s13, 1
    %p44 = por %p42, %p43
    %p45 = scmp.ne.s32.totalorder %s37, %s40
    %p46 = scmp.eq.s32.totalorder %s13, 0
    %p47 = por %p45, %p46
    %p48 = scmp.ne.s32.totalorder %s37, %s40
    %p49 = scmp.eq.s32.totalorder %s18, 1
    %p50 = por %p48, %p49
    %p51 = scmp.ne.s32.totalorder %s40, %s41
    %p52 = scmp.eq.s32.totalorder %s18, 0
    %p53 = por %p51, %p52
    %p54 = scmp.ne.s32.totalorder %s40, %s41
    %p55 = scmp.eq.s32.totalorder %s19, 1
    %p56 = por %p54, %p55
    %p58 = scmp.ne.s32.totalorder %s41, %s57
    %p59 = scmp.eq.s32.totalorder %s19, 0
    %p60 = por %p58, %p59
    %s62 = sadd.s32 %s61, 1
    %p65 = scmp.eq.s32.totalorder %s13, 1
    %p66 = scmp.ne.s32.totalorder %s61, %s63
    %p67 = scmp.eq.s32.totalorder %s13, 0
    %p68 = por %p66, %p67
    %p69 = scmp.ne.s32.totalorder %s61, %s63
    %p70 = scmp.eq.s32.totalorder %s18, 1
    %p71 = por %p69, %p70
    %p72 = scmp.ne.s32.totalorder %s63, %s64
    %p73 = scmp.eq.s32.totalorder %s18, 0
    %p74 = por %p72, %p73
    %p75 = scmp.ne.s32.totalorder %s63, %s64
    %p76 = scmp.eq.s32.totalorder %s19, 1
    %p77 = por %p75, %p76
    %p79 = scmp.ne.s32.totalorder %s64, %s78
    %p80 = scmp.eq.s32.totalorder %s19, 0
    %p81 = por %p79, %p80
    %s83 = sadd.s32 %s82, 1
    %p86 = scmp.eq.s32.totalorder %s13, 1
    %p87 = scmp.ne.s32.totalorder %s82, %s84
    %p88 = scmp.eq.s32.totalorder %s13, 0
    %p89 = por %p87, %p88
    %p90 = scmp.ne.s32.totalorder %s82, %s84
    %p91 = scmp.eq.s32.totalorder %s18, 1
    %p92 = por %p90, %p91
    %p93 = scmp.ne.s32.totalorder %s84, %s85
    %p94 = scmp.eq.s32.totalorder %s18, 0
    %p95 = por %p93, %p94
    %p96 = scmp.ne.s32.totalorder %s84, %s85
    %p97 = scmp.eq.s32.totalorder %s19, 1
    %p98 = por %p96, %p97
    %p100 = scmp.ne.s32.totalorder %s85, %s99
    %p101 = scmp.eq.s32.totalorder %s19, 0
    %p102 = por %p100, %p101
    %s104 = sadd.s32 %s103, 1
    %p107 = scmp.eq.s32.totalorder %s13, 1
    %p108 = scmp.ne.s32.totalorder %s103, %s105
    %p109 = scmp.eq.s32.totalorder %s13, 0
    %p110 = por %p108, %p109
    %p111 = scmp.ne.s32.totalorder %s103, %s105
    %p112 = scmp.eq.s32.totalorder %s18, 1
    %p113 = por %p111, %p112
    %p114 = scmp.ne.s32.totalorder %s105, %s106
    %p115 = scmp.eq.s32.totalorder %s18, 0
    %p116 = por %p114, %p115
    %p117 = scmp.ne.s32.totalorder %s105, %s106
    %p118 = scmp.eq.s32.totalorder %s19, 1
    %p119 = por %p117, %p118
    %p121 = scmp.ne.s32.totalorder %s106, %s120
    %p122 = scmp.eq.s32.totalorder %s19, 0
    %p123 = por %p121, %p122
    %s125 = sadd.s32 %s124, 1
    %p128 = scmp.eq.s32.totalorder %s13, 1
    %p129 = scmp.ne.s32.totalorder %s124, %s126
    %p130 = scmp.eq.s32.totalorder %s13, 0
    %p131 = por %p129, %p130
    %p132 = scmp.ne.s32.totalorder %s124, %s126
    %p133 = scmp.eq.s32.totalorder %s18, 1
    %p134 = por %p132, %p133
    %p135 = scmp.ne.s32.totalorder %s126, %s127
    %p136 = scmp.eq.s32.totalorder %s18, 0
    %p137 = por %p135, %p136
    %p138 = scmp.ne.s32.totalorder %s126, %s127
    %p139 = scmp.eq.s32.totalorder %s19, 1
    %p140 = por %p138, %p139
    %p142 = scmp.ne.s32.totalorder %s127, %s141
    %p143 = scmp.eq.s32.totalorder %s19, 0
    %p144 = por %p142, %p143
    %s146 = sadd.s32 %s145, 1
    %p149 = scmp.eq.s32.totalorder %s13, 1
    %p150 = scmp.ne.s32.totalorder %s145, %s147
    %p151 = scmp.eq.s32.totalorder %s13, 0
    %p152 = por %p150, %p151
    %p153 = scmp.ne.s32.totalorder %s145, %s147
    %p154 = scmp.eq.s32.totalorder %s18, 1
    %p155 = por %p153, %p154
    %p156 = scmp.ne.s32.totalorder %s147, %s148
    %p157 = scmp.eq.s32.totalorder %s18, 0
    %p158 = por %p156, %p157
    %p159 = scmp.ne.s32.totalorder %s147, %s148
    %p160 = scmp.eq.s32.totalorder %s19, 1
    %p161 = por %p159, %p160
    %p163 = scmp.ne.s32.totalorder %s148, %s162
    %p164 = scmp.eq.s32.totalorder %s19, 0
    %p165 = por %p163, %p164
    %s167 = sadd.s32 %s166, 1
    %p170 = scmp.eq.s32.totalorder %s13, 1
    %p171 = scmp.ne.s32.totalorder %s166, %s168
    %p172 = scmp.eq.s32.totalorder %s13, 0
    %p173 = por %p171, %p172
    %p174 = scmp.ne.s32.totalorder %s166, %s168
    %p175 = scmp.eq.s32.totalorder %s18, 1
    %p176 = por %p174, %p175
    %p177 = scmp.ne.s32.totalorder %s168, %s169
    %p178 = scmp.eq.s32.totalorder %s18, 0
    %p179 = por %p177, %p178
    %p180 = scmp.ne.s32.totalorder %s168, %s169
    %p181 = scmp.eq.s32.totalorder %s19, 1
    %p182 = por %p180, %p181
    %p184 = scmp.ne.s32.totalorder %s169, %s183
    %p185 = scmp.eq.s32.totalorder %s19, 0
    %p186 = por %p184, %p185
    %s187 = ssub.s32 %s20, %s32
    %p188 = scmp.eq.s32.totalorder %s187, 0
    %s190 = sadd.s32 %s189, 1
    %s191 = scalar_select %p188, %s189, %s190
    %p194 = pneg %p188
    %p195 = scmp.eq.s32.totalorder %s13, 1
    %p196 = por %p194, %p195
    %p197 = scmp.ne.s32.totalorder %s189, %s192
    %p198 = scmp.eq.s32.totalorder %s13, 0
    %p199 = por %p197, %p198
    %p200 = scmp.ne.s32.totalorder %s189, %s192
    %p201 = scmp.eq.s32.totalorder %s18, 1
    %p202 = por %p200, %p201
    %p203 = scmp.ne.s32.totalorder %s192, %s193
    %p204 = scmp.eq.s32.totalorder %s18, 0
    %p205 = por %p203, %p204
    %p206 = scmp.ne.s32.totalorder %s192, %s193
    %p207 = scmp.eq.s32.totalorder %s19, 1
    %p208 = por %p206, %p207
    %p210 = scmp.ne.s32.totalorder %s193, %s209
    %p211 = scmp.eq.s32.totalorder %s19, 0
    %p212 = por %p210, %p211
    %p213 = scmp.le.s32.totalorder 1, %s13
    %p214 = scmp.lt.s32.totalorder %s13, 3
    %p215 = pnand %p213, %p214
    %p216 = pneg %p215
    // Predicated region
    $region9: #{fe_forward.11} parent=5 // pred_check
      _
    $region10: #{fe_forward.11} parent=5 // pred_check_branch
      %218 = sbr.rel (%p215) target = $region12
    $region11: #{fe_forward.11} parent=5 // pred_region
      %s219 = ssub.s32 %s13, 1
      // Predicated region
      $region13: #{fe_forward.11} parent=11 // pred_check
        %p220 = pneg %p74
      $region14: #{fe_forward.11} parent=11 // pred_check_branch
        %222 = sbr.rel (%p220) target = $region16
      $region15: #{fe_forward.11} parent=11 // pred_region
        _
      $region16: #{fe_forward.11} parent=11 // pred_fallthru
        _
      // Predicated region
      $region17: #{fe_forward.11} parent=11 // pred_check
        %p223 = pneg %p95
      $region18: #{fe_forward.11} parent=11 // pred_check_branch
        %225 = sbr.rel (%p223) target = $region20
      $region19: #{fe_forward.11} parent=11 // pred_region
        _
      $region20: #{fe_forward.11} parent=11 // pred_fallthru
        _
      // Predicated region
      $region21: #{fe_forward.11} parent=11 // pred_check
        %p226 = pneg %p116
      $region22: #{fe_forward.11} parent=11 // pred_check_branch
        %228 = sbr.rel (%p226) target = $region24
      $region23: #{fe_forward.11} parent=11 // pred_region
        _
      $region24: #{fe_forward.11} parent=11 // pred_fallthru
        _
      // Predicated region
      $region25: #{fe_forward.11} parent=11 // pred_check
        %p229 = pneg %p137
      $region26: #{fe_forward.11} parent=11 // pred_check_branch
        %231 = sbr.rel (%p229) target = $region28
      $region27: #{fe_forward.11} parent=11 // pred_region
        _
      $region28: #{fe_forward.11} parent=11 // pred_fallthru
        _
      // Predicated region
      $region29: #{fe_forward.11} parent=11 // pred_check
        %p232 = pneg %p158
      $region30: #{fe_forward.11} parent=11 // pred_check_branch
        %234 = sbr.rel (%p232) target = $region32
      $region31: #{fe_forward.11} parent=11 // pred_region
        _
      $region32: #{fe_forward.11} parent=11 // pred_fallthru
        _
      // Predicated region
      $region33: #{fe_forward.11} parent=11 // pred_check
        %p235 = pneg %p179
      $region34: #{fe_forward.11} parent=11 // pred_check_branch
        %237 = sbr.rel (%p235) target = $region36
      $region35: #{fe_forward.11} parent=11 // pred_region
        _
      $region36: #{fe_forward.11} parent=11 // pred_fallthru
        _
    $region12: #{fe_forward.11} parent=5 // pred_fallthru
      _
    %p238 = scmp.lt.s32.totalorder %s13, 2
    // Predicated region
    $region37: #{fe_forward.11} parent=5 // pred_check
      %p239 = pneg %p238
    $region38: #{fe_forward.11} parent=5 // pred_check_branch
      %241 = sbr.rel (%p239) target = $region40
    $region39: #{fe_forward.11} parent=5 // pred_region
      // Predicated region
      $region41: #{fe_forward.11} parent=39 // pred_check
        %p242 = pneg %p47
      $region42: #{fe_forward.11} parent=39 // pred_check_branch
        %244 = sbr.rel (%p242) target = $region44
      $region43: #{fe_forward.11} parent=39 // pred_region
        %s245 = smul.u32 16, %s21
        %p246 = scmp.lt.s32.totalorder %s20, 1
        %s247 = scalar_select %p246, %s20, 1
        %p248 = scmp.lt.s32.totalorder %s245, 15
        %s249 = scalar_select %p248, %s245, 15
        %s250 = smul.addr %s247, 16
        %s251 = sadd.s32 %s249, %s250
        %s252 = smul.addr %s251, 8
        %s253 = scalar_lea.vmem %s0, %s252
        %s254 = smul.u32 16, %s21
      $region44: #{fe_forward.11} parent=39 // pred_fallthru
        _
    $region40: #{fe_forward.11} parent=5 // pred_fallthru
      _
    %p255 = scmp.le.s32.totalorder 1, %s13
    %p256 = scmp.lt.s32.totalorder %s13, 3
    %p257 = pnand %p255, %p256
    %p258 = pneg %p257
    // Predicated region
    $region45: #{fe_forward.11} parent=5 // pred_check
      _
    $region46: #{fe_forward.11} parent=5 // pred_check_branch
      %260 = sbr.rel (%p257) target = $region48
    $region47: #{fe_forward.11} parent=5 // pred_region
      %s261 = ssub.s32 %s13, 1
      %s262 = smul.u32 16, %s23
      %p263 = scmp.lt.s32.totalorder %s22, 1
      %s264 = scalar_select %p263, %s22, 1
      %p265 = scmp.lt.s32.totalorder %s262, 15
      %s266 = scalar_select %p265, %s262, 15
      %s267 = smul.addr %s264, 16
      %s268 = sadd.s32 %s266, %s267
      %s269 = smul.addr %s268, 8
      %s270 = scalar_lea.vmem %s0, %s269
      %p271 = pneg %p53
      %p272 = pneg %p50
      %p273 = pneg %p74
      %p274 = pneg %p71
      %p275 = pneg %p95
      %p276 = pneg %p92
      %p277 = pneg %p116
      %p278 = pneg %p113
      %p279 = pneg %p137
      %p280 = pneg %p134
      %p281 = pneg %p158
      %p282 = pneg %p155
      %p283 = pneg %p179
      %p284 = pneg %p176
      %p285 = pneg %p205
      %p286 = pneg %p202
      %p287 = scmp.lt.s32.totalorder %s22, 1
      %s288 = scalar_select %p287, %s22, 1
      %s289 = smul.addr %s288, 8
      %s290 = scalar_lea.vmem %s7, %s289
      %s291 = smul.u32 16, %s23
      %p292 = scmp.lt.s32.totalorder %s22, 1
      %s293 = scalar_select %p292, %s22, 1
      %p294 = scmp.lt.s32.totalorder %s291, 15
      %s295 = scalar_select %p294, %s291, 15
      %s296 = smul.addr %s293, 16
      %s297 = sadd.s32 %s295, %s296
      %s298 = smul.addr %s297, 8
      %s299 = scalar_lea.vmem %s0, %s298
      %s300 = smul.u32 16, %s23
      %p301 = scmp.lt.s32.totalorder %s22, 1
      %s302 = scalar_select %p301, %s22, 1
      %s303 = smul.addr %s302, 8
      %s304 = scalar_lea.vmem %s7, %s303
      %p305 = scmp.eq.s32.totalorder %s23, 0
      // Predicated region
      $region49: #{fe_forward.11} parent=47 // pred_check
        %p306 = pneg %p305
      $region50: #{fe_forward.11} parent=47 // pred_check_branch
        %308 = sbr.rel (%p306) target = $region52
      $region51: #{fe_forward.11} parent=47 // pred_region
        %309 = vst [vmem:[#allocation2] sm:$0xff] -inf
      $region52: #{fe_forward.11} parent=47 // pred_fallthru
        _
      %v310 = vld [vmem:[%s299] sm:$0xff]
      %v311 = vld [vmem:[%s299 + $0x8] sm:$0xff]
      %v312 = vld [vmem:[%s299 + $0x10] sm:$0xff]
      %v313 = vld [vmem:[%s299 + $0x18] sm:$0xff]
      %v314 = vld [vmem:[%s299 + $0x20] sm:$0xff]
      %v315 = vld [vmem:[%s299 + $0x28] sm:$0xff]
      %v316 = vld [vmem:[%s299 + $0x30] sm:$0xff]
      %v317 = vld [vmem:[%s299 + $0x38] sm:$0xff]
      %v318 = vld [vmem:[%s299 + $0x40] sm:$0xff]
      %v319 = vld [vmem:[%s299 + $0x48] sm:$0xff]
      %v320 = vld [vmem:[%s299 + $0x50] sm:$0xff]
      %v321 = vld [vmem:[%s299 + $0x58] sm:$0xff]
      %v322 = vld [vmem:[%s299 + $0x60] sm:$0xff]
      %v323 = vld [vmem:[%s299 + $0x68] sm:$0xff]
      %v324 = vld [vmem:[%s299 + $0x70] sm:$0xff]
      %v325 = vld [vmem:[%s299 + $0x78] sm:$0xff]
      %v326 = vld [vmem:[%s1] sm:$0xff]
      %v327 = vld [vmem:[%s1 + $0x8] sm:$0xff]
      %v328 = vld [vmem:[%s1 + $0x10] sm:$0xff]
      %v329 = vld [vmem:[%s1 + $0x18] sm:$0xff]
      %v330 = vld [vmem:[%s1 + $0x20] sm:$0xff]
      %v331 = vld [vmem:[%s1 + $0x28] sm:$0xff]
      %v332 = vld [vmem:[%s1 + $0x30] sm:$0xff]
      %v333 = vld [vmem:[%s1 + $0x38] sm:$0xff]
      %v334 = vld [vmem:[%s2] sm:$0x1]
      %v336 = vperm.slane %v334, 0
      %vm338 = vcmask 523264
      %v340 = vsel %vm338, %v310, 0
      %v343 = vsel %vm338, %v311, 0
      %v346 = vsel %vm338, %v312, 0
      %v349 = vsel %vm338, %v313, 0
      %v352 = vsel %vm338, %v314, 0
      %v355 = vsel %vm338, %v315, 0
      %v358 = vsel %vm338, %v316, 0
      %v361 = vsel %vm338, %v317, 0
      %v364 = vsel %vm338, %v318, 0
      %v367 = vsel %vm338, %v319, 0
      %v370 = vsel %vm338, %v320, 0
      %v373 = vsel %vm338, %v321, 0
      %v376 = vsel %vm338, %v322, 0
      %v379 = vsel %vm338, %v323, 0
      %v382 = vsel %vm338, %v324, 0
      %v385 = vsel %vm338, %v325, 0
      %387 = vmatpush.msra.mxu0 0.0
      %388 = vmatpush.msra.mxu0 0.0
      %389 = vmatpush.msra.mxu0 0.0
      %390 = vmatpush.msra.mxu0 0.0
      %391 = vmatpush.msra.mxu0 0.0
      %392 = vmatpush.msra.mxu0 0.0
      %393 = vmatpush.msra.mxu0 0.0
      %394 = vmatpush.msra.mxu0 0.0
      %395 = vmatpush.msra.mxu0 %v333
      %396 = vmatpush.msra.mxu0 %v332
      %397 = vmatpush.msra.mxu0 %v331
      %398 = vmatpush.msra.mxu0 %v330
      %399 = vmatpush.msra.mxu0 %v329
      %400 = vmatpush.msra.mxu0 %v328
      %401 = vmatpush.msra.mxu0 %v327
      %402 = vmatpush.msra.mxu0 %v326
      %403 = vmatmul.f32.gmra.mxu0 %v340
      %v404 = vpop.f32.mrf.mxu0
      %v405 = vadd.f32 %v336, %v404
      %406 = vmatmul.f32.gmra.mxu0 %v343
      %v407 = vpop.f32.mrf.mxu0
      %v408 = vadd.f32 %v336, %v407
      %409 = vmatmul.f32.gmra.mxu0 %v346
      %v410 = vpop.f32.mrf.mxu0
      %v411 = vadd.f32 %v336, %v410
      %412 = vmatmul.f32.gmra.mxu0 %v349
      %v413 = vpop.f32.mrf.mxu0
      %v414 = vadd.f32 %v336, %v413
      %415 = vmatmul.f32.gmra.mxu0 %v352
      %v416 = vpop.f32.mrf.mxu0
      %v417 = vadd.f32 %v336, %v416
      %418 = vmatmul.f32.gmra.mxu0 %v355
      %v419 = vpop.f32.mrf.mxu0
      %v420 = vadd.f32 %v336, %v419
      %421 = vmatmul.f32.gmra.mxu0 %v358
      %v422 = vpop.f32.mrf.mxu0
      %v423 = vadd.f32 %v336, %v422
      %424 = vmatmul.f32.gmra.mxu0 %v361
      %v425 = vpop.f32.mrf.mxu0
      %v426 = vadd.f32 %v336, %v425
      %427 = vmatmul.f32.gmra.mxu0 %v364
      %v428 = vpop.f32.mrf.mxu0
      %v429 = vadd.f32 %v336, %v428
      %430 = vmatmul.f32.gmra.mxu0 %v367
      %v431 = vpop.f32.mrf.mxu0
      %v432 = vadd.f32 %v336, %v431
      %433 = vmatmul.f32.gmra.mxu0 %v370
      %v434 = vpop.f32.mrf.mxu0
      %v435 = vadd.f32 %v336, %v434
      %436 = vmatmul.f32.gmra.mxu0 %v373
      %v437 = vpop.f32.mrf.mxu0
      %v438 = vadd.f32 %v336, %v437
      %439 = vmatmul.f32.gmra.mxu0 %v376
      %v440 = vpop.f32.mrf.mxu0
      %v441 = vadd.f32 %v336, %v440
      %442 = vmatmul.f32.gmra.mxu0 %v379
      %v443 = vpop.f32.mrf.mxu0
      %v444 = vadd.f32 %v336, %v443
      %445 = vmatmul.f32.gmra.mxu0 %v382
      %v446 = vpop.f32.mrf.mxu0
      %v447 = vadd.f32 %v336, %v446
      %448 = vmatmul.f32.gmra.mxu0 %v385
      %v449 = vpop.f32.mrf.mxu0
      %v450 = vadd.f32 %v336, %v449
      %451 = vdwg.mxu0
      %v452 = vmax.f32 %v405, 0.0
      %v453 = vmax.f32 %v408, 0.0
      %v454 = vmax.f32 %v411, 0.0
      %v455 = vmax.f32 %v414, 0.0
      %v456 = vmax.f32 %v417, 0.0
      %v457 = vmax.f32 %v420, 0.0
      %v458 = vmax.f32 %v423, 0.0
      %v459 = vmax.f32 %v426, 0.0
      %v460 = vmax.f32 %v429, 0.0
      %v461 = vmax.f32 %v432, 0.0
      %v462 = vmax.f32 %v435, 0.0
      %v463 = vmax.f32 %v438, 0.0
      %v464 = vmax.f32 %v441, 0.0
      %v465 = vmax.f32 %v444, 0.0
      %v466 = vmax.f32 %v447, 0.0
      %v467 = vmax.f32 %v450, 0.0
      %v468 = vld [vmem:[%s3] sm:$0xff]
      %v469 = vld [vmem:[%s3 + $0x8] sm:$0xff]
      %v470 = vld [vmem:[%s3 + $0x10] sm:$0xff]
      %v471 = vld [vmem:[%s3 + $0x18] sm:$0xff]
      %v472 = vld [vmem:[%s3 + $0x20] sm:$0xff]
      %v473 = vld [vmem:[%s3 + $0x28] sm:$0xff]
      %v474 = vld [vmem:[%s3 + $0x30] sm:$0xff]
      %v475 = vld [vmem:[%s3 + $0x38] sm:$0xff]
      %v476 = vld [vmem:[%s4] sm:$0x1]
      %v478 = vperm.slane %v476, 0
      %v481 = vsel %vm338, %v452, 0
      %v484 = vsel %vm338, %v453, 0
      %v487 = vsel %vm338, %v454, 0
      %v490 = vsel %vm338, %v455, 0
      %v493 = vsel %vm338, %v456, 0
      %v496 = vsel %vm338, %v457, 0
      %v499 = vsel %vm338, %v458, 0
      %v502 = vsel %vm338, %v459, 0
      %v505 = vsel %vm338, %v460, 0
      %v508 = vsel %vm338, %v461, 0
      %v511 = vsel %vm338, %v462, 0
      %v514 = vsel %vm338, %v463, 0
      %v517 = vsel %vm338, %v464, 0
      %v520 = vsel %vm338, %v465, 0
      %v523 = vsel %vm338, %v466, 0
      %v526 = vsel %vm338, %v467, 0
      %528 = vmatpush.msra.mxu0 0.0
      %529 = vmatpush.msra.mxu0 0.0
      %530 = vmatpush.msra.mxu0 0.0
      %531 = vmatpush.msra.mxu0 0.0
      %532 = vmatpush.msra.mxu0 0.0
      %533 = vmatpush.msra.mxu0 0.0
      %534 = vmatpush.msra.mxu0 0.0
      %535 = vmatpush.msra.mxu0 0.0
      %536 = vmatpush.msra.mxu0 %v475
      %537 = vmatpush.msra.mxu0 %v474
      %538 = vmatpush.msra.mxu0 %v473
      %539 = vmatpush.msra.mxu0 %v472
      %540 = vmatpush.msra.mxu0 %v471
      %541 = vmatpush.msra.mxu0 %v470
      %542 = vmatpush.msra.mxu0 %v469
      %543 = vmatpush.msra.mxu0 %v468
      %544 = vmatmul.f32.gmra.mxu0 %v481
      %v545 = vpop.f32.mrf.mxu0
      %v546 = vadd.f32 %v478, %v545
      %547 = vmatmul.f32.gmra.mxu0 %v484
      %v548 = vpop.f32.mrf.mxu0
      %v549 = vadd.f32 %v478, %v548
      %550 = vmatmul.f32.gmra.mxu0 %v487
      %v551 = vpop.f32.mrf.mxu0
      %v552 = vadd.f32 %v478, %v551
      %553 = vmatmul.f32.gmra.mxu0 %v490
      %v554 = vpop.f32.mrf.mxu0
      %v555 = vadd.f32 %v478, %v554
      %556 = vmatmul.f32.gmra.mxu0 %v493
      %v557 = vpop.f32.mrf.mxu0
      %v558 = vadd.f32 %v478, %v557
      %559 = vmatmul.f32.gmra.mxu0 %v496
      %v560 = vpop.f32.mrf.mxu0
      %v561 = vadd.f32 %v478, %v560
      %562 = vmatmul.f32.gmra.mxu0 %v499
      %v563 = vpop.f32.mrf.mxu0
      %v564 = vadd.f32 %v478, %v563
      %565 = vmatmul.f32.gmra.mxu0 %v502
      %v566 = vpop.f32.mrf.mxu0
      %v567 = vadd.f32 %v478, %v566
      %568 = vmatmul.f32.gmra.mxu0 %v505
      %v569 = vpop.f32.mrf.mxu0
      %v570 = vadd.f32 %v478, %v569
      %571 = vmatmul.f32.gmra.mxu0 %v508
      %v572 = vpop.f32.mrf.mxu0
      %v573 = vadd.f32 %v478, %v572
      %574 = vmatmul.f32.gmra.mxu0 %v511
      %v575 = vpop.f32.mrf.mxu0
      %v576 = vadd.f32 %v478, %v575
      %577 = vmatmul.f32.gmra.mxu0 %v514
      %v578 = vpop.f32.mrf.mxu0
      %v579 = vadd.f32 %v478, %v578
      %580 = vmatmul.f32.gmra.mxu0 %v517
      %v581 = vpop.f32.mrf.mxu0
      %v582 = vadd.f32 %v478, %v581
      %583 = vmatmul.f32.gmra.mxu0 %v520
      %v584 = vpop.f32.mrf.mxu0
      %v585 = vadd.f32 %v478, %v584
      %586 = vmatmul.f32.gmra.mxu0 %v523
      %v587 = vpop.f32.mrf.mxu0
      %v588 = vadd.f32 %v478, %v587
      %589 = vmatmul.f32.gmra.mxu0 %v526
      %v590 = vpop.f32.mrf.mxu0
      %v591 = vadd.f32 %v478, %v590
      %592 = vdwg.mxu0
      %v593 = vmax.f32 %v546, 0.0
      %v594 = vmax.f32 %v549, 0.0
      %v595 = vmax.f32 %v552, 0.0
      %v596 = vmax.f32 %v555, 0.0
      %v597 = vmax.f32 %v558, 0.0
      %v598 = vmax.f32 %v561, 0.0
      %v599 = vmax.f32 %v564, 0.0
      %v600 = vmax.f32 %v567, 0.0
      %v601 = vmax.f32 %v570, 0.0
      %v602 = vmax.f32 %v573, 0.0
      %v603 = vmax.f32 %v576, 0.0
      %v604 = vmax.f32 %v579, 0.0
      %v605 = vmax.f32 %v582, 0.0
      %v606 = vmax.f32 %v585, 0.0
      %v607 = vmax.f32 %v588, 0.0
      %v608 = vmax.f32 %v591, 0.0
      %v609 = vpack.c.bf16 %v594, %v593
      %v610 = vpack.c.bf16 %v596, %v595
      %v611 = vpack.c.bf16 %v598, %v597
      %v612 = vpack.c.bf16 %v600, %v599
      %v613 = vpack.c.bf16 %v602, %v601
      %v614 = vpack.c.bf16 %v604, %v603
      %v615 = vpack.c.bf16 %v606, %v605
      %v616 = vpack.c.bf16 %v608, %v607
      %v617 = vld [vmem:[%s5] sm:$0xff]
      %v618 = vld [vmem:[%s5 + $0x8] sm:$0xff]
      %v619 = vld [vmem:[%s5 + $0x10] sm:$0xff]
      %v620 = vld [vmem:[%s5 + $0x18] sm:$0xff]
      %v621 = vld [vmem:[%s5 + $0x20] sm:$0xff]
      %v622 = vld [vmem:[%s5 + $0x28] sm:$0xff]
      %v623 = vld [vmem:[%s5 + $0x30] sm:$0xff]
      %v624 = vld [vmem:[%s5 + $0x38] sm:$0xff]
      %v625 = vld [vmem:[%s5 + $0x40] sm:$0xff]
      %v626 = vld [vmem:[%s5 + $0x48] sm:$0xff]
      %v627 = vld [vmem:[%s5 + $0x50] sm:$0xff]
      %v628 = vld [vmem:[%s5 + $0x58] sm:$0xff]
      %v629 = vld [vmem:[%s5 + $0x60] sm:$0xff]
      %v630 = vld [vmem:[%s5 + $0x68] sm:$0xff]
      %v631 = vld [vmem:[%s5 + $0x70] sm:$0xff]
      %v632 = vld [vmem:[%s5 + $0x78] sm:$0xff]
      %v633 = vld [vmem:[%s5 + $0x80] sm:$0xff]
      %v634 = vld [vmem:[%s5 + $0x88] sm:$0xff]
      %v635 = vld [vmem:[%s5 + $0x90] sm:$0xff]
      %v636 = vld [vmem:[%s5 + $0x98] sm:$0xff]
      %v637 = vld [vmem:[%s5 + $0xa0] sm:$0xff]
      %v638 = vld [vmem:[%s5 + $0xa8] sm:$0xff]
      %v639 = vld [vmem:[%s5 + $0xb0] sm:$0xff]
      %v640 = vld [vmem:[%s5 + $0xb8] sm:$0xff]
      %v641 = vld [vmem:[%s5 + $0xc0] sm:$0xff]
      %v642 = vld [vmem:[%s5 + $0xc8] sm:$0xff]
      %v643 = vld [vmem:[%s5 + $0xd0] sm:$0xff]
      %v644 = vld [vmem:[%s5 + $0xd8] sm:$0xff]
      %v645 = vld [vmem:[%s5 + $0xe0] sm:$0xff]
      %v646 = vld [vmem:[%s5 + $0xe8] sm:$0xff]
      %v647 = vld [vmem:[%s5 + $0xf0] sm:$0xff]
      %v648 = vld [vmem:[%s5 + $0xf8] sm:$0xff]
      %v649 = vld [vmem:[%s5 + $0x100] sm:$0xff]
      %v650 = vld [vmem:[%s5 + $0x108] sm:$0xff]
      %v651 = vld [vmem:[%s5 + $0x110] sm:$0xff]
      %v652 = vld [vmem:[%s5 + $0x118] sm:$0xff]
      %v653 = vld [vmem:[%s5 + $0x120] sm:$0xff]
      %v654 = vld [vmem:[%s5 + $0x128] sm:$0xff]
      %v655 = vld [vmem:[%s5 + $0x130] sm:$0xff]
      %v656 = vld [vmem:[%s5 + $0x138] sm:$0xff]
      %v657 = vld [vmem:[%s5 + $0x140] sm:$0xff]
      %v658 = vld [vmem:[%s5 + $0x148] sm:$0xff]
      %v659 = vld [vmem:[%s5 + $0x150] sm:$0xff]
      %v660 = vld [vmem:[%s5 + $0x158] sm:$0xff]
      %v661 = vld [vmem:[%s5 + $0x160] sm:$0xff]
      %v662 = vld [vmem:[%s5 + $0x168] sm:$0xff]
      %v663 = vld [vmem:[%s5 + $0x170] sm:$0xff]
      %v664 = vld [vmem:[%s5 + $0x178] sm:$0xff]
      %v665 = vld [vmem:[%s5 + $0x180] sm:$0xff]
      %v666 = vld [vmem:[%s5 + $0x188] sm:$0xff]
      %v667 = vld [vmem:[%s5 + $0x190] sm:$0xff]
      %v668 = vld [vmem:[%s5 + $0x198] sm:$0xff]
      %v669 = vld [vmem:[%s5 + $0x1a0] sm:$0xff]
      %v670 = vld [vmem:[%s5 + $0x1a8] sm:$0xff]
      %v671 = vld [vmem:[%s5 + $0x1b0] sm:$0xff]
      %v672 = vld [vmem:[%s5 + $0x1b8] sm:$0xff]
      %v673 = vld [vmem:[%s5 + $0x1c0] sm:$0xff]
      %v674 = vld [vmem:[%s5 + $0x1c8] sm:$0xff]
      %v675 = vld [vmem:[%s5 + $0x1d0] sm:$0xff]
      %v676 = vld [vmem:[%s5 + $0x1d8] sm:$0xff]
      %v677 = vld [vmem:[%s5 + $0x1e0] sm:$0xff]
      %v678 = vld [vmem:[%s5 + $0x1e8] sm:$0xff]
      %v679 = vld [vmem:[%s5 + $0x1f0] sm:$0xff]
      %v680 = vld [vmem:[%s5 + $0x1f8] sm:$0xff]
      %v681 = vld [vmem:[%s6] sm:$0xff]
      %v683 = vperm.slane %v681, 0
      %v684 = vperm.slane %v681, 1
      %v685 = vperm.slane %v681, 2
      %v686 = vperm.slane %v681, 3
      %v687 = vperm.slane %v681, 4
      %v688 = vperm.slane %v681, 5
      %v689 = vperm.slane %v681, 6
      %v690 = vperm.slane %v681, 7
      %v763 = vunpack.c.l.b16 %v617
      %v764 = vunpack.c.h.b16 %v617
      %v765 = vunpack.c.l.b16 %v618
      %v766 = vunpack.c.h.b16 %v618
      %v767 = vunpack.c.l.b16 %v619
      %v768 = vunpack.c.h.b16 %v619
      %v769 = vunpack.c.l.b16 %v620
      %v770 = vunpack.c.h.b16 %v620
      %v771 = vunpack.c.l.b16 %v621
      %v772 = vunpack.c.h.b16 %v621
      %v773 = vunpack.c.l.b16 %v622
      %v774 = vunpack.c.h.b16 %v622
      %v775 = vunpack.c.l.b16 %v623
      %v776 = vunpack.c.h.b16 %v623
      %v777 = vunpack.c.l.b16 %v624
      %v778 = vunpack.c.h.b16 %v624
      %v779 = vunpack.c.l.b16 %v625
      %v780 = vunpack.c.h.b16 %v625
      %v781 = vunpack.c.l.b16 %v626
      %v782 = vunpack.c.h.b16 %v626
      %v783 = vunpack.c.l.b16 %v627
      %v784 = vunpack.c.h.b16 %v627
      %v785 = vunpack.c.l.b16 %v628
      %v786 = vunpack.c.h.b16 %v628
      %v787 = vunpack.c.l.b16 %v629
      %v788 = vunpack.c.h.b16 %v629
      %v789 = vunpack.c.l.b16 %v630
      %v790 = vunpack.c.h.b16 %v630
      %v791 = vunpack.c.l.b16 %v631
      %v792 = vunpack.c.h.b16 %v631
      %v793 = vunpack.c.l.b16 %v632
      %v794 = vunpack.c.h.b16 %v632
      %v795 = vunpack.c.l.b16 %v633
      %v796 = vunpack.c.h.b16 %v633
      %v797 = vunpack.c.l.b16 %v634
      %v798 = vunpack.c.h.b16 %v634
      %v799 = vunpack.c.l.b16 %v635
      %v800 = vunpack.c.h.b16 %v635
      %v801 = vunpack.c.l.b16 %v636
      %v802 = vunpack.c.h.b16 %v636
      %v803 = vunpack.c.l.b16 %v637
      %v804 = vunpack.c.h.b16 %v637
      %v805 = vunpack.c.l.b16 %v638
      %v806 = vunpack.c.h.b16 %v638
      %v807 = vunpack.c.l.b16 %v639
      %v808 = vunpack.c.h.b16 %v639
      %v809 = vunpack.c.l.b16 %v640
      %v810 = vunpack.c.h.b16 %v640
      %v811 = vunpack.c.l.b16 %v641
      %v812 = vunpack.c.h.b16 %v641
      %v813 = vunpack.c.l.b16 %v642
      %v814 = vunpack.c.h.b16 %v642
      %v815 = vunpack.c.l.b16 %v643
      %v816 = vunpack.c.h.b16 %v643
      %v817 = vunpack.c.l.b16 %v644
      %v818 = vunpack.c.h.b16 %v644
      %v819 = vunpack.c.l.b16 %v645
      %v820 = vunpack.c.h.b16 %v645
      %v821 = vunpack.c.l.b16 %v646
      %v822 = vunpack.c.h.b16 %v646
      %v823 = vunpack.c.l.b16 %v647
      %v824 = vunpack.c.h.b16 %v647
      %v825 = vunpack.c.l.b16 %v648
      %v826 = vunpack.c.h.b16 %v648
      %v827 = vunpack.c.l.b16 %v649
      %v828 = vunpack.c.h.b16 %v649
      %v829 = vunpack.c.l.b16 %v650
      %v830 = vunpack.c.h.b16 %v650
      %v831 = vunpack.c.l.b16 %v651
      %v832 = vunpack.c.h.b16 %v651
      %v833 = vunpack.c.l.b16 %v652
      %v834 = vunpack.c.h.b16 %v652
      %v835 = vunpack.c.l.b16 %v653
      %v836 = vunpack.c.h.b16 %v653
      %v837 = vunpack.c.l.b16 %v654
      %v838 = vunpack.c.h.b16 %v654
      %v839 = vunpack.c.l.b16 %v655
      %v840 = vunpack.c.h.b16 %v655
      %v841 = vunpack.c.l.b16 %v656
      %v842 = vunpack.c.h.b16 %v656
      %v843 = vunpack.c.l.b16 %v657
      %v844 = vunpack.c.h.b16 %v657
      %v845 = vunpack.c.l.b16 %v658
      %v846 = vunpack.c.h.b16 %v658
      %v847 = vunpack.c.l.b16 %v659
      %v848 = vunpack.c.h.b16 %v659
      %v849 = vunpack.c.l.b16 %v660
      %v850 = vunpack.c.h.b16 %v660
      %v851 = vunpack.c.l.b16 %v661
      %v852 = vunpack.c.h.b16 %v661
      %v853 = vunpack.c.l.b16 %v662
      %v854 = vunpack.c.h.b16 %v662
      %v855 = vunpack.c.l.b16 %v663
      %v856 = vunpack.c.h.b16 %v663
      %v857 = vunpack.c.l.b16 %v664
      %v858 = vunpack.c.h.b16 %v664
      %v859 = vunpack.c.l.b16 %v665
      %v860 = vunpack.c.h.b16 %v665
      %v861 = vunpack.c.l.b16 %v666
      %v862 = vunpack.c.h.b16 %v666
      %v863 = vunpack.c.l.b16 %v667
      %v864 = vunpack.c.h.b16 %v667
      %v865 = vunpack.c.l.b16 %v668
      %v866 = vunpack.c.h.b16 %v668
      %v867 = vunpack.c.l.b16 %v669
      %v868 = vunpack.c.h.b16 %v669
      %v869 = vunpack.c.l.b16 %v670
      %v870 = vunpack.c.h.b16 %v670
      %v871 = vunpack.c.l.b16 %v671
      %v872 = vunpack.c.h.b16 %v671
      %v873 = vunpack.c.l.b16 %v672
      %v874 = vunpack.c.h.b16 %v672
      %v875 = vunpack.c.l.b16 %v673
      %v876 = vunpack.c.h.b16 %v673
      %v877 = vunpack.c.l.b16 %v674
      %v878 = vunpack.c.h.b16 %v674
      %v879 = vunpack.c.l.b16 %v675
      %v880 = vunpack.c.h.b16 %v675
      %v881 = vunpack.c.l.b16 %v676
      %v882 = vunpack.c.h.b16 %v676
      %v883 = vunpack.c.l.b16 %v677
      %v884 = vunpack.c.h.b16 %v677
      %v885 = vunpack.c.l.b16 %v678
      %v886 = vunpack.c.h.b16 %v678
      %v887 = vunpack.c.l.b16 %v679
      %v888 = vunpack.c.h.b16 %v679
      %v889 = vunpack.c.l.b16 %v680
      %v890 = vunpack.c.h.b16 %v680
      %v891 = vpack.c.b16 %v771, %v763
      %v892 = vpack.c.b16 %v772, %v764
      %v893 = vpack.c.b16 %v773, %v765
      %v894 = vpack.c.b16 %v774, %v766
      %v895 = vpack.c.b16 %v775, %v767
      %v896 = vpack.c.b16 %v776, %v768
      %v897 = vpack.c.b16 %v777, %v769
      %v898 = vpack.c.b16 %v778, %v770
      %v899 = vpack.c.b16 %v787, %v779
      %v900 = vpack.c.b16 %v788, %v780
      %v901 = vpack.c.b16 %v789, %v781
      %v902 = vpack.c.b16 %v790, %v782
      %v903 = vpack.c.b16 %v791, %v783
      %v904 = vpack.c.b16 %v792, %v784
      %v905 = vpack.c.b16 %v793, %v785
      %v906 = vpack.c.b16 %v794, %v786
      %v907 = vpack.c.b16 %v803, %v795
      %v908 = vpack.c.b16 %v804, %v796
      %v909 = vpack.c.b16 %v805, %v797
      %v910 = vpack.c.b16 %v806, %v798
      %v911 = vpack.c.b16 %v807, %v799
      %v912 = vpack.c.b16 %v808, %v800
      %v913 = vpack.c.b16 %v809, %v801
      %v914 = vpack.c.b16 %v810, %v802
      %v915 = vpack.c.b16 %v819, %v811
      %v916 = vpack.c.b16 %v820, %v812
      %v917 = vpack.c.b16 %v821, %v813
      %v918 = vpack.c.b16 %v822, %v814
      %v919 = vpack.c.b16 %v823, %v815
      %v920 = vpack.c.b16 %v824, %v816
      %v921 = vpack.c.b16 %v825, %v817
      %v922 = vpack.c.b16 %v826, %v818
      %v923 = vpack.c.b16 %v835, %v827
      %v924 = vpack.c.b16 %v836, %v828
      %v925 = vpack.c.b16 %v837, %v829
      %v926 = vpack.c.b16 %v838, %v830
      %v927 = vpack.c.b16 %v839, %v831
      %v928 = vpack.c.b16 %v840, %v832
      %v929 = vpack.c.b16 %v841, %v833
      %v930 = vpack.c.b16 %v842, %v834
      %v931 = vpack.c.b16 %v851, %v843
      %v932 = vpack.c.b16 %v852, %v844
      %v933 = vpack.c.b16 %v853, %v845
      %v934 = vpack.c.b16 %v854, %v846
      %v935 = vpack.c.b16 %v855, %v847
      %v936 = vpack.c.b16 %v856, %v848
      %v937 = vpack.c.b16 %v857, %v849
      %v938 = vpack.c.b16 %v858, %v850
      %v939 = vpack.c.b16 %v867, %v859
      %v940 = vpack.c.b16 %v868, %v860
      %v941 = vpack.c.b16 %v869, %v861
      %v942 = vpack.c.b16 %v870, %v862
      %v943 = vpack.c.b16 %v871, %v863
      %v944 = vpack.c.b16 %v872, %v864
      %v945 = vpack.c.b16 %v873, %v865
      %v946 = vpack.c.b16 %v874, %v866
      %v947 = vpack.c.b16 %v883, %v875
      %v948 = vpack.c.b16 %v884, %v876
      %v949 = vpack.c.b16 %v885, %v877
      %v950 = vpack.c.b16 %v886, %v878
      %v951 = vpack.c.b16 %v887, %v879
      %v952 = vpack.c.b16 %v888, %v880
      %v953 = vpack.c.b16 %v889, %v881
      %v954 = vpack.c.b16 %v890, %v882
      %1019 = vmatpush.bf16.msra.mxu0 %v947
      %1020 = vmatpush.bf16.msra.mxu0 %v939
      %1021 = vmatpush.bf16.msra.mxu0 %v931
      %1022 = vmatpush.bf16.msra.mxu0 %v923
      %1023 = vmatpush.bf16.msra.mxu0 %v915
      %1024 = vmatpush.bf16.msra.mxu0 %v907
      %1025 = vmatpush.bf16.msra.mxu0 %v899
      %1026 = vmatpush.bf16.msra.mxu0 %v891
      %1027 = vmatmul.bf16.gmra.mxu0 %v609
      %v1028 = vpop.f32.mrf.mxu0
      %v1029 = vadd.f32 %v683, %v1028
      %v1030 = vpop.f32.mrf.mxu0
      %v1031 = vadd.f32 %v683, %v1030
      %1032 = vmatmul.bf16.gmra.mxu0 %v610
      %v1033 = vpop.f32.mrf.mxu0
      %v1034 = vadd.f32 %v683, %v1033
      %v1035 = vpop.f32.mrf.mxu0
      %v1036 = vadd.f32 %v683, %v1035
      %1037 = vmatmul.bf16.gmra.mxu0 %v611
      %v1038 = vpop.f32.mrf.mxu0
      %v1039 = vadd.f32 %v683, %v1038
      %v1040 = vpop.f32.mrf.mxu0
      %v1041 = vadd.f32 %v683, %v1040
      %1042 = vmatmul.bf16.gmra.mxu0 %v612
      %v1043 = vpop.f32.mrf.mxu0
      %v1044 = vadd.f32 %v683, %v1043
      %v1045 = vpop.f32.mrf.mxu0
      %v1046 = vadd.f32 %v683, %v1045
      %1047 = vmatmul.bf16.gmra.mxu0 %v613
      %v1048 = vpop.f32.mrf.mxu0
      %v1049 = vadd.f32 %v683, %v1048
      %v1050 = vpop.f32.mrf.mxu0
      %v1051 = vadd.f32 %v683, %v1050
      %1052 = vmatmul.bf16.gmra.mxu0 %v614
      %v1053 = vpop.f32.mrf.mxu0
      %v1054 = vadd.f32 %v683, %v1053
      %v1055 = vpop.f32.mrf.mxu0
      %v1056 = vadd.f32 %v683, %v1055
      %1057 = vmatmul.bf16.gmra.mxu0 %v615
      %v1058 = vpop.f32.mrf.mxu0
      %v1059 = vadd.f32 %v683, %v1058
      %v1060 = vpop.f32.mrf.mxu0
      %v1061 = vadd.f32 %v683, %v1060
      %1062 = vmatmul.bf16.gmra.mxu0 %v616
      %v1063 = vpop.f32.mrf.mxu0
      %v1064 = vadd.f32 %v683, %v1063
      %v1065 = vpop.f32.mrf.mxu0
      %v1066 = vadd.f32 %v683, %v1065
      %1067 = vdwg.mxu0
      %1068 = vmatpush.bf16.msra.mxu0 %v948
      %1069 = vmatpush.bf16.msra.mxu0 %v940
      %1070 = vmatpush.bf16.msra.mxu0 %v932
      %1071 = vmatpush.bf16.msra.mxu0 %v924
      %1072 = vmatpush.bf16.msra.mxu0 %v916
      %1073 = vmatpush.bf16.msra.mxu0 %v908
      %1074 = vmatpush.bf16.msra.mxu0 %v900
      %1075 = vmatpush.bf16.msra.mxu0 %v892
      %1076 = vmatmul.bf16.gmra.mxu0 %v609
      %v1077 = vpop.f32.mrf.mxu0
      %v1078 = vadd.f32 %v684, %v1077
      %v1079 = vpop.f32.mrf.mxu0
      %v1080 = vadd.f32 %v684, %v1079
      %1081 = vmatmul.bf16.gmra.mxu0 %v610
      %v1082 = vpop.f32.mrf.mxu0
      %v1083 = vadd.f32 %v684, %v1082
      %v1084 = vpop.f32.mrf.mxu0
      %v1085 = vadd.f32 %v684, %v1084
      %1086 = vmatmul.bf16.gmra.mxu0 %v611
      %v1087 = vpop.f32.mrf.mxu0
      %v1088 = vadd.f32 %v684, %v1087
      %v1089 = vpop.f32.mrf.mxu0
      %v1090 = vadd.f32 %v684, %v1089
      %1091 = vmatmul.bf16.gmra.mxu0 %v612
      %v1092 = vpop.f32.mrf.mxu0
      %v1093 = vadd.f32 %v684, %v1092
      %v1094 = vpop.f32.mrf.mxu0
      %v1095 = vadd.f32 %v684, %v1094
      %1096 = vmatmul.bf16.gmra.mxu0 %v613
      %v1097 = vpop.f32.mrf.mxu0
      %v1098 = vadd.f32 %v684, %v1097
      %v1099 = vpop.f32.mrf.mxu0
      %v1100 = vadd.f32 %v684, %v1099
      %1101 = vmatmul.bf16.gmra.mxu0 %v614
      %v1102 = vpop.f32.mrf.mxu0
      %v1103 = vadd.f32 %v684, %v1102
      %v1104 = vpop.f32.mrf.mxu0
      %v1105 = vadd.f32 %v684, %v1104
      %1106 = vmatmul.bf16.gmra.mxu0 %v615
      %v1107 = vpop.f32.mrf.mxu0
      %v1108 = vadd.f32 %v684, %v1107
      %v1109 = vpop.f32.mrf.mxu0
      %v1110 = vadd.f32 %v684, %v1109
      %1111 = vmatmul.bf16.gmra.mxu0 %v616
      %v1112 = vpop.f32.mrf.mxu0
      %v1113 = vadd.f32 %v684, %v1112
      %v1114 = vpop.f32.mrf.mxu0
      %v1115 = vadd.f32 %v684, %v1114
      %1116 = vdwg.mxu0
      %1117 = vmatpush.bf16.msra.mxu0 %v949
      %1118 = vmatpush.bf16.msra.mxu0 %v941
      %1119 = vmatpush.bf16.msra.mxu0 %v933
      %1120 = vmatpush.bf16.msra.mxu0 %v925
      %1121 = vmatpush.bf16.msra.mxu0 %v917
      %1122 = vmatpush.bf16.msra.mxu0 %v909
      %1123 = vmatpush.bf16.msra.mxu0 %v901
      %1124 = vmatpush.bf16.msra.mxu0 %v893
      %1125 = vmatmul.bf16.gmra.mxu0 %v609
      %v1126 = vpop.f32.mrf.mxu0
      %v1127 = vadd.f32 %v685, %v1126
      %v1128 = vpop.f32.mrf.mxu0
      %v1129 = vadd.f32 %v685, %v1128
      %1130 = vmatmul.bf16.gmra.mxu0 %v610
      %v1131 = vpop.f32.mrf.mxu0
      %v1132 = vadd.f32 %v685, %v1131
      %v1133 = vpop.f32.mrf.mxu0
      %v1134 = vadd.f32 %v685, %v1133
      %1135 = vmatmul.bf16.gmra.mxu0 %v611
      %v1136 = vpop.f32.mrf.mxu0
      %v1137 = vadd.f32 %v685, %v1136
      %v1138 = vpop.f32.mrf.mxu0
      %v1139 = vadd.f32 %v685, %v1138
      %1140 = vmatmul.bf16.gmra.mxu0 %v612
      %v1141 = vpop.f32.mrf.mxu0
      %v1142 = vadd.f32 %v685, %v1141
      %v1143 = vpop.f32.mrf.mxu0
      %v1144 = vadd.f32 %v685, %v1143
      %1145 = vmatmul.bf16.gmra.mxu0 %v613
      %v1146 = vpop.f32.mrf.mxu0
      %v1147 = vadd.f32 %v685, %v1146
      %v1148 = vpop.f32.mrf.mxu0
      %v1149 = vadd.f32 %v685, %v1148
      %1150 = vmatmul.bf16.gmra.mxu0 %v614
      %v1151 = vpop.f32.mrf.mxu0
      %v1152 = vadd.f32 %v685, %v1151
      %v1153 = vpop.f32.mrf.mxu0
      %v1154 = vadd.f32 %v685, %v1153
      %1155 = vmatmul.bf16.gmra.mxu0 %v615
      %v1156 = vpop.f32.mrf.mxu0
      %v1157 = vadd.f32 %v685, %v1156
      %v1158 = vpop.f32.mrf.mxu0
      %v1159 = vadd.f32 %v685, %v1158
      %1160 = vmatmul.bf16.gmra.mxu0 %v616
      %v1161 = vpop.f32.mrf.mxu0
      %v1162 = vadd.f32 %v685, %v1161
      %v1163 = vpop.f32.mrf.mxu0
      %v1164 = vadd.f32 %v685, %v1163
      %1165 = vdwg.mxu0
      %1166 = vmatpush.bf16.msra.mxu0 %v950
      %1167 = vmatpush.bf16.msra.mxu0 %v942
      %1168 = vmatpush.bf16.msra.mxu0 %v934
      %1169 = vmatpush.bf16.msra.mxu0 %v926
      %1170 = vmatpush.bf16.msra.mxu0 %v918
      %1171 = vmatpush.bf16.msra.mxu0 %v910
      %1172 = vmatpush.bf16.msra.mxu0 %v902
      %1173 = vmatpush.bf16.msra.mxu0 %v894
      %1174 = vmatmul.bf16.gmra.mxu0 %v609
      %v1175 = vpop.f32.mrf.mxu0
      %v1176 = vadd.f32 %v686, %v1175
      %v1177 = vpop.f32.mrf.mxu0
      %v1178 = vadd.f32 %v686, %v1177
      %1179 = vmatmul.bf16.gmra.mxu0 %v610
      %v1180 = vpop.f32.mrf.mxu0
      %v1181 = vadd.f32 %v686, %v1180
      %v1182 = vpop.f32.mrf.mxu0
      %v1183 = vadd.f32 %v686, %v1182
      %1184 = vmatmul.bf16.gmra.mxu0 %v611
      %v1185 = vpop.f32.mrf.mxu0
      %v1186 = vadd.f32 %v686, %v1185
      %v1187 = vpop.f32.mrf.mxu0
      %v1188 = vadd.f32 %v686, %v1187
      %1189 = vmatmul.bf16.gmra.mxu0 %v612
      %v1190 = vpop.f32.mrf.mxu0
      %v1191 = vadd.f32 %v686, %v1190
      %v1192 = vpop.f32.mrf.mxu0
      %v1193 = vadd.f32 %v686, %v1192
      %1194 = vmatmul.bf16.gmra.mxu0 %v613
      %v1195 = vpop.f32.mrf.mxu0
      %v1196 = vadd.f32 %v686, %v1195
      %v1197 = vpop.f32.mrf.mxu0
      %v1198 = vadd.f32 %v686, %v1197
      %1199 = vmatmul.bf16.gmra.mxu0 %v614
      %v1200 = vpop.f32.mrf.mxu0
      %v1201 = vadd.f32 %v686, %v1200
      %v1202 = vpop.f32.mrf.mxu0
      %v1203 = vadd.f32 %v686, %v1202
      %1204 = vmatmul.bf16.gmra.mxu0 %v615
      %v1205 = vpop.f32.mrf.mxu0
      %v1206 = vadd.f32 %v686, %v1205
      %v1207 = vpop.f32.mrf.mxu0
      %v1208 = vadd.f32 %v686, %v1207
      %1209 = vmatmul.bf16.gmra.mxu0 %v616
      %v1210 = vpop.f32.mrf.mxu0
      %v1211 = vadd.f32 %v686, %v1210
      %v1212 = vpop.f32.mrf.mxu0
      %v1213 = vadd.f32 %v686, %v1212
      %1214 = vdwg.mxu0
      %1215 = vmatpush.bf16.msra.mxu0 %v951
      %1216 = vmatpush.bf16.msra.mxu0 %v943
      %1217 = vmatpush.bf16.msra.mxu0 %v935
      %1218 = vmatpush.bf16.msra.mxu0 %v927
      %1219 = vmatpush.bf16.msra.mxu0 %v919
      %1220 = vmatpush.bf16.msra.mxu0 %v911
      %1221 = vmatpush.bf16.msra.mxu0 %v903
      %1222 = vmatpush.bf16.msra.mxu0 %v895
      %1223 = vmatmul.bf16.gmra.mxu0 %v609
      %v1224 = vpop.f32.mrf.mxu0
      %v1225 = vadd.f32 %v687, %v1224
      %v1226 = vpop.f32.mrf.mxu0
      %v1227 = vadd.f32 %v687, %v1226
      %1228 = vmatmul.bf16.gmra.mxu0 %v610
      %v1229 = vpop.f32.mrf.mxu0
      %v1230 = vadd.f32 %v687, %v1229
      %v1231 = vpop.f32.mrf.mxu0
      %v1232 = vadd.f32 %v687, %v1231
      %1233 = vmatmul.bf16.gmra.mxu0 %v611
      %v1234 = vpop.f32.mrf.mxu0
      %v1235 = vadd.f32 %v687, %v1234
      %v1236 = vpop.f32.mrf.mxu0
      %v1237 = vadd.f32 %v687, %v1236
      %1238 = vmatmul.bf16.gmra.mxu0 %v612
      %v1239 = vpop.f32.mrf.mxu0
      %v1240 = vadd.f32 %v687, %v1239
      %v1241 = vpop.f32.mrf.mxu0
      %v1242 = vadd.f32 %v687, %v1241
      %1243 = vmatmul.bf16.gmra.mxu0 %v613
      %v1244 = vpop.f32.mrf.mxu0
      %v1245 = vadd.f32 %v687, %v1244
      %v1246 = vpop.f32.mrf.mxu0
      %v1247 = vadd.f32 %v687, %v1246
      %1248 = vmatmul.bf16.gmra.mxu0 %v614
      %v1249 = vpop.f32.mrf.mxu0
      %v1250 = vadd.f32 %v687, %v1249
      %v1251 = vpop.f32.mrf.mxu0
      %v1252 = vadd.f32 %v687, %v1251
      %1253 = vmatmul.bf16.gmra.mxu0 %v615
      %v1254 = vpop.f32.mrf.mxu0
      %v1255 = vadd.f32 %v687, %v1254
      %v1256 = vpop.f32.mrf.mxu0
      %v1257 = vadd.f32 %v687, %v1256
      %1258 = vmatmul.bf16.gmra.mxu0 %v616
      %v1259 = vpop.f32.mrf.mxu0
      %v1260 = vadd.f32 %v687, %v1259
      %v1261 = vpop.f32.mrf.mxu0
      %v1262 = vadd.f32 %v687, %v1261
      %1263 = vdwg.mxu0
      %1264 = vmatpush.bf16.msra.mxu0 %v952
      %1265 = vmatpush.bf16.msra.mxu0 %v944
      %1266 = vmatpush.bf16.msra.mxu0 %v936
      %1267 = vmatpush.bf16.msra.mxu0 %v928
      %1268 = vmatpush.bf16.msra.mxu0 %v920
      %1269 = vmatpush.bf16.msra.mxu0 %v912
      %1270 = vmatpush.bf16.msra.mxu0 %v904
      %1271 = vmatpush.bf16.msra.mxu0 %v896
      %1272 = vmatmul.bf16.gmra.mxu0 %v609
      %v1273 = vpop.f32.mrf.mxu0
      %v1274 = vadd.f32 %v688, %v1273
      %v1275 = vpop.f32.mrf.mxu0
      %v1276 = vadd.f32 %v688, %v1275
      %1277 = vmatmul.bf16.gmra.mxu0 %v610
      %v1278 = vpop.f32.mrf.mxu0
      %v1279 = vadd.f32 %v688, %v1278
      %v1280 = vpop.f32.mrf.mxu0
      %v1281 = vadd.f32 %v688, %v1280
      %1282 = vmatmul.bf16.gmra.mxu0 %v611
      %v1283 = vpop.f32.mrf.mxu0
      %v1284 = vadd.f32 %v688, %v1283
      %v1285 = vpop.f32.mrf.mxu0
      %v1286 = vadd.f32 %v688, %v1285
      %1287 = vmatmul.bf16.gmra.mxu0 %v612
      %v1288 = vpop.f32.mrf.mxu0
      %v1289 = vadd.f32 %v688, %v1288
      %v1290 = vpop.f32.mrf.mxu0
      %v1291 = vadd.f32 %v688, %v1290
      %1292 = vmatmul.bf16.gmra.mxu0 %v613
      %v1293 = vpop.f32.mrf.mxu0
      %v1294 = vadd.f32 %v688, %v1293
      %v1295 = vpop.f32.mrf.mxu0
      %v1296 = vadd.f32 %v688, %v1295
      %1297 = vmatmul.bf16.gmra.mxu0 %v614
      %v1298 = vpop.f32.mrf.mxu0
      %v1299 = vadd.f32 %v688, %v1298
      %v1300 = vpop.f32.mrf.mxu0
      %v1301 = vadd.f32 %v688, %v1300
      %1302 = vmatmul.bf16.gmra.mxu0 %v615
      %v1303 = vpop.f32.mrf.mxu0
      %v1304 = vadd.f32 %v688, %v1303
      %v1305 = vpop.f32.mrf.mxu0
      %v1306 = vadd.f32 %v688, %v1305
      %1307 = vmatmul.bf16.gmra.mxu0 %v616
      %v1308 = vpop.f32.mrf.mxu0
      %v1309 = vadd.f32 %v688, %v1308
      %v1310 = vpop.f32.mrf.mxu0
      %v1311 = vadd.f32 %v688, %v1310
      %1312 = vdwg.mxu0
      %1313 = vmatpush.bf16.msra.mxu0 %v953
      %1314 = vmatpush.bf16.msra.mxu0 %v945
      %1315 = vmatpush.bf16.msra.mxu0 %v937
      %1316 = vmatpush.bf16.msra.mxu0 %v929
      %1317 = vmatpush.bf16.msra.mxu0 %v921
      %1318 = vmatpush.bf16.msra.mxu0 %v913
      %1319 = vmatpush.bf16.msra.mxu0 %v905
      %1320 = vmatpush.bf16.msra.mxu0 %v897
      %1321 = vmatmul.bf16.gmra.mxu0 %v609
      %v1322 = vpop.f32.mrf.mxu0
      %v1323 = vadd.f32 %v689, %v1322
      %v1324 = vpop.f32.mrf.mxu0
      %v1325 = vadd.f32 %v689, %v1324
      %1326 = vmatmul.bf16.gmra.mxu0 %v610
      %v1327 = vpop.f32.mrf.mxu0
      %v1328 = vadd.f32 %v689, %v1327
      %v1329 = vpop.f32.mrf.mxu0
      %v1330 = vadd.f32 %v689, %v1329
      %1331 = vmatmul.bf16.gmra.mxu0 %v611
      %v1332 = vpop.f32.mrf.mxu0
      %v1333 = vadd.f32 %v689, %v1332
      %v1334 = vpop.f32.mrf.mxu0
      %v1335 = vadd.f32 %v689, %v1334
      %1336 = vmatmul.bf16.gmra.mxu0 %v612
      %v1337 = vpop.f32.mrf.mxu0
      %v1338 = vadd.f32 %v689, %v1337
      %v1339 = vpop.f32.mrf.mxu0
      %v1340 = vadd.f32 %v689, %v1339
      %1341 = vmatmul.bf16.gmra.mxu0 %v613
      %v1342 = vpop.f32.mrf.mxu0
      %v1343 = vadd.f32 %v689, %v1342
      %v1344 = vpop.f32.mrf.mxu0
      %v1345 = vadd.f32 %v689, %v1344
      %1346 = vmatmul.bf16.gmra.mxu0 %v614
      %v1347 = vpop.f32.mrf.mxu0
      %v1348 = vadd.f32 %v689, %v1347
      %v1349 = vpop.f32.mrf.mxu0
      %v1350 = vadd.f32 %v689, %v1349
      %1351 = vmatmul.bf16.gmra.mxu0 %v615
      %v1352 = vpop.f32.mrf.mxu0
      %v1353 = vadd.f32 %v689, %v1352
      %v1354 = vpop.f32.mrf.mxu0
      %v1355 = vadd.f32 %v689, %v1354
      %1356 = vmatmul.bf16.gmra.mxu0 %v616
      %v1357 = vpop.f32.mrf.mxu0
      %v1358 = vadd.f32 %v689, %v1357
      %v1359 = vpop.f32.mrf.mxu0
      %v1360 = vadd.f32 %v689, %v1359
      %1361 = vdwg.mxu0
      %1362 = vmatpush.bf16.msra.mxu0 %v954
      %1363 = vmatpush.bf16.msra.mxu0 %v946
      %1364 = vmatpush.bf16.msra.mxu0 %v938
      %1365 = vmatpush.bf16.msra.mxu0 %v930
      %1366 = vmatpush.bf16.msra.mxu0 %v922
      %1367 = vmatpush.bf16.msra.mxu0 %v914
      %1368 = vmatpush.bf16.msra.mxu0 %v906
      %1369 = vmatpush.bf16.msra.mxu0 %v898
      %1370 = vmatmul.bf16.gmra.mxu0 %v609
      %v1371 = vpop.f32.mrf.mxu0
      %v1372 = vadd.f32 %v690, %v1371
      %v1373 = vpop.f32.mrf.mxu0
      %v1374 = vadd.f32 %v690, %v1373
      %1375 = vmatmul.bf16.gmra.mxu0 %v610
      %v1376 = vpop.f32.mrf.mxu0
      %v1377 = vadd.f32 %v690, %v1376
      %v1378 = vpop.f32.mrf.mxu0
      %v1379 = vadd.f32 %v690, %v1378
      %1380 = vmatmul.bf16.gmra.mxu0 %v611
      %v1381 = vpop.f32.mrf.mxu0
      %v1382 = vadd.f32 %v690, %v1381
      %v1383 = vpop.f32.mrf.mxu0
      %v1384 = vadd.f32 %v690, %v1383
      %1385 = vmatmul.bf16.gmra.mxu0 %v612
      %v1386 = vpop.f32.mrf.mxu0
      %v1387 = vadd.f32 %v690, %v1386
      %v1388 = vpop.f32.mrf.mxu0
      %v1389 = vadd.f32 %v690, %v1388
      %1390 = vmatmul.bf16.gmra.mxu0 %v613
      %v1391 = vpop.f32.mrf.mxu0
      %v1392 = vadd.f32 %v690, %v1391
      %v1393 = vpop.f32.mrf.mxu0
      %v1394 = vadd.f32 %v690, %v1393
      %1395 = vmatmul.bf16.gmra.mxu0 %v614
      %v1396 = vpop.f32.mrf.mxu0
      %v1397 = vadd.f32 %v690, %v1396
      %v1398 = vpop.f32.mrf.mxu0
      %v1399 = vadd.f32 %v690, %v1398
      %1400 = vmatmul.bf16.gmra.mxu0 %v615
      %v1401 = vpop.f32.mrf.mxu0
      %v1402 = vadd.f32 %v690, %v1401
      %v1403 = vpop.f32.mrf.mxu0
      %v1404 = vadd.f32 %v690, %v1403
      %1405 = vmatmul.bf16.gmra.mxu0 %v616
      %v1406 = vpop.f32.mrf.mxu0
      %v1407 = vadd.f32 %v690, %v1406
      %v1408 = vpop.f32.mrf.mxu0
      %v1409 = vadd.f32 %v690, %v1408
      %1410 = vdwg.mxu0
      %v1411 = vmax.f32 %v1029, 0.0
      %v1412 = vmax.f32 %v1078, 0.0
      %v1413 = vmax.f32 %v1127, 0.0
      %v1414 = vmax.f32 %v1176, 0.0
      %v1415 = vmax.f32 %v1225, 0.0
      %v1416 = vmax.f32 %v1274, 0.0
      %v1417 = vmax.f32 %v1323, 0.0
      %v1418 = vmax.f32 %v1372, 0.0
      %v1419 = vmax.f32 %v1031, 0.0
      %v1420 = vmax.f32 %v1080, 0.0
      %v1421 = vmax.f32 %v1129, 0.0
      %v1422 = vmax.f32 %v1178, 0.0
      %v1423 = vmax.f32 %v1227, 0.0
      %v1424 = vmax.f32 %v1276, 0.0
      %v1425 = vmax.f32 %v1325, 0.0
      %v1426 = vmax.f32 %v1374, 0.0
      %v1427 = vmax.f32 %v1034, 0.0
      %v1428 = vmax.f32 %v1083, 0.0
      %v1429 = vmax.f32 %v1132, 0.0
      %v1430 = vmax.f32 %v1181, 0.0
      %v1431 = vmax.f32 %v1230, 0.0
      %v1432 = vmax.f32 %v1279, 0.0
      %v1433 = vmax.f32 %v1328, 0.0
      %v1434 = vmax.f32 %v1377, 0.0
      %v1435 = vmax.f32 %v1036, 0.0
      %v1436 = vmax.f32 %v1085, 0.0
      %v1437 = vmax.f32 %v1134, 0.0
      %v1438 = vmax.f32 %v1183, 0.0
      %v1439 = vmax.f32 %v1232, 0.0
      %v1440 = vmax.f32 %v1281, 0.0
      %v1441 = vmax.f32 %v1330, 0.0
      %v1442 = vmax.f32 %v1379, 0.0
      %v1443 = vmax.f32 %v1039, 0.0
      %v1444 = vmax.f32 %v1088, 0.0
      %v1445 = vmax.f32 %v1137, 0.0
      %v1446 = vmax.f32 %v1186, 0.0
      %v1447 = vmax.f32 %v1235, 0.0
      %v1448 = vmax.f32 %v1284, 0.0
      %v1449 = vmax.f32 %v1333, 0.0
      %v1450 = vmax.f32 %v1382, 0.0
      %v1451 = vmax.f32 %v1041, 0.0
      %v1452 = vmax.f32 %v1090, 0.0
      %v1453 = vmax.f32 %v1139, 0.0
      %v1454 = vmax.f32 %v1188, 0.0
      %v1455 = vmax.f32 %v1237, 0.0
      %v1456 = vmax.f32 %v1286, 0.0
      %v1457 = vmax.f32 %v1335, 0.0
      %v1458 = vmax.f32 %v1384, 0.0
      %v1459 = vmax.f32 %v1044, 0.0
      %v1460 = vmax.f32 %v1093, 0.0
      %v1461 = vmax.f32 %v1142, 0.0
      %v1462 = vmax.f32 %v1191, 0.0
      %v1463 = vmax.f32 %v1240, 0.0
      %v1464 = vmax.f32 %v1289, 0.0
      %v1465 = vmax.f32 %v1338, 0.0
      %v1466 = vmax.f32 %v1387, 0.0
      %v1467 = vmax.f32 %v1046, 0.0
      %v1468 = vmax.f32 %v1095, 0.0
      %v1469 = vmax.f32 %v1144, 0.0
      %v1470 = vmax.f32 %v1193, 0.0
      %v1471 = vmax.f32 %v1242, 0.0
      %v1472 = vmax.f32 %v1291, 0.0
      %v1473 = vmax.f32 %v1340, 0.0
      %v1474 = vmax.f32 %v1389, 0.0
      %v1475 = vmax.f32 %v1049, 0.0
      %v1476 = vmax.f32 %v1098, 0.0
      %v1477 = vmax.f32 %v1147, 0.0
      %v1478 = vmax.f32 %v1196, 0.0
      %v1479 = vmax.f32 %v1245, 0.0
      %v1480 = vmax.f32 %v1294, 0.0
      %v1481 = vmax.f32 %v1343, 0.0
      %v1482 = vmax.f32 %v1392, 0.0
      %v1483 = vmax.f32 %v1051, 0.0
      %v1484 = vmax.f32 %v1100, 0.0
      %v1485 = vmax.f32 %v1149, 0.0
      %v1486 = vmax.f32 %v1198, 0.0
      %v1487 = vmax.f32 %v1247, 0.0
      %v1488 = vmax.f32 %v1296, 0.0
      %v1489 = vmax.f32 %v1345, 0.0
      %v1490 = vmax.f32 %v1394, 0.0
      %v1491 = vmax.f32 %v1054, 0.0
      %v1492 = vmax.f32 %v1103, 0.0
      %v1493 = vmax.f32 %v1152, 0.0
      %v1494 = vmax.f32 %v1201, 0.0
      %v1495 = vmax.f32 %v1250, 0.0
      %v1496 = vmax.f32 %v1299, 0.0
      %v1497 = vmax.f32 %v1348, 0.0
      %v1498 = vmax.f32 %v1397, 0.0
      %v1499 = vmax.f32 %v1056, 0.0
      %v1500 = vmax.f32 %v1105, 0.0
      %v1501 = vmax.f32 %v1154, 0.0
      %v1502 = vmax.f32 %v1203, 0.0
      %v1503 = vmax.f32 %v1252, 0.0
      %v1504 = vmax.f32 %v1301, 0.0
      %v1505 = vmax.f32 %v1350, 0.0
      %v1506 = vmax.f32 %v1399, 0.0
      %v1507 = vmax.f32 %v1059, 0.0
      %v1508 = vmax.f32 %v1108, 0.0
      %v1509 = vmax.f32 %v1157, 0.0
      %v1510 = vmax.f32 %v1206, 0.0
      %v1511 = vmax.f32 %v1255, 0.0
      %v1512 = vmax.f32 %v1304, 0.0
      %v1513 = vmax.f32 %v1353, 0.0
      %v1514 = vmax.f32 %v1402, 0.0
      %v1515 = vmax.f32 %v1061, 0.0
      %v1516 = vmax.f32 %v1110, 0.0
      %v1517 = vmax.f32 %v1159, 0.0
      %v1518 = vmax.f32 %v1208, 0.0
      %v1519 = vmax.f32 %v1257, 0.0
      %v1520 = vmax.f32 %v1306, 0.0
      %v1521 = vmax.f32 %v1355, 0.0
      %v1522 = vmax.f32 %v1404, 0.0
      %v1523 = vmax.f32 %v1064, 0.0
      %v1524 = vmax.f32 %v1113, 0.0
      %v1525 = vmax.f32 %v1162, 0.0
      %v1526 = vmax.f32 %v1211, 0.0
      %v1527 = vmax.f32 %v1260, 0.0
      %v1528 = vmax.f32 %v1309, 0.0
      %v1529 = vmax.f32 %v1358, 0.0
      %v1530 = vmax.f32 %v1407, 0.0
      %v1531 = vmax.f32 %v1066, 0.0
      %v1532 = vmax.f32 %v1115, 0.0
      %v1533 = vmax.f32 %v1164, 0.0
      %v1534 = vmax.f32 %v1213, 0.0
      %v1535 = vmax.f32 %v1262, 0.0
      %v1536 = vmax.f32 %v1311, 0.0
      %v1537 = vmax.f32 %v1360, 0.0
      %v1538 = vmax.f32 %v1409, 0.0
      %v1539 = vld [vmem:[#allocation2] sm:$0xff]
      %v1540 = vmax.f32 %v1411, %v1419
      %v1541 = vmax.f32 %v1540, %v1427
      %v1542 = vmax.f32 %v1541, %v1435
      %v1543 = vmax.f32 %v1542, %v1443
      %v1544 = vmax.f32 %v1543, %v1451
      %v1545 = vmax.f32 %v1544, %v1459
      %v1546 = vmax.f32 %v1545, %v1467
      %v1547 = vmax.f32 %v1546, %v1475
      %v1548 = vmax.f32 %v1547, %v1483
      %v1549 = vmax.f32 %v1548, %v1491
      %v1550 = vmax.f32 %v1549, %v1499
      %v1551 = vmax.f32 %v1550, %v1507
      %v1552 = vmax.f32 %v1551, %v1515
      %v1553 = vmax.f32 %v1552, %v1523
      %v1554 = vmax.f32 %v1553, %v1531
      %v1555 = vrot.slane %v1554, 4
      %v1556 = vmax.f32 %v1554, %v1555
      %v1557 = vrot.slane %v1556, 2
      %v1558 = vmax.f32 %v1556, %v1557
      %v1559 = vrot.slane %v1558, 1
      %v1560 = vmax.f32 %v1558, %v1559
      %v1561 = vmax.f32 %v1412, %v1420
      %v1562 = vmax.f32 %v1561, %v1428
      %v1563 = vmax.f32 %v1562, %v1436
      %v1564 = vmax.f32 %v1563, %v1444
      %v1565 = vmax.f32 %v1564, %v1452
      %v1566 = vmax.f32 %v1565, %v1460
      %v1567 = vmax.f32 %v1566, %v1468
      %v1568 = vmax.f32 %v1567, %v1476
      %v1569 = vmax.f32 %v1568, %v1484
      %v1570 = vmax.f32 %v1569, %v1492
      %v1571 = vmax.f32 %v1570, %v1500
      %v1572 = vmax.f32 %v1571, %v1508
      %v1573 = vmax.f32 %v1572, %v1516
      %v1574 = vmax.f32 %v1573, %v1524
      %v1575 = vmax.f32 %v1574, %v1532
      %v1576 = vrot.slane %v1575, 4
      %v1577 = vmax.f32 %v1575, %v1576
      %v1578 = vrot.slane %v1577, 2
      %v1579 = vmax.f32 %v1577, %v1578
      %v1580 = vrot.slane %v1579, 1
      %v1581 = vmax.f32 %v1579, %v1580
      %v1582 = vmax.f32 %v1413, %v1421
      %v1583 = vmax.f32 %v1582, %v1429
      %v1584 = vmax.f32 %v1583, %v1437
      %v1585 = vmax.f32 %v1584, %v1445
      %v1586 = vmax.f32 %v1585, %v1453
      %v1587 = vmax.f32 %v1586, %v1461
      %v1588 = vmax.f32 %v1587, %v1469
      %v1589 = vmax.f32 %v1588, %v1477
      %v1590 = vmax.f32 %v1589, %v1485
      %v1591 = vmax.f32 %v1590, %v1493
      %v1592 = vmax.f32 %v1591, %v1501
      %v1593 = vmax.f32 %v1592, %v1509
      %v1594 = vmax.f32 %v1593, %v1517
      %v1595 = vmax.f32 %v1594, %v1525
      %v1596 = vmax.f32 %v1595, %v1533
      %v1597 = vrot.slane %v1596, 4
      %v1598 = vmax.f32 %v1596, %v1597
      %v1599 = vrot.slane %v1598, 2
      %v1600 = vmax.f32 %v1598, %v1599
      %v1601 = vrot.slane %v1600, 1
      %v1602 = vmax.f32 %v1600, %v1601
      %v1603 = vmax.f32 %v1414, %v1422
      %v1604 = vmax.f32 %v1603, %v1430
      %v1605 = vmax.f32 %v1604, %v1438
      %v1606 = vmax.f32 %v1605, %v1446
      %v1607 = vmax.f32 %v1606, %v1454
      %v1608 = vmax.f32 %v1607, %v1462
      %v1609 = vmax.f32 %v1608, %v1470
      %v1610 = vmax.f32 %v1609, %v1478
      %v1611 = vmax.f32 %v1610, %v1486
      %v1612 = vmax.f32 %v1611, %v1494
      %v1613 = vmax.f32 %v1612, %v1502
      %v1614 = vmax.f32 %v1613, %v1510
      %v1615 = vmax.f32 %v1614, %v1518
      %v1616 = vmax.f32 %v1615, %v1526
      %v1617 = vmax.f32 %v1616, %v1534
      %v1618 = vrot.slane %v1617, 4
      %v1619 = vmax.f32 %v1617, %v1618
      %v1620 = vrot.slane %v1619, 2
      %v1621 = vmax.f32 %v1619, %v1620
      %v1622 = vrot.slane %v1621, 1
      %v1623 = vmax.f32 %v1621, %v1622
      %v1624 = vmax.f32 %v1415, %v1423
      %v1625 = vmax.f32 %v1624, %v1431
      %v1626 = vmax.f32 %v1625, %v1439
      %v1627 = vmax.f32 %v1626, %v1447
      %v1628 = vmax.f32 %v1627, %v1455
      %v1629 = vmax.f32 %v1628, %v1463
      %v1630 = vmax.f32 %v1629, %v1471
      %v1631 = vmax.f32 %v1630, %v1479
      %v1632 = vmax.f32 %v1631, %v1487
      %v1633 = vmax.f32 %v1632, %v1495
      %v1634 = vmax.f32 %v1633, %v1503
      %v1635 = vmax.f32 %v1634, %v1511
      %v1636 = vmax.f32 %v1635, %v1519
      %v1637 = vmax.f32 %v1636, %v1527
      %v1638 = vmax.f32 %v1637, %v1535
      %v1639 = vrot.slane %v1638, 4
      %v1640 = vmax.f32 %v1638, %v1639
      %v1641 = vrot.slane %v1640, 2
      %v1642 = vmax.f32 %v1640, %v1641
      %v1643 = vrot.slane %v1642, 1
      %v1644 = vmax.f32 %v1642, %v1643
      %v1645 = vmax.f32 %v1416, %v1424
      %v1646 = vmax.f32 %v1645, %v1432
      %v1647 = vmax.f32 %v1646, %v1440
      %v1648 = vmax.f32 %v1647, %v1448
      %v1649 = vmax.f32 %v1648, %v1456
      %v1650 = vmax.f32 %v1649, %v1464
      %v1651 = vmax.f32 %v1650, %v1472
      %v1652 = vmax.f32 %v1651, %v1480
      %v1653 = vmax.f32 %v1652, %v1488
      %v1654 = vmax.f32 %v1653, %v1496
      %v1655 = vmax.f32 %v1654, %v1504
      %v1656 = vmax.f32 %v1655, %v1512
      %v1657 = vmax.f32 %v1656, %v1520
      %v1658 = vmax.f32 %v1657, %v1528
      %v1659 = vmax.f32 %v1658, %v1536
      %v1660 = vrot.slane %v1659, 4
      %v1661 = vmax.f32 %v1659, %v1660
      %v1662 = vrot.slane %v1661, 2
      %v1663 = vmax.f32 %v1661, %v1662
      %v1664 = vrot.slane %v1663, 1
      %v1665 = vmax.f32 %v1663, %v1664
      %v1666 = vmax.f32 %v1417, %v1425
      %v1667 = vmax.f32 %v1666, %v1433
      %v1668 = vmax.f32 %v1667, %v1441
      %v1669 = vmax.f32 %v1668, %v1449
      %v1670 = vmax.f32 %v1669, %v1457
      %v1671 = vmax.f32 %v1670, %v1465
      %v1672 = vmax.f32 %v1671, %v1473
      %v1673 = vmax.f32 %v1672, %v1481
      %v1674 = vmax.f32 %v1673, %v1489
      %v1675 = vmax.f32 %v1674, %v1497
      %v1676 = vmax.f32 %v1675, %v1505
      %v1677 = vmax.f32 %v1676, %v1513
      %v1678 = vmax.f32 %v1677, %v1521
      %v1679 = vmax.f32 %v1678, %v1529
      %v1680 = vmax.f32 %v1679, %v1537
      %v1681 = vrot.slane %v1680, 4
      %v1682 = vmax.f32 %v1680, %v1681
      %v1683 = vrot.slane %v1682, 2
      %v1684 = vmax.f32 %v1682, %v1683
      %v1685 = vrot.slane %v1684, 1
      %v1686 = vmax.f32 %v1684, %v1685
      %v1687 = vmax.f32 %v1418, %v1426
      %v1688 = vmax.f32 %v1687, %v1434
      %v1689 = vmax.f32 %v1688, %v1442
      %v1690 = vmax.f32 %v1689, %v1450
      %v1691 = vmax.f32 %v1690, %v1458
      %v1692 = vmax.f32 %v1691, %v1466
      %v1693 = vmax.f32 %v1692, %v1474
      %v1694 = vmax.f32 %v1693, %v1482
      %v1695 = vmax.f32 %v1694, %v1490
      %v1696 = vmax.f32 %v1695, %v1498
      %v1697 = vmax.f32 %v1696, %v1506
      %v1698 = vmax.f32 %v1697, %v1514
      %v1699 = vmax.f32 %v1698, %v1522
      %v1700 = vmax.f32 %v1699, %v1530
      %v1701 = vmax.f32 %v1700, %v1538
      %v1702 = vrot.slane %v1701, 4
      %v1703 = vmax.f32 %v1701, %v1702
      %v1704 = vrot.slane %v1703, 2
      %v1705 = vmax.f32 %v1703, %v1704
      %v1706 = vrot.slane %v1705, 1
      %v1707 = vmax.f32 %v1705, %v1706
      %v1716 = vrot.slane %v1581, 7
      %v1717 = vrot.slane %v1602, 6
      %v1718 = vrot.slane %v1623, 5
      %v1719 = vrot.slane %v1644, 4
      %v1720 = vrot.slane %v1665, 3
      %v1721 = vrot.slane %v1686, 2
      %v1722 = vrot.slane %v1707, 1
      %vm1723 = vcmask 1040384
      %v1724 = vsel %vm1723, %v1560, %v1716
      %vm1725 = vcmask 1042434
      %v1726 = vsel %vm1725, %v1717, %v1718
      %vm1727 = vcmask 1041408
      %v1728 = vsel %vm1727, %v1724, %v1726
      %vm1729 = vcmask 1044484
      %v1730 = vsel %vm1729, %v1719, %v1720
      %vm1731 = vcmask 1046534
      %v1732 = vsel %vm1731, %v1721, %v1722
      %vm1733 = vcmask 1045508
      %v1734 = vsel %vm1733, %v1730, %v1732
      %vm1735 = vcmask 1043456
      %v1736 = vsel %vm1735, %v1728, %v1734
      %v1738 = vmax.f32 %v1539, %v1736
      %1739 = vst [vmem:[#allocation2] sm:$0xff] %v1738
      // Predicated region
      $region53: #{fe_forward.11} parent=47 // pred_check
        %p1740 = pneg %p305
      $region54: #{fe_forward.11} parent=47 // pred_check_branch
        %1742 = sbr.rel (%p1740) target = $region56
      $region55: #{fe_forward.11} parent=47 // pred_region
        %v1743 = vld [vmem:[#allocation2] sm:$0xff]
        %1744 = vst [vmem:[%s304] sm:$0xff] %v1743
      $region56: #{fe_forward.11} parent=47 // pred_fallthru
        _
      %p1745 = scmp.lt.s32.totalorder %s22, 1
      %s1746 = scalar_select %p1745, %s22, 1
      %s1747 = smul.addr %s1746, 8
      %s1748 = scalar_lea.vmem %s7, %s1747
      // Predicated region
      $region57: #{fe_forward.11} parent=47 // pred_check
        %p1749 = pneg %p202
      $region58: #{fe_forward.11} parent=47 // pred_check_branch
        %1751 = sbr.rel (%p1749) target = $region60
      $region59: #{fe_forward.11} parent=47 // pred_region
        _
      $region60: #{fe_forward.11} parent=47 // pred_fallthru
        _
    $region48: #{fe_forward.11} parent=5 // pred_fallthru
      _
    %p1752 = scmp.le.s32.totalorder 2, %s13
    // Predicated region
    $region61: #{fe_forward.11} parent=5 // pred_check
      %p1753 = pneg %p1752
    $region62: #{fe_forward.11} parent=5 // pred_check_branch
      %1755 = sbr.rel (%p1753) target = $region64
    $region63: #{fe_forward.11} parent=5 // pred_region
      %s1756 = ssub.s32 %s13, 2
      // Predicated region
      $region65: #{fe_forward.11} parent=63 // pred_check
        %p1757 = pneg %p208
      $region66: #{fe_forward.11} parent=63 // pred_check_branch
        %1759 = sbr.rel (%p1757) target = $region68
      $region67: #{fe_forward.11} parent=63 // pred_region
        %p1760 = scmp.lt.s32.totalorder %s24, 1
        %s1761 = scalar_select %p1760, %s24, 1
        %s1762 = smul.addr %s1761, 8
        %s1763 = scalar_lea.vmem %s7, %s1762
      $region68: #{fe_forward.11} parent=63 // pred_fallthru
        _
    $region64: #{fe_forward.11} parent=5 // pred_fallthru
      _
  $region6: #{fe_forward.11} parent=0 // loop_footer
    %s17 = sadd.s32 1, %s13
  $region7: #{fe_forward.11} parent=0 // loop_footer_branch
    %12 = sbr.rel target = $region3
  $region8: #{fe_forward.11} parent=0 // loop_exit
    _

// kernel: fe_forward.12
$region0: #{fe_forward.12}
  #allocation0 [shape = 'u32[]', space=smem, size = 0x4, offset = 0x4, fixed_abs, tag = 'smem constant byte address 0x4 - core index']
  #allocation1 [shape = 'u32[72,128]{1,0:T(1,128)}', space=vmem, size = 0x9000, scoped, tag = 'internal scratch']
  %s0 = inlined_call_operand.vmem [shape: f32[2,128,64], index: 0, kind: input, shape index: {}]
  %s1 = inlined_call_operand.vmem [shape: f32[2,64,64], index: 1, kind: input, shape index: {}]
  %s2 = inlined_call_operand.vmem [shape: f32[2,128,64], index: 2, kind: output, shape index: {}]
  %s3 = sld [smem:[#allocation0]]
  $region41: #{fe_forward.12} parent=0
    _
  %s5 = ssub.s32 1, %s3
  %s6 = scalar_select 0, %s5, %s3
  loop: start=0, step=1, limit=4
  $region2: #{fe_forward.12} parent=0 // loop_pre_header
    _
  $region3: #{fe_forward.12} parent=0 // loop_header
    %s8 = sphi 0, %s12
    %p9 = scmp.ge.s32.totalorder %s8, 4
    %s18 = sphi 0, %s20
    %s21 = sphi 0, %s18
    %s22 = sphi 0, %s21
    %s38 = sphi 0, %s22
    %s44 = sphi 0, %s46
    %s47 = sphi 0, %s44
    %s48 = sphi 0, %s47
    %s64 = sphi 0, %s48
    %s70 = sphi 0, %s72
    %s73 = sphi 0, %s70
    %s74 = sphi 0, %s73
    %s90 = sphi 0, %s74
  $region4: #{fe_forward.12} parent=0 // loop_header_branch
    %11 = sbr.rel (%p9) target = $region8
  $region5: #{fe_forward.12} parent=0 // loop_body
    %s13 = ssub.s32 %s8, 1
    %s14 = ssub.s32 %s8, 2
    %s15 = sadd.s32 %s8, 1
    %s16 = ssub.s32 %s8, %s15
    %p17 = scmp.eq.s32.totalorder %s16, 0
    %s19 = sadd.s32 %s18, 1
    %s20 = scalar_select %p17, %s18, %s19
    %p23 = pneg %p17
    %p24 = scmp.eq.s32.totalorder %s8, 1
    %p25 = por %p23, %p24
    %p26 = scmp.ne.s32.totalorder %s18, %s21
    %p27 = scmp.eq.s32.totalorder %s8, 0
    %p28 = por %p26, %p27
    %p29 = scmp.ne.s32.totalorder %s18, %s21
    %p30 = scmp.eq.s32.totalorder %s13, 1
    %p31 = por %p29, %p30
    %p32 = scmp.ne.s32.totalorder %s21, %s22
    %p33 = scmp.eq.s32.totalorder %s13, 0
    %p34 = por %p32, %p33
    %p35 = scmp.ne.s32.totalorder %s21, %s22
    %p36 = scmp.eq.s32.totalorder %s14, 1
    %p37 = por %p35, %p36
    %p39 = scmp.ne.s32.totalorder %s22, %s38
    %p40 = scmp.eq.s32.totalorder %s14, 0
    %p41 = por %p39, %p40
    %s42 = ssub.s32 %s8, %s15
    %p43 = scmp.eq.s32.totalorder %s42, 0
    %s45 = sadd.s32 %s44, 1
    %s46 = scalar_select %p43, %s44, %s45
    %p49 = pneg %p43
    %p50 = scmp.eq.s32.totalorder %s8, 1
    %p51 = por %p49, %p50
    %p52 = scmp.ne.s32.totalorder %s44, %s47
    %p53 = scmp.eq.s32.totalorder %s8, 0
    %p54 = por %p52, %p53
    %p55 = scmp.ne.s32.totalorder %s44, %s47
    %p56 = scmp.eq.s32.totalorder %s13, 1
    %p57 = por %p55, %p56
    %p58 = scmp.ne.s32.totalorder %s47, %s48
    %p59 = scmp.eq.s32.totalorder %s13, 0
    %p60 = por %p58, %p59
    %p61 = scmp.ne.s32.totalorder %s47, %s48
    %p62 = scmp.eq.s32.totalorder %s14, 1
    %p63 = por %p61, %p62
    %p65 = scmp.ne.s32.totalorder %s48, %s64
    %p66 = scmp.eq.s32.totalorder %s14, 0
    %p67 = por %p65, %p66
    %s68 = ssub.s32 %s8, %s15
    %p69 = scmp.eq.s32.totalorder %s68, 0
    %s71 = sadd.s32 %s70, 1
    %s72 = scalar_select %p69, %s70, %s71
    %p75 = pneg %p69
    %p76 = scmp.eq.s32.totalorder %s8, 1
    %p77 = por %p75, %p76
    %p78 = scmp.ne.s32.totalorder %s70, %s73
    %p79 = scmp.eq.s32.totalorder %s8, 0
    %p80 = por %p78, %p79
    %p81 = scmp.ne.s32.totalorder %s70, %s73
    %p82 = scmp.eq.s32.totalorder %s13, 1
    %p83 = por %p81, %p82
    %p84 = scmp.ne.s32.totalorder %s73, %s74
    %p85 = scmp.eq.s32.totalorder %s13, 0
    %p86 = por %p84, %p85
    %p87 = scmp.ne.s32.totalorder %s73, %s74
    %p88 = scmp.eq.s32.totalorder %s14, 1
    %p89 = por %p87, %p88
    %p91 = scmp.ne.s32.totalorder %s74, %s90
    %p92 = scmp.eq.s32.totalorder %s14, 0
    %p93 = por %p91, %p92
    %p94 = scmp.le.s32.totalorder 1, %s8
    %p95 = scmp.lt.s32.totalorder %s8, 3
    %p96 = pnand %p94, %p95
    %p97 = pneg %p96
    // Predicated region
    $region9: #{fe_forward.12} parent=5 // pred_check
      _
    $region10: #{fe_forward.12} parent=5 // pred_check_branch
      %99 = sbr.rel (%p96) target = $region12
    $region11: #{fe_forward.12} parent=5 // pred_region
      %s100 = ssub.s32 %s8, 1
    $region12: #{fe_forward.12} parent=5 // pred_fallthru
      _
    %p101 = scmp.lt.s32.totalorder %s8, 2
    // Predicated region
    $region13: #{fe_forward.12} parent=5 // pred_check
      %p102 = pneg %p101
    $region14: #{fe_forward.12} parent=5 // pred_check_branch
      %104 = sbr.rel (%p102) target = $region16
    $region15: #{fe_forward.12} parent=5 // pred_region
      // Predicated region
      $region17: #{fe_forward.12} parent=15 // pred_check
        %p105 = pneg %p28
      $region18: #{fe_forward.12} parent=15 // pred_check_branch
        %107 = sbr.rel (%p105) target = $region20
      $region19: #{fe_forward.12} parent=15 // pred_region
        %p108 = scmp.lt.s32.totalorder %s8, 1
        %s109 = scalar_select %p108, %s8, 1
        %s110 = smul.addr %s109, 16
        %s111 = smul.addr %s110, 8
        %s112 = scalar_lea.vmem %s0, %s111
      $region20: #{fe_forward.12} parent=15 // pred_fallthru
        _
      // Predicated region
      $region21: #{fe_forward.12} parent=15 // pred_check
        %p113 = pneg %p54
      $region22: #{fe_forward.12} parent=15 // pred_check_branch
        %115 = sbr.rel (%p113) target = $region24
      $region23: #{fe_forward.12} parent=15 // pred_region
        %p116 = scmp.lt.s32.totalorder %s8, 1
        %s117 = scalar_select %p116, %s8, 1
        %s118 = smul.addr %s117, 8
        %s119 = smul.addr %s118, 8
        %s120 = scalar_lea.vmem %s1, %s119
      $region24: #{fe_forward.12} parent=15 // pred_fallthru
        _
    $region16: #{fe_forward.12} parent=5 // pred_fallthru
      _
    %p121 = scmp.le.s32.totalorder 1, %s8
    %p122 = scmp.lt.s32.totalorder %s8, 3
    %p123 = pnand %p121, %p122
    %p124 = pneg %p123
    // Predicated region
    $region25: #{fe_forward.12} parent=5 // pred_check
      _
    $region26: #{fe_forward.12} parent=5 // pred_check_branch
      %126 = sbr.rel (%p123) target = $region28
    $region27: #{fe_forward.12} parent=5 // pred_region
      %s127 = ssub.s32 %s8, 1
      %p128 = scmp.lt.s32.totalorder %s13, 1
      %s129 = scalar_select %p128, %s13, 1
      %s130 = smul.addr %s129, 16
      %s131 = smul.addr %s130, 8
      %s132 = scalar_lea.vmem %s0, %s131
      %p133 = pneg %p34
      %p134 = pneg %p31
      %p135 = scmp.lt.s32.totalorder %s13, 1
      %s136 = scalar_select %p135, %s13, 1
      %s137 = smul.addr %s136, 8
      %s138 = smul.addr %s137, 8
      %s139 = scalar_lea.vmem %s1, %s138
      %p140 = pneg %p60
      %p141 = pneg %p57
      %p142 = pneg %p86
      %p143 = pneg %p83
      %p144 = scmp.lt.s32.totalorder %s13, 1
      %s145 = scalar_select %p144, %s13, 1
      %s146 = smul.addr %s145, 16
      %s147 = smul.addr %s146, 8
      %s148 = scalar_lea.vmem %s2, %s147
      %p149 = scmp.lt.s32.totalorder %s13, 1
      %s150 = scalar_select %p149, %s13, 1
      %s151 = smul.addr %s150, 16
      %s152 = smul.addr %s151, 8
      %s153 = scalar_lea.vmem %s0, %s152
      %p154 = scmp.lt.s32.totalorder %s13, 1
      %s155 = scalar_select %p154, %s13, 1
      %s156 = smul.addr %s155, 8
      %s157 = smul.addr %s156, 8
      %s158 = scalar_lea.vmem %s1, %s157
      %p159 = scmp.lt.s32.totalorder %s13, 1
      %s160 = scalar_select %p159, %s13, 1
      %s161 = smul.addr %s160, 16
      %s162 = smul.addr %s161, 8
      %s163 = scalar_lea.vmem %s2, %s162
      %v164 = vld [vmem:[%s153] sm:$0xff]
      %v165 = vld [vmem:[%s153 + $0x8] sm:$0xff]
      %v166 = vld [vmem:[%s153 + $0x10] sm:$0xff]
      %v167 = vld [vmem:[%s153 + $0x18] sm:$0xff]
      %v168 = vld [vmem:[%s153 + $0x20] sm:$0xff]
      %v169 = vld [vmem:[%s153 + $0x28] sm:$0xff]
      %v170 = vld [vmem:[%s153 + $0x30] sm:$0xff]
      %v171 = vld [vmem:[%s153 + $0x38] sm:$0xff]
      %v172 = vld [vmem:[%s153 + $0x40] sm:$0xff]
      %v173 = vld [vmem:[%s153 + $0x48] sm:$0xff]
      %v174 = vld [vmem:[%s153 + $0x50] sm:$0xff]
      %v175 = vld [vmem:[%s153 + $0x58] sm:$0xff]
      %v176 = vld [vmem:[%s153 + $0x60] sm:$0xff]
      %v177 = vld [vmem:[%s153 + $0x68] sm:$0xff]
      %v178 = vld [vmem:[%s153 + $0x70] sm:$0xff]
      %v179 = vld [vmem:[%s153 + $0x78] sm:$0xff]
      %v180 = vld [vmem:[%s158] sm:$0xff]
      %v181 = vld [vmem:[%s158 + $0x8] sm:$0xff]
      %v182 = vld [vmem:[%s158 + $0x10] sm:$0xff]
      %v183 = vld [vmem:[%s158 + $0x18] sm:$0xff]
      %v184 = vld [vmem:[%s158 + $0x20] sm:$0xff]
      %v185 = vld [vmem:[%s158 + $0x28] sm:$0xff]
      %v186 = vld [vmem:[%s158 + $0x30] sm:$0xff]
      %v187 = vld [vmem:[%s158 + $0x38] sm:$0xff]
      %vm188 = vcmask 523264
      %v190 = vsel %vm188, %v164, 0
      %v193 = vsel %vm188, %v165, 0
      %v196 = vsel %vm188, %v166, 0
      %v199 = vsel %vm188, %v167, 0
      %v202 = vsel %vm188, %v168, 0
      %v205 = vsel %vm188, %v169, 0
      %v208 = vsel %vm188, %v170, 0
      %v211 = vsel %vm188, %v171, 0
      %v214 = vsel %vm188, %v172, 0
      %v217 = vsel %vm188, %v173, 0
      %v220 = vsel %vm188, %v174, 0
      %v223 = vsel %vm188, %v175, 0
      %v226 = vsel %vm188, %v176, 0
      %v229 = vsel %vm188, %v177, 0
      %v232 = vsel %vm188, %v178, 0
      %v235 = vsel %vm188, %v179, 0
      %237 = vmatpush.msra.mxu0 0.0
      %238 = vmatpush.msra.mxu0 0.0
      %239 = vmatpush.msra.mxu0 0.0
      %240 = vmatpush.msra.mxu0 0.0
      %241 = vmatpush.msra.mxu0 0.0
      %242 = vmatpush.msra.mxu0 0.0
      %243 = vmatpush.msra.mxu0 0.0
      %244 = vmatpush.msra.mxu0 0.0
      %245 = vmatpush.msra.mxu0 %v187
      %246 = vmatpush.msra.mxu0 %v186
      %247 = vmatpush.msra.mxu0 %v185
      %248 = vmatpush.msra.mxu0 %v184
      %249 = vmatpush.msra.mxu0 %v183
      %250 = vmatpush.msra.mxu0 %v182
      %251 = vmatpush.msra.mxu0 %v181
      %252 = vmatpush.msra.mxu0 %v180
      %253 = vmatmul.f32.gmra.mxu0 %v190
      %v254 = vpop.f32.mrf.mxu0
      %v255 = vadd.f32 0.0, %v254
      %256 = vmatmul.f32.gmra.mxu0 %v193
      %v257 = vpop.f32.mrf.mxu0
      %v258 = vadd.f32 0.0, %v257
      %259 = vmatmul.f32.gmra.mxu0 %v196
      %v260 = vpop.f32.mrf.mxu0
      %v261 = vadd.f32 0.0, %v260
      %262 = vmatmul.f32.gmra.mxu0 %v199
      %v263 = vpop.f32.mrf.mxu0
      %v264 = vadd.f32 0.0, %v263
      %265 = vmatmul.f32.gmra.mxu0 %v202
      %v266 = vpop.f32.mrf.mxu0
      %v267 = vadd.f32 0.0, %v266
      %268 = vmatmul.f32.gmra.mxu0 %v205
      %v269 = vpop.f32.mrf.mxu0
      %v270 = vadd.f32 0.0, %v269
      %271 = vmatmul.f32.gmra.mxu0 %v208
      %v272 = vpop.f32.mrf.mxu0
      %v273 = vadd.f32 0.0, %v272
      %274 = vmatmul.f32.gmra.mxu0 %v211
      %v275 = vpop.f32.mrf.mxu0
      %v276 = vadd.f32 0.0, %v275
      %277 = vmatmul.f32.gmra.mxu0 %v214
      %v278 = vpop.f32.mrf.mxu0
      %v279 = vadd.f32 0.0, %v278
      %280 = vmatmul.f32.gmra.mxu0 %v217
      %v281 = vpop.f32.mrf.mxu0
      %v282 = vadd.f32 0.0, %v281
      %283 = vmatmul.f32.gmra.mxu0 %v220
      %v284 = vpop.f32.mrf.mxu0
      %v285 = vadd.f32 0.0, %v284
      %286 = vmatmul.f32.gmra.mxu0 %v223
      %v287 = vpop.f32.mrf.mxu0
      %v288 = vadd.f32 0.0, %v287
      %289 = vmatmul.f32.gmra.mxu0 %v226
      %v290 = vpop.f32.mrf.mxu0
      %v291 = vadd.f32 0.0, %v290
      %292 = vmatmul.f32.gmra.mxu0 %v229
      %v293 = vpop.f32.mrf.mxu0
      %v294 = vadd.f32 0.0, %v293
      %295 = vmatmul.f32.gmra.mxu0 %v232
      %v296 = vpop.f32.mrf.mxu0
      %v297 = vadd.f32 0.0, %v296
      %298 = vmatmul.f32.gmra.mxu0 %v235
      %v299 = vpop.f32.mrf.mxu0
      %v300 = vadd.f32 0.0, %v299
      %301 = vdwg.mxu0
      %302 = vst.msk [vmem:[%s163] sm:$0xff] %vm188, %v255
      %303 = vst.msk [vmem:[%s163 + $0x8] sm:$0xff] %vm188, %v258
      %304 = vst.msk [vmem:[%s163 + $0x10] sm:$0xff] %vm188, %v261
      %305 = vst.msk [vmem:[%s163 + $0x18] sm:$0xff] %vm188, %v264
      %306 = vst.msk [vmem:[%s163 + $0x20] sm:$0xff] %vm188, %v267
      %307 = vst.msk [vmem:[%s163 + $0x28] sm:$0xff] %vm188, %v270
      %308 = vst.msk [vmem:[%s163 + $0x30] sm:$0xff] %vm188, %v273
      %309 = vst.msk [vmem:[%s163 + $0x38] sm:$0xff] %vm188, %v276
      %310 = vst.msk [vmem:[%s163 + $0x40] sm:$0xff] %vm188, %v279
      %311 = vst.msk [vmem:[%s163 + $0x48] sm:$0xff] %vm188, %v282
      %312 = vst.msk [vmem:[%s163 + $0x50] sm:$0xff] %vm188, %v285
      %313 = vst.msk [vmem:[%s163 + $0x58] sm:$0xff] %vm188, %v288
      %314 = vst.msk [vmem:[%s163 + $0x60] sm:$0xff] %vm188, %v291
      %315 = vst.msk [vmem:[%s163 + $0x68] sm:$0xff] %vm188, %v294
      %316 = vst.msk [vmem:[%s163 + $0x70] sm:$0xff] %vm188, %v297
      %317 = vst.msk [vmem:[%s163 + $0x78] sm:$0xff] %vm188, %v300
      %p318 = scmp.lt.s32.totalorder %s13, 1
      %s319 = scalar_select %p318, %s13, 1
      %s320 = smul.addr %s319, 16
      %s321 = smul.addr %s320, 8
      %s322 = scalar_lea.vmem %s2, %s321
      // Predicated region
      $region29: #{fe_forward.12} parent=27 // pred_check
        %p323 = pneg %p83
      $region30: #{fe_forward.12} parent=27 // pred_check_branch
        %325 = sbr.rel (%p323) target = $region32
      $region31: #{fe_forward.12} parent=27 // pred_region
        _
      $region32: #{fe_forward.12} parent=27 // pred_fallthru
        _
    $region28: #{fe_forward.12} parent=5 // pred_fallthru
      _
    %p326 = scmp.le.s32.totalorder 2, %s8
    // Predicated region
    $region33: #{fe_forward.12} parent=5 // pred_check
      %p327 = pneg %p326
    $region34: #{fe_forward.12} parent=5 // pred_check_branch
      %329 = sbr.rel (%p327) target = $region36
    $region35: #{fe_forward.12} parent=5 // pred_region
      %s330 = ssub.s32 %s8, 2
      // Predicated region
      $region37: #{fe_forward.12} parent=35 // pred_check
        %p331 = pneg %p89
      $region38: #{fe_forward.12} parent=35 // pred_check_branch
        %333 = sbr.rel (%p331) target = $region40
      $region39: #{fe_forward.12} parent=35 // pred_region
        %p334 = scmp.lt.s32.totalorder %s14, 1
        %s335 = scalar_select %p334, %s14, 1
        %s336 = smul.addr %s335, 16
        %s337 = smul.addr %s336, 8
        %s338 = scalar_lea.vmem %s2, %s337
      $region40: #{fe_forward.12} parent=35 // pred_fallthru
        _
    $region36: #{fe_forward.12} parent=5 // pred_fallthru
      _
  $region6: #{fe_forward.12} parent=0 // loop_footer
    %s12 = sadd.s32 1, %s8
  $region7: #{fe_forward.12} parent=0 // loop_footer_branch
    %7 = sbr.rel target = $region3
  $region8: #{fe_forward.12} parent=0 // loop_exit
    _

// kernel: custom-call.10
$region0: #{custom-call.10}
  %s0 = inlined_call_operand.vmem [shape: f32[2,128], index: 0, kind: output, shape index: {}]

// kernel: fe_forward.13
$region0: #{fe_forward.13}
  #allocation0 [shape = 'u32[]', space=smem, size = 0x4, offset = 0x4, fixed_abs, tag = 'smem constant byte address 0x4 - core index']
  #allocation1 [shape = 'u32[72,128]{1,0:T(1,128)}', space=vmem, size = 0x9000, scoped, tag = 'internal scratch']
  %s0 = inlined_call_operand.vmem [shape: f32[8192,64], index: 0, kind: input, shape index: {}]
  %s1 = inlined_call_operand.vmem [shape: f32[64,64], index: 1, kind: input, shape index: {}]
  %s2 = inlined_call_operand.vmem [shape: f32[3,64], index: 2, kind: input, shape index: {}]
  %s3 = inlined_call_operand.vmem [shape: f32[8192,64], index: 3, kind: output, shape index: {}]
  %s4 = sld [smem:[#allocation0]]
  $region45: #{fe_forward.13} parent=0
    _
  %s6 = ssub.s32 1, %s4
  %s7 = scalar_select 0, %s6, %s4
  loop: start=0, step=1, limit=10
  $region2: #{fe_forward.13} parent=0 // loop_pre_header
    _
  $region3: #{fe_forward.13} parent=0 // loop_header
    %s9 = sphi 0, %s13
    %p10 = scmp.ge.s32.totalorder %s9, 10
    %s19 = sphi 0, %s21
    %s22 = sphi 0, %s19
    %s23 = sphi 0, %s22
    %s39 = sphi 0, %s23
    %s43 = sphi 0, %s43
    %s45 = sphi 0, %s43
    %s46 = sphi 0, %s45
    %s60 = sphi 0, %s46
    %s64 = sphi 0, %s64
    %s66 = sphi 0, %s64
    %s67 = sphi 0, %s66
    %s81 = sphi 0, %s67
    %s87 = sphi 0, %s89
    %s90 = sphi 0, %s87
    %s91 = sphi 0, %s90
    %s107 = sphi 0, %s91
  $region4: #{fe_forward.13} parent=0 // loop_header_branch
    %12 = sbr.rel (%p10) target = $region8
  $region5: #{fe_forward.13} parent=0 // loop_body
    %s14 = ssub.s32 %s9, 1
    %s15 = ssub.s32 %s9, 2
    %s16 = sadd.s32 %s9, 1
    %s17 = ssub.s32 %s9, %s16
    %p18 = scmp.eq.s32.totalorder %s17, 0
    %s20 = sadd.s32 %s19, 1
    %s21 = scalar_select %p18, %s19, %s20
    %p24 = pneg %p18
    %p25 = scmp.eq.s32.totalorder %s9, 7
    %p26 = por %p24, %p25
    %p27 = scmp.ne.s32.totalorder %s19, %s22
    %p28 = scmp.eq.s32.totalorder %s9, 0
    %p29 = por %p27, %p28
    %p30 = scmp.ne.s32.totalorder %s19, %s22
    %p31 = scmp.eq.s32.totalorder %s14, 7
    %p32 = por %p30, %p31
    %p33 = scmp.ne.s32.totalorder %s22, %s23
    %p34 = scmp.eq.s32.totalorder %s14, 0
    %p35 = por %p33, %p34
    %p36 = scmp.ne.s32.totalorder %s22, %s23
    %p37 = scmp.eq.s32.totalorder %s15, 7
    %p38 = por %p36, %p37
    %p40 = scmp.ne.s32.totalorder %s23, %s39
    %p41 = scmp.eq.s32.totalorder %s15, 0
    %p42 = por %p40, %p41
    %s44 = sadd.s32 %s43, 1
    %p47 = scmp.eq.s32.totalorder %s9, 7
    %p48 = scmp.ne.s32.totalorder %s43, %s45
    %p49 = scmp.eq.s32.totalorder %s9, 0
    %p50 = por %p48, %p49
    %p51 = scmp.ne.s32.totalorder %s43, %s45
    %p52 = scmp.eq.s32.totalorder %s14, 7
    %p53 = por %p51, %p52
    %p54 = scmp.ne.s32.totalorder %s45, %s46
    %p55 = scmp.eq.s32.totalorder %s14, 0
    %p56 = por %p54, %p55
    %p57 = scmp.ne.s32.totalorder %s45, %s46
    %p58 = scmp.eq.s32.totalorder %s15, 7
    %p59 = por %p57, %p58
    %p61 = scmp.ne.s32.totalorder %s46, %s60
    %p62 = scmp.eq.s32.totalorder %s15, 0
    %p63 = por %p61, %p62
    %s65 = sadd.s32 %s64, 1
    %p68 = scmp.eq.s32.totalorder %s9, 7
    %p69 = scmp.ne.s32.totalorder %s64, %s66
    %p70 = scmp.eq.s32.totalorder %s9, 0
    %p71 = por %p69, %p70
    %p72 = scmp.ne.s32.totalorder %s64, %s66
    %p73 = scmp.eq.s32.totalorder %s14, 7
    %p74 = por %p72, %p73
    %p75 = scmp.ne.s32.totalorder %s66, %s67
    %p76 = scmp.eq.s32.totalorder %s14, 0
    %p77 = por %p75, %p76
    %p78 = scmp.ne.s32.totalorder %s66, %s67
    %p79 = scmp.eq.s32.totalorder %s15, 7
    %p80 = por %p78, %p79
    %p82 = scmp.ne.s32.totalorder %s67, %s81
    %p83 = scmp.eq.s32.totalorder %s15, 0
    %p84 = por %p82, %p83
    %s85 = ssub.s32 %s9, %s16
    %p86 = scmp.eq.s32.totalorder %s85, 0
    %s88 = sadd.s32 %s87, 1
    %s89 = scalar_select %p86, %s87, %s88
    %p92 = pneg %p86
    %p93 = scmp.eq.s32.totalorder %s9, 7
    %p94 = por %p92, %p93
    %p95 = scmp.ne.s32.totalorder %s87, %s90
    %p96 = scmp.eq.s32.totalorder %s9, 0
    %p97 = por %p95, %p96
    %p98 = scmp.ne.s32.totalorder %s87, %s90
    %p99 = scmp.eq.s32.totalorder %s14, 7
    %p100 = por %p98, %p99
    %p101 = scmp.ne.s32.totalorder %s90, %s91
    %p102 = scmp.eq.s32.totalorder %s14, 0
    %p103 = por %p101, %p102
    %p104 = scmp.ne.s32.totalorder %s90, %s91
    %p105 = scmp.eq.s32.totalorder %s15, 7
    %p106 = por %p104, %p105
    %p108 = scmp.ne.s32.totalorder %s91, %s107
    %p109 = scmp.eq.s32.totalorder %s15, 0
    %p110 = por %p108, %p109
    %p111 = scmp.le.s32.totalorder 1, %s9
    %p112 = scmp.lt.s32.totalorder %s9, 9
    %p113 = pnand %p111, %p112
    %p114 = pneg %p113
    // Predicated region
    $region9: #{fe_forward.13} parent=5 // pred_check
      _
    $region10: #{fe_forward.13} parent=5 // pred_check_branch
      %116 = sbr.rel (%p113) target = $region12
    $region11: #{fe_forward.13} parent=5 // pred_region
      %s117 = ssub.s32 %s9, 1
      // Predicated region
      $region13: #{fe_forward.13} parent=11 // pred_check
        %p118 = pneg %p56
      $region14: #{fe_forward.13} parent=11 // pred_check_branch
        %120 = sbr.rel (%p118) target = $region16
      $region15: #{fe_forward.13} parent=11 // pred_region
        _
      $region16: #{fe_forward.13} parent=11 // pred_fallthru
        _
      // Predicated region
      $region17: #{fe_forward.13} parent=11 // pred_check
        %p121 = pneg %p77
      $region18: #{fe_forward.13} parent=11 // pred_check_branch
        %123 = sbr.rel (%p121) target = $region20
      $region19: #{fe_forward.13} parent=11 // pred_region
        _
      $region20: #{fe_forward.13} parent=11 // pred_fallthru
        _
    $region12: #{fe_forward.13} parent=5 // pred_fallthru
      _
    %p124 = scmp.lt.s32.totalorder %s9, 8
    // Predicated region
    $region21: #{fe_forward.13} parent=5 // pred_check
      %p125 = pneg %p124
    $region22: #{fe_forward.13} parent=5 // pred_check_branch
      %127 = sbr.rel (%p125) target = $region24
    $region23: #{fe_forward.13} parent=5 // pred_region
      // Predicated region
      $region25: #{fe_forward.13} parent=23 // pred_check
        %p128 = pneg %p29
      $region26: #{fe_forward.13} parent=23 // pred_check_branch
        %130 = sbr.rel (%p128) target = $region28
      $region27: #{fe_forward.13} parent=23 // pred_region
        %s131 = smul.u32 128, %s9
        %p132 = scmp.lt.s32.totalorder %s131, 1023
        %s133 = scalar_select %p132, %s131, 1023
        %s134 = smul.addr %s133, 8
        %s135 = scalar_lea.vmem %s0, %s134
        %s136 = smul.u32 128, %s9
      $region28: #{fe_forward.13} parent=23 // pred_fallthru
        _
    $region24: #{fe_forward.13} parent=5 // pred_fallthru
      _
    %p137 = scmp.le.s32.totalorder 1, %s9
    %p138 = scmp.lt.s32.totalorder %s9, 9
    %p139 = pnand %p137, %p138
    %p140 = pneg %p139
    // Predicated region
    $region29: #{fe_forward.13} parent=5 // pred_check
      _
    $region30: #{fe_forward.13} parent=5 // pred_check_branch
      %142 = sbr.rel (%p139) target = $region32
    $region31: #{fe_forward.13} parent=5 // pred_region
      %s143 = ssub.s32 %s9, 1
      %s144 = smul.u32 128, %s14
      %p145 = scmp.lt.s32.totalorder %s144, 1023
      %s146 = scalar_select %p145, %s144, 1023
      %s147 = smul.addr %s146, 8
      %s148 = scalar_lea.vmem %s0, %s147
      %p149 = pneg %p35
      %p150 = pneg %p32
      %p151 = pneg %p56
      %p152 = pneg %p53
      %p153 = pneg %p77
      %p154 = pneg %p74
      %p155 = pneg %p103
      %p156 = pneg %p100
      %s157 = smul.u32 128, %s14
      %p158 = scmp.lt.s32.totalorder %s157, 1023
      %s159 = scalar_select %p158, %s157, 1023
      %s160 = smul.addr %s159, 8
      %s161 = scalar_lea.vmem %s3, %s160
      %s162 = smul.u32 128, %s14
      %p163 = scmp.lt.s32.totalorder %s162, 1023
      %s164 = scalar_select %p163, %s162, 1023
      %s165 = smul.addr %s164, 8
      %s166 = scalar_lea.vmem %s0, %s165
      %s167 = smul.u32 128, %s14
      %s168 = smul.u32 128, %s14
      %p169 = scmp.lt.s32.totalorder %s168, 1023
      %s170 = scalar_select %p169, %s168, 1023
      %s171 = smul.addr %s170, 8
      %s172 = scalar_lea.vmem %s3, %s171
      %s173 = smul.u32 128, %s14
      %v174 = vld [vmem:[%s166] sm:$0xff]
      %v175 = vld [vmem:[%s166 + $0x8] sm:$0xff]
      %v176 = vld [vmem:[%s166 + $0x10] sm:$0xff]
      %v177 = vld [vmem:[%s166 + $0x18] sm:$0xff]
      %v178 = vld [vmem:[%s166 + $0x20] sm:$0xff]
      %v179 = vld [vmem:[%s166 + $0x28] sm:$0xff]
      %v180 = vld [vmem:[%s166 + $0x30] sm:$0xff]
      %v181 = vld [vmem:[%s166 + $0x38] sm:$0xff]
      %v182 = vld [vmem:[%s166 + $0x40] sm:$0xff]
      %v183 = vld [vmem:[%s166 + $0x48] sm:$0xff]
      %v184 = vld [vmem:[%s166 + $0x50] sm:$0xff]
      %v185 = vld [vmem:[%s166 + $0x58] sm:$0xff]
      %v186 = vld [vmem:[%s166 + $0x60] sm:$0xff]
      %v187 = vld [vmem:[%s166 + $0x68] sm:$0xff]
      %v188 = vld [vmem:[%s166 + $0x70] sm:$0xff]
      %v189 = vld [vmem:[%s166 + $0x78] sm:$0xff]
      %v190 = vld [vmem:[%s166 + $0x80] sm:$0xff]
      %v191 = vld [vmem:[%s166 + $0x88] sm:$0xff]
      %v192 = vld [vmem:[%s166 + $0x90] sm:$0xff]
      %v193 = vld [vmem:[%s166 + $0x98] sm:$0xff]
      %v194 = vld [vmem:[%s166 + $0xa0] sm:$0xff]
      %v195 = vld [vmem:[%s166 + $0xa8] sm:$0xff]
      %v196 = vld [vmem:[%s166 + $0xb0] sm:$0xff]
      %v197 = vld [vmem:[%s166 + $0xb8] sm:$0xff]
      %v198 = vld [vmem:[%s166 + $0xc0] sm:$0xff]
      %v199 = vld [vmem:[%s166 + $0xc8] sm:$0xff]
      %v200 = vld [vmem:[%s166 + $0xd0] sm:$0xff]
      %v201 = vld [vmem:[%s166 + $0xd8] sm:$0xff]
      %v202 = vld [vmem:[%s166 + $0xe0] sm:$0xff]
      %v203 = vld [vmem:[%s166 + $0xe8] sm:$0xff]
      %v204 = vld [vmem:[%s166 + $0xf0] sm:$0xff]
      %v205 = vld [vmem:[%s166 + $0xf8] sm:$0xff]
      %v206 = vld [vmem:[%s166 + $0x100] sm:$0xff]
      %v207 = vld [vmem:[%s166 + $0x108] sm:$0xff]
      %v208 = vld [vmem:[%s166 + $0x110] sm:$0xff]
      %v209 = vld [vmem:[%s166 + $0x118] sm:$0xff]
      %v210 = vld [vmem:[%s166 + $0x120] sm:$0xff]
      %v211 = vld [vmem:[%s166 + $0x128] sm:$0xff]
      %v212 = vld [vmem:[%s166 + $0x130] sm:$0xff]
      %v213 = vld [vmem:[%s166 + $0x138] sm:$0xff]
      %v214 = vld [vmem:[%s166 + $0x140] sm:$0xff]
      %v215 = vld [vmem:[%s166 + $0x148] sm:$0xff]
      %v216 = vld [vmem:[%s166 + $0x150] sm:$0xff]
      %v217 = vld [vmem:[%s166 + $0x158] sm:$0xff]
      %v218 = vld [vmem:[%s166 + $0x160] sm:$0xff]
      %v219 = vld [vmem:[%s166 + $0x168] sm:$0xff]
      %v220 = vld [vmem:[%s166 + $0x170] sm:$0xff]
      %v221 = vld [vmem:[%s166 + $0x178] sm:$0xff]
      %v222 = vld [vmem:[%s166 + $0x180] sm:$0xff]
      %v223 = vld [vmem:[%s166 + $0x188] sm:$0xff]
      %v224 = vld [vmem:[%s166 + $0x190] sm:$0xff]
      %v225 = vld [vmem:[%s166 + $0x198] sm:$0xff]
      %v226 = vld [vmem:[%s166 + $0x1a0] sm:$0xff]
      %v227 = vld [vmem:[%s166 + $0x1a8] sm:$0xff]
      %v228 = vld [vmem:[%s166 + $0x1b0] sm:$0xff]
      %v229 = vld [vmem:[%s166 + $0x1b8] sm:$0xff]
      %v230 = vld [vmem:[%s166 + $0x1c0] sm:$0xff]
      %v231 = vld [vmem:[%s166 + $0x1c8] sm:$0xff]
      %v232 = vld [vmem:[%s166 + $0x1d0] sm:$0xff]
      %v233 = vld [vmem:[%s166 + $0x1d8] sm:$0xff]
      %v234 = vld [vmem:[%s166 + $0x1e0] sm:$0xff]
      %v235 = vld [vmem:[%s166 + $0x1e8] sm:$0xff]
      %v236 = vld [vmem:[%s166 + $0x1f0] sm:$0xff]
      %v237 = vld [vmem:[%s166 + $0x1f8] sm:$0xff]
      %v238 = vld [vmem:[%s166 + $0x200] sm:$0xff]
      %v239 = vld [vmem:[%s166 + $0x208] sm:$0xff]
      %v240 = vld [vmem:[%s166 + $0x210] sm:$0xff]
      %v241 = vld [vmem:[%s166 + $0x218] sm:$0xff]
      %v242 = vld [vmem:[%s166 + $0x220] sm:$0xff]
      %v243 = vld [vmem:[%s166 + $0x228] sm:$0xff]
      %v244 = vld [vmem:[%s166 + $0x230] sm:$0xff]
      %v245 = vld [vmem:[%s166 + $0x238] sm:$0xff]
      %v246 = vld [vmem:[%s166 + $0x240] sm:$0xff]
      %v247 = vld [vmem:[%s166 + $0x248] sm:$0xff]
      %v248 = vld [vmem:[%s166 + $0x250] sm:$0xff]
      %v249 = vld [vmem:[%s166 + $0x258] sm:$0xff]
      %v250 = vld [vmem:[%s166 + $0x260] sm:$0xff]
      %v251 = vld [vmem:[%s166 + $0x268] sm:$0xff]
      %v252 = vld [vmem:[%s166 + $0x270] sm:$0xff]
      %v253 = vld [vmem:[%s166 + $0x278] sm:$0xff]
      %v254 = vld [vmem:[%s166 + $0x280] sm:$0xff]
      %v255 = vld [vmem:[%s166 + $0x288] sm:$0xff]
      %v256 = vld [vmem:[%s166 + $0x290] sm:$0xff]
      %v257 = vld [vmem:[%s166 + $0x298] sm:$0xff]
      %v258 = vld [vmem:[%s166 + $0x2a0] sm:$0xff]
      %v259 = vld [vmem:[%s166 + $0x2a8] sm:$0xff]
      %v260 = vld [vmem:[%s166 + $0x2b0] sm:$0xff]
      %v261 = vld [vmem:[%s166 + $0x2b8] sm:$0xff]
      %v262 = vld [vmem:[%s166 + $0x2c0] sm:$0xff]
      %v263 = vld [vmem:[%s166 + $0x2c8] sm:$0xff]
      %v264 = vld [vmem:[%s166 + $0x2d0] sm:$0xff]
      %v265 = vld [vmem:[%s166 + $0x2d8] sm:$0xff]
      %v266 = vld [vmem:[%s166 + $0x2e0] sm:$0xff]
      %v267 = vld [vmem:[%s166 + $0x2e8] sm:$0xff]
      %v268 = vld [vmem:[%s166 + $0x2f0] sm:$0xff]
      %v269 = vld [vmem:[%s166 + $0x2f8] sm:$0xff]
      %v270 = vld [vmem:[%s166 + $0x300] sm:$0xff]
      %v271 = vld [vmem:[%s166 + $0x308] sm:$0xff]
      %v272 = vld [vmem:[%s166 + $0x310] sm:$0xff]
      %v273 = vld [vmem:[%s166 + $0x318] sm:$0xff]
      %v274 = vld [vmem:[%s166 + $0x320] sm:$0xff]
      %v275 = vld [vmem:[%s166 + $0x328] sm:$0xff]
      %v276 = vld [vmem:[%s166 + $0x330] sm:$0xff]
      %v277 = vld [vmem:[%s166 + $0x338] sm:$0xff]
      %v278 = vld [vmem:[%s166 + $0x340] sm:$0xff]
      %v279 = vld [vmem:[%s166 + $0x348] sm:$0xff]
      %v280 = vld [vmem:[%s166 + $0x350] sm:$0xff]
      %v281 = vld [vmem:[%s166 + $0x358] sm:$0xff]
      %v282 = vld [vmem:[%s166 + $0x360] sm:$0xff]
      %v283 = vld [vmem:[%s166 + $0x368] sm:$0xff]
      %v284 = vld [vmem:[%s166 + $0x370] sm:$0xff]
      %v285 = vld [vmem:[%s166 + $0x378] sm:$0xff]
      %v286 = vld [vmem:[%s166 + $0x380] sm:$0xff]
      %v287 = vld [vmem:[%s166 + $0x388] sm:$0xff]
      %v288 = vld [vmem:[%s166 + $0x390] sm:$0xff]
      %v289 = vld [vmem:[%s166 + $0x398] sm:$0xff]
      %v290 = vld [vmem:[%s166 + $0x3a0] sm:$0xff]
      %v291 = vld [vmem:[%s166 + $0x3a8] sm:$0xff]
      %v292 = vld [vmem:[%s166 + $0x3b0] sm:$0xff]
      %v293 = vld [vmem:[%s166 + $0x3b8] sm:$0xff]
      %v294 = vld [vmem:[%s166 + $0x3c0] sm:$0xff]
      %v295 = vld [vmem:[%s166 + $0x3c8] sm:$0xff]
      %v296 = vld [vmem:[%s166 + $0x3d0] sm:$0xff]
      %v297 = vld [vmem:[%s166 + $0x3d8] sm:$0xff]
      %v298 = vld [vmem:[%s166 + $0x3e0] sm:$0xff]
      %v299 = vld [vmem:[%s166 + $0x3e8] sm:$0xff]
      %v300 = vld [vmem:[%s166 + $0x3f0] sm:$0xff]
      %v301 = vld [vmem:[%s166 + $0x3f8] sm:$0xff]
      %v302 = vld [vmem:[%s1] sm:$0xff]
      %v303 = vld [vmem:[%s1 + $0x8] sm:$0xff]
      %v304 = vld [vmem:[%s1 + $0x10] sm:$0xff]
      %v305 = vld [vmem:[%s1 + $0x18] sm:$0xff]
      %v306 = vld [vmem:[%s1 + $0x20] sm:$0xff]
      %v307 = vld [vmem:[%s1 + $0x28] sm:$0xff]
      %v308 = vld [vmem:[%s1 + $0x30] sm:$0xff]
      %v309 = vld [vmem:[%s1 + $0x38] sm:$0xff]
      %v310 = vld [vmem:[%s2] sm:$0x7]
      %v311 = vperm.slane %v310, 0
      %vm312 = vcmask 523264
      %v314 = vsel %vm312, %v174, 0
      %v317 = vsel %vm312, %v175, 0
      %v320 = vsel %vm312, %v176, 0
      %v323 = vsel %vm312, %v177, 0
      %v326 = vsel %vm312, %v178, 0
      %v329 = vsel %vm312, %v179, 0
      %v332 = vsel %vm312, %v180, 0
      %v335 = vsel %vm312, %v181, 0
      %v338 = vsel %vm312, %v182, 0
      %v341 = vsel %vm312, %v183, 0
      %v344 = vsel %vm312, %v184, 0
      %v347 = vsel %vm312, %v185, 0
      %v350 = vsel %vm312, %v186, 0
      %v353 = vsel %vm312, %v187, 0
      %v356 = vsel %vm312, %v188, 0
      %v359 = vsel %vm312, %v189, 0
      %v362 = vsel %vm312, %v190, 0
      %v365 = vsel %vm312, %v191, 0
      %v368 = vsel %vm312, %v192, 0
      %v371 = vsel %vm312, %v193, 0
      %v374 = vsel %vm312, %v194, 0
      %v377 = vsel %vm312, %v195, 0
      %v380 = vsel %vm312, %v196, 0
      %v383 = vsel %vm312, %v197, 0
      %v386 = vsel %vm312, %v198, 0
      %v389 = vsel %vm312, %v199, 0
      %v392 = vsel %vm312, %v200, 0
      %v395 = vsel %vm312, %v201, 0
      %v398 = vsel %vm312, %v202, 0
      %v401 = vsel %vm312, %v203, 0
      %v404 = vsel %vm312, %v204, 0
      %v407 = vsel %vm312, %v205, 0
      %v410 = vsel %vm312, %v206, 0
      %v413 = vsel %vm312, %v207, 0
      %v416 = vsel %vm312, %v208, 0
      %v419 = vsel %vm312, %v209, 0
      %v422 = vsel %vm312, %v210, 0
      %v425 = vsel %vm312, %v211, 0
      %v428 = vsel %vm312, %v212, 0
      %v431 = vsel %vm312, %v213, 0
      %v434 = vsel %vm312, %v214, 0
      %v437 = vsel %vm312, %v215, 0
      %v440 = vsel %vm312, %v216, 0
      %v443 = vsel %vm312, %v217, 0
      %v446 = vsel %vm312, %v218, 0
      %v449 = vsel %vm312, %v219, 0
      %v452 = vsel %vm312, %v220, 0
      %v455 = vsel %vm312, %v221, 0
      %v458 = vsel %vm312, %v222, 0
      %v461 = vsel %vm312, %v223, 0
      %v464 = vsel %vm312, %v224, 0
      %v467 = vsel %vm312, %v225, 0
      %v470 = vsel %vm312, %v226, 0
      %v473 = vsel %vm312, %v227, 0
      %v476 = vsel %vm312, %v228, 0
      %v479 = vsel %vm312, %v229, 0
      %v482 = vsel %vm312, %v230, 0
      %v485 = vsel %vm312, %v231, 0
      %v488 = vsel %vm312, %v232, 0
      %v491 = vsel %vm312, %v233, 0
      %v494 = vsel %vm312, %v234, 0
      %v497 = vsel %vm312, %v235, 0
      %v500 = vsel %vm312, %v236, 0
      %v503 = vsel %vm312, %v237, 0
      %v506 = vsel %vm312, %v238, 0
      %v509 = vsel %vm312, %v239, 0
      %v512 = vsel %vm312, %v240, 0
      %v515 = vsel %vm312, %v241, 0
      %v518 = vsel %vm312, %v242, 0
      %v521 = vsel %vm312, %v243, 0
      %v524 = vsel %vm312, %v244, 0
      %v527 = vsel %vm312, %v245, 0
      %v530 = vsel %vm312, %v246, 0
      %v533 = vsel %vm312, %v247, 0
      %v536 = vsel %vm312, %v248, 0
      %v539 = vsel %vm312, %v249, 0
      %v542 = vsel %vm312, %v250, 0
      %v545 = vsel %vm312, %v251, 0
      %v548 = vsel %vm312, %v252, 0
      %v551 = vsel %vm312, %v253, 0
      %v554 = vsel %vm312, %v254, 0
      %v557 = vsel %vm312, %v255, 0
      %v560 = vsel %vm312, %v256, 0
      %v563 = vsel %vm312, %v257, 0
      %v566 = vsel %vm312, %v258, 0
      %v569 = vsel %vm312, %v259, 0
      %v572 = vsel %vm312, %v260, 0
      %v575 = vsel %vm312, %v261, 0
      %v578 = vsel %vm312, %v262, 0
      %v581 = vsel %vm312, %v263, 0
      %v584 = vsel %vm312, %v264, 0
      %v587 = vsel %vm312, %v265, 0
      %v590 = vsel %vm312, %v266, 0
      %v593 = vsel %vm312, %v267, 0
      %v596 = vsel %vm312, %v268, 0
      %v599 = vsel %vm312, %v269, 0
      %v602 = vsel %vm312, %v270, 0
      %v605 = vsel %vm312, %v271, 0
      %v608 = vsel %vm312, %v272, 0
      %v611 = vsel %vm312, %v273, 0
      %v614 = vsel %vm312, %v274, 0
      %v617 = vsel %vm312, %v275, 0
      %v620 = vsel %vm312, %v276, 0
      %v623 = vsel %vm312, %v277, 0
      %v626 = vsel %vm312, %v278, 0
      %v629 = vsel %vm312, %v279, 0
      %v632 = vsel %vm312, %v280, 0
      %v635 = vsel %vm312, %v281, 0
      %v638 = vsel %vm312, %v282, 0
      %v641 = vsel %vm312, %v283, 0
      %v644 = vsel %vm312, %v284, 0
      %v647 = vsel %vm312, %v285, 0
      %v650 = vsel %vm312, %v286, 0
      %v653 = vsel %vm312, %v287, 0
      %v656 = vsel %vm312, %v288, 0
      %v659 = vsel %vm312, %v289, 0
      %v662 = vsel %vm312, %v290, 0
      %v665 = vsel %vm312, %v291, 0
      %v668 = vsel %vm312, %v292, 0
      %v671 = vsel %vm312, %v293, 0
      %v674 = vsel %vm312, %v294, 0
      %v677 = vsel %vm312, %v295, 0
      %v680 = vsel %vm312, %v296, 0
      %v683 = vsel %vm312, %v297, 0
      %v686 = vsel %vm312, %v298, 0
      %v689 = vsel %vm312, %v299, 0
      %v692 = vsel %vm312, %v300, 0
      %v695 = vsel %vm312, %v301, 0
      %697 = vmatpush.msra.mxu0 0.0
      %698 = vmatpush.msra.mxu0 0.0
      %699 = vmatpush.msra.mxu0 0.0
      %700 = vmatpush.msra.mxu0 0.0
      %701 = vmatpush.msra.mxu0 0.0
      %702 = vmatpush.msra.mxu0 0.0
      %703 = vmatpush.msra.mxu0 0.0
      %704 = vmatpush.msra.mxu0 0.0
      %705 = vmatpush.msra.mxu0 %v309
      %706 = vmatpush.msra.mxu0 %v308
      %707 = vmatpush.msra.mxu0 %v307
      %708 = vmatpush.msra.mxu0 %v306
      %709 = vmatpush.msra.mxu0 %v305
      %710 = vmatpush.msra.mxu0 %v304
      %711 = vmatpush.msra.mxu0 %v303
      %712 = vmatpush.msra.mxu0 %v302
      %713 = vmatmul.f32.gmra.mxu0 %v314
      %v714 = vpop.f32.mrf.mxu0
      %v715 = vadd.f32 %v311, %v714
      %716 = vmatmul.f32.gmra.mxu0 %v317
      %v717 = vpop.f32.mrf.mxu0
      %v718 = vadd.f32 %v311, %v717
      %719 = vmatmul.f32.gmra.mxu0 %v320
      %v720 = vpop.f32.mrf.mxu0
      %v721 = vadd.f32 %v311, %v720
      %722 = vmatmul.f32.gmra.mxu0 %v323
      %v723 = vpop.f32.mrf.mxu0
      %v724 = vadd.f32 %v311, %v723
      %725 = vmatmul.f32.gmra.mxu0 %v326
      %v726 = vpop.f32.mrf.mxu0
      %v727 = vadd.f32 %v311, %v726
      %728 = vmatmul.f32.gmra.mxu0 %v329
      %v729 = vpop.f32.mrf.mxu0
      %v730 = vadd.f32 %v311, %v729
      %731 = vmatmul.f32.gmra.mxu0 %v332
      %v732 = vpop.f32.mrf.mxu0
      %v733 = vadd.f32 %v311, %v732
      %734 = vmatmul.f32.gmra.mxu0 %v335
      %v735 = vpop.f32.mrf.mxu0
      %v736 = vadd.f32 %v311, %v735
      %737 = vmatmul.f32.gmra.mxu0 %v338
      %v738 = vpop.f32.mrf.mxu0
      %v739 = vadd.f32 %v311, %v738
      %740 = vmatmul.f32.gmra.mxu0 %v341
      %v741 = vpop.f32.mrf.mxu0
      %v742 = vadd.f32 %v311, %v741
      %743 = vmatmul.f32.gmra.mxu0 %v344
      %v744 = vpop.f32.mrf.mxu0
      %v745 = vadd.f32 %v311, %v744
      %746 = vmatmul.f32.gmra.mxu0 %v347
      %v747 = vpop.f32.mrf.mxu0
      %v748 = vadd.f32 %v311, %v747
      %749 = vmatmul.f32.gmra.mxu0 %v350
      %v750 = vpop.f32.mrf.mxu0
      %v751 = vadd.f32 %v311, %v750
      %752 = vmatmul.f32.gmra.mxu0 %v353
      %v753 = vpop.f32.mrf.mxu0
      %v754 = vadd.f32 %v311, %v753
      %755 = vmatmul.f32.gmra.mxu0 %v356
      %v756 = vpop.f32.mrf.mxu0
      %v757 = vadd.f32 %v311, %v756
      %758 = vmatmul.f32.gmra.mxu0 %v359
      %v759 = vpop.f32.mrf.mxu0
      %v760 = vadd.f32 %v311, %v759
      %761 = vmatmul.f32.gmra.mxu0 %v362
      %v762 = vpop.f32.mrf.mxu0
      %v763 = vadd.f32 %v311, %v762
      %764 = vmatmul.f32.gmra.mxu0 %v365
      %v765 = vpop.f32.mrf.mxu0
      %v766 = vadd.f32 %v311, %v765
      %767 = vmatmul.f32.gmra.mxu0 %v368
      %v768 = vpop.f32.mrf.mxu0
      %v769 = vadd.f32 %v311, %v768
      %770 = vmatmul.f32.gmra.mxu0 %v371
      %v771 = vpop.f32.mrf.mxu0
      %v772 = vadd.f32 %v311, %v771
      %773 = vmatmul.f32.gmra.mxu0 %v374
      %v774 = vpop.f32.mrf.mxu0
      %v775 = vadd.f32 %v311, %v774
      %776 = vmatmul.f32.gmra.mxu0 %v377
      %v777 = vpop.f32.mrf.mxu0
      %v778 = vadd.f32 %v311, %v777
      %779 = vmatmul.f32.gmra.mxu0 %v380
      %v780 = vpop.f32.mrf.mxu0
      %v781 = vadd.f32 %v311, %v780
      %782 = vmatmul.f32.gmra.mxu0 %v383
      %v783 = vpop.f32.mrf.mxu0
      %v784 = vadd.f32 %v311, %v783
      %785 = vmatmul.f32.gmra.mxu0 %v386
      %v786 = vpop.f32.mrf.mxu0
      %v787 = vadd.f32 %v311, %v786
      %788 = vmatmul.f32.gmra.mxu0 %v389
      %v789 = vpop.f32.mrf.mxu0
      %v790 = vadd.f32 %v311, %v789
      %791 = vmatmul.f32.gmra.mxu0 %v392
      %v792 = vpop.f32.mrf.mxu0
      %v793 = vadd.f32 %v311, %v792
      %794 = vmatmul.f32.gmra.mxu0 %v395
      %v795 = vpop.f32.mrf.mxu0
      %v796 = vadd.f32 %v311, %v795
      %797 = vmatmul.f32.gmra.mxu0 %v398
      %v798 = vpop.f32.mrf.mxu0
      %v799 = vadd.f32 %v311, %v798
      %800 = vmatmul.f32.gmra.mxu0 %v401
      %v801 = vpop.f32.mrf.mxu0
      %v802 = vadd.f32 %v311, %v801
      %803 = vmatmul.f32.gmra.mxu0 %v404
      %v804 = vpop.f32.mrf.mxu0
      %v805 = vadd.f32 %v311, %v804
      %806 = vmatmul.f32.gmra.mxu0 %v407
      %v807 = vpop.f32.mrf.mxu0
      %v808 = vadd.f32 %v311, %v807
      %809 = vmatmul.f32.gmra.mxu0 %v410
      %v810 = vpop.f32.mrf.mxu0
      %v811 = vadd.f32 %v311, %v810
      %812 = vmatmul.f32.gmra.mxu0 %v413
      %v813 = vpop.f32.mrf.mxu0
      %v814 = vadd.f32 %v311, %v813
      %815 = vmatmul.f32.gmra.mxu0 %v416
      %v816 = vpop.f32.mrf.mxu0
      %v817 = vadd.f32 %v311, %v816
      %818 = vmatmul.f32.gmra.mxu0 %v419
      %v819 = vpop.f32.mrf.mxu0
      %v820 = vadd.f32 %v311, %v819
      %821 = vmatmul.f32.gmra.mxu0 %v422
      %v822 = vpop.f32.mrf.mxu0
      %v823 = vadd.f32 %v311, %v822
      %824 = vmatmul.f32.gmra.mxu0 %v425
      %v825 = vpop.f32.mrf.mxu0
      %v826 = vadd.f32 %v311, %v825
      %827 = vmatmul.f32.gmra.mxu0 %v428
      %v828 = vpop.f32.mrf.mxu0
      %v829 = vadd.f32 %v311, %v828
      %830 = vmatmul.f32.gmra.mxu0 %v431
      %v831 = vpop.f32.mrf.mxu0
      %v832 = vadd.f32 %v311, %v831
      %833 = vmatmul.f32.gmra.mxu0 %v434
      %v834 = vpop.f32.mrf.mxu0
      %v835 = vadd.f32 %v311, %v834
      %836 = vmatmul.f32.gmra.mxu0 %v437
      %v837 = vpop.f32.mrf.mxu0
      %v838 = vadd.f32 %v311, %v837
      %839 = vmatmul.f32.gmra.mxu0 %v440
      %v840 = vpop.f32.mrf.mxu0
      %v841 = vadd.f32 %v311, %v840
      %842 = vmatmul.f32.gmra.mxu0 %v443
      %v843 = vpop.f32.mrf.mxu0
      %v844 = vadd.f32 %v311, %v843
      %845 = vmatmul.f32.gmra.mxu0 %v446
      %v846 = vpop.f32.mrf.mxu0
      %v847 = vadd.f32 %v311, %v846
      %848 = vmatmul.f32.gmra.mxu0 %v449
      %v849 = vpop.f32.mrf.mxu0
      %v850 = vadd.f32 %v311, %v849
      %851 = vmatmul.f32.gmra.mxu0 %v452
      %v852 = vpop.f32.mrf.mxu0
      %v853 = vadd.f32 %v311, %v852
      %854 = vmatmul.f32.gmra.mxu0 %v455
      %v855 = vpop.f32.mrf.mxu0
      %v856 = vadd.f32 %v311, %v855
      %857 = vmatmul.f32.gmra.mxu0 %v458
      %v858 = vpop.f32.mrf.mxu0
      %v859 = vadd.f32 %v311, %v858
      %860 = vmatmul.f32.gmra.mxu0 %v461
      %v861 = vpop.f32.mrf.mxu0
      %v862 = vadd.f32 %v311, %v861
      %863 = vmatmul.f32.gmra.mxu0 %v464
      %v864 = vpop.f32.mrf.mxu0
      %v865 = vadd.f32 %v311, %v864
      %866 = vmatmul.f32.gmra.mxu0 %v467
      %v867 = vpop.f32.mrf.mxu0
      %v868 = vadd.f32 %v311, %v867
      %869 = vmatmul.f32.gmra.mxu0 %v470
      %v870 = vpop.f32.mrf.mxu0
      %v871 = vadd.f32 %v311, %v870
      %872 = vmatmul.f32.gmra.mxu0 %v473
      %v873 = vpop.f32.mrf.mxu0
      %v874 = vadd.f32 %v311, %v873
      %875 = vmatmul.f32.gmra.mxu0 %v476
      %v876 = vpop.f32.mrf.mxu0
      %v877 = vadd.f32 %v311, %v876
      %878 = vmatmul.f32.gmra.mxu0 %v479
      %v879 = vpop.f32.mrf.mxu0
      %v880 = vadd.f32 %v311, %v879
      %881 = vmatmul.f32.gmra.mxu0 %v482
      %v882 = vpop.f32.mrf.mxu0
      %v883 = vadd.f32 %v311, %v882
      %884 = vmatmul.f32.gmra.mxu0 %v485
      %v885 = vpop.f32.mrf.mxu0
      %v886 = vadd.f32 %v311, %v885
      %887 = vmatmul.f32.gmra.mxu0 %v488
      %v888 = vpop.f32.mrf.mxu0
      %v889 = vadd.f32 %v311, %v888
      %890 = vmatmul.f32.gmra.mxu0 %v491
      %v891 = vpop.f32.mrf.mxu0
      %v892 = vadd.f32 %v311, %v891
      %893 = vmatmul.f32.gmra.mxu0 %v494
      %v894 = vpop.f32.mrf.mxu0
      %v895 = vadd.f32 %v311, %v894
      %896 = vmatmul.f32.gmra.mxu0 %v497
      %v897 = vpop.f32.mrf.mxu0
      %v898 = vadd.f32 %v311, %v897
      %899 = vmatmul.f32.gmra.mxu0 %v500
      %v900 = vpop.f32.mrf.mxu0
      %v901 = vadd.f32 %v311, %v900
      %902 = vmatmul.f32.gmra.mxu0 %v503
      %v903 = vpop.f32.mrf.mxu0
      %v904 = vadd.f32 %v311, %v903
      %905 = vmatmul.f32.gmra.mxu0 %v506
      %v906 = vpop.f32.mrf.mxu0
      %v907 = vadd.f32 %v311, %v906
      %908 = vmatmul.f32.gmra.mxu0 %v509
      %v909 = vpop.f32.mrf.mxu0
      %v910 = vadd.f32 %v311, %v909
      %911 = vmatmul.f32.gmra.mxu0 %v512
      %v912 = vpop.f32.mrf.mxu0
      %v913 = vadd.f32 %v311, %v912
      %914 = vmatmul.f32.gmra.mxu0 %v515
      %v915 = vpop.f32.mrf.mxu0
      %v916 = vadd.f32 %v311, %v915
      %917 = vmatmul.f32.gmra.mxu0 %v518
      %v918 = vpop.f32.mrf.mxu0
      %v919 = vadd.f32 %v311, %v918
      %920 = vmatmul.f32.gmra.mxu0 %v521
      %v921 = vpop.f32.mrf.mxu0
      %v922 = vadd.f32 %v311, %v921
      %923 = vmatmul.f32.gmra.mxu0 %v524
      %v924 = vpop.f32.mrf.mxu0
      %v925 = vadd.f32 %v311, %v924
      %926 = vmatmul.f32.gmra.mxu0 %v527
      %v927 = vpop.f32.mrf.mxu0
      %v928 = vadd.f32 %v311, %v927
      %929 = vmatmul.f32.gmra.mxu0 %v530
      %v930 = vpop.f32.mrf.mxu0
      %v931 = vadd.f32 %v311, %v930
      %932 = vmatmul.f32.gmra.mxu0 %v533
      %v933 = vpop.f32.mrf.mxu0
      %v934 = vadd.f32 %v311, %v933
      %935 = vmatmul.f32.gmra.mxu0 %v536
      %v936 = vpop.f32.mrf.mxu0
      %v937 = vadd.f32 %v311, %v936
      %938 = vmatmul.f32.gmra.mxu0 %v539
      %v939 = vpop.f32.mrf.mxu0
      %v940 = vadd.f32 %v311, %v939
      %941 = vmatmul.f32.gmra.mxu0 %v542
      %v942 = vpop.f32.mrf.mxu0
      %v943 = vadd.f32 %v311, %v942
      %944 = vmatmul.f32.gmra.mxu0 %v545
      %v945 = vpop.f32.mrf.mxu0
      %v946 = vadd.f32 %v311, %v945
      %947 = vmatmul.f32.gmra.mxu0 %v548
      %v948 = vpop.f32.mrf.mxu0
      %v949 = vadd.f32 %v311, %v948
      %950 = vmatmul.f32.gmra.mxu0 %v551
      %v951 = vpop.f32.mrf.mxu0
      %v952 = vadd.f32 %v311, %v951
      %953 = vmatmul.f32.gmra.mxu0 %v554
      %v954 = vpop.f32.mrf.mxu0
      %v955 = vadd.f32 %v311, %v954
      %956 = vmatmul.f32.gmra.mxu0 %v557
      %v957 = vpop.f32.mrf.mxu0
      %v958 = vadd.f32 %v311, %v957
      %959 = vmatmul.f32.gmra.mxu0 %v560
      %v960 = vpop.f32.mrf.mxu0
      %v961 = vadd.f32 %v311, %v960
      %962 = vmatmul.f32.gmra.mxu0 %v563
      %v963 = vpop.f32.mrf.mxu0
      %v964 = vadd.f32 %v311, %v963
      %965 = vmatmul.f32.gmra.mxu0 %v566
      %v966 = vpop.f32.mrf.mxu0
      %v967 = vadd.f32 %v311, %v966
      %968 = vmatmul.f32.gmra.mxu0 %v569
      %v969 = vpop.f32.mrf.mxu0
      %v970 = vadd.f32 %v311, %v969
      %971 = vmatmul.f32.gmra.mxu0 %v572
      %v972 = vpop.f32.mrf.mxu0
      %v973 = vadd.f32 %v311, %v972
      %974 = vmatmul.f32.gmra.mxu0 %v575
      %v975 = vpop.f32.mrf.mxu0
      %v976 = vadd.f32 %v311, %v975
      %977 = vmatmul.f32.gmra.mxu0 %v578
      %v978 = vpop.f32.mrf.mxu0
      %v979 = vadd.f32 %v311, %v978
      %980 = vmatmul.f32.gmra.mxu0 %v581
      %v981 = vpop.f32.mrf.mxu0
      %v982 = vadd.f32 %v311, %v981
      %983 = vmatmul.f32.gmra.mxu0 %v584
      %v984 = vpop.f32.mrf.mxu0
      %v985 = vadd.f32 %v311, %v984
      %986 = vmatmul.f32.gmra.mxu0 %v587
      %v987 = vpop.f32.mrf.mxu0
      %v988 = vadd.f32 %v311, %v987
      %989 = vmatmul.f32.gmra.mxu0 %v590
      %v990 = vpop.f32.mrf.mxu0
      %v991 = vadd.f32 %v311, %v990
      %992 = vmatmul.f32.gmra.mxu0 %v593
      %v993 = vpop.f32.mrf.mxu0
      %v994 = vadd.f32 %v311, %v993
      %995 = vmatmul.f32.gmra.mxu0 %v596
      %v996 = vpop.f32.mrf.mxu0
      %v997 = vadd.f32 %v311, %v996
      %998 = vmatmul.f32.gmra.mxu0 %v599
      %v999 = vpop.f32.mrf.mxu0
      %v1000 = vadd.f32 %v311, %v999
      %1001 = vmatmul.f32.gmra.mxu0 %v602
      %v1002 = vpop.f32.mrf.mxu0
      %v1003 = vadd.f32 %v311, %v1002
      %1004 = vmatmul.f32.gmra.mxu0 %v605
      %v1005 = vpop.f32.mrf.mxu0
      %v1006 = vadd.f32 %v311, %v1005
      %1007 = vmatmul.f32.gmra.mxu0 %v608
      %v1008 = vpop.f32.mrf.mxu0
      %v1009 = vadd.f32 %v311, %v1008
      %1010 = vmatmul.f32.gmra.mxu0 %v611
      %v1011 = vpop.f32.mrf.mxu0
      %v1012 = vadd.f32 %v311, %v1011
      %1013 = vmatmul.f32.gmra.mxu0 %v614
      %v1014 = vpop.f32.mrf.mxu0
      %v1015 = vadd.f32 %v311, %v1014
      %1016 = vmatmul.f32.gmra.mxu0 %v617
      %v1017 = vpop.f32.mrf.mxu0
      %v1018 = vadd.f32 %v311, %v1017
      %1019 = vmatmul.f32.gmra.mxu0 %v620
      %v1020 = vpop.f32.mrf.mxu0
      %v1021 = vadd.f32 %v311, %v1020
      %1022 = vmatmul.f32.gmra.mxu0 %v623
      %v1023 = vpop.f32.mrf.mxu0
      %v1024 = vadd.f32 %v311, %v1023
      %1025 = vmatmul.f32.gmra.mxu0 %v626
      %v1026 = vpop.f32.mrf.mxu0
      %v1027 = vadd.f32 %v311, %v1026
      %1028 = vmatmul.f32.gmra.mxu0 %v629
      %v1029 = vpop.f32.mrf.mxu0
      %v1030 = vadd.f32 %v311, %v1029
      %1031 = vmatmul.f32.gmra.mxu0 %v632
      %v1032 = vpop.f32.mrf.mxu0
      %v1033 = vadd.f32 %v311, %v1032
      %1034 = vmatmul.f32.gmra.mxu0 %v635
      %v1035 = vpop.f32.mrf.mxu0
      %v1036 = vadd.f32 %v311, %v1035
      %1037 = vmatmul.f32.gmra.mxu0 %v638
      %v1038 = vpop.f32.mrf.mxu0
      %v1039 = vadd.f32 %v311, %v1038
      %1040 = vmatmul.f32.gmra.mxu0 %v641
      %v1041 = vpop.f32.mrf.mxu0
      %v1042 = vadd.f32 %v311, %v1041
      %1043 = vmatmul.f32.gmra.mxu0 %v644
      %v1044 = vpop.f32.mrf.mxu0
      %v1045 = vadd.f32 %v311, %v1044
      %1046 = vmatmul.f32.gmra.mxu0 %v647
      %v1047 = vpop.f32.mrf.mxu0
      %v1048 = vadd.f32 %v311, %v1047
      %1049 = vmatmul.f32.gmra.mxu0 %v650
      %v1050 = vpop.f32.mrf.mxu0
      %v1051 = vadd.f32 %v311, %v1050
      %1052 = vmatmul.f32.gmra.mxu0 %v653
      %v1053 = vpop.f32.mrf.mxu0
      %v1054 = vadd.f32 %v311, %v1053
      %1055 = vmatmul.f32.gmra.mxu0 %v656
      %v1056 = vpop.f32.mrf.mxu0
      %v1057 = vadd.f32 %v311, %v1056
      %1058 = vmatmul.f32.gmra.mxu0 %v659
      %v1059 = vpop.f32.mrf.mxu0
      %v1060 = vadd.f32 %v311, %v1059
      %1061 = vmatmul.f32.gmra.mxu0 %v662
      %v1062 = vpop.f32.mrf.mxu0
      %v1063 = vadd.f32 %v311, %v1062
      %1064 = vmatmul.f32.gmra.mxu0 %v665
      %v1065 = vpop.f32.mrf.mxu0
      %v1066 = vadd.f32 %v311, %v1065
      %1067 = vmatmul.f32.gmra.mxu0 %v668
      %v1068 = vpop.f32.mrf.mxu0
      %v1069 = vadd.f32 %v311, %v1068
      %1070 = vmatmul.f32.gmra.mxu0 %v671
      %v1071 = vpop.f32.mrf.mxu0
      %v1072 = vadd.f32 %v311, %v1071
      %1073 = vmatmul.f32.gmra.mxu0 %v674
      %v1074 = vpop.f32.mrf.mxu0
      %v1075 = vadd.f32 %v311, %v1074
      %1076 = vmatmul.f32.gmra.mxu0 %v677
      %v1077 = vpop.f32.mrf.mxu0
      %v1078 = vadd.f32 %v311, %v1077
      %1079 = vmatmul.f32.gmra.mxu0 %v680
      %v1080 = vpop.f32.mrf.mxu0
      %v1081 = vadd.f32 %v311, %v1080
      %1082 = vmatmul.f32.gmra.mxu0 %v683
      %v1083 = vpop.f32.mrf.mxu0
      %v1084 = vadd.f32 %v311, %v1083
      %1085 = vmatmul.f32.gmra.mxu0 %v686
      %v1086 = vpop.f32.mrf.mxu0
      %v1087 = vadd.f32 %v311, %v1086
      %1088 = vmatmul.f32.gmra.mxu0 %v689
      %v1089 = vpop.f32.mrf.mxu0
      %v1090 = vadd.f32 %v311, %v1089
      %1091 = vmatmul.f32.gmra.mxu0 %v692
      %v1092 = vpop.f32.mrf.mxu0
      %v1093 = vadd.f32 %v311, %v1092
      %1094 = vmatmul.f32.gmra.mxu0 %v695
      %v1095 = vpop.f32.mrf.mxu0
      %v1096 = vadd.f32 %v311, %v1095
      %1097 = vdwg.mxu0
      %v1098 = vmax.f32 %v715, 0.0
      %v1099 = vmax.f32 %v718, 0.0
      %v1100 = vmax.f32 %v721, 0.0
      %v1101 = vmax.f32 %v724, 0.0
      %v1102 = vmax.f32 %v727, 0.0
      %v1103 = vmax.f32 %v730, 0.0
      %v1104 = vmax.f32 %v733, 0.0
      %v1105 = vmax.f32 %v736, 0.0
      %v1106 = vmax.f32 %v739, 0.0
      %v1107 = vmax.f32 %v742, 0.0
      %v1108 = vmax.f32 %v745, 0.0
      %v1109 = vmax.f32 %v748, 0.0
      %v1110 = vmax.f32 %v751, 0.0
      %v1111 = vmax.f32 %v754, 0.0
      %v1112 = vmax.f32 %v757, 0.0
      %v1113 = vmax.f32 %v760, 0.0
      %v1114 = vmax.f32 %v763, 0.0
      %v1115 = vmax.f32 %v766, 0.0
      %v1116 = vmax.f32 %v769, 0.0
      %v1117 = vmax.f32 %v772, 0.0
      %v1118 = vmax.f32 %v775, 0.0
      %v1119 = vmax.f32 %v778, 0.0
      %v1120 = vmax.f32 %v781, 0.0
      %v1121 = vmax.f32 %v784, 0.0
      %v1122 = vmax.f32 %v787, 0.0
      %v1123 = vmax.f32 %v790, 0.0
      %v1124 = vmax.f32 %v793, 0.0
      %v1125 = vmax.f32 %v796, 0.0
      %v1126 = vmax.f32 %v799, 0.0
      %v1127 = vmax.f32 %v802, 0.0
      %v1128 = vmax.f32 %v805, 0.0
      %v1129 = vmax.f32 %v808, 0.0
      %v1130 = vmax.f32 %v811, 0.0
      %v1131 = vmax.f32 %v814, 0.0
      %v1132 = vmax.f32 %v817, 0.0
      %v1133 = vmax.f32 %v820, 0.0
      %v1134 = vmax.f32 %v823, 0.0
      %v1135 = vmax.f32 %v826, 0.0
      %v1136 = vmax.f32 %v829, 0.0
      %v1137 = vmax.f32 %v832, 0.0
      %v1138 = vmax.f32 %v835, 0.0
      %v1139 = vmax.f32 %v838, 0.0
      %v1140 = vmax.f32 %v841, 0.0
      %v1141 = vmax.f32 %v844, 0.0
      %v1142 = vmax.f32 %v847, 0.0
      %v1143 = vmax.f32 %v850, 0.0
      %v1144 = vmax.f32 %v853, 0.0
      %v1145 = vmax.f32 %v856, 0.0
      %v1146 = vmax.f32 %v859, 0.0
      %v1147 = vmax.f32 %v862, 0.0
      %v1148 = vmax.f32 %v865, 0.0
      %v1149 = vmax.f32 %v868, 0.0
      %v1150 = vmax.f32 %v871, 0.0
      %v1151 = vmax.f32 %v874, 0.0
      %v1152 = vmax.f32 %v877, 0.0
      %v1153 = vmax.f32 %v880, 0.0
      %v1154 = vmax.f32 %v883, 0.0
      %v1155 = vmax.f32 %v886, 0.0
      %v1156 = vmax.f32 %v889, 0.0
      %v1157 = vmax.f32 %v892, 0.0
      %v1158 = vmax.f32 %v895, 0.0
      %v1159 = vmax.f32 %v898, 0.0
      %v1160 = vmax.f32 %v901, 0.0
      %v1161 = vmax.f32 %v904, 0.0
      %v1162 = vmax.f32 %v907, 0.0
      %v1163 = vmax.f32 %v910, 0.0
      %v1164 = vmax.f32 %v913, 0.0
      %v1165 = vmax.f32 %v916, 0.0
      %v1166 = vmax.f32 %v919, 0.0
      %v1167 = vmax.f32 %v922, 0.0
      %v1168 = vmax.f32 %v925, 0.0
      %v1169 = vmax.f32 %v928, 0.0
      %v1170 = vmax.f32 %v931, 0.0
      %v1171 = vmax.f32 %v934, 0.0
      %v1172 = vmax.f32 %v937, 0.0
      %v1173 = vmax.f32 %v940, 0.0
      %v1174 = vmax.f32 %v943, 0.0
      %v1175 = vmax.f32 %v946, 0.0
      %v1176 = vmax.f32 %v949, 0.0
      %v1177 = vmax.f32 %v952, 0.0
      %v1178 = vmax.f32 %v955, 0.0
      %v1179 = vmax.f32 %v958, 0.0
      %v1180 = vmax.f32 %v961, 0.0
      %v1181 = vmax.f32 %v964, 0.0
      %v1182 = vmax.f32 %v967, 0.0
      %v1183 = vmax.f32 %v970, 0.0
      %v1184 = vmax.f32 %v973, 0.0
      %v1185 = vmax.f32 %v976, 0.0
      %v1186 = vmax.f32 %v979, 0.0
      %v1187 = vmax.f32 %v982, 0.0
      %v1188 = vmax.f32 %v985, 0.0
      %v1189 = vmax.f32 %v988, 0.0
      %v1190 = vmax.f32 %v991, 0.0
      %v1191 = vmax.f32 %v994, 0.0
      %v1192 = vmax.f32 %v997, 0.0
      %v1193 = vmax.f32 %v1000, 0.0
      %v1194 = vmax.f32 %v1003, 0.0
      %v1195 = vmax.f32 %v1006, 0.0
      %v1196 = vmax.f32 %v1009, 0.0
      %v1197 = vmax.f32 %v1012, 0.0
      %v1198 = vmax.f32 %v1015, 0.0
      %v1199 = vmax.f32 %v1018, 0.0
      %v1200 = vmax.f32 %v1021, 0.0
      %v1201 = vmax.f32 %v1024, 0.0
      %v1202 = vmax.f32 %v1027, 0.0
      %v1203 = vmax.f32 %v1030, 0.0
      %v1204 = vmax.f32 %v1033, 0.0
      %v1205 = vmax.f32 %v1036, 0.0
      %v1206 = vmax.f32 %v1039, 0.0
      %v1207 = vmax.f32 %v1042, 0.0
      %v1208 = vmax.f32 %v1045, 0.0
      %v1209 = vmax.f32 %v1048, 0.0
      %v1210 = vmax.f32 %v1051, 0.0
      %v1211 = vmax.f32 %v1054, 0.0
      %v1212 = vmax.f32 %v1057, 0.0
      %v1213 = vmax.f32 %v1060, 0.0
      %v1214 = vmax.f32 %v1063, 0.0
      %v1215 = vmax.f32 %v1066, 0.0
      %v1216 = vmax.f32 %v1069, 0.0
      %v1217 = vmax.f32 %v1072, 0.0
      %v1218 = vmax.f32 %v1075, 0.0
      %v1219 = vmax.f32 %v1078, 0.0
      %v1220 = vmax.f32 %v1081, 0.0
      %v1221 = vmax.f32 %v1084, 0.0
      %v1222 = vmax.f32 %v1087, 0.0
      %v1223 = vmax.f32 %v1090, 0.0
      %v1224 = vmax.f32 %v1093, 0.0
      %v1225 = vmax.f32 %v1096, 0.0
      %v1226 = vperm.slane %v310, 1
      %v1227 = vmul.f32 %v1098, %v1226
      %v1228 = vmul.f32 %v1099, %v1226
      %v1229 = vmul.f32 %v1100, %v1226
      %v1230 = vmul.f32 %v1101, %v1226
      %v1231 = vmul.f32 %v1102, %v1226
      %v1232 = vmul.f32 %v1103, %v1226
      %v1233 = vmul.f32 %v1104, %v1226
      %v1234 = vmul.f32 %v1105, %v1226
      %v1235 = vmul.f32 %v1106, %v1226
      %v1236 = vmul.f32 %v1107, %v1226
      %v1237 = vmul.f32 %v1108, %v1226
      %v1238 = vmul.f32 %v1109, %v1226
      %v1239 = vmul.f32 %v1110, %v1226
      %v1240 = vmul.f32 %v1111, %v1226
      %v1241 = vmul.f32 %v1112, %v1226
      %v1242 = vmul.f32 %v1113, %v1226
      %v1243 = vmul.f32 %v1114, %v1226
      %v1244 = vmul.f32 %v1115, %v1226
      %v1245 = vmul.f32 %v1116, %v1226
      %v1246 = vmul.f32 %v1117, %v1226
      %v1247 = vmul.f32 %v1118, %v1226
      %v1248 = vmul.f32 %v1119, %v1226
      %v1249 = vmul.f32 %v1120, %v1226
      %v1250 = vmul.f32 %v1121, %v1226
      %v1251 = vmul.f32 %v1122, %v1226
      %v1252 = vmul.f32 %v1123, %v1226
      %v1253 = vmul.f32 %v1124, %v1226
      %v1254 = vmul.f32 %v1125, %v1226
      %v1255 = vmul.f32 %v1126, %v1226
      %v1256 = vmul.f32 %v1127, %v1226
      %v1257 = vmul.f32 %v1128, %v1226
      %v1258 = vmul.f32 %v1129, %v1226
      %v1259 = vmul.f32 %v1130, %v1226
      %v1260 = vmul.f32 %v1131, %v1226
      %v1261 = vmul.f32 %v1132, %v1226
      %v1262 = vmul.f32 %v1133, %v1226
      %v1263 = vmul.f32 %v1134, %v1226
      %v1264 = vmul.f32 %v1135, %v1226
      %v1265 = vmul.f32 %v1136, %v1226
      %v1266 = vmul.f32 %v1137, %v1226
      %v1267 = vmul.f32 %v1138, %v1226
      %v1268 = vmul.f32 %v1139, %v1226
      %v1269 = vmul.f32 %v1140, %v1226
      %v1270 = vmul.f32 %v1141, %v1226
      %v1271 = vmul.f32 %v1142, %v1226
      %v1272 = vmul.f32 %v1143, %v1226
      %v1273 = vmul.f32 %v1144, %v1226
      %v1274 = vmul.f32 %v1145, %v1226
      %v1275 = vmul.f32 %v1146, %v1226
      %v1276 = vmul.f32 %v1147, %v1226
      %v1277 = vmul.f32 %v1148, %v1226
      %v1278 = vmul.f32 %v1149, %v1226
      %v1279 = vmul.f32 %v1150, %v1226
      %v1280 = vmul.f32 %v1151, %v1226
      %v1281 = vmul.f32 %v1152, %v1226
      %v1282 = vmul.f32 %v1153, %v1226
      %v1283 = vmul.f32 %v1154, %v1226
      %v1284 = vmul.f32 %v1155, %v1226
      %v1285 = vmul.f32 %v1156, %v1226
      %v1286 = vmul.f32 %v1157, %v1226
      %v1287 = vmul.f32 %v1158, %v1226
      %v1288 = vmul.f32 %v1159, %v1226
      %v1289 = vmul.f32 %v1160, %v1226
      %v1290 = vmul.f32 %v1161, %v1226
      %v1291 = vmul.f32 %v1162, %v1226
      %v1292 = vmul.f32 %v1163, %v1226
      %v1293 = vmul.f32 %v1164, %v1226
      %v1294 = vmul.f32 %v1165, %v1226
      %v1295 = vmul.f32 %v1166, %v1226
      %v1296 = vmul.f32 %v1167, %v1226
      %v1297 = vmul.f32 %v1168, %v1226
      %v1298 = vmul.f32 %v1169, %v1226
      %v1299 = vmul.f32 %v1170, %v1226
      %v1300 = vmul.f32 %v1171, %v1226
      %v1301 = vmul.f32 %v1172, %v1226
      %v1302 = vmul.f32 %v1173, %v1226
      %v1303 = vmul.f32 %v1174, %v1226
      %v1304 = vmul.f32 %v1175, %v1226
      %v1305 = vmul.f32 %v1176, %v1226
      %v1306 = vmul.f32 %v1177, %v1226
      %v1307 = vmul.f32 %v1178, %v1226
      %v1308 = vmul.f32 %v1179, %v1226
      %v1309 = vmul.f32 %v1180, %v1226
      %v1310 = vmul.f32 %v1181, %v1226
      %v1311 = vmul.f32 %v1182, %v1226
      %v1312 = vmul.f32 %v1183, %v1226
      %v1313 = vmul.f32 %v1184, %v1226
      %v1314 = vmul.f32 %v1185, %v1226
      %v1315 = vmul.f32 %v1186, %v1226
      %v1316 = vmul.f32 %v1187, %v1226
      %v1317 = vmul.f32 %v1188, %v1226
      %v1318 = vmul.f32 %v1189, %v1226
      %v1319 = vmul.f32 %v1190, %v1226
      %v1320 = vmul.f32 %v1191, %v1226
      %v1321 = vmul.f32 %v1192, %v1226
      %v1322 = vmul.f32 %v1193, %v1226
      %v1323 = vmul.f32 %v1194, %v1226
      %v1324 = vmul.f32 %v1195, %v1226
      %v1325 = vmul.f32 %v1196, %v1226
      %v1326 = vmul.f32 %v1197, %v1226
      %v1327 = vmul.f32 %v1198, %v1226
      %v1328 = vmul.f32 %v1199, %v1226
      %v1329 = vmul.f32 %v1200, %v1226
      %v1330 = vmul.f32 %v1201, %v1226
      %v1331 = vmul.f32 %v1202, %v1226
      %v1332 = vmul.f32 %v1203, %v1226
      %v1333 = vmul.f32 %v1204, %v1226
      %v1334 = vmul.f32 %v1205, %v1226
      %v1335 = vmul.f32 %v1206, %v1226
      %v1336 = vmul.f32 %v1207, %v1226
      %v1337 = vmul.f32 %v1208, %v1226
      %v1338 = vmul.f32 %v1209, %v1226
      %v1339 = vmul.f32 %v1210, %v1226
      %v1340 = vmul.f32 %v1211, %v1226
      %v1341 = vmul.f32 %v1212, %v1226
      %v1342 = vmul.f32 %v1213, %v1226
      %v1343 = vmul.f32 %v1214, %v1226
      %v1344 = vmul.f32 %v1215, %v1226
      %v1345 = vmul.f32 %v1216, %v1226
      %v1346 = vmul.f32 %v1217, %v1226
      %v1347 = vmul.f32 %v1218, %v1226
      %v1348 = vmul.f32 %v1219, %v1226
      %v1349 = vmul.f32 %v1220, %v1226
      %v1350 = vmul.f32 %v1221, %v1226
      %v1351 = vmul.f32 %v1222, %v1226
      %v1352 = vmul.f32 %v1223, %v1226
      %v1353 = vmul.f32 %v1224, %v1226
      %v1354 = vmul.f32 %v1225, %v1226
      %v1355 = vperm.slane %v310, 2
      %v1356 = vadd.f32 %v1227, %v1355
      %v1357 = vadd.f32 %v1228, %v1355
      %v1358 = vadd.f32 %v1229, %v1355
      %v1359 = vadd.f32 %v1230, %v1355
      %v1360 = vadd.f32 %v1231, %v1355
      %v1361 = vadd.f32 %v1232, %v1355
      %v1362 = vadd.f32 %v1233, %v1355
      %v1363 = vadd.f32 %v1234, %v1355
      %v1364 = vadd.f32 %v1235, %v1355
      %v1365 = vadd.f32 %v1236, %v1355
      %v1366 = vadd.f32 %v1237, %v1355
      %v1367 = vadd.f32 %v1238, %v1355
      %v1368 = vadd.f32 %v1239, %v1355
      %v1369 = vadd.f32 %v1240, %v1355
      %v1370 = vadd.f32 %v1241, %v1355
      %v1371 = vadd.f32 %v1242, %v1355
      %v1372 = vadd.f32 %v1243, %v1355
      %v1373 = vadd.f32 %v1244, %v1355
      %v1374 = vadd.f32 %v1245, %v1355
      %v1375 = vadd.f32 %v1246, %v1355
      %v1376 = vadd.f32 %v1247, %v1355
      %v1377 = vadd.f32 %v1248, %v1355
      %v1378 = vadd.f32 %v1249, %v1355
      %v1379 = vadd.f32 %v1250, %v1355
      %v1380 = vadd.f32 %v1251, %v1355
      %v1381 = vadd.f32 %v1252, %v1355
      %v1382 = vadd.f32 %v1253, %v1355
      %v1383 = vadd.f32 %v1254, %v1355
      %v1384 = vadd.f32 %v1255, %v1355
      %v1385 = vadd.f32 %v1256, %v1355
      %v1386 = vadd.f32 %v1257, %v1355
      %v1387 = vadd.f32 %v1258, %v1355
      %v1388 = vadd.f32 %v1259, %v1355
      %v1389 = vadd.f32 %v1260, %v1355
      %v1390 = vadd.f32 %v1261, %v1355
      %v1391 = vadd.f32 %v1262, %v1355
      %v1392 = vadd.f32 %v1263, %v1355
      %v1393 = vadd.f32 %v1264, %v1355
      %v1394 = vadd.f32 %v1265, %v1355
      %v1395 = vadd.f32 %v1266, %v1355
      %v1396 = vadd.f32 %v1267, %v1355
      %v1397 = vadd.f32 %v1268, %v1355
      %v1398 = vadd.f32 %v1269, %v1355
      %v1399 = vadd.f32 %v1270, %v1355
      %v1400 = vadd.f32 %v1271, %v1355
      %v1401 = vadd.f32 %v1272, %v1355
      %v1402 = vadd.f32 %v1273, %v1355
      %v1403 = vadd.f32 %v1274, %v1355
      %v1404 = vadd.f32 %v1275, %v1355
      %v1405 = vadd.f32 %v1276, %v1355
      %v1406 = vadd.f32 %v1277, %v1355
      %v1407 = vadd.f32 %v1278, %v1355
      %v1408 = vadd.f32 %v1279, %v1355
      %v1409 = vadd.f32 %v1280, %v1355
      %v1410 = vadd.f32 %v1281, %v1355
      %v1411 = vadd.f32 %v1282, %v1355
      %v1412 = vadd.f32 %v1283, %v1355
      %v1413 = vadd.f32 %v1284, %v1355
      %v1414 = vadd.f32 %v1285, %v1355
      %v1415 = vadd.f32 %v1286, %v1355
      %v1416 = vadd.f32 %v1287, %v1355
      %v1417 = vadd.f32 %v1288, %v1355
      %v1418 = vadd.f32 %v1289, %v1355
      %v1419 = vadd.f32 %v1290, %v1355
      %v1420 = vadd.f32 %v1291, %v1355
      %v1421 = vadd.f32 %v1292, %v1355
      %v1422 = vadd.f32 %v1293, %v1355
      %v1423 = vadd.f32 %v1294, %v1355
      %v1424 = vadd.f32 %v1295, %v1355
      %v1425 = vadd.f32 %v1296, %v1355
      %v1426 = vadd.f32 %v1297, %v1355
      %v1427 = vadd.f32 %v1298, %v1355
      %v1428 = vadd.f32 %v1299, %v1355
      %v1429 = vadd.f32 %v1300, %v1355
      %v1430 = vadd.f32 %v1301, %v1355
      %v1431 = vadd.f32 %v1302, %v1355
      %v1432 = vadd.f32 %v1303, %v1355
      %v1433 = vadd.f32 %v1304, %v1355
      %v1434 = vadd.f32 %v1305, %v1355
      %v1435 = vadd.f32 %v1306, %v1355
      %v1436 = vadd.f32 %v1307, %v1355
      %v1437 = vadd.f32 %v1308, %v1355
      %v1438 = vadd.f32 %v1309, %v1355
      %v1439 = vadd.f32 %v1310, %v1355
      %v1440 = vadd.f32 %v1311, %v1355
      %v1441 = vadd.f32 %v1312, %v1355
      %v1442 = vadd.f32 %v1313, %v1355
      %v1443 = vadd.f32 %v1314, %v1355
      %v1444 = vadd.f32 %v1315, %v1355
      %v1445 = vadd.f32 %v1316, %v1355
      %v1446 = vadd.f32 %v1317, %v1355
      %v1447 = vadd.f32 %v1318, %v1355
      %v1448 = vadd.f32 %v1319, %v1355
      %v1449 = vadd.f32 %v1320, %v1355
      %v1450 = vadd.f32 %v1321, %v1355
      %v1451 = vadd.f32 %v1322, %v1355
      %v1452 = vadd.f32 %v1323, %v1355
      %v1453 = vadd.f32 %v1324, %v1355
      %v1454 = vadd.f32 %v1325, %v1355
      %v1455 = vadd.f32 %v1326, %v1355
      %v1456 = vadd.f32 %v1327, %v1355
      %v1457 = vadd.f32 %v1328, %v1355
      %v1458 = vadd.f32 %v1329, %v1355
      %v1459 = vadd.f32 %v1330, %v1355
      %v1460 = vadd.f32 %v1331, %v1355
      %v1461 = vadd.f32 %v1332, %v1355
      %v1462 = vadd.f32 %v1333, %v1355
      %v1463 = vadd.f32 %v1334, %v1355
      %v1464 = vadd.f32 %v1335, %v1355
      %v1465 = vadd.f32 %v1336, %v1355
      %v1466 = vadd.f32 %v1337, %v1355
      %v1467 = vadd.f32 %v1338, %v1355
      %v1468 = vadd.f32 %v1339, %v1355
      %v1469 = vadd.f32 %v1340, %v1355
      %v1470 = vadd.f32 %v1341, %v1355
      %v1471 = vadd.f32 %v1342, %v1355
      %v1472 = vadd.f32 %v1343, %v1355
      %v1473 = vadd.f32 %v1344, %v1355
      %v1474 = vadd.f32 %v1345, %v1355
      %v1475 = vadd.f32 %v1346, %v1355
      %v1476 = vadd.f32 %v1347, %v1355
      %v1477 = vadd.f32 %v1348, %v1355
      %v1478 = vadd.f32 %v1349, %v1355
      %v1479 = vadd.f32 %v1350, %v1355
      %v1480 = vadd.f32 %v1351, %v1355
      %v1481 = vadd.f32 %v1352, %v1355
      %v1482 = vadd.f32 %v1353, %v1355
      %v1483 = vadd.f32 %v1354, %v1355
      %1484 = vst.msk [vmem:[%s172] sm:$0xff] %vm312, %v1356
      %1485 = vst.msk [vmem:[%s172 + $0x8] sm:$0xff] %vm312, %v1357
      %1486 = vst.msk [vmem:[%s172 + $0x10] sm:$0xff] %vm312, %v1358
      %1487 = vst.msk [vmem:[%s172 + $0x18] sm:$0xff] %vm312, %v1359
      %1488 = vst.msk [vmem:[%s172 + $0x20] sm:$0xff] %vm312, %v1360
      %1489 = vst.msk [vmem:[%s172 + $0x28] sm:$0xff] %vm312, %v1361
      %1490 = vst.msk [vmem:[%s172 + $0x30] sm:$0xff] %vm312, %v1362
      %1491 = vst.msk [vmem:[%s172 + $0x38] sm:$0xff] %vm312, %v1363
      %1492 = vst.msk [vmem:[%s172 + $0x40] sm:$0xff] %vm312, %v1364
      %1493 = vst.msk [vmem:[%s172 + $0x48] sm:$0xff] %vm312, %v1365
      %1494 = vst.msk [vmem:[%s172 + $0x50] sm:$0xff] %vm312, %v1366
      %1495 = vst.msk [vmem:[%s172 + $0x58] sm:$0xff] %vm312, %v1367
      %1496 = vst.msk [vmem:[%s172 + $0x60] sm:$0xff] %vm312, %v1368
      %1497 = vst.msk [vmem:[%s172 + $0x68] sm:$0xff] %vm312, %v1369
      %1498 = vst.msk [vmem:[%s172 + $0x70] sm:$0xff] %vm312, %v1370
      %1499 = vst.msk [vmem:[%s172 + $0x78] sm:$0xff] %vm312, %v1371
      %1500 = vst.msk [vmem:[%s172 + $0x80] sm:$0xff] %vm312, %v1372
      %1501 = vst.msk [vmem:[%s172 + $0x88] sm:$0xff] %vm312, %v1373
      %1502 = vst.msk [vmem:[%s172 + $0x90] sm:$0xff] %vm312, %v1374
      %1503 = vst.msk [vmem:[%s172 + $0x98] sm:$0xff] %vm312, %v1375
      %1504 = vst.msk [vmem:[%s172 + $0xa0] sm:$0xff] %vm312, %v1376
      %1505 = vst.msk [vmem:[%s172 + $0xa8] sm:$0xff] %vm312, %v1377
      %1506 = vst.msk [vmem:[%s172 + $0xb0] sm:$0xff] %vm312, %v1378
      %1507 = vst.msk [vmem:[%s172 + $0xb8] sm:$0xff] %vm312, %v1379
      %1508 = vst.msk [vmem:[%s172 + $0xc0] sm:$0xff] %vm312, %v1380
      %1509 = vst.msk [vmem:[%s172 + $0xc8] sm:$0xff] %vm312, %v1381
      %1510 = vst.msk [vmem:[%s172 + $0xd0] sm:$0xff] %vm312, %v1382
      %1511 = vst.msk [vmem:[%s172 + $0xd8] sm:$0xff] %vm312, %v1383
      %1512 = vst.msk [vmem:[%s172 + $0xe0] sm:$0xff] %vm312, %v1384
      %1513 = vst.msk [vmem:[%s172 + $0xe8] sm:$0xff] %vm312, %v1385
      %1514 = vst.msk [vmem:[%s172 + $0xf0] sm:$0xff] %vm312, %v1386
      %1515 = vst.msk [vmem:[%s172 + $0xf8] sm:$0xff] %vm312, %v1387
      %1516 = vst.msk [vmem:[%s172 + $0x100] sm:$0xff] %vm312, %v1388
      %1517 = vst.msk [vmem:[%s172 + $0x108] sm:$0xff] %vm312, %v1389
      %1518 = vst.msk [vmem:[%s172 + $0x110] sm:$0xff] %vm312, %v1390
      %1519 = vst.msk [vmem:[%s172 + $0x118] sm:$0xff] %vm312, %v1391
      %1520 = vst.msk [vmem:[%s172 + $0x120] sm:$0xff] %vm312, %v1392
      %1521 = vst.msk [vmem:[%s172 + $0x128] sm:$0xff] %vm312, %v1393
      %1522 = vst.msk [vmem:[%s172 + $0x130] sm:$0xff] %vm312, %v1394
      %1523 = vst.msk [vmem:[%s172 + $0x138] sm:$0xff] %vm312, %v1395
      %1524 = vst.msk [vmem:[%s172 + $0x140] sm:$0xff] %vm312, %v1396
      %1525 = vst.msk [vmem:[%s172 + $0x148] sm:$0xff] %vm312, %v1397
      %1526 = vst.msk [vmem:[%s172 + $0x150] sm:$0xff] %vm312, %v1398
      %1527 = vst.msk [vmem:[%s172 + $0x158] sm:$0xff] %vm312, %v1399
      %1528 = vst.msk [vmem:[%s172 + $0x160] sm:$0xff] %vm312, %v1400
      %1529 = vst.msk [vmem:[%s172 + $0x168] sm:$0xff] %vm312, %v1401
      %1530 = vst.msk [vmem:[%s172 + $0x170] sm:$0xff] %vm312, %v1402
      %1531 = vst.msk [vmem:[%s172 + $0x178] sm:$0xff] %vm312, %v1403
      %1532 = vst.msk [vmem:[%s172 + $0x180] sm:$0xff] %vm312, %v1404
      %1533 = vst.msk [vmem:[%s172 + $0x188] sm:$0xff] %vm312, %v1405
      %1534 = vst.msk [vmem:[%s172 + $0x190] sm:$0xff] %vm312, %v1406
      %1535 = vst.msk [vmem:[%s172 + $0x198] sm:$0xff] %vm312, %v1407
      %1536 = vst.msk [vmem:[%s172 + $0x1a0] sm:$0xff] %vm312, %v1408
      %1537 = vst.msk [vmem:[%s172 + $0x1a8] sm:$0xff] %vm312, %v1409
      %1538 = vst.msk [vmem:[%s172 + $0x1b0] sm:$0xff] %vm312, %v1410
      %1539 = vst.msk [vmem:[%s172 + $0x1b8] sm:$0xff] %vm312, %v1411
      %1540 = vst.msk [vmem:[%s172 + $0x1c0] sm:$0xff] %vm312, %v1412
      %1541 = vst.msk [vmem:[%s172 + $0x1c8] sm:$0xff] %vm312, %v1413
      %1542 = vst.msk [vmem:[%s172 + $0x1d0] sm:$0xff] %vm312, %v1414
      %1543 = vst.msk [vmem:[%s172 + $0x1d8] sm:$0xff] %vm312, %v1415
      %1544 = vst.msk [vmem:[%s172 + $0x1e0] sm:$0xff] %vm312, %v1416
      %1545 = vst.msk [vmem:[%s172 + $0x1e8] sm:$0xff] %vm312, %v1417
      %1546 = vst.msk [vmem:[%s172 + $0x1f0] sm:$0xff] %vm312, %v1418
      %1547 = vst.msk [vmem:[%s172 + $0x1f8] sm:$0xff] %vm312, %v1419
      %1548 = vst.msk [vmem:[%s172 + $0x200] sm:$0xff] %vm312, %v1420
      %1549 = vst.msk [vmem:[%s172 + $0x208] sm:$0xff] %vm312, %v1421
      %1550 = vst.msk [vmem:[%s172 + $0x210] sm:$0xff] %vm312, %v1422
      %1551 = vst.msk [vmem:[%s172 + $0x218] sm:$0xff] %vm312, %v1423
      %1552 = vst.msk [vmem:[%s172 + $0x220] sm:$0xff] %vm312, %v1424
      %1553 = vst.msk [vmem:[%s172 + $0x228] sm:$0xff] %vm312, %v1425
      %1554 = vst.msk [vmem:[%s172 + $0x230] sm:$0xff] %vm312, %v1426
      %1555 = vst.msk [vmem:[%s172 + $0x238] sm:$0xff] %vm312, %v1427
      %1556 = vst.msk [vmem:[%s172 + $0x240] sm:$0xff] %vm312, %v1428
      %1557 = vst.msk [vmem:[%s172 + $0x248] sm:$0xff] %vm312, %v1429
      %1558 = vst.msk [vmem:[%s172 + $0x250] sm:$0xff] %vm312, %v1430
      %1559 = vst.msk [vmem:[%s172 + $0x258] sm:$0xff] %vm312, %v1431
      %1560 = vst.msk [vmem:[%s172 + $0x260] sm:$0xff] %vm312, %v1432
      %1561 = vst.msk [vmem:[%s172 + $0x268] sm:$0xff] %vm312, %v1433
      %1562 = vst.msk [vmem:[%s172 + $0x270] sm:$0xff] %vm312, %v1434
      %1563 = vst.msk [vmem:[%s172 + $0x278] sm:$0xff] %vm312, %v1435
      %1564 = vst.msk [vmem:[%s172 + $0x280] sm:$0xff] %vm312, %v1436
      %1565 = vst.msk [vmem:[%s172 + $0x288] sm:$0xff] %vm312, %v1437
      %1566 = vst.msk [vmem:[%s172 + $0x290] sm:$0xff] %vm312, %v1438
      %1567 = vst.msk [vmem:[%s172 + $0x298] sm:$0xff] %vm312, %v1439
      %1568 = vst.msk [vmem:[%s172 + $0x2a0] sm:$0xff] %vm312, %v1440
      %1569 = vst.msk [vmem:[%s172 + $0x2a8] sm:$0xff] %vm312, %v1441
      %1570 = vst.msk [vmem:[%s172 + $0x2b0] sm:$0xff] %vm312, %v1442
      %1571 = vst.msk [vmem:[%s172 + $0x2b8] sm:$0xff] %vm312, %v1443
      %1572 = vst.msk [vmem:[%s172 + $0x2c0] sm:$0xff] %vm312, %v1444
      %1573 = vst.msk [vmem:[%s172 + $0x2c8] sm:$0xff] %vm312, %v1445
      %1574 = vst.msk [vmem:[%s172 + $0x2d0] sm:$0xff] %vm312, %v1446
      %1575 = vst.msk [vmem:[%s172 + $0x2d8] sm:$0xff] %vm312, %v1447
      %1576 = vst.msk [vmem:[%s172 + $0x2e0] sm:$0xff] %vm312, %v1448
      %1577 = vst.msk [vmem:[%s172 + $0x2e8] sm:$0xff] %vm312, %v1449
      %1578 = vst.msk [vmem:[%s172 + $0x2f0] sm:$0xff] %vm312, %v1450
      %1579 = vst.msk [vmem:[%s172 + $0x2f8] sm:$0xff] %vm312, %v1451
      %1580 = vst.msk [vmem:[%s172 + $0x300] sm:$0xff] %vm312, %v1452
      %1581 = vst.msk [vmem:[%s172 + $0x308] sm:$0xff] %vm312, %v1453
      %1582 = vst.msk [vmem:[%s172 + $0x310] sm:$0xff] %vm312, %v1454
      %1583 = vst.msk [vmem:[%s172 + $0x318] sm:$0xff] %vm312, %v1455
      %1584 = vst.msk [vmem:[%s172 + $0x320] sm:$0xff] %vm312, %v1456
      %1585 = vst.msk [vmem:[%s172 + $0x328] sm:$0xff] %vm312, %v1457
      %1586 = vst.msk [vmem:[%s172 + $0x330] sm:$0xff] %vm312, %v1458
      %1587 = vst.msk [vmem:[%s172 + $0x338] sm:$0xff] %vm312, %v1459
      %1588 = vst.msk [vmem:[%s172 + $0x340] sm:$0xff] %vm312, %v1460
      %1589 = vst.msk [vmem:[%s172 + $0x348] sm:$0xff] %vm312, %v1461
      %1590 = vst.msk [vmem:[%s172 + $0x350] sm:$0xff] %vm312, %v1462
      %1591 = vst.msk [vmem:[%s172 + $0x358] sm:$0xff] %vm312, %v1463
      %1592 = vst.msk [vmem:[%s172 + $0x360] sm:$0xff] %vm312, %v1464
      %1593 = vst.msk [vmem:[%s172 + $0x368] sm:$0xff] %vm312, %v1465
      %1594 = vst.msk [vmem:[%s172 + $0x370] sm:$0xff] %vm312, %v1466
      %1595 = vst.msk [vmem:[%s172 + $0x378] sm:$0xff] %vm312, %v1467
      %1596 = vst.msk [vmem:[%s172 + $0x380] sm:$0xff] %vm312, %v1468
      %1597 = vst.msk [vmem:[%s172 + $0x388] sm:$0xff] %vm312, %v1469
      %1598 = vst.msk [vmem:[%s172 + $0x390] sm:$0xff] %vm312, %v1470
      %1599 = vst.msk [vmem:[%s172 + $0x398] sm:$0xff] %vm312, %v1471
      %1600 = vst.msk [vmem:[%s172 + $0x3a0] sm:$0xff] %vm312, %v1472
      %1601 = vst.msk [vmem:[%s172 + $0x3a8] sm:$0xff] %vm312, %v1473
      %1602 = vst.msk [vmem:[%s172 + $0x3b0] sm:$0xff] %vm312, %v1474
      %1603 = vst.msk [vmem:[%s172 + $0x3b8] sm:$0xff] %vm312, %v1475
      %1604 = vst.msk [vmem:[%s172 + $0x3c0] sm:$0xff] %vm312, %v1476
      %1605 = vst.msk [vmem:[%s172 + $0x3c8] sm:$0xff] %vm312, %v1477
      %1606 = vst.msk [vmem:[%s172 + $0x3d0] sm:$0xff] %vm312, %v1478
      %1607 = vst.msk [vmem:[%s172 + $0x3d8] sm:$0xff] %vm312, %v1479
      %1608 = vst.msk [vmem:[%s172 + $0x3e0] sm:$0xff] %vm312, %v1480
      %1609 = vst.msk [vmem:[%s172 + $0x3e8] sm:$0xff] %vm312, %v1481
      %1610 = vst.msk [vmem:[%s172 + $0x3f0] sm:$0xff] %vm312, %v1482
      %1611 = vst.msk [vmem:[%s172 + $0x3f8] sm:$0xff] %vm312, %v1483
      %s1612 = smul.u32 128, %s14
      %p1613 = scmp.lt.s32.totalorder %s1612, 1023
      %s1614 = scalar_select %p1613, %s1612, 1023
      %s1615 = smul.addr %s1614, 8
      %s1616 = scalar_lea.vmem %s3, %s1615
      // Predicated region
      $region33: #{fe_forward.13} parent=31 // pred_check
        %p1617 = pneg %p100
      $region34: #{fe_forward.13} parent=31 // pred_check_branch
        %1619 = sbr.rel (%p1617) target = $region36
      $region35: #{fe_forward.13} parent=31 // pred_region
        %s1620 = smul.u32 128, %s14
      $region36: #{fe_forward.13} parent=31 // pred_fallthru
        _
    $region32: #{fe_forward.13} parent=5 // pred_fallthru
      _
    %p1621 = scmp.le.s32.totalorder 2, %s9
    // Predicated region
    $region37: #{fe_forward.13} parent=5 // pred_check
      %p1622 = pneg %p1621
    $region38: #{fe_forward.13} parent=5 // pred_check_branch
      %1624 = sbr.rel (%p1622) target = $region40
    $region39: #{fe_forward.13} parent=5 // pred_region
      %s1625 = ssub.s32 %s9, 2
      // Predicated region
      $region41: #{fe_forward.13} parent=39 // pred_check
        %p1626 = pneg %p106
      $region42: #{fe_forward.13} parent=39 // pred_check_branch
        %1628 = sbr.rel (%p1626) target = $region44
      $region43: #{fe_forward.13} parent=39 // pred_region
        %s1629 = smul.u32 128, %s15
        %p1630 = scmp.lt.s32.totalorder %s1629, 1023
        %s1631 = scalar_select %p1630, %s1629, 1023
        %s1632 = smul.addr %s1631, 8
        %s1633 = scalar_lea.vmem %s3, %s1632
      $region44: #{fe_forward.13} parent=39 // pred_fallthru
        _
    $region40: #{fe_forward.13} parent=5 // pred_fallthru
      _
  $region6: #{fe_forward.13} parent=0 // loop_footer
    %s13 = sadd.s32 1, %s9
  $region7: #{fe_forward.13} parent=0 // loop_footer_branch
    %8 = sbr.rel target = $region3
  $region8: #{fe_forward.13} parent=0 // loop_exit
    _

// kernel: fe_forward.15
$region0: #{fe_forward.15}
  #allocation0 [shape = 'u32[]', space=smem, size = 0x4, offset = 0x4, fixed_abs, tag = 'smem constant byte address 0x4 - core index']
  #allocation1 [shape = 'u32[72,128]{1,0:T(1,128)}', space=vmem, size = 0x9000, scoped, tag = 'internal scratch']
  #allocation2 [shape = 'f32[1,1024]{1,0:T(1,128)}', space=vmem, size = 0x1000, scoped, tag = 'scratch operand']
  %s0 = inlined_call_operand.vmem [shape: bf16[2,128,128], index: 0, kind: input, shape index: {}]
  %s1 = inlined_call_operand.vmem [shape: bf16[128,128], index: 1, kind: input, shape index: {}]
  %s2 = inlined_call_operand.vmem [shape: f32[1,128], index: 2, kind: input, shape index: {}]
  %s3 = inlined_call_operand.vmem [shape: bf16[128,1024], index: 3, kind: input, shape index: {}]
  %s4 = inlined_call_operand.vmem [shape: f32[3,1024], index: 4, kind: input, shape index: {}]
  %s5 = inlined_call_operand.vmem [shape: f32[2,1024], index: 5, kind: input, shape index: {}]
  %s6 = inlined_call_operand.vmem [shape: f32[2,1,1024], index: 6, kind: output, shape index: {}]
  %s7 = sld [smem:[#allocation0]]
  $region65: #{fe_forward.15} parent=0
    _
  %s9 = ssub.s32 1, %s7
  %s10 = scalar_select 0, %s9, %s7
  loop: start=0, step=1, limit=4
  $region2: #{fe_forward.15} parent=0 // loop_pre_header
    _
  $region3: #{fe_forward.15} parent=0 // loop_header
    %s12 = sphi 0, %s16
    %p13 = scmp.ge.s32.totalorder %s12, 4
    %s19 = sphi 0, %s31
    %s20 = sphi 0, %s27
    %s21 = sphi 0, %s19
    %s22 = sphi 0, %s20
    %s23 = sphi 0, %s21
    %s24 = sphi 0, %s22
    %s36 = sphi 0, %s38
    %s39 = sphi 0, %s36
    %s40 = sphi 0, %s39
    %s56 = sphi 0, %s40
    %s60 = sphi 0, %s60
    %s62 = sphi 0, %s60
    %s63 = sphi 0, %s62
    %s77 = sphi 0, %s63
    %s81 = sphi 0, %s81
    %s83 = sphi 0, %s81
    %s84 = sphi 0, %s83
    %s98 = sphi 0, %s84
    %s102 = sphi 0, %s102
    %s104 = sphi 0, %s102
    %s105 = sphi 0, %s104
    %s119 = sphi 0, %s105
    %s123 = sphi 0, %s123
    %s125 = sphi 0, %s123
    %s126 = sphi 0, %s125
    %s140 = sphi 0, %s126
    %s144 = sphi 0, %s144
    %s146 = sphi 0, %s144
    %s147 = sphi 0, %s146
    %s161 = sphi 0, %s147
    %s167 = sphi 0, %s169
    %s170 = sphi 0, %s167
    %s171 = sphi 0, %s170
    %s187 = sphi 0, %s171
  $region4: #{fe_forward.15} parent=0 // loop_header_branch
    %15 = sbr.rel (%p13) target = $region8
  $region5: #{fe_forward.15} parent=0 // loop_body
    %s17 = ssub.s32 %s12, 1
    %s18 = ssub.s32 %s12, 2
    %s25 = sadd.s32 1, %s20
    %p26 = scmp.ge.s32.totalorder %s25, 1
    %s27 = scalar_select %p26, 0, %s25
    %s28 = sadd.s32 1, %s19
    %s29 = scalar_select %p26, %s28, %s19
    %p30 = scmp.ge.s32.totalorder %s29, 2
    %s31 = scalar_select %p30, 0, %s29
    %s32 = ssub.s32 %s19, %s31
    %s33 = ssub.s32 %s20, %s27
    %s34 = sor.u32 %s32, %s33
    %p35 = scmp.eq.s32.totalorder %s34, 0
    %s37 = sadd.s32 %s36, 1
    %s38 = scalar_select %p35, %s36, %s37
    %p41 = pneg %p35
    %p42 = scmp.eq.s32.totalorder %s12, 1
    %p43 = por %p41, %p42
    %p44 = scmp.ne.s32.totalorder %s36, %s39
    %p45 = scmp.eq.s32.totalorder %s12, 0
    %p46 = por %p44, %p45
    %p47 = scmp.ne.s32.totalorder %s36, %s39
    %p48 = scmp.eq.s32.totalorder %s17, 1
    %p49 = por %p47, %p48
    %p50 = scmp.ne.s32.totalorder %s39, %s40
    %p51 = scmp.eq.s32.totalorder %s17, 0
    %p52 = por %p50, %p51
    %p53 = scmp.ne.s32.totalorder %s39, %s40
    %p54 = scmp.eq.s32.totalorder %s18, 1
    %p55 = por %p53, %p54
    %p57 = scmp.ne.s32.totalorder %s40, %s56
    %p58 = scmp.eq.s32.totalorder %s18, 0
    %p59 = por %p57, %p58
    %s61 = sadd.s32 %s60, 1
    %p64 = scmp.eq.s32.totalorder %s12, 1
    %p65 = scmp.ne.s32.totalorder %s60, %s62
    %p66 = scmp.eq.s32.totalorder %s12, 0
    %p67 = por %p65, %p66
    %p68 = scmp.ne.s32.totalorder %s60, %s62
    %p69 = scmp.eq.s32.totalorder %s17, 1
    %p70 = por %p68, %p69
    %p71 = scmp.ne.s32.totalorder %s62, %s63
    %p72 = scmp.eq.s32.totalorder %s17, 0
    %p73 = por %p71, %p72
    %p74 = scmp.ne.s32.totalorder %s62, %s63
    %p75 = scmp.eq.s32.totalorder %s18, 1
    %p76 = por %p74, %p75
    %p78 = scmp.ne.s32.totalorder %s63, %s77
    %p79 = scmp.eq.s32.totalorder %s18, 0
    %p80 = por %p78, %p79
    %s82 = sadd.s32 %s81, 1
    %p85 = scmp.eq.s32.totalorder %s12, 1
    %p86 = scmp.ne.s32.totalorder %s81, %s83
    %p87 = scmp.eq.s32.totalorder %s12, 0
    %p88 = por %p86, %p87
    %p89 = scmp.ne.s32.totalorder %s81, %s83
    %p90 = scmp.eq.s32.totalorder %s17, 1
    %p91 = por %p89, %p90
    %p92 = scmp.ne.s32.totalorder %s83, %s84
    %p93 = scmp.eq.s32.totalorder %s17, 0
    %p94 = por %p92, %p93
    %p95 = scmp.ne.s32.totalorder %s83, %s84
    %p96 = scmp.eq.s32.totalorder %s18, 1
    %p97 = por %p95, %p96
    %p99 = scmp.ne.s32.totalorder %s84, %s98
    %p100 = scmp.eq.s32.totalorder %s18, 0
    %p101 = por %p99, %p100
    %s103 = sadd.s32 %s102, 1
    %p106 = scmp.eq.s32.totalorder %s12, 1
    %p107 = scmp.ne.s32.totalorder %s102, %s104
    %p108 = scmp.eq.s32.totalorder %s12, 0
    %p109 = por %p107, %p108
    %p110 = scmp.ne.s32.totalorder %s102, %s104
    %p111 = scmp.eq.s32.totalorder %s17, 1
    %p112 = por %p110, %p111
    %p113 = scmp.ne.s32.totalorder %s104, %s105
    %p114 = scmp.eq.s32.totalorder %s17, 0
    %p115 = por %p113, %p114
    %p116 = scmp.ne.s32.totalorder %s104, %s105
    %p117 = scmp.eq.s32.totalorder %s18, 1
    %p118 = por %p116, %p117
    %p120 = scmp.ne.s32.totalorder %s105, %s119
    %p121 = scmp.eq.s32.totalorder %s18, 0
    %p122 = por %p120, %p121
    %s124 = sadd.s32 %s123, 1
    %p127 = scmp.eq.s32.totalorder %s12, 1
    %p128 = scmp.ne.s32.totalorder %s123, %s125
    %p129 = scmp.eq.s32.totalorder %s12, 0
    %p130 = por %p128, %p129
    %p131 = scmp.ne.s32.totalorder %s123, %s125
    %p132 = scmp.eq.s32.totalorder %s17, 1
    %p133 = por %p131, %p132
    %p134 = scmp.ne.s32.totalorder %s125, %s126
    %p135 = scmp.eq.s32.totalorder %s17, 0
    %p136 = por %p134, %p135
    %p137 = scmp.ne.s32.totalorder %s125, %s126
    %p138 = scmp.eq.s32.totalorder %s18, 1
    %p139 = por %p137, %p138
    %p141 = scmp.ne.s32.totalorder %s126, %s140
    %p142 = scmp.eq.s32.totalorder %s18, 0
    %p143 = por %p141, %p142
    %s145 = sadd.s32 %s144, 1
    %p148 = scmp.eq.s32.totalorder %s12, 1
    %p149 = scmp.ne.s32.totalorder %s144, %s146
    %p150 = scmp.eq.s32.totalorder %s12, 0
    %p151 = por %p149, %p150
    %p152 = scmp.ne.s32.totalorder %s144, %s146
    %p153 = scmp.eq.s32.totalorder %s17, 1
    %p154 = por %p152, %p153
    %p155 = scmp.ne.s32.totalorder %s146, %s147
    %p156 = scmp.eq.s32.totalorder %s17, 0
    %p157 = por %p155, %p156
    %p158 = scmp.ne.s32.totalorder %s146, %s147
    %p159 = scmp.eq.s32.totalorder %s18, 1
    %p160 = por %p158, %p159
    %p162 = scmp.ne.s32.totalorder %s147, %s161
    %p163 = scmp.eq.s32.totalorder %s18, 0
    %p164 = por %p162, %p163
    %s165 = ssub.s32 %s19, %s31
    %p166 = scmp.eq.s32.totalorder %s165, 0
    %s168 = sadd.s32 %s167, 1
    %s169 = scalar_select %p166, %s167, %s168
    %p172 = pneg %p166
    %p173 = scmp.eq.s32.totalorder %s12, 1
    %p174 = por %p172, %p173
    %p175 = scmp.ne.s32.totalorder %s167, %s170
    %p176 = scmp.eq.s32.totalorder %s12, 0
    %p177 = por %p175, %p176
    %p178 = scmp.ne.s32.totalorder %s167, %s170
    %p179 = scmp.eq.s32.totalorder %s17, 1
    %p180 = por %p178, %p179
    %p181 = scmp.ne.s32.totalorder %s170, %s171
    %p182 = scmp.eq.s32.totalorder %s17, 0
    %p183 = por %p181, %p182
    %p184 = scmp.ne.s32.totalorder %s170, %s171
    %p185 = scmp.eq.s32.totalorder %s18, 1
    %p186 = por %p184, %p185
    %p188 = scmp.ne.s32.totalorder %s171, %s187
    %p189 = scmp.eq.s32.totalorder %s18, 0
    %p190 = por %p188, %p189
    %p191 = scmp.le.s32.totalorder 1, %s12
    %p192 = scmp.lt.s32.totalorder %s12, 3
    %p193 = pnand %p191, %p192
    %p194 = pneg %p193
    // Predicated region
    $region9: #{fe_forward.15} parent=5 // pred_check
      _
    $region10: #{fe_forward.15} parent=5 // pred_check_branch
      %196 = sbr.rel (%p193) target = $region12
    $region11: #{fe_forward.15} parent=5 // pred_region
      %s197 = ssub.s32 %s12, 1
      // Predicated region
      $region13: #{fe_forward.15} parent=11 // pred_check
        %p198 = pneg %p73
      $region14: #{fe_forward.15} parent=11 // pred_check_branch
        %200 = sbr.rel (%p198) target = $region16
      $region15: #{fe_forward.15} parent=11 // pred_region
        _
      $region16: #{fe_forward.15} parent=11 // pred_fallthru
        _
      // Predicated region
      $region17: #{fe_forward.15} parent=11 // pred_check
        %p201 = pneg %p94
      $region18: #{fe_forward.15} parent=11 // pred_check_branch
        %203 = sbr.rel (%p201) target = $region20
      $region19: #{fe_forward.15} parent=11 // pred_region
        _
      $region20: #{fe_forward.15} parent=11 // pred_fallthru
        _
      // Predicated region
      $region21: #{fe_forward.15} parent=11 // pred_check
        %p204 = pneg %p115
      $region22: #{fe_forward.15} parent=11 // pred_check_branch
        %206 = sbr.rel (%p204) target = $region24
      $region23: #{fe_forward.15} parent=11 // pred_region
        _
      $region24: #{fe_forward.15} parent=11 // pred_fallthru
        _
      // Predicated region
      $region25: #{fe_forward.15} parent=11 // pred_check
        %p207 = pneg %p136
      $region26: #{fe_forward.15} parent=11 // pred_check_branch
        %209 = sbr.rel (%p207) target = $region28
      $region27: #{fe_forward.15} parent=11 // pred_region
        _
      $region28: #{fe_forward.15} parent=11 // pred_fallthru
        _
      // Predicated region
      $region29: #{fe_forward.15} parent=11 // pred_check
        %p210 = pneg %p157
      $region30: #{fe_forward.15} parent=11 // pred_check_branch
        %212 = sbr.rel (%p210) target = $region32
      $region31: #{fe_forward.15} parent=11 // pred_region
        _
      $region32: #{fe_forward.15} parent=11 // pred_fallthru
        _
    $region12: #{fe_forward.15} parent=5 // pred_fallthru
      _
    %p213 = scmp.lt.s32.totalorder %s12, 2
    // Predicated region
    $region33: #{fe_forward.15} parent=5 // pred_check
      %p214 = pneg %p213
    $region34: #{fe_forward.15} parent=5 // pred_check_branch
      %216 = sbr.rel (%p214) target = $region36
    $region35: #{fe_forward.15} parent=5 // pred_region
      // Predicated region
      $region37: #{fe_forward.15} parent=35 // pred_check
        %p217 = pneg %p46
      $region38: #{fe_forward.15} parent=35 // pred_check_branch
        %219 = sbr.rel (%p217) target = $region40
      $region39: #{fe_forward.15} parent=35 // pred_region
        %s220 = smul.u32 16, %s20
        %p221 = scmp.lt.s32.totalorder %s19, 1
        %s222 = scalar_select %p221, %s19, 1
        %p223 = scmp.lt.s32.totalorder %s220, 15
        %s224 = scalar_select %p223, %s220, 15
        %s225 = smul.addr %s222, 16
        %s226 = sadd.s32 %s224, %s225
        %s227 = smul.addr %s226, 4
        %s228 = scalar_lea.vmem %s0, %s227
        %s229 = smul.u32 16, %s20
      $region40: #{fe_forward.15} parent=35 // pred_fallthru
        _
    $region36: #{fe_forward.15} parent=5 // pred_fallthru
      _
    %p230 = scmp.le.s32.totalorder 1, %s12
    %p231 = scmp.lt.s32.totalorder %s12, 3
    %p232 = pnand %p230, %p231
    %p233 = pneg %p232
    // Predicated region
    $region41: #{fe_forward.15} parent=5 // pred_check
      _
    $region42: #{fe_forward.15} parent=5 // pred_check_branch
      %235 = sbr.rel (%p232) target = $region44
    $region43: #{fe_forward.15} parent=5 // pred_region
      %s236 = ssub.s32 %s12, 1
      %s237 = smul.u32 16, %s22
      %p238 = scmp.lt.s32.totalorder %s21, 1
      %s239 = scalar_select %p238, %s21, 1
      %p240 = scmp.lt.s32.totalorder %s237, 15
      %s241 = scalar_select %p240, %s237, 15
      %s242 = smul.addr %s239, 16
      %s243 = sadd.s32 %s241, %s242
      %s244 = smul.addr %s243, 4
      %s245 = scalar_lea.vmem %s0, %s244
      %p246 = pneg %p52
      %p247 = pneg %p49
      %p248 = pneg %p73
      %p249 = pneg %p70
      %p250 = pneg %p94
      %p251 = pneg %p91
      %p252 = pneg %p115
      %p253 = pneg %p112
      %p254 = pneg %p136
      %p255 = pneg %p133
      %p256 = pneg %p157
      %p257 = pneg %p154
      %p258 = pneg %p183
      %p259 = pneg %p180
      %p260 = scmp.lt.s32.totalorder %s21, 1
      %s261 = scalar_select %p260, %s21, 1
      %s262 = smul.addr %s261, 8
      %s263 = scalar_lea.vmem %s6, %s262
      %s264 = smul.u32 16, %s22
      %p265 = scmp.lt.s32.totalorder %s21, 1
      %s266 = scalar_select %p265, %s21, 1
      %p267 = scmp.lt.s32.totalorder %s264, 15
      %s268 = scalar_select %p267, %s264, 15
      %s269 = smul.addr %s266, 16
      %s270 = sadd.s32 %s268, %s269
      %s271 = smul.addr %s270, 4
      %s272 = scalar_lea.vmem %s0, %s271
      %s273 = smul.u32 16, %s22
      %p274 = scmp.lt.s32.totalorder %s21, 1
      %s275 = scalar_select %p274, %s21, 1
      %s276 = smul.addr %s275, 8
      %s277 = scalar_lea.vmem %s6, %s276
      %p278 = scmp.eq.s32.totalorder %s22, 0
      // Predicated region
      $region45: #{fe_forward.15} parent=43 // pred_check
        %p279 = pneg %p278
      $region46: #{fe_forward.15} parent=43 // pred_check_branch
        %281 = sbr.rel (%p279) target = $region48
      $region47: #{fe_forward.15} parent=43 // pred_region
        %282 = vst [vmem:[#allocation2] sm:$0xff] -inf
      $region48: #{fe_forward.15} parent=43 // pred_fallthru
        _
      %v283 = vld [vmem:[%s272] sm:$0xf]
      %v284 = vld [vmem:[%s272 + $0x4] sm:$0xf]
      %v285 = vld [vmem:[%s272 + $0x8] sm:$0xf]
      %v286 = vld [vmem:[%s272 + $0xc] sm:$0xf]
      %v287 = vld [vmem:[%s272 + $0x10] sm:$0xf]
      %v288 = vld [vmem:[%s272 + $0x14] sm:$0xf]
      %v289 = vld [vmem:[%s272 + $0x18] sm:$0xf]
      %v290 = vld [vmem:[%s272 + $0x1c] sm:$0xf]
      %v291 = vld [vmem:[%s272 + $0x20] sm:$0xf]
      %v292 = vld [vmem:[%s272 + $0x24] sm:$0xf]
      %v293 = vld [vmem:[%s272 + $0x28] sm:$0xf]
      %v294 = vld [vmem:[%s272 + $0x2c] sm:$0xf]
      %v295 = vld [vmem:[%s272 + $0x30] sm:$0xf]
      %v296 = vld [vmem:[%s272 + $0x34] sm:$0xf]
      %v297 = vld [vmem:[%s272 + $0x38] sm:$0xf]
      %v298 = vld [vmem:[%s272 + $0x3c] sm:$0xf]
      %v299 = vld [vmem:[%s1] sm:$0xf]
      %v300 = vld [vmem:[%s1 + $0x4] sm:$0xf]
      %v301 = vld [vmem:[%s1 + $0x8] sm:$0xf]
      %v302 = vld [vmem:[%s1 + $0xc] sm:$0xf]
      %v303 = vld [vmem:[%s1 + $0x10] sm:$0xf]
      %v304 = vld [vmem:[%s1 + $0x14] sm:$0xf]
      %v305 = vld [vmem:[%s1 + $0x18] sm:$0xf]
      %v306 = vld [vmem:[%s1 + $0x1c] sm:$0xf]
      %v307 = vld [vmem:[%s1 + $0x20] sm:$0xf]
      %v308 = vld [vmem:[%s1 + $0x24] sm:$0xf]
      %v309 = vld [vmem:[%s1 + $0x28] sm:$0xf]
      %v310 = vld [vmem:[%s1 + $0x2c] sm:$0xf]
      %v311 = vld [vmem:[%s1 + $0x30] sm:$0xf]
      %v312 = vld [vmem:[%s1 + $0x34] sm:$0xf]
      %v313 = vld [vmem:[%s1 + $0x38] sm:$0xf]
      %v314 = vld [vmem:[%s1 + $0x3c] sm:$0xf]
      %v315 = vld [vmem:[%s2] sm:$0x1]
      %v317 = vperm.slane %v315, 0
      %v335 = vunpack.c.l.b16 %v283
      %v336 = vunpack.c.l.b16 %v284
      %v337 = vunpack.c.l.b16 %v285
      %v338 = vunpack.c.l.b16 %v286
      %v339 = vunpack.c.l.b16 %v287
      %v340 = vunpack.c.l.b16 %v288
      %v341 = vunpack.c.l.b16 %v289
      %v342 = vunpack.c.l.b16 %v290
      %v343 = vunpack.c.l.b16 %v291
      %v344 = vunpack.c.l.b16 %v292
      %v345 = vunpack.c.l.b16 %v293
      %v346 = vunpack.c.l.b16 %v294
      %v347 = vunpack.c.l.b16 %v295
      %v348 = vunpack.c.l.b16 %v296
      %v349 = vunpack.c.l.b16 %v297
      %v350 = vunpack.c.l.b16 %v298
      %v351 = vpack.c.b16 %v336, %v335
      %v352 = vpack.c.b16 %v338, %v337
      %v353 = vpack.c.b16 %v340, %v339
      %v354 = vpack.c.b16 %v342, %v341
      %v355 = vpack.c.b16 %v344, %v343
      %v356 = vpack.c.b16 %v346, %v345
      %v357 = vpack.c.b16 %v348, %v347
      %v358 = vpack.c.b16 %v350, %v349
      %v383 = vunpack.c.l.b16 %v299
      %v384 = vunpack.c.l.b16 %v300
      %v385 = vunpack.c.l.b16 %v301
      %v386 = vunpack.c.l.b16 %v302
      %v387 = vunpack.c.l.b16 %v303
      %v388 = vunpack.c.l.b16 %v304
      %v389 = vunpack.c.l.b16 %v305
      %v390 = vunpack.c.l.b16 %v306
      %v391 = vunpack.c.l.b16 %v307
      %v392 = vunpack.c.l.b16 %v308
      %v393 = vunpack.c.l.b16 %v309
      %v394 = vunpack.c.l.b16 %v310
      %v395 = vunpack.c.l.b16 %v311
      %v396 = vunpack.c.l.b16 %v312
      %v397 = vunpack.c.l.b16 %v313
      %v398 = vunpack.c.l.b16 %v314
      %v399 = vpack.c.b16 %v384, %v383
      %v400 = vpack.c.b16 %v386, %v385
      %v401 = vpack.c.b16 %v388, %v387
      %v402 = vpack.c.b16 %v390, %v389
      %v403 = vpack.c.b16 %v392, %v391
      %v404 = vpack.c.b16 %v394, %v393
      %v405 = vpack.c.b16 %v396, %v395
      %v406 = vpack.c.b16 %v398, %v397
      %415 = vmatpush.bf16.msra.mxu0 %v406
      %416 = vmatpush.bf16.msra.mxu0 %v405
      %417 = vmatpush.bf16.msra.mxu0 %v404
      %418 = vmatpush.bf16.msra.mxu0 %v403
      %419 = vmatpush.bf16.msra.mxu0 %v402
      %420 = vmatpush.bf16.msra.mxu0 %v401
      %421 = vmatpush.bf16.msra.mxu0 %v400
      %422 = vmatpush.bf16.msra.mxu0 %v399
      %423 = vmatmul.bf16.gmra.mxu0 %v351
      %v424 = vpop.f32.mrf.mxu0
      %v425 = vadd.f32 %v317, %v424
      %v426 = vpop.f32.mrf.mxu0
      %v427 = vadd.f32 %v317, %v426
      %428 = vmatmul.bf16.gmra.mxu0 %v352
      %v429 = vpop.f32.mrf.mxu0
      %v430 = vadd.f32 %v317, %v429
      %v431 = vpop.f32.mrf.mxu0
      %v432 = vadd.f32 %v317, %v431
      %433 = vmatmul.bf16.gmra.mxu0 %v353
      %v434 = vpop.f32.mrf.mxu0
      %v435 = vadd.f32 %v317, %v434
      %v436 = vpop.f32.mrf.mxu0
      %v437 = vadd.f32 %v317, %v436
      %438 = vmatmul.bf16.gmra.mxu0 %v354
      %v439 = vpop.f32.mrf.mxu0
      %v440 = vadd.f32 %v317, %v439
      %v441 = vpop.f32.mrf.mxu0
      %v442 = vadd.f32 %v317, %v441
      %443 = vmatmul.bf16.gmra.mxu0 %v355
      %v444 = vpop.f32.mrf.mxu0
      %v445 = vadd.f32 %v317, %v444
      %v446 = vpop.f32.mrf.mxu0
      %v447 = vadd.f32 %v317, %v446
      %448 = vmatmul.bf16.gmra.mxu0 %v356
      %v449 = vpop.f32.mrf.mxu0
      %v450 = vadd.f32 %v317, %v449
      %v451 = vpop.f32.mrf.mxu0
      %v452 = vadd.f32 %v317, %v451
      %453 = vmatmul.bf16.gmra.mxu0 %v357
      %v454 = vpop.f32.mrf.mxu0
      %v455 = vadd.f32 %v317, %v454
      %v456 = vpop.f32.mrf.mxu0
      %v457 = vadd.f32 %v317, %v456
      %458 = vmatmul.bf16.gmra.mxu0 %v358
      %v459 = vpop.f32.mrf.mxu0
      %v460 = vadd.f32 %v317, %v459
      %v461 = vpop.f32.mrf.mxu0
      %v462 = vadd.f32 %v317, %v461
      %463 = vdwg.mxu0
      %v464 = vmax.f32 %v425, 0.0
      %v465 = vmax.f32 %v427, 0.0
      %v466 = vmax.f32 %v430, 0.0
      %v467 = vmax.f32 %v432, 0.0
      %v468 = vmax.f32 %v435, 0.0
      %v469 = vmax.f32 %v437, 0.0
      %v470 = vmax.f32 %v440, 0.0
      %v471 = vmax.f32 %v442, 0.0
      %v472 = vmax.f32 %v445, 0.0
      %v473 = vmax.f32 %v447, 0.0
      %v474 = vmax.f32 %v450, 0.0
      %v475 = vmax.f32 %v452, 0.0
      %v476 = vmax.f32 %v455, 0.0
      %v477 = vmax.f32 %v457, 0.0
      %v478 = vmax.f32 %v460, 0.0
      %v479 = vmax.f32 %v462, 0.0
      %v480 = vld [vmem:[%s4] sm:$0x77]
      %v481 = vld [vmem:[%s4 + $0x8] sm:$0x77]
      %v482 = vld [vmem:[%s4 + $0x10] sm:$0x77]
      %v483 = vld [vmem:[%s4 + $0x18] sm:$0x77]
      %v484 = vpack.c.bf16 %v465, %v464
      %v485 = vpack.c.bf16 %v467, %v466
      %v486 = vpack.c.bf16 %v469, %v468
      %v487 = vpack.c.bf16 %v471, %v470
      %v488 = vpack.c.bf16 %v473, %v472
      %v489 = vpack.c.bf16 %v475, %v474
      %v490 = vpack.c.bf16 %v477, %v476
      %v491 = vpack.c.bf16 %v479, %v478
      %v492 = vld [vmem:[%s3] sm:$0xff]
      %v493 = vld [vmem:[%s3 + $0x8] sm:$0xff]
      %v494 = vld [vmem:[%s3 + $0x10] sm:$0xff]
      %v495 = vld [vmem:[%s3 + $0x18] sm:$0xff]
      %v496 = vld [vmem:[%s3 + $0x20] sm:$0xff]
      %v497 = vld [vmem:[%s3 + $0x28] sm:$0xff]
      %v498 = vld [vmem:[%s3 + $0x30] sm:$0xff]
      %v499 = vld [vmem:[%s3 + $0x38] sm:$0xff]
      %v500 = vld [vmem:[%s3 + $0x40] sm:$0xff]
      %v501 = vld [vmem:[%s3 + $0x48] sm:$0xff]
      %v502 = vld [vmem:[%s3 + $0x50] sm:$0xff]
      %v503 = vld [vmem:[%s3 + $0x58] sm:$0xff]
      %v504 = vld [vmem:[%s3 + $0x60] sm:$0xff]
      %v505 = vld [vmem:[%s3 + $0x68] sm:$0xff]
      %v506 = vld [vmem:[%s3 + $0x70] sm:$0xff]
      %v507 = vld [vmem:[%s3 + $0x78] sm:$0xff]
      %v508 = vld [vmem:[%s3 + $0x80] sm:$0xff]
      %v509 = vld [vmem:[%s3 + $0x88] sm:$0xff]
      %v510 = vld [vmem:[%s3 + $0x90] sm:$0xff]
      %v511 = vld [vmem:[%s3 + $0x98] sm:$0xff]
      %v512 = vld [vmem:[%s3 + $0xa0] sm:$0xff]
      %v513 = vld [vmem:[%s3 + $0xa8] sm:$0xff]
      %v514 = vld [vmem:[%s3 + $0xb0] sm:$0xff]
      %v515 = vld [vmem:[%s3 + $0xb8] sm:$0xff]
      %v516 = vld [vmem:[%s3 + $0xc0] sm:$0xff]
      %v517 = vld [vmem:[%s3 + $0xc8] sm:$0xff]
      %v518 = vld [vmem:[%s3 + $0xd0] sm:$0xff]
      %v519 = vld [vmem:[%s3 + $0xd8] sm:$0xff]
      %v520 = vld [vmem:[%s3 + $0xe0] sm:$0xff]
      %v521 = vld [vmem:[%s3 + $0xe8] sm:$0xff]
      %v522 = vld [vmem:[%s3 + $0xf0] sm:$0xff]
      %v523 = vld [vmem:[%s3 + $0xf8] sm:$0xff]
      %v524 = vld [vmem:[%s3 + $0x100] sm:$0xff]
      %v525 = vld [vmem:[%s3 + $0x108] sm:$0xff]
      %v526 = vld [vmem:[%s3 + $0x110] sm:$0xff]
      %v527 = vld [vmem:[%s3 + $0x118] sm:$0xff]
      %v528 = vld [vmem:[%s3 + $0x120] sm:$0xff]
      %v529 = vld [vmem:[%s3 + $0x128] sm:$0xff]
      %v530 = vld [vmem:[%s3 + $0x130] sm:$0xff]
      %v531 = vld [vmem:[%s3 + $0x138] sm:$0xff]
      %v532 = vld [vmem:[%s3 + $0x140] sm:$0xff]
      %v533 = vld [vmem:[%s3 + $0x148] sm:$0xff]
      %v534 = vld [vmem:[%s3 + $0x150] sm:$0xff]
      %v535 = vld [vmem:[%s3 + $0x158] sm:$0xff]
      %v536 = vld [vmem:[%s3 + $0x160] sm:$0xff]
      %v537 = vld [vmem:[%s3 + $0x168] sm:$0xff]
      %v538 = vld [vmem:[%s3 + $0x170] sm:$0xff]
      %v539 = vld [vmem:[%s3 + $0x178] sm:$0xff]
      %v540 = vld [vmem:[%s3 + $0x180] sm:$0xff]
      %v541 = vld [vmem:[%s3 + $0x188] sm:$0xff]
      %v542 = vld [vmem:[%s3 + $0x190] sm:$0xff]
      %v543 = vld [vmem:[%s3 + $0x198] sm:$0xff]
      %v544 = vld [vmem:[%s3 + $0x1a0] sm:$0xff]
      %v545 = vld [vmem:[%s3 + $0x1a8] sm:$0xff]
      %v546 = vld [vmem:[%s3 + $0x1b0] sm:$0xff]
      %v547 = vld [vmem:[%s3 + $0x1b8] sm:$0xff]
      %v548 = vld [vmem:[%s3 + $0x1c0] sm:$0xff]
      %v549 = vld [vmem:[%s3 + $0x1c8] sm:$0xff]
      %v550 = vld [vmem:[%s3 + $0x1d0] sm:$0xff]
      %v551 = vld [vmem:[%s3 + $0x1d8] sm:$0xff]
      %v552 = vld [vmem:[%s3 + $0x1e0] sm:$0xff]
      %v553 = vld [vmem:[%s3 + $0x1e8] sm:$0xff]
      %v554 = vld [vmem:[%s3 + $0x1f0] sm:$0xff]
      %v555 = vld [vmem:[%s3 + $0x1f8] sm:$0xff]
      %v560 = vperm.slane %v480, 0
      %v561 = vperm.slane %v480, 4
      %v562 = vperm.slane %v481, 0
      %v563 = vperm.slane %v481, 4
      %v564 = vperm.slane %v482, 0
      %v565 = vperm.slane %v482, 4
      %v566 = vperm.slane %v483, 0
      %v567 = vperm.slane %v483, 4
      %v576 = vperm.slane %v560, 0
      %v577 = vperm.slane %v561, 0
      %v578 = vperm.slane %v562, 0
      %v579 = vperm.slane %v563, 0
      %v580 = vperm.slane %v564, 0
      %v581 = vperm.slane %v565, 0
      %v582 = vperm.slane %v566, 0
      %v583 = vperm.slane %v567, 0
      %v648 = vunpack.c.l.b16 %v492
      %v649 = vunpack.c.h.b16 %v492
      %v650 = vunpack.c.l.b16 %v493
      %v651 = vunpack.c.h.b16 %v493
      %v652 = vunpack.c.l.b16 %v494
      %v653 = vunpack.c.h.b16 %v494
      %v654 = vunpack.c.l.b16 %v495
      %v655 = vunpack.c.h.b16 %v495
      %v656 = vunpack.c.l.b16 %v496
      %v657 = vunpack.c.h.b16 %v496
      %v658 = vunpack.c.l.b16 %v497
      %v659 = vunpack.c.h.b16 %v497
      %v660 = vunpack.c.l.b16 %v498
      %v661 = vunpack.c.h.b16 %v498
      %v662 = vunpack.c.l.b16 %v499
      %v663 = vunpack.c.h.b16 %v499
      %v664 = vunpack.c.l.b16 %v500
      %v665 = vunpack.c.h.b16 %v500
      %v666 = vunpack.c.l.b16 %v501
      %v667 = vunpack.c.h.b16 %v501
      %v668 = vunpack.c.l.b16 %v502
      %v669 = vunpack.c.h.b16 %v502
      %v670 = vunpack.c.l.b16 %v503
      %v671 = vunpack.c.h.b16 %v503
      %v672 = vunpack.c.l.b16 %v504
      %v673 = vunpack.c.h.b16 %v504
      %v674 = vunpack.c.l.b16 %v505
      %v675 = vunpack.c.h.b16 %v505
      %v676 = vunpack.c.l.b16 %v506
      %v677 = vunpack.c.h.b16 %v506
      %v678 = vunpack.c.l.b16 %v507
      %v679 = vunpack.c.h.b16 %v507
      %v680 = vunpack.c.l.b16 %v508
      %v681 = vunpack.c.h.b16 %v508
      %v682 = vunpack.c.l.b16 %v509
      %v683 = vunpack.c.h.b16 %v509
      %v684 = vunpack.c.l.b16 %v510
      %v685 = vunpack.c.h.b16 %v510
      %v686 = vunpack.c.l.b16 %v511
      %v687 = vunpack.c.h.b16 %v511
      %v688 = vunpack.c.l.b16 %v512
      %v689 = vunpack.c.h.b16 %v512
      %v690 = vunpack.c.l.b16 %v513
      %v691 = vunpack.c.h.b16 %v513
      %v692 = vunpack.c.l.b16 %v514
      %v693 = vunpack.c.h.b16 %v514
      %v694 = vunpack.c.l.b16 %v515
      %v695 = vunpack.c.h.b16 %v515
      %v696 = vunpack.c.l.b16 %v516
      %v697 = vunpack.c.h.b16 %v516
      %v698 = vunpack.c.l.b16 %v517
      %v699 = vunpack.c.h.b16 %v517
      %v700 = vunpack.c.l.b16 %v518
      %v701 = vunpack.c.h.b16 %v518
      %v702 = vunpack.c.l.b16 %v519
      %v703 = vunpack.c.h.b16 %v519
      %v704 = vunpack.c.l.b16 %v520
      %v705 = vunpack.c.h.b16 %v520
      %v706 = vunpack.c.l.b16 %v521
      %v707 = vunpack.c.h.b16 %v521
      %v708 = vunpack.c.l.b16 %v522
      %v709 = vunpack.c.h.b16 %v522
      %v710 = vunpack.c.l.b16 %v523
      %v711 = vunpack.c.h.b16 %v523
      %v712 = vunpack.c.l.b16 %v524
      %v713 = vunpack.c.h.b16 %v524
      %v714 = vunpack.c.l.b16 %v525
      %v715 = vunpack.c.h.b16 %v525
      %v716 = vunpack.c.l.b16 %v526
      %v717 = vunpack.c.h.b16 %v526
      %v718 = vunpack.c.l.b16 %v527
      %v719 = vunpack.c.h.b16 %v527
      %v720 = vunpack.c.l.b16 %v528
      %v721 = vunpack.c.h.b16 %v528
      %v722 = vunpack.c.l.b16 %v529
      %v723 = vunpack.c.h.b16 %v529
      %v724 = vunpack.c.l.b16 %v530
      %v725 = vunpack.c.h.b16 %v530
      %v726 = vunpack.c.l.b16 %v531
      %v727 = vunpack.c.h.b16 %v531
      %v728 = vunpack.c.l.b16 %v532
      %v729 = vunpack.c.h.b16 %v532
      %v730 = vunpack.c.l.b16 %v533
      %v731 = vunpack.c.h.b16 %v533
      %v732 = vunpack.c.l.b16 %v534
      %v733 = vunpack.c.h.b16 %v534
      %v734 = vunpack.c.l.b16 %v535
      %v735 = vunpack.c.h.b16 %v535
      %v736 = vunpack.c.l.b16 %v536
      %v737 = vunpack.c.h.b16 %v536
      %v738 = vunpack.c.l.b16 %v537
      %v739 = vunpack.c.h.b16 %v537
      %v740 = vunpack.c.l.b16 %v538
      %v741 = vunpack.c.h.b16 %v538
      %v742 = vunpack.c.l.b16 %v539
      %v743 = vunpack.c.h.b16 %v539
      %v744 = vunpack.c.l.b16 %v540
      %v745 = vunpack.c.h.b16 %v540
      %v746 = vunpack.c.l.b16 %v541
      %v747 = vunpack.c.h.b16 %v541
      %v748 = vunpack.c.l.b16 %v542
      %v749 = vunpack.c.h.b16 %v542
      %v750 = vunpack.c.l.b16 %v543
      %v751 = vunpack.c.h.b16 %v543
      %v752 = vunpack.c.l.b16 %v544
      %v753 = vunpack.c.h.b16 %v544
      %v754 = vunpack.c.l.b16 %v545
      %v755 = vunpack.c.h.b16 %v545
      %v756 = vunpack.c.l.b16 %v546
      %v757 = vunpack.c.h.b16 %v546
      %v758 = vunpack.c.l.b16 %v547
      %v759 = vunpack.c.h.b16 %v547
      %v760 = vunpack.c.l.b16 %v548
      %v761 = vunpack.c.h.b16 %v548
      %v762 = vunpack.c.l.b16 %v549
      %v763 = vunpack.c.h.b16 %v549
      %v764 = vunpack.c.l.b16 %v550
      %v765 = vunpack.c.h.b16 %v550
      %v766 = vunpack.c.l.b16 %v551
      %v767 = vunpack.c.h.b16 %v551
      %v768 = vunpack.c.l.b16 %v552
      %v769 = vunpack.c.h.b16 %v552
      %v770 = vunpack.c.l.b16 %v553
      %v771 = vunpack.c.h.b16 %v553
      %v772 = vunpack.c.l.b16 %v554
      %v773 = vunpack.c.h.b16 %v554
      %v774 = vunpack.c.l.b16 %v555
      %v775 = vunpack.c.h.b16 %v555
      %v776 = vpack.c.b16 %v656, %v648
      %v777 = vpack.c.b16 %v657, %v649
      %v778 = vpack.c.b16 %v658, %v650
      %v779 = vpack.c.b16 %v659, %v651
      %v780 = vpack.c.b16 %v660, %v652
      %v781 = vpack.c.b16 %v661, %v653
      %v782 = vpack.c.b16 %v662, %v654
      %v783 = vpack.c.b16 %v663, %v655
      %v784 = vpack.c.b16 %v672, %v664
      %v785 = vpack.c.b16 %v673, %v665
      %v786 = vpack.c.b16 %v674, %v666
      %v787 = vpack.c.b16 %v675, %v667
      %v788 = vpack.c.b16 %v676, %v668
      %v789 = vpack.c.b16 %v677, %v669
      %v790 = vpack.c.b16 %v678, %v670
      %v791 = vpack.c.b16 %v679, %v671
      %v792 = vpack.c.b16 %v688, %v680
      %v793 = vpack.c.b16 %v689, %v681
      %v794 = vpack.c.b16 %v690, %v682
      %v795 = vpack.c.b16 %v691, %v683
      %v796 = vpack.c.b16 %v692, %v684
      %v797 = vpack.c.b16 %v693, %v685
      %v798 = vpack.c.b16 %v694, %v686
      %v799 = vpack.c.b16 %v695, %v687
      %v800 = vpack.c.b16 %v704, %v696
      %v801 = vpack.c.b16 %v705, %v697
      %v802 = vpack.c.b16 %v706, %v698
      %v803 = vpack.c.b16 %v707, %v699
      %v804 = vpack.c.b16 %v708, %v700
      %v805 = vpack.c.b16 %v709, %v701
      %v806 = vpack.c.b16 %v710, %v702
      %v807 = vpack.c.b16 %v711, %v703
      %v808 = vpack.c.b16 %v720, %v712
      %v809 = vpack.c.b16 %v721, %v713
      %v810 = vpack.c.b16 %v722, %v714
      %v811 = vpack.c.b16 %v723, %v715
      %v812 = vpack.c.b16 %v724, %v716
      %v813 = vpack.c.b16 %v725, %v717
      %v814 = vpack.c.b16 %v726, %v718
      %v815 = vpack.c.b16 %v727, %v719
      %v816 = vpack.c.b16 %v736, %v728
      %v817 = vpack.c.b16 %v737, %v729
      %v818 = vpack.c.b16 %v738, %v730
      %v819 = vpack.c.b16 %v739, %v731
      %v820 = vpack.c.b16 %v740, %v732
      %v821 = vpack.c.b16 %v741, %v733
      %v822 = vpack.c.b16 %v742, %v734
      %v823 = vpack.c.b16 %v743, %v735
      %v824 = vpack.c.b16 %v752, %v744
      %v825 = vpack.c.b16 %v753, %v745
      %v826 = vpack.c.b16 %v754, %v746
      %v827 = vpack.c.b16 %v755, %v747
      %v828 = vpack.c.b16 %v756, %v748
      %v829 = vpack.c.b16 %v757, %v749
      %v830 = vpack.c.b16 %v758, %v750
      %v831 = vpack.c.b16 %v759, %v751
      %v832 = vpack.c.b16 %v768, %v760
      %v833 = vpack.c.b16 %v769, %v761
      %v834 = vpack.c.b16 %v770, %v762
      %v835 = vpack.c.b16 %v771, %v763
      %v836 = vpack.c.b16 %v772, %v764
      %v837 = vpack.c.b16 %v773, %v765
      %v838 = vpack.c.b16 %v774, %v766
      %v839 = vpack.c.b16 %v775, %v767
      %904 = vmatpush.bf16.msra.mxu0 %v832
      %905 = vmatpush.bf16.msra.mxu0 %v824
      %906 = vmatpush.bf16.msra.mxu0 %v816
      %907 = vmatpush.bf16.msra.mxu0 %v808
      %908 = vmatpush.bf16.msra.mxu0 %v800
      %909 = vmatpush.bf16.msra.mxu0 %v792
      %910 = vmatpush.bf16.msra.mxu0 %v784
      %911 = vmatpush.bf16.msra.mxu0 %v776
      %912 = vmatmul.bf16.gmra.mxu0 %v484
      %v913 = vpop.f32.mrf.mxu0
      %v914 = vadd.f32 %v576, %v913
      %v915 = vpop.f32.mrf.mxu0
      %v916 = vadd.f32 %v576, %v915
      %917 = vmatmul.bf16.gmra.mxu0 %v485
      %v918 = vpop.f32.mrf.mxu0
      %v919 = vadd.f32 %v576, %v918
      %v920 = vpop.f32.mrf.mxu0
      %v921 = vadd.f32 %v576, %v920
      %922 = vmatmul.bf16.gmra.mxu0 %v486
      %v923 = vpop.f32.mrf.mxu0
      %v924 = vadd.f32 %v576, %v923
      %v925 = vpop.f32.mrf.mxu0
      %v926 = vadd.f32 %v576, %v925
      %927 = vmatmul.bf16.gmra.mxu0 %v487
      %v928 = vpop.f32.mrf.mxu0
      %v929 = vadd.f32 %v576, %v928
      %v930 = vpop.f32.mrf.mxu0
      %v931 = vadd.f32 %v576, %v930
      %932 = vmatmul.bf16.gmra.mxu0 %v488
      %v933 = vpop.f32.mrf.mxu0
      %v934 = vadd.f32 %v576, %v933
      %v935 = vpop.f32.mrf.mxu0
      %v936 = vadd.f32 %v576, %v935
      %937 = vmatmul.bf16.gmra.mxu0 %v489
      %v938 = vpop.f32.mrf.mxu0
      %v939 = vadd.f32 %v576, %v938
      %v940 = vpop.f32.mrf.mxu0
      %v941 = vadd.f32 %v576, %v940
      %942 = vmatmul.bf16.gmra.mxu0 %v490
      %v943 = vpop.f32.mrf.mxu0
      %v944 = vadd.f32 %v576, %v943
      %v945 = vpop.f32.mrf.mxu0
      %v946 = vadd.f32 %v576, %v945
      %947 = vmatmul.bf16.gmra.mxu0 %v491
      %v948 = vpop.f32.mrf.mxu0
      %v949 = vadd.f32 %v576, %v948
      %v950 = vpop.f32.mrf.mxu0
      %v951 = vadd.f32 %v576, %v950
      %952 = vdwg.mxu0
      %953 = vmatpush.bf16.msra.mxu0 %v833
      %954 = vmatpush.bf16.msra.mxu0 %v825
      %955 = vmatpush.bf16.msra.mxu0 %v817
      %956 = vmatpush.bf16.msra.mxu0 %v809
      %957 = vmatpush.bf16.msra.mxu0 %v801
      %958 = vmatpush.bf16.msra.mxu0 %v793
      %959 = vmatpush.bf16.msra.mxu0 %v785
      %960 = vmatpush.bf16.msra.mxu0 %v777
      %961 = vmatmul.bf16.gmra.mxu0 %v484
      %v962 = vpop.f32.mrf.mxu0
      %v963 = vadd.f32 %v577, %v962
      %v964 = vpop.f32.mrf.mxu0
      %v965 = vadd.f32 %v577, %v964
      %966 = vmatmul.bf16.gmra.mxu0 %v485
      %v967 = vpop.f32.mrf.mxu0
      %v968 = vadd.f32 %v577, %v967
      %v969 = vpop.f32.mrf.mxu0
      %v970 = vadd.f32 %v577, %v969
      %971 = vmatmul.bf16.gmra.mxu0 %v486
      %v972 = vpop.f32.mrf.mxu0
      %v973 = vadd.f32 %v577, %v972
      %v974 = vpop.f32.mrf.mxu0
      %v975 = vadd.f32 %v577, %v974
      %976 = vmatmul.bf16.gmra.mxu0 %v487
      %v977 = vpop.f32.mrf.mxu0
      %v978 = vadd.f32 %v577, %v977
      %v979 = vpop.f32.mrf.mxu0
      %v980 = vadd.f32 %v577, %v979
      %981 = vmatmul.bf16.gmra.mxu0 %v488
      %v982 = vpop.f32.mrf.mxu0
      %v983 = vadd.f32 %v577, %v982
      %v984 = vpop.f32.mrf.mxu0
      %v985 = vadd.f32 %v577, %v984
      %986 = vmatmul.bf16.gmra.mxu0 %v489
      %v987 = vpop.f32.mrf.mxu0
      %v988 = vadd.f32 %v577, %v987
      %v989 = vpop.f32.mrf.mxu0
      %v990 = vadd.f32 %v577, %v989
      %991 = vmatmul.bf16.gmra.mxu0 %v490
      %v992 = vpop.f32.mrf.mxu0
      %v993 = vadd.f32 %v577, %v992
      %v994 = vpop.f32.mrf.mxu0
      %v995 = vadd.f32 %v577, %v994
      %996 = vmatmul.bf16.gmra.mxu0 %v491
      %v997 = vpop.f32.mrf.mxu0
      %v998 = vadd.f32 %v577, %v997
      %v999 = vpop.f32.mrf.mxu0
      %v1000 = vadd.f32 %v577, %v999
      %1001 = vdwg.mxu0
      %1002 = vmatpush.bf16.msra.mxu0 %v834
      %1003 = vmatpush.bf16.msra.mxu0 %v826
      %1004 = vmatpush.bf16.msra.mxu0 %v818
      %1005 = vmatpush.bf16.msra.mxu0 %v810
      %1006 = vmatpush.bf16.msra.mxu0 %v802
      %1007 = vmatpush.bf16.msra.mxu0 %v794
      %1008 = vmatpush.bf16.msra.mxu0 %v786
      %1009 = vmatpush.bf16.msra.mxu0 %v778
      %1010 = vmatmul.bf16.gmra.mxu0 %v484
      %v1011 = vpop.f32.mrf.mxu0
      %v1012 = vadd.f32 %v578, %v1011
      %v1013 = vpop.f32.mrf.mxu0
      %v1014 = vadd.f32 %v578, %v1013
      %1015 = vmatmul.bf16.gmra.mxu0 %v485
      %v1016 = vpop.f32.mrf.mxu0
      %v1017 = vadd.f32 %v578, %v1016
      %v1018 = vpop.f32.mrf.mxu0
      %v1019 = vadd.f32 %v578, %v1018
      %1020 = vmatmul.bf16.gmra.mxu0 %v486
      %v1021 = vpop.f32.mrf.mxu0
      %v1022 = vadd.f32 %v578, %v1021
      %v1023 = vpop.f32.mrf.mxu0
      %v1024 = vadd.f32 %v578, %v1023
      %1025 = vmatmul.bf16.gmra.mxu0 %v487
      %v1026 = vpop.f32.mrf.mxu0
      %v1027 = vadd.f32 %v578, %v1026
      %v1028 = vpop.f32.mrf.mxu0
      %v1029 = vadd.f32 %v578, %v1028
      %1030 = vmatmul.bf16.gmra.mxu0 %v488
      %v1031 = vpop.f32.mrf.mxu0
      %v1032 = vadd.f32 %v578, %v1031
      %v1033 = vpop.f32.mrf.mxu0
      %v1034 = vadd.f32 %v578, %v1033
      %1035 = vmatmul.bf16.gmra.mxu0 %v489
      %v1036 = vpop.f32.mrf.mxu0
      %v1037 = vadd.f32 %v578, %v1036
      %v1038 = vpop.f32.mrf.mxu0
      %v1039 = vadd.f32 %v578, %v1038
      %1040 = vmatmul.bf16.gmra.mxu0 %v490
      %v1041 = vpop.f32.mrf.mxu0
      %v1042 = vadd.f32 %v578, %v1041
      %v1043 = vpop.f32.mrf.mxu0
      %v1044 = vadd.f32 %v578, %v1043
      %1045 = vmatmul.bf16.gmra.mxu0 %v491
      %v1046 = vpop.f32.mrf.mxu0
      %v1047 = vadd.f32 %v578, %v1046
      %v1048 = vpop.f32.mrf.mxu0
      %v1049 = vadd.f32 %v578, %v1048
      %1050 = vdwg.mxu0
      %1051 = vmatpush.bf16.msra.mxu0 %v835
      %1052 = vmatpush.bf16.msra.mxu0 %v827
      %1053 = vmatpush.bf16.msra.mxu0 %v819
      %1054 = vmatpush.bf16.msra.mxu0 %v811
      %1055 = vmatpush.bf16.msra.mxu0 %v803
      %1056 = vmatpush.bf16.msra.mxu0 %v795
      %1057 = vmatpush.bf16.msra.mxu0 %v787
      %1058 = vmatpush.bf16.msra.mxu0 %v779
      %1059 = vmatmul.bf16.gmra.mxu0 %v484
      %v1060 = vpop.f32.mrf.mxu0
      %v1061 = vadd.f32 %v579, %v1060
      %v1062 = vpop.f32.mrf.mxu0
      %v1063 = vadd.f32 %v579, %v1062
      %1064 = vmatmul.bf16.gmra.mxu0 %v485
      %v1065 = vpop.f32.mrf.mxu0
      %v1066 = vadd.f32 %v579, %v1065
      %v1067 = vpop.f32.mrf.mxu0
      %v1068 = vadd.f32 %v579, %v1067
      %1069 = vmatmul.bf16.gmra.mxu0 %v486
      %v1070 = vpop.f32.mrf.mxu0
      %v1071 = vadd.f32 %v579, %v1070
      %v1072 = vpop.f32.mrf.mxu0
      %v1073 = vadd.f32 %v579, %v1072
      %1074 = vmatmul.bf16.gmra.mxu0 %v487
      %v1075 = vpop.f32.mrf.mxu0
      %v1076 = vadd.f32 %v579, %v1075
      %v1077 = vpop.f32.mrf.mxu0
      %v1078 = vadd.f32 %v579, %v1077
      %1079 = vmatmul.bf16.gmra.mxu0 %v488
      %v1080 = vpop.f32.mrf.mxu0
      %v1081 = vadd.f32 %v579, %v1080
      %v1082 = vpop.f32.mrf.mxu0
      %v1083 = vadd.f32 %v579, %v1082
      %1084 = vmatmul.bf16.gmra.mxu0 %v489
      %v1085 = vpop.f32.mrf.mxu0
      %v1086 = vadd.f32 %v579, %v1085
      %v1087 = vpop.f32.mrf.mxu0
      %v1088 = vadd.f32 %v579, %v1087
      %1089 = vmatmul.bf16.gmra.mxu0 %v490
      %v1090 = vpop.f32.mrf.mxu0
      %v1091 = vadd.f32 %v579, %v1090
      %v1092 = vpop.f32.mrf.mxu0
      %v1093 = vadd.f32 %v579, %v1092
      %1094 = vmatmul.bf16.gmra.mxu0 %v491
      %v1095 = vpop.f32.mrf.mxu0
      %v1096 = vadd.f32 %v579, %v1095
      %v1097 = vpop.f32.mrf.mxu0
      %v1098 = vadd.f32 %v579, %v1097
      %1099 = vdwg.mxu0
      %1100 = vmatpush.bf16.msra.mxu0 %v836
      %1101 = vmatpush.bf16.msra.mxu0 %v828
      %1102 = vmatpush.bf16.msra.mxu0 %v820
      %1103 = vmatpush.bf16.msra.mxu0 %v812
      %1104 = vmatpush.bf16.msra.mxu0 %v804
      %1105 = vmatpush.bf16.msra.mxu0 %v796
      %1106 = vmatpush.bf16.msra.mxu0 %v788
      %1107 = vmatpush.bf16.msra.mxu0 %v780
      %1108 = vmatmul.bf16.gmra.mxu0 %v484
      %v1109 = vpop.f32.mrf.mxu0
      %v1110 = vadd.f32 %v580, %v1109
      %v1111 = vpop.f32.mrf.mxu0
      %v1112 = vadd.f32 %v580, %v1111
      %1113 = vmatmul.bf16.gmra.mxu0 %v485
      %v1114 = vpop.f32.mrf.mxu0
      %v1115 = vadd.f32 %v580, %v1114
      %v1116 = vpop.f32.mrf.mxu0
      %v1117 = vadd.f32 %v580, %v1116
      %1118 = vmatmul.bf16.gmra.mxu0 %v486
      %v1119 = vpop.f32.mrf.mxu0
      %v1120 = vadd.f32 %v580, %v1119
      %v1121 = vpop.f32.mrf.mxu0
      %v1122 = vadd.f32 %v580, %v1121
      %1123 = vmatmul.bf16.gmra.mxu0 %v487
      %v1124 = vpop.f32.mrf.mxu0
      %v1125 = vadd.f32 %v580, %v1124
      %v1126 = vpop.f32.mrf.mxu0
      %v1127 = vadd.f32 %v580, %v1126
      %1128 = vmatmul.bf16.gmra.mxu0 %v488
      %v1129 = vpop.f32.mrf.mxu0
      %v1130 = vadd.f32 %v580, %v1129
      %v1131 = vpop.f32.mrf.mxu0
      %v1132 = vadd.f32 %v580, %v1131
      %1133 = vmatmul.bf16.gmra.mxu0 %v489
      %v1134 = vpop.f32.mrf.mxu0
      %v1135 = vadd.f32 %v580, %v1134
      %v1136 = vpop.f32.mrf.mxu0
      %v1137 = vadd.f32 %v580, %v1136
      %1138 = vmatmul.bf16.gmra.mxu0 %v490
      %v1139 = vpop.f32.mrf.mxu0
      %v1140 = vadd.f32 %v580, %v1139
      %v1141 = vpop.f32.mrf.mxu0
      %v1142 = vadd.f32 %v580, %v1141
      %1143 = vmatmul.bf16.gmra.mxu0 %v491
      %v1144 = vpop.f32.mrf.mxu0
      %v1145 = vadd.f32 %v580, %v1144
      %v1146 = vpop.f32.mrf.mxu0
      %v1147 = vadd.f32 %v580, %v1146
      %1148 = vdwg.mxu0
      %1149 = vmatpush.bf16.msra.mxu0 %v837
      %1150 = vmatpush.bf16.msra.mxu0 %v829
      %1151 = vmatpush.bf16.msra.mxu0 %v821
      %1152 = vmatpush.bf16.msra.mxu0 %v813
      %1153 = vmatpush.bf16.msra.mxu0 %v805
      %1154 = vmatpush.bf16.msra.mxu0 %v797
      %1155 = vmatpush.bf16.msra.mxu0 %v789
      %1156 = vmatpush.bf16.msra.mxu0 %v781
      %1157 = vmatmul.bf16.gmra.mxu0 %v484
      %v1158 = vpop.f32.mrf.mxu0
      %v1159 = vadd.f32 %v581, %v1158
      %v1160 = vpop.f32.mrf.mxu0
      %v1161 = vadd.f32 %v581, %v1160
      %1162 = vmatmul.bf16.gmra.mxu0 %v485
      %v1163 = vpop.f32.mrf.mxu0
      %v1164 = vadd.f32 %v581, %v1163
      %v1165 = vpop.f32.mrf.mxu0
      %v1166 = vadd.f32 %v581, %v1165
      %1167 = vmatmul.bf16.gmra.mxu0 %v486
      %v1168 = vpop.f32.mrf.mxu0
      %v1169 = vadd.f32 %v581, %v1168
      %v1170 = vpop.f32.mrf.mxu0
      %v1171 = vadd.f32 %v581, %v1170
      %1172 = vmatmul.bf16.gmra.mxu0 %v487
      %v1173 = vpop.f32.mrf.mxu0
      %v1174 = vadd.f32 %v581, %v1173
      %v1175 = vpop.f32.mrf.mxu0
      %v1176 = vadd.f32 %v581, %v1175
      %1177 = vmatmul.bf16.gmra.mxu0 %v488
      %v1178 = vpop.f32.mrf.mxu0
      %v1179 = vadd.f32 %v581, %v1178
      %v1180 = vpop.f32.mrf.mxu0
      %v1181 = vadd.f32 %v581, %v1180
      %1182 = vmatmul.bf16.gmra.mxu0 %v489
      %v1183 = vpop.f32.mrf.mxu0
      %v1184 = vadd.f32 %v581, %v1183
      %v1185 = vpop.f32.mrf.mxu0
      %v1186 = vadd.f32 %v581, %v1185
      %1187 = vmatmul.bf16.gmra.mxu0 %v490
      %v1188 = vpop.f32.mrf.mxu0
      %v1189 = vadd.f32 %v581, %v1188
      %v1190 = vpop.f32.mrf.mxu0
      %v1191 = vadd.f32 %v581, %v1190
      %1192 = vmatmul.bf16.gmra.mxu0 %v491
      %v1193 = vpop.f32.mrf.mxu0
      %v1194 = vadd.f32 %v581, %v1193
      %v1195 = vpop.f32.mrf.mxu0
      %v1196 = vadd.f32 %v581, %v1195
      %1197 = vdwg.mxu0
      %1198 = vmatpush.bf16.msra.mxu0 %v838
      %1199 = vmatpush.bf16.msra.mxu0 %v830
      %1200 = vmatpush.bf16.msra.mxu0 %v822
      %1201 = vmatpush.bf16.msra.mxu0 %v814
      %1202 = vmatpush.bf16.msra.mxu0 %v806
      %1203 = vmatpush.bf16.msra.mxu0 %v798
      %1204 = vmatpush.bf16.msra.mxu0 %v790
      %1205 = vmatpush.bf16.msra.mxu0 %v782
      %1206 = vmatmul.bf16.gmra.mxu0 %v484
      %v1207 = vpop.f32.mrf.mxu0
      %v1208 = vadd.f32 %v582, %v1207
      %v1209 = vpop.f32.mrf.mxu0
      %v1210 = vadd.f32 %v582, %v1209
      %1211 = vmatmul.bf16.gmra.mxu0 %v485
      %v1212 = vpop.f32.mrf.mxu0
      %v1213 = vadd.f32 %v582, %v1212
      %v1214 = vpop.f32.mrf.mxu0
      %v1215 = vadd.f32 %v582, %v1214
      %1216 = vmatmul.bf16.gmra.mxu0 %v486
      %v1217 = vpop.f32.mrf.mxu0
      %v1218 = vadd.f32 %v582, %v1217
      %v1219 = vpop.f32.mrf.mxu0
      %v1220 = vadd.f32 %v582, %v1219
      %1221 = vmatmul.bf16.gmra.mxu0 %v487
      %v1222 = vpop.f32.mrf.mxu0
      %v1223 = vadd.f32 %v582, %v1222
      %v1224 = vpop.f32.mrf.mxu0
      %v1225 = vadd.f32 %v582, %v1224
      %1226 = vmatmul.bf16.gmra.mxu0 %v488
      %v1227 = vpop.f32.mrf.mxu0
      %v1228 = vadd.f32 %v582, %v1227
      %v1229 = vpop.f32.mrf.mxu0
      %v1230 = vadd.f32 %v582, %v1229
      %1231 = vmatmul.bf16.gmra.mxu0 %v489
      %v1232 = vpop.f32.mrf.mxu0
      %v1233 = vadd.f32 %v582, %v1232
      %v1234 = vpop.f32.mrf.mxu0
      %v1235 = vadd.f32 %v582, %v1234
      %1236 = vmatmul.bf16.gmra.mxu0 %v490
      %v1237 = vpop.f32.mrf.mxu0
      %v1238 = vadd.f32 %v582, %v1237
      %v1239 = vpop.f32.mrf.mxu0
      %v1240 = vadd.f32 %v582, %v1239
      %1241 = vmatmul.bf16.gmra.mxu0 %v491
      %v1242 = vpop.f32.mrf.mxu0
      %v1243 = vadd.f32 %v582, %v1242
      %v1244 = vpop.f32.mrf.mxu0
      %v1245 = vadd.f32 %v582, %v1244
      %1246 = vdwg.mxu0
      %1247 = vmatpush.bf16.msra.mxu0 %v839
      %1248 = vmatpush.bf16.msra.mxu0 %v831
      %1249 = vmatpush.bf16.msra.mxu0 %v823
      %1250 = vmatpush.bf16.msra.mxu0 %v815
      %1251 = vmatpush.bf16.msra.mxu0 %v807
      %1252 = vmatpush.bf16.msra.mxu0 %v799
      %1253 = vmatpush.bf16.msra.mxu0 %v791
      %1254 = vmatpush.bf16.msra.mxu0 %v783
      %1255 = vmatmul.bf16.gmra.mxu0 %v484
      %v1256 = vpop.f32.mrf.mxu0
      %v1257 = vadd.f32 %v583, %v1256
      %v1258 = vpop.f32.mrf.mxu0
      %v1259 = vadd.f32 %v583, %v1258
      %1260 = vmatmul.bf16.gmra.mxu0 %v485
      %v1261 = vpop.f32.mrf.mxu0
      %v1262 = vadd.f32 %v583, %v1261
      %v1263 = vpop.f32.mrf.mxu0
      %v1264 = vadd.f32 %v583, %v1263
      %1265 = vmatmul.bf16.gmra.mxu0 %v486
      %v1266 = vpop.f32.mrf.mxu0
      %v1267 = vadd.f32 %v583, %v1266
      %v1268 = vpop.f32.mrf.mxu0
      %v1269 = vadd.f32 %v583, %v1268
      %1270 = vmatmul.bf16.gmra.mxu0 %v487
      %v1271 = vpop.f32.mrf.mxu0
      %v1272 = vadd.f32 %v583, %v1271
      %v1273 = vpop.f32.mrf.mxu0
      %v1274 = vadd.f32 %v583, %v1273
      %1275 = vmatmul.bf16.gmra.mxu0 %v488
      %v1276 = vpop.f32.mrf.mxu0
      %v1277 = vadd.f32 %v583, %v1276
      %v1278 = vpop.f32.mrf.mxu0
      %v1279 = vadd.f32 %v583, %v1278
      %1280 = vmatmul.bf16.gmra.mxu0 %v489
      %v1281 = vpop.f32.mrf.mxu0
      %v1282 = vadd.f32 %v583, %v1281
      %v1283 = vpop.f32.mrf.mxu0
      %v1284 = vadd.f32 %v583, %v1283
      %1285 = vmatmul.bf16.gmra.mxu0 %v490
      %v1286 = vpop.f32.mrf.mxu0
      %v1287 = vadd.f32 %v583, %v1286
      %v1288 = vpop.f32.mrf.mxu0
      %v1289 = vadd.f32 %v583, %v1288
      %1290 = vmatmul.bf16.gmra.mxu0 %v491
      %v1291 = vpop.f32.mrf.mxu0
      %v1292 = vadd.f32 %v583, %v1291
      %v1293 = vpop.f32.mrf.mxu0
      %v1294 = vadd.f32 %v583, %v1293
      %1295 = vdwg.mxu0
      %v1296 = vmax.f32 %v914, 0.0
      %v1297 = vmax.f32 %v963, 0.0
      %v1298 = vmax.f32 %v1012, 0.0
      %v1299 = vmax.f32 %v1061, 0.0
      %v1300 = vmax.f32 %v1110, 0.0
      %v1301 = vmax.f32 %v1159, 0.0
      %v1302 = vmax.f32 %v1208, 0.0
      %v1303 = vmax.f32 %v1257, 0.0
      %v1304 = vmax.f32 %v916, 0.0
      %v1305 = vmax.f32 %v965, 0.0
      %v1306 = vmax.f32 %v1014, 0.0
      %v1307 = vmax.f32 %v1063, 0.0
      %v1308 = vmax.f32 %v1112, 0.0
      %v1309 = vmax.f32 %v1161, 0.0
      %v1310 = vmax.f32 %v1210, 0.0
      %v1311 = vmax.f32 %v1259, 0.0
      %v1312 = vmax.f32 %v919, 0.0
      %v1313 = vmax.f32 %v968, 0.0
      %v1314 = vmax.f32 %v1017, 0.0
      %v1315 = vmax.f32 %v1066, 0.0
      %v1316 = vmax.f32 %v1115, 0.0
      %v1317 = vmax.f32 %v1164, 0.0
      %v1318 = vmax.f32 %v1213, 0.0
      %v1319 = vmax.f32 %v1262, 0.0
      %v1320 = vmax.f32 %v921, 0.0
      %v1321 = vmax.f32 %v970, 0.0
      %v1322 = vmax.f32 %v1019, 0.0
      %v1323 = vmax.f32 %v1068, 0.0
      %v1324 = vmax.f32 %v1117, 0.0
      %v1325 = vmax.f32 %v1166, 0.0
      %v1326 = vmax.f32 %v1215, 0.0
      %v1327 = vmax.f32 %v1264, 0.0
      %v1328 = vmax.f32 %v924, 0.0
      %v1329 = vmax.f32 %v973, 0.0
      %v1330 = vmax.f32 %v1022, 0.0
      %v1331 = vmax.f32 %v1071, 0.0
      %v1332 = vmax.f32 %v1120, 0.0
      %v1333 = vmax.f32 %v1169, 0.0
      %v1334 = vmax.f32 %v1218, 0.0
      %v1335 = vmax.f32 %v1267, 0.0
      %v1336 = vmax.f32 %v926, 0.0
      %v1337 = vmax.f32 %v975, 0.0
      %v1338 = vmax.f32 %v1024, 0.0
      %v1339 = vmax.f32 %v1073, 0.0
      %v1340 = vmax.f32 %v1122, 0.0
      %v1341 = vmax.f32 %v1171, 0.0
      %v1342 = vmax.f32 %v1220, 0.0
      %v1343 = vmax.f32 %v1269, 0.0
      %v1344 = vmax.f32 %v929, 0.0
      %v1345 = vmax.f32 %v978, 0.0
      %v1346 = vmax.f32 %v1027, 0.0
      %v1347 = vmax.f32 %v1076, 0.0
      %v1348 = vmax.f32 %v1125, 0.0
      %v1349 = vmax.f32 %v1174, 0.0
      %v1350 = vmax.f32 %v1223, 0.0
      %v1351 = vmax.f32 %v1272, 0.0
      %v1352 = vmax.f32 %v931, 0.0
      %v1353 = vmax.f32 %v980, 0.0
      %v1354 = vmax.f32 %v1029, 0.0
      %v1355 = vmax.f32 %v1078, 0.0
      %v1356 = vmax.f32 %v1127, 0.0
      %v1357 = vmax.f32 %v1176, 0.0
      %v1358 = vmax.f32 %v1225, 0.0
      %v1359 = vmax.f32 %v1274, 0.0
      %v1360 = vmax.f32 %v934, 0.0
      %v1361 = vmax.f32 %v983, 0.0
      %v1362 = vmax.f32 %v1032, 0.0
      %v1363 = vmax.f32 %v1081, 0.0
      %v1364 = vmax.f32 %v1130, 0.0
      %v1365 = vmax.f32 %v1179, 0.0
      %v1366 = vmax.f32 %v1228, 0.0
      %v1367 = vmax.f32 %v1277, 0.0
      %v1368 = vmax.f32 %v936, 0.0
      %v1369 = vmax.f32 %v985, 0.0
      %v1370 = vmax.f32 %v1034, 0.0
      %v1371 = vmax.f32 %v1083, 0.0
      %v1372 = vmax.f32 %v1132, 0.0
      %v1373 = vmax.f32 %v1181, 0.0
      %v1374 = vmax.f32 %v1230, 0.0
      %v1375 = vmax.f32 %v1279, 0.0
      %v1376 = vmax.f32 %v939, 0.0
      %v1377 = vmax.f32 %v988, 0.0
      %v1378 = vmax.f32 %v1037, 0.0
      %v1379 = vmax.f32 %v1086, 0.0
      %v1380 = vmax.f32 %v1135, 0.0
      %v1381 = vmax.f32 %v1184, 0.0
      %v1382 = vmax.f32 %v1233, 0.0
      %v1383 = vmax.f32 %v1282, 0.0
      %v1384 = vmax.f32 %v941, 0.0
      %v1385 = vmax.f32 %v990, 0.0
      %v1386 = vmax.f32 %v1039, 0.0
      %v1387 = vmax.f32 %v1088, 0.0
      %v1388 = vmax.f32 %v1137, 0.0
      %v1389 = vmax.f32 %v1186, 0.0
      %v1390 = vmax.f32 %v1235, 0.0
      %v1391 = vmax.f32 %v1284, 0.0
      %v1392 = vmax.f32 %v944, 0.0
      %v1393 = vmax.f32 %v993, 0.0
      %v1394 = vmax.f32 %v1042, 0.0
      %v1395 = vmax.f32 %v1091, 0.0
      %v1396 = vmax.f32 %v1140, 0.0
      %v1397 = vmax.f32 %v1189, 0.0
      %v1398 = vmax.f32 %v1238, 0.0
      %v1399 = vmax.f32 %v1287, 0.0
      %v1400 = vmax.f32 %v946, 0.0
      %v1401 = vmax.f32 %v995, 0.0
      %v1402 = vmax.f32 %v1044, 0.0
      %v1403 = vmax.f32 %v1093, 0.0
      %v1404 = vmax.f32 %v1142, 0.0
      %v1405 = vmax.f32 %v1191, 0.0
      %v1406 = vmax.f32 %v1240, 0.0
      %v1407 = vmax.f32 %v1289, 0.0
      %v1408 = vmax.f32 %v949, 0.0
      %v1409 = vmax.f32 %v998, 0.0
      %v1410 = vmax.f32 %v1047, 0.0
      %v1411 = vmax.f32 %v1096, 0.0
      %v1412 = vmax.f32 %v1145, 0.0
      %v1413 = vmax.f32 %v1194, 0.0
      %v1414 = vmax.f32 %v1243, 0.0
      %v1415 = vmax.f32 %v1292, 0.0
      %v1416 = vmax.f32 %v951, 0.0
      %v1417 = vmax.f32 %v1000, 0.0
      %v1418 = vmax.f32 %v1049, 0.0
      %v1419 = vmax.f32 %v1098, 0.0
      %v1420 = vmax.f32 %v1147, 0.0
      %v1421 = vmax.f32 %v1196, 0.0
      %v1422 = vmax.f32 %v1245, 0.0
      %v1423 = vmax.f32 %v1294, 0.0
      %v1424 = vperm.slane %v480, 1
      %v1425 = vperm.slane %v480, 5
      %v1426 = vperm.slane %v481, 1
      %v1427 = vperm.slane %v481, 5
      %v1428 = vperm.slane %v482, 1
      %v1429 = vperm.slane %v482, 5
      %v1430 = vperm.slane %v483, 1
      %v1431 = vperm.slane %v483, 5
      %v1440 = vperm.slane %v1424, 1
      %v1441 = vperm.slane %v1425, 1
      %v1442 = vperm.slane %v1426, 1
      %v1443 = vperm.slane %v1427, 1
      %v1444 = vperm.slane %v1428, 1
      %v1445 = vperm.slane %v1429, 1
      %v1446 = vperm.slane %v1430, 1
      %v1447 = vperm.slane %v1431, 1
      %v1448 = vmul.f32 %v1296, %v1440
      %v1449 = vmul.f32 %v1297, %v1441
      %v1450 = vmul.f32 %v1298, %v1442
      %v1451 = vmul.f32 %v1299, %v1443
      %v1452 = vmul.f32 %v1300, %v1444
      %v1453 = vmul.f32 %v1301, %v1445
      %v1454 = vmul.f32 %v1302, %v1446
      %v1455 = vmul.f32 %v1303, %v1447
      %v1456 = vmul.f32 %v1304, %v1440
      %v1457 = vmul.f32 %v1305, %v1441
      %v1458 = vmul.f32 %v1306, %v1442
      %v1459 = vmul.f32 %v1307, %v1443
      %v1460 = vmul.f32 %v1308, %v1444
      %v1461 = vmul.f32 %v1309, %v1445
      %v1462 = vmul.f32 %v1310, %v1446
      %v1463 = vmul.f32 %v1311, %v1447
      %v1464 = vmul.f32 %v1312, %v1440
      %v1465 = vmul.f32 %v1313, %v1441
      %v1466 = vmul.f32 %v1314, %v1442
      %v1467 = vmul.f32 %v1315, %v1443
      %v1468 = vmul.f32 %v1316, %v1444
      %v1469 = vmul.f32 %v1317, %v1445
      %v1470 = vmul.f32 %v1318, %v1446
      %v1471 = vmul.f32 %v1319, %v1447
      %v1472 = vmul.f32 %v1320, %v1440
      %v1473 = vmul.f32 %v1321, %v1441
      %v1474 = vmul.f32 %v1322, %v1442
      %v1475 = vmul.f32 %v1323, %v1443
      %v1476 = vmul.f32 %v1324, %v1444
      %v1477 = vmul.f32 %v1325, %v1445
      %v1478 = vmul.f32 %v1326, %v1446
      %v1479 = vmul.f32 %v1327, %v1447
      %v1480 = vmul.f32 %v1328, %v1440
      %v1481 = vmul.f32 %v1329, %v1441
      %v1482 = vmul.f32 %v1330, %v1442
      %v1483 = vmul.f32 %v1331, %v1443
      %v1484 = vmul.f32 %v1332, %v1444
      %v1485 = vmul.f32 %v1333, %v1445
      %v1486 = vmul.f32 %v1334, %v1446
      %v1487 = vmul.f32 %v1335, %v1447
      %v1488 = vmul.f32 %v1336, %v1440
      %v1489 = vmul.f32 %v1337, %v1441
      %v1490 = vmul.f32 %v1338, %v1442
      %v1491 = vmul.f32 %v1339, %v1443
      %v1492 = vmul.f32 %v1340, %v1444
      %v1493 = vmul.f32 %v1341, %v1445
      %v1494 = vmul.f32 %v1342, %v1446
      %v1495 = vmul.f32 %v1343, %v1447
      %v1496 = vmul.f32 %v1344, %v1440
      %v1497 = vmul.f32 %v1345, %v1441
      %v1498 = vmul.f32 %v1346, %v1442
      %v1499 = vmul.f32 %v1347, %v1443
      %v1500 = vmul.f32 %v1348, %v1444
      %v1501 = vmul.f32 %v1349, %v1445
      %v1502 = vmul.f32 %v1350, %v1446
      %v1503 = vmul.f32 %v1351, %v1447
      %v1504 = vmul.f32 %v1352, %v1440
      %v1505 = vmul.f32 %v1353, %v1441
      %v1506 = vmul.f32 %v1354, %v1442
      %v1507 = vmul.f32 %v1355, %v1443
      %v1508 = vmul.f32 %v1356, %v1444
      %v1509 = vmul.f32 %v1357, %v1445
      %v1510 = vmul.f32 %v1358, %v1446
      %v1511 = vmul.f32 %v1359, %v1447
      %v1512 = vmul.f32 %v1360, %v1440
      %v1513 = vmul.f32 %v1361, %v1441
      %v1514 = vmul.f32 %v1362, %v1442
      %v1515 = vmul.f32 %v1363, %v1443
      %v1516 = vmul.f32 %v1364, %v1444
      %v1517 = vmul.f32 %v1365, %v1445
      %v1518 = vmul.f32 %v1366, %v1446
      %v1519 = vmul.f32 %v1367, %v1447
      %v1520 = vmul.f32 %v1368, %v1440
      %v1521 = vmul.f32 %v1369, %v1441
      %v1522 = vmul.f32 %v1370, %v1442
      %v1523 = vmul.f32 %v1371, %v1443
      %v1524 = vmul.f32 %v1372, %v1444
      %v1525 = vmul.f32 %v1373, %v1445
      %v1526 = vmul.f32 %v1374, %v1446
      %v1527 = vmul.f32 %v1375, %v1447
      %v1528 = vmul.f32 %v1376, %v1440
      %v1529 = vmul.f32 %v1377, %v1441
      %v1530 = vmul.f32 %v1378, %v1442
      %v1531 = vmul.f32 %v1379, %v1443
      %v1532 = vmul.f32 %v1380, %v1444
      %v1533 = vmul.f32 %v1381, %v1445
      %v1534 = vmul.f32 %v1382, %v1446
      %v1535 = vmul.f32 %v1383, %v1447
      %v1536 = vmul.f32 %v1384, %v1440
      %v1537 = vmul.f32 %v1385, %v1441
      %v1538 = vmul.f32 %v1386, %v1442
      %v1539 = vmul.f32 %v1387, %v1443
      %v1540 = vmul.f32 %v1388, %v1444
      %v1541 = vmul.f32 %v1389, %v1445
      %v1542 = vmul.f32 %v1390, %v1446
      %v1543 = vmul.f32 %v1391, %v1447
      %v1544 = vmul.f32 %v1392, %v1440
      %v1545 = vmul.f32 %v1393, %v1441
      %v1546 = vmul.f32 %v1394, %v1442
      %v1547 = vmul.f32 %v1395, %v1443
      %v1548 = vmul.f32 %v1396, %v1444
      %v1549 = vmul.f32 %v1397, %v1445
      %v1550 = vmul.f32 %v1398, %v1446
      %v1551 = vmul.f32 %v1399, %v1447
      %v1552 = vmul.f32 %v1400, %v1440
      %v1553 = vmul.f32 %v1401, %v1441
      %v1554 = vmul.f32 %v1402, %v1442
      %v1555 = vmul.f32 %v1403, %v1443
      %v1556 = vmul.f32 %v1404, %v1444
      %v1557 = vmul.f32 %v1405, %v1445
      %v1558 = vmul.f32 %v1406, %v1446
      %v1559 = vmul.f32 %v1407, %v1447
      %v1560 = vmul.f32 %v1408, %v1440
      %v1561 = vmul.f32 %v1409, %v1441
      %v1562 = vmul.f32 %v1410, %v1442
      %v1563 = vmul.f32 %v1411, %v1443
      %v1564 = vmul.f32 %v1412, %v1444
      %v1565 = vmul.f32 %v1413, %v1445
      %v1566 = vmul.f32 %v1414, %v1446
      %v1567 = vmul.f32 %v1415, %v1447
      %v1568 = vmul.f32 %v1416, %v1440
      %v1569 = vmul.f32 %v1417, %v1441
      %v1570 = vmul.f32 %v1418, %v1442
      %v1571 = vmul.f32 %v1419, %v1443
      %v1572 = vmul.f32 %v1420, %v1444
      %v1573 = vmul.f32 %v1421, %v1445
      %v1574 = vmul.f32 %v1422, %v1446
      %v1575 = vmul.f32 %v1423, %v1447
      %v1576 = vperm.slane %v480, 2
      %v1577 = vperm.slane %v480, 6
      %v1578 = vperm.slane %v481, 2
      %v1579 = vperm.slane %v481, 6
      %v1580 = vperm.slane %v482, 2
      %v1581 = vperm.slane %v482, 6
      %v1582 = vperm.slane %v483, 2
      %v1583 = vperm.slane %v483, 6
      %v1592 = vperm.slane %v1576, 2
      %v1593 = vperm.slane %v1577, 2
      %v1594 = vperm.slane %v1578, 2
      %v1595 = vperm.slane %v1579, 2
      %v1596 = vperm.slane %v1580, 2
      %v1597 = vperm.slane %v1581, 2
      %v1598 = vperm.slane %v1582, 2
      %v1599 = vperm.slane %v1583, 2
      %v1600 = vadd.f32 %v1448, %v1592
      %v1601 = vadd.f32 %v1449, %v1593
      %v1602 = vadd.f32 %v1450, %v1594
      %v1603 = vadd.f32 %v1451, %v1595
      %v1604 = vadd.f32 %v1452, %v1596
      %v1605 = vadd.f32 %v1453, %v1597
      %v1606 = vadd.f32 %v1454, %v1598
      %v1607 = vadd.f32 %v1455, %v1599
      %v1608 = vadd.f32 %v1456, %v1592
      %v1609 = vadd.f32 %v1457, %v1593
      %v1610 = vadd.f32 %v1458, %v1594
      %v1611 = vadd.f32 %v1459, %v1595
      %v1612 = vadd.f32 %v1460, %v1596
      %v1613 = vadd.f32 %v1461, %v1597
      %v1614 = vadd.f32 %v1462, %v1598
      %v1615 = vadd.f32 %v1463, %v1599
      %v1616 = vadd.f32 %v1464, %v1592
      %v1617 = vadd.f32 %v1465, %v1593
      %v1618 = vadd.f32 %v1466, %v1594
      %v1619 = vadd.f32 %v1467, %v1595
      %v1620 = vadd.f32 %v1468, %v1596
      %v1621 = vadd.f32 %v1469, %v1597
      %v1622 = vadd.f32 %v1470, %v1598
      %v1623 = vadd.f32 %v1471, %v1599
      %v1624 = vadd.f32 %v1472, %v1592
      %v1625 = vadd.f32 %v1473, %v1593
      %v1626 = vadd.f32 %v1474, %v1594
      %v1627 = vadd.f32 %v1475, %v1595
      %v1628 = vadd.f32 %v1476, %v1596
      %v1629 = vadd.f32 %v1477, %v1597
      %v1630 = vadd.f32 %v1478, %v1598
      %v1631 = vadd.f32 %v1479, %v1599
      %v1632 = vadd.f32 %v1480, %v1592
      %v1633 = vadd.f32 %v1481, %v1593
      %v1634 = vadd.f32 %v1482, %v1594
      %v1635 = vadd.f32 %v1483, %v1595
      %v1636 = vadd.f32 %v1484, %v1596
      %v1637 = vadd.f32 %v1485, %v1597
      %v1638 = vadd.f32 %v1486, %v1598
      %v1639 = vadd.f32 %v1487, %v1599
      %v1640 = vadd.f32 %v1488, %v1592
      %v1641 = vadd.f32 %v1489, %v1593
      %v1642 = vadd.f32 %v1490, %v1594
      %v1643 = vadd.f32 %v1491, %v1595
      %v1644 = vadd.f32 %v1492, %v1596
      %v1645 = vadd.f32 %v1493, %v1597
      %v1646 = vadd.f32 %v1494, %v1598
      %v1647 = vadd.f32 %v1495, %v1599
      %v1648 = vadd.f32 %v1496, %v1592
      %v1649 = vadd.f32 %v1497, %v1593
      %v1650 = vadd.f32 %v1498, %v1594
      %v1651 = vadd.f32 %v1499, %v1595
      %v1652 = vadd.f32 %v1500, %v1596
      %v1653 = vadd.f32 %v1501, %v1597
      %v1654 = vadd.f32 %v1502, %v1598
      %v1655 = vadd.f32 %v1503, %v1599
      %v1656 = vadd.f32 %v1504, %v1592
      %v1657 = vadd.f32 %v1505, %v1593
      %v1658 = vadd.f32 %v1506, %v1594
      %v1659 = vadd.f32 %v1507, %v1595
      %v1660 = vadd.f32 %v1508, %v1596
      %v1661 = vadd.f32 %v1509, %v1597
      %v1662 = vadd.f32 %v1510, %v1598
      %v1663 = vadd.f32 %v1511, %v1599
      %v1664 = vadd.f32 %v1512, %v1592
      %v1665 = vadd.f32 %v1513, %v1593
      %v1666 = vadd.f32 %v1514, %v1594
      %v1667 = vadd.f32 %v1515, %v1595
      %v1668 = vadd.f32 %v1516, %v1596
      %v1669 = vadd.f32 %v1517, %v1597
      %v1670 = vadd.f32 %v1518, %v1598
      %v1671 = vadd.f32 %v1519, %v1599
      %v1672 = vadd.f32 %v1520, %v1592
      %v1673 = vadd.f32 %v1521, %v1593
      %v1674 = vadd.f32 %v1522, %v1594
      %v1675 = vadd.f32 %v1523, %v1595
      %v1676 = vadd.f32 %v1524, %v1596
      %v1677 = vadd.f32 %v1525, %v1597
      %v1678 = vadd.f32 %v1526, %v1598
      %v1679 = vadd.f32 %v1527, %v1599
      %v1680 = vadd.f32 %v1528, %v1592
      %v1681 = vadd.f32 %v1529, %v1593
      %v1682 = vadd.f32 %v1530, %v1594
      %v1683 = vadd.f32 %v1531, %v1595
      %v1684 = vadd.f32 %v1532, %v1596
      %v1685 = vadd.f32 %v1533, %v1597
      %v1686 = vadd.f32 %v1534, %v1598
      %v1687 = vadd.f32 %v1535, %v1599
      %v1688 = vadd.f32 %v1536, %v1592
      %v1689 = vadd.f32 %v1537, %v1593
      %v1690 = vadd.f32 %v1538, %v1594
      %v1691 = vadd.f32 %v1539, %v1595
      %v1692 = vadd.f32 %v1540, %v1596
      %v1693 = vadd.f32 %v1541, %v1597
      %v1694 = vadd.f32 %v1542, %v1598
      %v1695 = vadd.f32 %v1543, %v1599
      %v1696 = vadd.f32 %v1544, %v1592
      %v1697 = vadd.f32 %v1545, %v1593
      %v1698 = vadd.f32 %v1546, %v1594
      %v1699 = vadd.f32 %v1547, %v1595
      %v1700 = vadd.f32 %v1548, %v1596
      %v1701 = vadd.f32 %v1549, %v1597
      %v1702 = vadd.f32 %v1550, %v1598
      %v1703 = vadd.f32 %v1551, %v1599
      %v1704 = vadd.f32 %v1552, %v1592
      %v1705 = vadd.f32 %v1553, %v1593
      %v1706 = vadd.f32 %v1554, %v1594
      %v1707 = vadd.f32 %v1555, %v1595
      %v1708 = vadd.f32 %v1556, %v1596
      %v1709 = vadd.f32 %v1557, %v1597
      %v1710 = vadd.f32 %v1558, %v1598
      %v1711 = vadd.f32 %v1559, %v1599
      %v1712 = vadd.f32 %v1560, %v1592
      %v1713 = vadd.f32 %v1561, %v1593
      %v1714 = vadd.f32 %v1562, %v1594
      %v1715 = vadd.f32 %v1563, %v1595
      %v1716 = vadd.f32 %v1564, %v1596
      %v1717 = vadd.f32 %v1565, %v1597
      %v1718 = vadd.f32 %v1566, %v1598
      %v1719 = vadd.f32 %v1567, %v1599
      %v1720 = vadd.f32 %v1568, %v1592
      %v1721 = vadd.f32 %v1569, %v1593
      %v1722 = vadd.f32 %v1570, %v1594
      %v1723 = vadd.f32 %v1571, %v1595
      %v1724 = vadd.f32 %v1572, %v1596
      %v1725 = vadd.f32 %v1573, %v1597
      %v1726 = vadd.f32 %v1574, %v1598
      %v1727 = vadd.f32 %v1575, %v1599
      %v1728 = vld [vmem:[#allocation2] sm:$0xff]
      %v1729 = vmax.f32 %v1600, %v1608
      %v1730 = vmax.f32 %v1729, %v1616
      %v1731 = vmax.f32 %v1730, %v1624
      %v1732 = vmax.f32 %v1731, %v1632
      %v1733 = vmax.f32 %v1732, %v1640
      %v1734 = vmax.f32 %v1733, %v1648
      %v1735 = vmax.f32 %v1734, %v1656
      %v1736 = vmax.f32 %v1735, %v1664
      %v1737 = vmax.f32 %v1736, %v1672
      %v1738 = vmax.f32 %v1737, %v1680
      %v1739 = vmax.f32 %v1738, %v1688
      %v1740 = vmax.f32 %v1739, %v1696
      %v1741 = vmax.f32 %v1740, %v1704
      %v1742 = vmax.f32 %v1741, %v1712
      %v1743 = vmax.f32 %v1742, %v1720
      %v1744 = vrot.slane %v1743, 4
      %v1745 = vmax.f32 %v1743, %v1744
      %v1746 = vrot.slane %v1745, 2
      %v1747 = vmax.f32 %v1745, %v1746
      %v1748 = vrot.slane %v1747, 1
      %v1749 = vmax.f32 %v1747, %v1748
      %v1750 = vmax.f32 %v1601, %v1609
      %v1751 = vmax.f32 %v1750, %v1617
      %v1752 = vmax.f32 %v1751, %v1625
      %v1753 = vmax.f32 %v1752, %v1633
      %v1754 = vmax.f32 %v1753, %v1641
      %v1755 = vmax.f32 %v1754, %v1649
      %v1756 = vmax.f32 %v1755, %v1657
      %v1757 = vmax.f32 %v1756, %v1665
      %v1758 = vmax.f32 %v1757, %v1673
      %v1759 = vmax.f32 %v1758, %v1681
      %v1760 = vmax.f32 %v1759, %v1689
      %v1761 = vmax.f32 %v1760, %v1697
      %v1762 = vmax.f32 %v1761, %v1705
      %v1763 = vmax.f32 %v1762, %v1713
      %v1764 = vmax.f32 %v1763, %v1721
      %v1765 = vrot.slane %v1764, 4
      %v1766 = vmax.f32 %v1764, %v1765
      %v1767 = vrot.slane %v1766, 2
      %v1768 = vmax.f32 %v1766, %v1767
      %v1769 = vrot.slane %v1768, 1
      %v1770 = vmax.f32 %v1768, %v1769
      %v1771 = vmax.f32 %v1602, %v1610
      %v1772 = vmax.f32 %v1771, %v1618
      %v1773 = vmax.f32 %v1772, %v1626
      %v1774 = vmax.f32 %v1773, %v1634
      %v1775 = vmax.f32 %v1774, %v1642
      %v1776 = vmax.f32 %v1775, %v1650
      %v1777 = vmax.f32 %v1776, %v1658
      %v1778 = vmax.f32 %v1777, %v1666
      %v1779 = vmax.f32 %v1778, %v1674
      %v1780 = vmax.f32 %v1779, %v1682
      %v1781 = vmax.f32 %v1780, %v1690
      %v1782 = vmax.f32 %v1781, %v1698
      %v1783 = vmax.f32 %v1782, %v1706
      %v1784 = vmax.f32 %v1783, %v1714
      %v1785 = vmax.f32 %v1784, %v1722
      %v1786 = vrot.slane %v1785, 4
      %v1787 = vmax.f32 %v1785, %v1786
      %v1788 = vrot.slane %v1787, 2
      %v1789 = vmax.f32 %v1787, %v1788
      %v1790 = vrot.slane %v1789, 1
      %v1791 = vmax.f32 %v1789, %v1790
      %v1792 = vmax.f32 %v1603, %v1611
      %v1793 = vmax.f32 %v1792, %v1619
      %v1794 = vmax.f32 %v1793, %v1627
      %v1795 = vmax.f32 %v1794, %v1635
      %v1796 = vmax.f32 %v1795, %v1643
      %v1797 = vmax.f32 %v1796, %v1651
      %v1798 = vmax.f32 %v1797, %v1659
      %v1799 = vmax.f32 %v1798, %v1667
      %v1800 = vmax.f32 %v1799, %v1675
      %v1801 = vmax.f32 %v1800, %v1683
      %v1802 = vmax.f32 %v1801, %v1691
      %v1803 = vmax.f32 %v1802, %v1699
      %v1804 = vmax.f32 %v1803, %v1707
      %v1805 = vmax.f32 %v1804, %v1715
      %v1806 = vmax.f32 %v1805, %v1723
      %v1807 = vrot.slane %v1806, 4
      %v1808 = vmax.f32 %v1806, %v1807
      %v1809 = vrot.slane %v1808, 2
      %v1810 = vmax.f32 %v1808, %v1809
      %v1811 = vrot.slane %v1810, 1
      %v1812 = vmax.f32 %v1810, %v1811
      %v1813 = vmax.f32 %v1604, %v1612
      %v1814 = vmax.f32 %v1813, %v1620
      %v1815 = vmax.f32 %v1814, %v1628
      %v1816 = vmax.f32 %v1815, %v1636
      %v1817 = vmax.f32 %v1816, %v1644
      %v1818 = vmax.f32 %v1817, %v1652
      %v1819 = vmax.f32 %v1818, %v1660
      %v1820 = vmax.f32 %v1819, %v1668
      %v1821 = vmax.f32 %v1820, %v1676
      %v1822 = vmax.f32 %v1821, %v1684
      %v1823 = vmax.f32 %v1822, %v1692
      %v1824 = vmax.f32 %v1823, %v1700
      %v1825 = vmax.f32 %v1824, %v1708
      %v1826 = vmax.f32 %v1825, %v1716
      %v1827 = vmax.f32 %v1826, %v1724
      %v1828 = vrot.slane %v1827, 4
      %v1829 = vmax.f32 %v1827, %v1828
      %v1830 = vrot.slane %v1829, 2
      %v1831 = vmax.f32 %v1829, %v1830
      %v1832 = vrot.slane %v1831, 1
      %v1833 = vmax.f32 %v1831, %v1832
      %v1834 = vmax.f32 %v1605, %v1613
      %v1835 = vmax.f32 %v1834, %v1621
      %v1836 = vmax.f32 %v1835, %v1629
      %v1837 = vmax.f32 %v1836, %v1637
      %v1838 = vmax.f32 %v1837, %v1645
      %v1839 = vmax.f32 %v1838, %v1653
      %v1840 = vmax.f32 %v1839, %v1661
      %v1841 = vmax.f32 %v1840, %v1669
      %v1842 = vmax.f32 %v1841, %v1677
      %v1843 = vmax.f32 %v1842, %v1685
      %v1844 = vmax.f32 %v1843, %v1693
      %v1845 = vmax.f32 %v1844, %v1701
      %v1846 = vmax.f32 %v1845, %v1709
      %v1847 = vmax.f32 %v1846, %v1717
      %v1848 = vmax.f32 %v1847, %v1725
      %v1849 = vrot.slane %v1848, 4
      %v1850 = vmax.f32 %v1848, %v1849
      %v1851 = vrot.slane %v1850, 2
      %v1852 = vmax.f32 %v1850, %v1851
      %v1853 = vrot.slane %v1852, 1
      %v1854 = vmax.f32 %v1852, %v1853
      %v1855 = vmax.f32 %v1606, %v1614
      %v1856 = vmax.f32 %v1855, %v1622
      %v1857 = vmax.f32 %v1856, %v1630
      %v1858 = vmax.f32 %v1857, %v1638
      %v1859 = vmax.f32 %v1858, %v1646
      %v1860 = vmax.f32 %v1859, %v1654
      %v1861 = vmax.f32 %v1860, %v1662
      %v1862 = vmax.f32 %v1861, %v1670
      %v1863 = vmax.f32 %v1862, %v1678
      %v1864 = vmax.f32 %v1863, %v1686
      %v1865 = vmax.f32 %v1864, %v1694
      %v1866 = vmax.f32 %v1865, %v1702
      %v1867 = vmax.f32 %v1866, %v1710
      %v1868 = vmax.f32 %v1867, %v1718
      %v1869 = vmax.f32 %v1868, %v1726
      %v1870 = vrot.slane %v1869, 4
      %v1871 = vmax.f32 %v1869, %v1870
      %v1872 = vrot.slane %v1871, 2
      %v1873 = vmax.f32 %v1871, %v1872
      %v1874 = vrot.slane %v1873, 1
      %v1875 = vmax.f32 %v1873, %v1874
      %v1876 = vmax.f32 %v1607, %v1615
      %v1877 = vmax.f32 %v1876, %v1623
      %v1878 = vmax.f32 %v1877, %v1631
      %v1879 = vmax.f32 %v1878, %v1639
      %v1880 = vmax.f32 %v1879, %v1647
      %v1881 = vmax.f32 %v1880, %v1655
      %v1882 = vmax.f32 %v1881, %v1663
      %v1883 = vmax.f32 %v1882, %v1671
      %v1884 = vmax.f32 %v1883, %v1679
      %v1885 = vmax.f32 %v1884, %v1687
      %v1886 = vmax.f32 %v1885, %v1695
      %v1887 = vmax.f32 %v1886, %v1703
      %v1888 = vmax.f32 %v1887, %v1711
      %v1889 = vmax.f32 %v1888, %v1719
      %v1890 = vmax.f32 %v1889, %v1727
      %v1891 = vrot.slane %v1890, 4
      %v1892 = vmax.f32 %v1890, %v1891
      %v1893 = vrot.slane %v1892, 2
      %v1894 = vmax.f32 %v1892, %v1893
      %v1895 = vrot.slane %v1894, 1
      %v1896 = vmax.f32 %v1894, %v1895
      %v1905 = vrot.slane %v1770, 7
      %v1906 = vrot.slane %v1791, 6
      %v1907 = vrot.slane %v1812, 5
      %v1908 = vrot.slane %v1833, 4
      %v1909 = vrot.slane %v1854, 3
      %v1910 = vrot.slane %v1875, 2
      %v1911 = vrot.slane %v1896, 1
      %vm1912 = vcmask 1040384
      %v1913 = vsel %vm1912, %v1749, %v1905
      %vm1914 = vcmask 1042434
      %v1915 = vsel %vm1914, %v1906, %v1907
      %vm1916 = vcmask 1041408
      %v1917 = vsel %vm1916, %v1913, %v1915
      %vm1918 = vcmask 1044484
      %v1919 = vsel %vm1918, %v1908, %v1909
      %vm1920 = vcmask 1046534
      %v1921 = vsel %vm1920, %v1910, %v1911
      %vm1922 = vcmask 1045508
      %v1923 = vsel %vm1922, %v1919, %v1921
      %vm1924 = vcmask 1043456
      %v1925 = vsel %vm1924, %v1917, %v1923
      %v1927 = vmax.f32 %v1728, %v1925
      %1928 = vst [vmem:[#allocation2] sm:$0xff] %v1927
      // Predicated region
      $region49: #{fe_forward.15} parent=43 // pred_check
        %p1929 = pneg %p278
      $region50: #{fe_forward.15} parent=43 // pred_check_branch
        %1931 = sbr.rel (%p1929) target = $region52
      $region51: #{fe_forward.15} parent=43 // pred_region
        %v1932 = vld [vmem:[%s5] sm:$0xff]
        %v1933 = vld [vmem:[%s5 + $0x8] sm:$0xff]
        %v1934 = vld [vmem:[#allocation2] sm:$0xff]
        %v1937 = vrot.slane %v1932, 1
        %v1938 = vrot.slane %v1932, 2
        %v1939 = vrot.slane %v1932, 3
        %v1940 = vrot.slane %v1933, 4
        %v1941 = vrot.slane %v1933, 5
        %v1942 = vrot.slane %v1933, 6
        %v1943 = vrot.slane %v1933, 7
        %v1944 = vsel %vm1912, %v1932, %v1937
        %v1945 = vsel %vm1914, %v1938, %v1939
        %v1946 = vsel %vm1916, %v1944, %v1945
        %v1947 = vsel %vm1918, %v1940, %v1941
        %v1948 = vsel %vm1920, %v1942, %v1943
        %v1949 = vsel %vm1922, %v1947, %v1948
        %v1950 = vsel %vm1924, %v1946, %v1949
        %v1952 = vmul.f32 %v1934, %v1950
        %1953 = vst [vmem:[#allocation1] sm:$0xff] %v1932
        %1954 = vst [vmem:[#allocation1 + $0x8] sm:$0xff] %v1933
        %s1955 = scalar_lea.vmem [#allocation1], 1
        %v1956 = vld [vmem:[%s1955] ss:$2 sm:$0xff]
        %v1958 = vadd.f32 %v1952, %v1956
        %1959 = vst [vmem:[%s277] sm:$0xff] %v1958
      $region52: #{fe_forward.15} parent=43 // pred_fallthru
        _
      %p1960 = scmp.lt.s32.totalorder %s21, 1
      %s1961 = scalar_select %p1960, %s21, 1
      %s1962 = smul.addr %s1961, 8
      %s1963 = scalar_lea.vmem %s6, %s1962
      // Predicated region
      $region53: #{fe_forward.15} parent=43 // pred_check
        %p1964 = pneg %p180
      $region54: #{fe_forward.15} parent=43 // pred_check_branch
        %1966 = sbr.rel (%p1964) target = $region56
      $region55: #{fe_forward.15} parent=43 // pred_region
        _
      $region56: #{fe_forward.15} parent=43 // pred_fallthru
        _
    $region44: #{fe_forward.15} parent=5 // pred_fallthru
      _
    %p1967 = scmp.le.s32.totalorder 2, %s12
    // Predicated region
    $region57: #{fe_forward.15} parent=5 // pred_check
      %p1968 = pneg %p1967
    $region58: #{fe_forward.15} parent=5 // pred_check_branch
      %1970 = sbr.rel (%p1968) target = $region60
    $region59: #{fe_forward.15} parent=5 // pred_region
      %s1971 = ssub.s32 %s12, 2
      // Predicated region
      $region61: #{fe_forward.15} parent=59 // pred_check
        %p1972 = pneg %p186
      $region62: #{fe_forward.15} parent=59 // pred_check_branch
        %1974 = sbr.rel (%p1972) target = $region64
      $region63: #{fe_forward.15} parent=59 // pred_region
        %p1975 = scmp.lt.s32.totalorder %s23, 1
        %s1976 = scalar_select %p1975, %s23, 1
        %s1977 = smul.addr %s1976, 8
        %s1978 = scalar_lea.vmem %s6, %s1977
      $region64: #{fe_forward.15} parent=59 // pred_fallthru
        _
    $region60: #{fe_forward.15} parent=5 // pred_fallthru
      _
  $region6: #{fe_forward.15} parent=0 // loop_footer
    %s16 = sadd.s32 1, %s12
  $region7: #{fe_forward.15} parent=0 // loop_footer_branch
    %11 = sbr.rel target = $region3
  $region8: #{fe_forward.15} parent=0 // loop_exit
    _

</llo_original>
